<compile_context>
chip_gen: v5e
topology: v5e:2x2
jax: 0.10.0
libtpu: 0.0.40
codegen_flags: <defaults>
</compile_context>

<pallas_src>
import functools
import math

import jax
import jax.numpy as jnp
from jax import lax
from jax.experimental import pallas as pl
from jax.experimental.pallas import tpu as pltpu


# ----------------------------------------------------------------------------
# Kernel 1: fused  normalize -> backbone 3x3 conv -> RPN 3x3 conv -> heads
#   One grid step per image.  Feature maps are kept as (H*W, C) 2-D tiles
#   (rows = flattened pixels, lanes = channels).  The 3x3 taps become plain
#   static row-slices of a zero-padded VMEM scratch (vertical padding is real
#   zeros in the scratch; horizontal wrap-around rows are masked out), so the
#   whole conv is 9 MXU matmuls of shape (H*W, C) x (C, C_out) per layer.
# ----------------------------------------------------------------------------
def _fused_backbone_rpn_kernel(img_ref, nscale_ref, nshift_ref,
                               wb_ref, bb_ref, wr_ref, br_ref,
                               wh_ref, bh_ref,
                               out_ref,
                               imgpad_ref, featpad_ref,
                               *, H, W, P):
    HW = H * W

    # pixel normalization fused into the conv kernel: (x/255 - mean)/std
    x = img_ref[0] * nscale_ref[...] + nshift_ref[...]          # (HW, C_in) f32

    # stage the normalized image into a zero-padded flattened-rows scratch
    imgpad_ref[...] = jnp.zeros_like(imgpad_ref)
    imgpad_ref[P:P + HW, :] = x.astype(imgpad_ref.dtype)

    # per-pixel column index (for masking horizontal wrap-around rows)
    w_idx = lax.broadcasted_iota(jnp.int32, (HW, 1), 0) % W

    def conv3x3(src_ref, wtap_ref):
        c_out = wtap_ref.shape[-1]
        acc = jnp.zeros((HW, c_out), jnp.float32)
        t = 0
        for oy in (-1, 0, 1):
            for ox in (-1, 0, 1):
                start = P + oy * W + ox
                patch = src_ref[start:start + HW, :]            # (HW, C_src) bf16
                if ox != 0:
                    ok = (w_idx + ox >= 0) & (w_idx + ox < W)
                    patch = jnp.where(ok, patch, jnp.zeros_like(patch))
                acc = acc + jnp.dot(patch, wtap_ref[t],
                                    preferred_element_type=jnp.float32)
                t += 1
        return acc

    # backbone 3x3 conv + ReLU (features never leave VMEM)
    feat = jnp.maximum(conv3x3(imgpad_ref, wb_ref) + bb_ref[...], 0.0)

    featpad_ref[...] = jnp.zeros_like(featpad_ref)
    featpad_ref[P:P + HW, :] = feat.astype(featpad_ref.dtype)

    # RPN 3x3 conv + ReLU
    t_act = jnp.maximum(conv3x3(featpad_ref, wr_ref) + br_ref[...], 0.0)

    # both 1x1 heads as one lane-dense (C_feat, 128) matmul
    heads = jnp.dot(t_act.astype(jnp.bfloat16), wh_ref[...],
                    preferred_element_type=jnp.float32) + bh_ref[...]
    out_ref[0] = heads                                           # (HW, 128) f32


def fused_backbone_rpn(images_flat, nscale, nshift, wb, bb, wr, br, wh, bh,
                       *, H, W):
    # images_flat: (B, H*W, C_in) raw pixels (f32); weights bf16; biases f32
    B, HW, C_in = images_flat.shape
    C_feat = wb.shape[-1]
    P = ((W + 1 + 7) // 8) * 8        # flattened-row halo, 8-aligned stores

    kernel = functools.partial(_fused_backbone_rpn_kernel, H=H, W=W, P=P)
    return pl.pallas_call(
        kernel,
        out_shape=jax.ShapeDtypeStruct((B, HW, 128), jnp.float32),
        grid=(B,),
        in_specs=[
            pl.BlockSpec((1, HW, C_in), lambda b: (b, 0, 0)),
            pl.BlockSpec((1, C_in), lambda b: (0, 0)),
            pl.BlockSpec((1, C_in), lambda b: (0, 0)),
            pl.BlockSpec((9, C_in, C_feat), lambda b: (0, 0, 0)),
            pl.BlockSpec((1, C_feat), lambda b: (0, 0)),
            pl.BlockSpec((9, C_feat, C_feat), lambda b: (0, 0, 0)),
            pl.BlockSpec((1, C_feat), lambda b: (0, 0)),
            pl.BlockSpec((C_feat, 128), lambda b: (0, 0)),
            pl.BlockSpec((1, 128), lambda b: (0, 0)),
        ],
        out_specs=pl.BlockSpec((1, HW, 128), lambda b: (b, 0, 0)),
        scratch_shapes=[
            pltpu.VMEM((HW + 2 * P, C_in), jnp.bfloat16),
            pltpu.VMEM((HW + 2 * P, C_feat), jnp.bfloat16),
        ],
        compiler_params=pltpu.CompilerParams(
            dimension_semantics=("parallel",),
            vmem_limit_bytes=32 * 1024 * 1024,
        ),
    )(images_flat, nscale, nshift, wb, bb, wr, br, wh, bh)


# ----------------------------------------------------------------------------
# Kernel 2: anchor delta decode (Box2BoxTransform.apply_deltas) + Boxes.clip
#   Layout (4, M): lanes = boxes (lane-dense), rows = coordinates.
#   Grid over (batch, M-tiles); the anchor tensor is a single (4, HWA) array
#   whose BlockSpec ignores the batch index (reused for every image).
# ----------------------------------------------------------------------------
_SCALE_CLAMP = math.log(1000.0 / 16.0)   # detectron2 default scale_clamp


def _decode_clip_kernel(anchors_ref, deltas_ref, o_ref, *,
                        img_h, img_w, bbox_weights):
    wx, wy, ww, wh = bbox_weights
    a = anchors_ref[...]          # (4, T)
    d = deltas_ref[0]             # (4, T)
    x1, y1, x2, y2 = a[0:1, :], a[1:2, :], a[2:3, :], a[3:4, :]
    dx = d[0:1, :] / wx
    dy = d[1:2, :] / wy
    dw = jnp.minimum(d[2:3, :] / ww, _SCALE_CLAMP)
    dh = jnp.minimum(d[3:4, :] / wh, _SCALE_CLAMP)
    w = x2 - x1
    h = y2 - y1
    cx = x1 + 0.5 * w
    cy = y1 + 0.5 * h
    pcx = dx * w + cx
    pcy = dy * h + cy
    pw = jnp.exp(dw) * w
    ph = jnp.exp(dh) * h
    # fused Boxes.clip: x in [0, W], y in [0, H]
    o_ref[0, 0:1, :] = jnp.clip(pcx - 0.5 * pw, 0.0, img_w)
    o_ref[0, 1:2, :] = jnp.clip(pcy - 0.5 * ph, 0.0, img_h)
    o_ref[0, 2:3, :] = jnp.clip(pcx + 0.5 * pw, 0.0, img_w)
    o_ref[0, 3:4, :] = jnp.clip(pcy + 0.5 * ph, 0.0, img_h)


def decode_and_clip_boxes(anchors_t, deltas_t, *, img_h, img_w,
                          bbox_weights=(1.0, 1.0, 1.0, 1.0), max_tile=2048):
    # anchors_t: (4, M) shared across batch ; deltas_t: (B, 4, M)
    B, _, M = deltas_t.shape
    Mp = ((M + 127) // 128) * 128
    if Mp != M:
        anchors_t = jnp.pad(anchors_t, ((0, 0), (0, Mp - M)))
        deltas_t = jnp.pad(deltas_t, ((0, 0), (0, 0), (0, Mp - M)))
    # largest lane-dense tile (multiple of 128) that divides Mp
    tile = Mp
    for cand in range(min(Mp, max_tile), 127, -128):
        if Mp % cand == 0:
            tile = cand
            break

    kernel = functools.partial(_decode_clip_kernel, img_h=float(img_h),
                               img_w=float(img_w), bbox_weights=bbox_weights)
    out = pl.pallas_call(
        kernel,
        out_shape=jax.ShapeDtypeStruct((B, 4, Mp), jnp.float32),
        grid=(B, Mp // tile),
        in_specs=[
            pl.BlockSpec((4, tile), lambda b, m: (0, m)),       # anchors reused per batch
            pl.BlockSpec((1, 4, tile), lambda b, m: (b, 0, m)),
        ],
        out_specs=pl.BlockSpec((1, 4, tile), lambda b, m: (b, 0, m)),
        compiler_params=pltpu.CompilerParams(
            dimension_semantics=("parallel", "parallel"),
            vmem_limit_bytes=32 * 1024 * 1024,
        ),
    )(anchors_t, deltas_t)
    return out[:, :, :M]


# ----------------------------------------------------------------------------
# Parameters / anchors
# ----------------------------------------------------------------------------
def make_params(key, c_in=3, c_feat=32, num_anchors=3):
    ks = jax.random.split(key, 4)
    return {
        "backbone_w": jax.random.normal(ks[0], (c_feat, c_in, 3, 3), jnp.float32) * 0.05,
        "backbone_b": jnp.zeros((c_feat,), jnp.float32),
        "rpn_conv_w": jax.random.normal(ks[1], (c_feat, c_feat, 3, 3), jnp.float32) * 0.05,
        "rpn_conv_b": jnp.zeros((c_feat,), jnp.float32),
        "rpn_obj_w": jax.random.normal(ks[2], (num_anchors, c_feat, 1, 1), jnp.float32) * 0.05,
        "rpn_obj_b": jnp.zeros((num_anchors,), jnp.float32),
        "rpn_box_w": jax.random.normal(ks[3], (4 * num_anchors, c_feat, 1, 1), jnp.float32) * 0.05,
        "rpn_box_b": jnp.zeros((4 * num_anchors,), jnp.float32),
        # pixel stats: sum(mean) < 3.0  ->  div_pixel = True (RGB branch)
        "pixel_mean": jnp.array([0.485, 0.456, 0.406], jnp.float32),
        "pixel_std": jnp.array([0.229, 0.224, 0.225], jnp.float32),
    }


def generate_anchors(H, W, sizes=(8.0, 16.0, 32.0)):
    # single (HWA, 4) anchor set — NOT broadcast over batch
    ys = jnp.arange(H, dtype=jnp.float32) + 0.5
    xs = jnp.arange(W, dtype=jnp.float32) + 0.5
    cx, cy = jnp.meshgrid(xs, ys)                              # each (H, W)
    per_size = []
    for s in sizes:
        per_size.append(jnp.stack(
            [cx - s / 2.0, cy - s / 2.0, cx + s / 2.0, cy + s / 2.0], axis=-1))
    anc = jnp.stack(per_size, axis=2)                          # (H, W, A, 4)
    return anc.reshape(H * W * len(sizes), 4)


# ----------------------------------------------------------------------------
# ProposalNetwork forward
# ----------------------------------------------------------------------------
@functools.partial(jax.jit, static_argnames=("topk",))
def proposal_network_forward(params, images_nchw, topk=64):
    # images_nchw: (B, C, H, W) float32  (PyTorch convention)
    B, C, H, W = images_nchw.shape
    A = params["rpn_obj_w"].shape[0]
    Cf = params["backbone_w"].shape[0]

    # layout: NCHW -> flattened channels-last (B, H*W, C) raw pixels
    x = jnp.transpose(images_nchw, (0, 2, 3, 1)).reshape(B, H * W, C)

    # normalization constants: (x/255 - mean)/std == x*scale + shift,
    # applied inside the fused kernel (no separate HBM pass / kernel)
    mean = params["pixel_mean"]
    std = params["pixel_std"]
    nscale = (1.0 / (255.0 * std)).reshape(1, C)
    nshift = (-mean / std).reshape(1, C)

    # conv weights reorganized once to (tap, C_in, C_out); bf16 MXU operands
    wb = jnp.transpose(params["backbone_w"], (2, 3, 1, 0)).reshape(9, C, Cf)
    wb = wb.astype(jnp.bfloat16)
    bb = params["backbone_b"].reshape(1, Cf)
    wr = jnp.transpose(params["rpn_conv_w"], (2, 3, 1, 0)).reshape(9, Cf, Cf)
    wr = wr.astype(jnp.bfloat16)
    br = params["rpn_conv_b"].reshape(1, Cf)

    # both 1x1 heads concatenated into one lane-dense (Cf, 128) slab:
    # columns [0:A] = objectness logits, [A:5A] = anchor deltas, rest = pad
    w_obj = params["rpn_obj_w"].reshape(A, Cf).T               # (Cf, A)
    w_box = params["rpn_box_w"].reshape(4 * A, Cf).T           # (Cf, 4A)
    wh = jnp.zeros((Cf, 128), jnp.float32)
    wh = wh.at[:, :A].set(w_obj).at[:, A:5 * A].set(w_box).astype(jnp.bfloat16)
    bh = jnp.zeros((128,), jnp.float32)
    bh = bh.at[:A].set(params["rpn_obj_b"]).at[A:5 * A].set(params["rpn_box_b"])
    bh = bh.reshape(1, 128)

    # fused backbone + RPN + heads (single Pallas kernel, one step per image)
    slab = fused_backbone_rpn(x, nscale, nshift, wb, bb, wr, br, wh, bh,
                              H=H, W=W)                        # (B, H*W, 128)

    obj_logits = slab[:, :, :A].reshape(B, H * W * A)
    deltas = slab[:, :, A:5 * A].reshape(B, H * W, A, 4).reshape(B, H * W * A, 4)
    deltas_t = jnp.transpose(deltas, (0, 2, 1))                # (B, 4, HWA)

    anchors_t = generate_anchors(H, W).T                       # (4, HWA)
    boxes_t = decode_and_clip_boxes(anchors_t, deltas_t, img_h=H, img_w=W)
    boxes = jnp.transpose(boxes_t, (0, 2, 1))                  # (B, HWA, 4)

    # proposal selection: top-k by objectness (glue)
    # TODO(synk): batched NMS / detector_postprocess rescaling not implemented.
    top_scores, top_idx = jax.lax.top_k(obj_logits, topk)                  # (B, k)
    top_boxes = jnp.take_along_axis(boxes, top_idx[..., None], axis=1)     # (B, k, 4)
    return {"proposal_boxes": top_boxes, "objectness_logits": top_scores}


if __name__ == "__main__":
    key = jax.random.PRNGKey(0)
    k_img, k_par = jax.random.split(key)

    B, C, H, W = 2, 3, 16, 16
    # synthetic uint8-like RGB images in [0, 255), NCHW as the PyTorch module expects
    images = jax.random.uniform(k_img, (B, C, H, W), jnp.float32, 0.0, 255.0)

    params = make_params(k_par, c_in=C, c_feat=32, num_anchors=3)

    out = proposal_network_forward(params, images, topk=64)
    out = jax.block_until_ready(out)

    assert out["proposal_boxes"].shape == (B, 64, 4)
    assert out["objectness_logits"].shape == (B, 64)
    assert jnp.all(jnp.isfinite(out["proposal_boxes"]))
    assert jnp.all(jnp.isfinite(out["objectness_logits"]))
    print("KERNEL_OK")
</pallas_src>

<mosaic_0001>
module attributes {stable_mosaic.version = 11 : i64} {
  func.func @_fused_backbone_rpn_kernel(%arg0: i32, %arg1: memref<1x256x3xf32, #tpu.memory_space<vmem>>, %arg2: memref<1x3xf32, #tpu.memory_space<vmem>>, %arg3: memref<1x3xf32, #tpu.memory_space<vmem>>, %arg4: memref<9x3x32xbf16, #tpu.memory_space<vmem>>, %arg5: memref<1x32xf32, #tpu.memory_space<vmem>>, %arg6: memref<9x32x32xbf16, #tpu.memory_space<vmem>>, %arg7: memref<1x32xf32, #tpu.memory_space<vmem>>, %arg8: memref<32x128xbf16, #tpu.memory_space<vmem>>, %arg9: memref<1x128xf32, #tpu.memory_space<vmem>>, %arg10: memref<1x256x128xf32, #tpu.memory_space<vmem>>, %arg11: memref<304x3xbf16, #tpu.memory_space<vmem>>, %arg12: memref<304x32xbf16, #tpu.memory_space<vmem>>) attributes {dimension_semantics = [#tpu.dimension_semantics<parallel>], iteration_bounds = array<i64: 2>, scalar_prefetch = 0 : i64, scratch_operands = 2 : i64, tpu.core_type = #tpu.core_type<tc>, window_params = [{transform_indices = @transform_0, window_bounds = array<i64: 1, 256, 3>}, {pipeline_mode = #tpu.pipeline_mode<synchronous>, transform_indices = @transform_1, window_bounds = array<i64: 1, 3>}, {pipeline_mode = #tpu.pipeline_mode<synchronous>, transform_indices = @transform_2, window_bounds = array<i64: 1, 3>}, {pipeline_mode = #tpu.pipeline_mode<synchronous>, transform_indices = @transform_3, window_bounds = array<i64: 9, 3, 32>}, {pipeline_mode = #tpu.pipeline_mode<synchronous>, transform_indices = @transform_4, window_bounds = array<i64: 1, 32>}, {pipeline_mode = #tpu.pipeline_mode<synchronous>, transform_indices = @transform_5, window_bounds = array<i64: 9, 32, 32>}, {pipeline_mode = #tpu.pipeline_mode<synchronous>, transform_indices = @transform_6, window_bounds = array<i64: 1, 32>}, {pipeline_mode = #tpu.pipeline_mode<synchronous>, transform_indices = @transform_7, window_bounds = array<i64: 32, 128>}, {pipeline_mode = #tpu.pipeline_mode<synchronous>, transform_indices = @transform_8, window_bounds = array<i64: 1, 128>}, {transform_indices = @transform_9, window_bounds = array<i64: 1, 256, 128>}]} {
    %c0 = arith.constant 0 : index
    %c0_0 = arith.constant 0 : index
    %c0_1 = arith.constant 0 : index
    %0 = vector.load %arg1[%c0, %c0_0, %c0_1] : memref<1x256x3xf32, #tpu.memory_space<vmem>>, vector<1x256x3xf32>
    %1 = vector.shape_cast %0 : vector<1x256x3xf32> to vector<256x3xf32>
    %c0_2 = arith.constant 0 : index
    %c0_3 = arith.constant 0 : index
    %2 = vector.load %arg2[%c0_2, %c0_3] : memref<1x3xf32, #tpu.memory_space<vmem>>, vector<1x3xf32>
    %3 = vector.broadcast %2 : vector<1x3xf32> to vector<256x3xf32>
    %4 = arith.mulf %1, %3 : vector<256x3xf32>
    %c0_4 = arith.constant 0 : index
    %c0_5 = arith.constant 0 : index
    %5 = vector.load %arg3[%c0_4, %c0_5] : memref<1x3xf32, #tpu.memory_space<vmem>>, vector<1x3xf32>
    %6 = vector.broadcast %5 : vector<1x3xf32> to vector<256x3xf32>
    %7 = arith.addf %4, %6 : vector<256x3xf32>
    %cst = arith.constant 0.000000e+00 : bf16
    %8 = vector.broadcast %cst : bf16 to vector<304x3xbf16>
    %c0_6 = arith.constant 0 : index
    %c0_7 = arith.constant 0 : index
    %9 = vector.load %arg11[%c0_6, %c0_7] : memref<304x3xbf16, #tpu.memory_space<vmem>>, vector<304x3xbf16>
    tpu.vector_store %arg11[%c0_6, %c0_7], %8 {strides = array<i32>} : memref<304x3xbf16, #tpu.memory_space<vmem>>, vector<304x3xbf16>,
    %10 = arith.truncf %7 : vector<256x3xf32> to vector<256x3xbf16>
    %c24 = arith.constant 24 : index
    %c0_8 = arith.constant 0 : index
    %11 = vector.load %arg11[%c24, %c0_8] : memref<304x3xbf16, #tpu.memory_space<vmem>>, vector<256x3xbf16>
    tpu.vector_store %arg11[%c24, %c0_8], %10 {strides = array<i32>} : memref<304x3xbf16, #tpu.memory_space<vmem>>, vector<256x3xbf16>,
    %12 = tpu.iota {dimensions = array<i32: 0>} : vector<256x1xi32>
    %c16_i32 = arith.constant 16 : i32
    %c0_i32 = arith.constant 0 : i32
    %13 = arith.cmpi eq, %c16_i32, %c0_i32 : i32
    %c1_i32 = arith.constant 1 : i32
    %14 = arith.select %13, %c1_i32, %c16_i32 : i32
    %15 = vector.broadcast %14 : i32 to vector<256x1xi32>
    %16 = arith.remsi %12, %15 : vector<256x1xi32>
    %c0_i32_9 = arith.constant 0 : i32
    %17 = vector.broadcast %c0_i32_9 : i32 to vector<256x1xi32>
    %18 = arith.cmpi ne, %16, %17 : vector<256x1xi32>
    %c0_i32_10 = arith.constant 0 : i32
    %19 = vector.broadcast %c0_i32_10 : i32 to vector<256x1xi32>
    %20 = arith.cmpi slt, %16, %19 : vector<256x1xi32>
    %c0_i32_11 = arith.constant 0 : i32
    %21 = arith.cmpi slt, %14, %c0_i32_11 : i32
    %22 = vector.broadcast %21 : i1 to vector<256x1xi1>
    %23 = vector.broadcast %22 : vector<256x1xi1> to vector<256x1xi1>
    %24 = arith.xori %20, %23 : vector<256x1xi1>
    %25 = arith.andi %24, %18 : vector<256x1xi1>
    %26 = vector.broadcast %14 : i32 to vector<256x1xi32>
    %27 = arith.addi %16, %26 : vector<256x1xi32>
    %28 = arith.select %25, %27, %16 : vector<256x1xi1>, vector<256x1xi32>
    %cst_12 = arith.constant 0.000000e+00 : f32
    %29 = vector.broadcast %cst_12 : f32 to vector<256x32xf32>
    %c7 = arith.constant 7 : index
    %c0_13 = arith.constant 0 : index
    %30 = vector.load %arg11[%c7, %c0_13] : memref<304x3xbf16, #tpu.memory_space<vmem>>, vector<256x3xbf16>
    %c-1_i32 = arith.constant -1 : i32
    %31 = vector.broadcast %c-1_i32 : i32 to vector<256x1xi32>
    %32 = arith.addi %28, %31 : vector<256x1xi32>
    %c0_i32_14 = arith.constant 0 : i32
    %33 = vector.broadcast %c0_i32_14 : i32 to vector<256x1xi32>
    %34 = arith.cmpi sge, %32, %33 : vector<256x1xi32>
    %c-1_i32_15 = arith.constant -1 : i32
    %35 = vector.broadcast %c-1_i32_15 : i32 to vector<256x1xi32>
    %36 = arith.addi %28, %35 : vector<256x1xi32>
    %c16_i32_16 = arith.constant 16 : i32
    %37 = vector.broadcast %c16_i32_16 : i32 to vector<256x1xi32>
    %38 = arith.cmpi slt, %36, %37 : vector<256x1xi32>
    %39 = arith.andi %34, %38 : vector<256x1xi1>
    %cst_17 = arith.constant 0.000000e+00 : bf16
    %40 = vector.broadcast %cst_17 : bf16 to vector<256x3xbf16>
    %41 = vector.shape_cast %39 : vector<256x1xi1> to vector<256x1xi1>
    %42 = vector.broadcast %41 : vector<256x1xi1> to vector<256x3xi1>
    %43 = arith.select %42, %30, %40 : vector<256x3xi1>, vector<256x3xbf16>
    %c0_18 = arith.constant 0 : index
    %c0_19 = arith.constant 0 : index
    %c0_20 = arith.constant 0 : index
    %44 = vector.load %arg4[%c0_18, %c0_19, %c0_20] : memref<9x3x32xbf16, #tpu.memory_space<vmem>>, vector<1x3x32xbf16>
    %45 = vector.shape_cast %44 : vector<1x3x32xbf16> to vector<3x32xbf16>
    %cst_21 = arith.constant dense<0.000000e+00> : vector<256x32xf32>
    %46 = tpu.matmul %43, %45, %cst_21 {dimension_numbers = #tpu.dot_dimension_numbers<[1], [0], [0], [1], [0, 0, 1, 1], [], []>} : vector<256x3xbf16>, vector<3x32xbf16>, vector<256x32xf32> -> vector<256x32xf32>
    %47 = arith.addf %29, %46 : vector<256x32xf32>
    %c8 = arith.constant 8 : index
    %c0_22 = arith.constant 0 : index
    %48 = vector.load %arg11[%c8, %c0_22] : memref<304x3xbf16, #tpu.memory_space<vmem>>, vector<256x3xbf16>
    %c1 = arith.constant 1 : index
    %c0_23 = arith.constant 0 : index
    %c0_24 = arith.constant 0 : index
    %49 = vector.load %arg4[%c1, %c0_23, %c0_24] : memref<9x3x32xbf16, #tpu.memory_space<vmem>>, vector<1x3x32xbf16>
    %50 = vector.shape_cast %49 : vector<1x3x32xbf16> to vector<3x32xbf16>
    %cst_25 = arith.constant dense<0.000000e+00> : vector<256x32xf32>
    %51 = tpu.matmul %48, %50, %cst_25 {dimension_numbers = #tpu.dot_dimension_numbers<[1], [0], [0], [1], [0, 0, 1, 1], [], []>} : vector<256x3xbf16>, vector<3x32xbf16>, vector<256x32xf32> -> vector<256x32xf32>
    %52 = arith.addf %47, %51 : vector<256x32xf32>
    %c9 = arith.constant 9 : index
    %c0_26 = arith.constant 0 : index
    %53 = vector.load %arg11[%c9, %c0_26] : memref<304x3xbf16, #tpu.memory_space<vmem>>, vector<256x3xbf16>
    %c1_i32_27 = arith.constant 1 : i32
    %54 = vector.broadcast %c1_i32_27 : i32 to vector<256x1xi32>
    %55 = arith.addi %28, %54 : vector<256x1xi32>
    %c0_i32_28 = arith.constant 0 : i32
    %56 = vector.broadcast %c0_i32_28 : i32 to vector<256x1xi32>
    %57 = arith.cmpi sge, %55, %56 : vector<256x1xi32>
    %c1_i32_29 = arith.constant 1 : i32
    %58 = vector.broadcast %c1_i32_29 : i32 to vector<256x1xi32>
    %59 = arith.addi %28, %58 : vector<256x1xi32>
    %c16_i32_30 = arith.constant 16 : i32
    %60 = vector.broadcast %c16_i32_30 : i32 to vector<256x1xi32>
    %61 = arith.cmpi slt, %59, %60 : vector<256x1xi32>
    %62 = arith.andi %57, %61 : vector<256x1xi1>
    %cst_31 = arith.constant 0.000000e+00 : bf16
    %63 = vector.broadcast %cst_31 : bf16 to vector<256x3xbf16>
    %64 = vector.shape_cast %62 : vector<256x1xi1> to vector<256x1xi1>
    %65 = vector.broadcast %64 : vector<256x1xi1> to vector<256x3xi1>
    %66 = arith.select %65, %53, %63 : vector<256x3xi1>, vector<256x3xbf16>
    %c2 = arith.constant 2 : index
    %c0_32 = arith.constant 0 : index
    %c0_33 = arith.constant 0 : index
    %67 = vector.load %arg4[%c2, %c0_32, %c0_33] : memref<9x3x32xbf16, #tpu.memory_space<vmem>>, vector<1x3x32xbf16>
    %68 = vector.shape_cast %67 : vector<1x3x32xbf16> to vector<3x32xbf16>
    %cst_34 = arith.constant dense<0.000000e+00> : vector<256x32xf32>
    %69 = tpu.matmul %66, %68, %cst_34 {dimension_numbers = #tpu.dot_dimension_numbers<[1], [0], [0], [1], [0, 0, 1, 1], [], []>} : vector<256x3xbf16>, vector<3x32xbf16>, vector<256x32xf32> -> vector<256x32xf32>
    %70 = arith.addf %52, %69 : vector<256x32xf32>
    %c23 = arith.constant 23 : index
    %c0_35 = arith.constant 0 : index
    %71 = vector.load %arg11[%c23, %c0_35] : memref<304x3xbf16, #tpu.memory_space<vmem>>, vector<256x3xbf16>
    %c-1_i32_36 = arith.constant -1 : i32
    %72 = vector.broadcast %c-1_i32_36 : i32 to vector<256x1xi32>
    %73 = arith.addi %28, %72 : vector<256x1xi32>
    %c0_i32_37 = arith.constant 0 : i32
    %74 = vector.broadcast %c0_i32_37 : i32 to vector<256x1xi32>
    %75 = arith.cmpi sge, %73, %74 : vector<256x1xi32>
    %c-1_i32_38 = arith.constant -1 : i32
    %76 = vector.broadcast %c-1_i32_38 : i32 to vector<256x1xi32>
    %77 = arith.addi %28, %76 : vector<256x1xi32>
    %c16_i32_39 = arith.constant 16 : i32
    %78 = vector.broadcast %c16_i32_39 : i32 to vector<256x1xi32>
    %79 = arith.cmpi slt, %77, %78 : vector<256x1xi32>
    %80 = arith.andi %75, %79 : vector<256x1xi1>
    %cst_40 = arith.constant 0.000000e+00 : bf16
    %81 = vector.broadcast %cst_40 : bf16 to vector<256x3xbf16>
    %82 = vector.shape_cast %80 : vector<256x1xi1> to vector<256x1xi1>
    %83 = vector.broadcast %82 : vector<256x1xi1> to vector<256x3xi1>
    %84 = arith.select %83, %71, %81 : vector<256x3xi1>, vector<256x3xbf16>
    %c3 = arith.constant 3 : index
    %c0_41 = arith.constant 0 : index
    %c0_42 = arith.constant 0 : index
    %85 = vector.load %arg4[%c3, %c0_41, %c0_42] : memref<9x3x32xbf16, #tpu.memory_space<vmem>>, vector<1x3x32xbf16>
    %86 = vector.shape_cast %85 : vector<1x3x32xbf16> to vector<3x32xbf16>
    %cst_43 = arith.constant dense<0.000000e+00> : vector<256x32xf32>
    %87 = tpu.matmul %84, %86, %cst_43 {dimension_numbers = #tpu.dot_dimension_numbers<[1], [0], [0], [1], [0, 0, 1, 1], [], []>} : vector<256x3xbf16>, vector<3x32xbf16>, vector<256x32xf32> -> vector<256x32xf32>
    %88 = arith.addf %70, %87 : vector<256x32xf32>
    %c24_44 = arith.constant 24 : index
    %c0_45 = arith.constant 0 : index
    %89 = vector.load %arg11[%c24_44, %c0_45] : memref<304x3xbf16, #tpu.memory_space<vmem>>, vector<256x3xbf16>
    %c4 = arith.constant 4 : index
    %c0_46 = arith.constant 0 : index
    %c0_47 = arith.constant 0 : index
    %90 = vector.load %arg4[%c4, %c0_46, %c0_47] : memref<9x3x32xbf16, #tpu.memory_space<vmem>>, vector<1x3x32xbf16>
    %91 = vector.shape_cast %90 : vector<1x3x32xbf16> to vector<3x32xbf16>
    %cst_48 = arith.constant dense<0.000000e+00> : vector<256x32xf32>
    %92 = tpu.matmul %89, %91, %cst_48 {dimension_numbers = #tpu.dot_dimension_numbers<[1], [0], [0], [1], [0, 0, 1, 1], [], []>} : vector<256x3xbf16>, vector<3x32xbf16>, vector<256x32xf32> -> vector<256x32xf32>
    %93 = arith.addf %88, %92 : vector<256x32xf32>
    %c25 = arith.constant 25 : index
    %c0_49 = arith.constant 0 : index
    %94 = vector.load %arg11[%c25, %c0_49] : memref<304x3xbf16, #tpu.memory_space<vmem>>, vector<256x3xbf16>
    %c1_i32_50 = arith.constant 1 : i32
    %95 = vector.broadcast %c1_i32_50 : i32 to vector<256x1xi32>
    %96 = arith.addi %28, %95 : vector<256x1xi32>
    %c0_i32_51 = arith.constant 0 : i32
    %97 = vector.broadcast %c0_i32_51 : i32 to vector<256x1xi32>
    %98 = arith.cmpi sge, %96, %97 : vector<256x1xi32>
    %c1_i32_52 = arith.constant 1 : i32
    %99 = vector.broadcast %c1_i32_52 : i32 to vector<256x1xi32>
    %100 = arith.addi %28, %99 : vector<256x1xi32>
    %c16_i32_53 = arith.constant 16 : i32
    %101 = vector.broadcast %c16_i32_53 : i32 to vector<256x1xi32>
    %102 = arith.cmpi slt, %100, %101 : vector<256x1xi32>
    %103 = arith.andi %98, %102 : vector<256x1xi1>
    %cst_54 = arith.constant 0.000000e+00 : bf16
    %104 = vector.broadcast %cst_54 : bf16 to vector<256x3xbf16>
    %105 = vector.shape_cast %103 : vector<256x1xi1> to vector<256x1xi1>
    %106 = vector.broadcast %105 : vector<256x1xi1> to vector<256x3xi1>
    %107 = arith.select %106, %94, %104 : vector<256x3xi1>, vector<256x3xbf16>
    %c5 = arith.constant 5 : index
    %c0_55 = arith.constant 0 : index
    %c0_56 = arith.constant 0 : index
    %108 = vector.load %arg4[%c5, %c0_55, %c0_56] : memref<9x3x32xbf16, #tpu.memory_space<vmem>>, vector<1x3x32xbf16>
    %109 = vector.shape_cast %108 : vector<1x3x32xbf16> to vector<3x32xbf16>
    %cst_57 = arith.constant dense<0.000000e+00> : vector<256x32xf32>
    %110 = tpu.matmul %107, %109, %cst_57 {dimension_numbers = #tpu.dot_dimension_numbers<[1], [0], [0], [1], [0, 0, 1, 1], [], []>} : vector<256x3xbf16>, vector<3x32xbf16>, vector<256x32xf32> -> vector<256x32xf32>
    %111 = arith.addf %93, %110 : vector<256x32xf32>
    %c39 = arith.constant 39 : index
    %c0_58 = arith.constant 0 : index
    %112 = vector.load %arg11[%c39, %c0_58] : memref<304x3xbf16, #tpu.memory_space<vmem>>, vector<256x3xbf16>
    %c-1_i32_59 = arith.constant -1 : i32
    %113 = vector.broadcast %c-1_i32_59 : i32 to vector<256x1xi32>
    %114 = arith.addi %28, %113 : vector<256x1xi32>
    %c0_i32_60 = arith.constant 0 : i32
    %115 = vector.broadcast %c0_i32_60 : i32 to vector<256x1xi32>
    %116 = arith.cmpi sge, %114, %115 : vector<256x1xi32>
    %c-1_i32_61 = arith.constant -1 : i32
    %117 = vector.broadcast %c-1_i32_61 : i32 to vector<256x1xi32>
    %118 = arith.addi %28, %117 : vector<256x1xi32>
    %c16_i32_62 = arith.constant 16 : i32
    %119 = vector.broadcast %c16_i32_62 : i32 to vector<256x1xi32>
    %120 = arith.cmpi slt, %118, %119 : vector<256x1xi32>
    %121 = arith.andi %116, %120 : vector<256x1xi1>
    %cst_63 = arith.constant 0.000000e+00 : bf16
    %122 = vector.broadcast %cst_63 : bf16 to vector<256x3xbf16>
    %123 = vector.shape_cast %121 : vector<256x1xi1> to vector<256x1xi1>
    %124 = vector.broadcast %123 : vector<256x1xi1> to vector<256x3xi1>
    %125 = arith.select %124, %112, %122 : vector<256x3xi1>, vector<256x3xbf16>
    %c6 = arith.constant 6 : index
    %c0_64 = arith.constant 0 : index
    %c0_65 = arith.constant 0 : index
    %126 = vector.load %arg4[%c6, %c0_64, %c0_65] : memref<9x3x32xbf16, #tpu.memory_space<vmem>>, vector<1x3x32xbf16>
    %127 = vector.shape_cast %126 : vector<1x3x32xbf16> to vector<3x32xbf16>
    %cst_66 = arith.constant dense<0.000000e+00> : vector<256x32xf32>
    %128 = tpu.matmul %125, %127, %cst_66 {dimension_numbers = #tpu.dot_dimension_numbers<[1], [0], [0], [1], [0, 0, 1, 1], [], []>} : vector<256x3xbf16>, vector<3x32xbf16>, vector<256x32xf32> -> vector<256x32xf32>
    %129 = arith.addf %111, %128 : vector<256x32xf32>
    %c40 = arith.constant 40 : index
    %c0_67 = arith.constant 0 : index
    %130 = vector.load %arg11[%c40, %c0_67] : memref<304x3xbf16, #tpu.memory_space<vmem>>, vector<256x3xbf16>
    %c7_68 = arith.constant 7 : index
    %c0_69 = arith.constant 0 : index
    %c0_70 = arith.constant 0 : index
    %131 = vector.load %arg4[%c7_68, %c0_69, %c0_70] : memref<9x3x32xbf16, #tpu.memory_space<vmem>>, vector<1x3x32xbf16>
    %132 = vector.shape_cast %131 : vector<1x3x32xbf16> to vector<3x32xbf16>
    %cst_71 = arith.constant dense<0.000000e+00> : vector<256x32xf32>
    %133 = tpu.matmul %130, %132, %cst_71 {dimension_numbers = #tpu.dot_dimension_numbers<[1], [0], [0], [1], [0, 0, 1, 1], [], []>} : vector<256x3xbf16>, vector<3x32xbf16>, vector<256x32xf32> -> vector<256x32xf32>
    %134 = arith.addf %129, %133 : vector<256x32xf32>
    %c41 = arith.constant 41 : index
    %c0_72 = arith.constant 0 : index
    %135 = vector.load %arg11[%c41, %c0_72] : memref<304x3xbf16, #tpu.memory_space<vmem>>, vector<256x3xbf16>
    %c1_i32_73 = arith.constant 1 : i32
    %136 = vector.broadcast %c1_i32_73 : i32 to vector<256x1xi32>
    %137 = arith.addi %28, %136 : vector<256x1xi32>
    %c0_i32_74 = arith.constant 0 : i32
    %138 = vector.broadcast %c0_i32_74 : i32 to vector<256x1xi32>
    %139 = arith.cmpi sge, %137, %138 : vector<256x1xi32>
    %c1_i32_75 = arith.constant 1 : i32
    %140 = vector.broadcast %c1_i32_75 : i32 to vector<256x1xi32>
    %141 = arith.addi %28, %140 : vector<256x1xi32>
    %c16_i32_76 = arith.constant 16 : i32
    %142 = vector.broadcast %c16_i32_76 : i32 to vector<256x1xi32>
    %143 = arith.cmpi slt, %141, %142 : vector<256x1xi32>
    %144 = arith.andi %139, %143 : vector<256x1xi1>
    %cst_77 = arith.constant 0.000000e+00 : bf16
    %145 = vector.broadcast %cst_77 : bf16 to vector<256x3xbf16>
    %146 = vector.shape_cast %144 : vector<256x1xi1> to vector<256x1xi1>
    %147 = vector.broadcast %146 : vector<256x1xi1> to vector<256x3xi1>
    %148 = arith.select %147, %135, %145 : vector<256x3xi1>, vector<256x3xbf16>
    %c8_78 = arith.constant 8 : index
    %c0_79 = arith.constant 0 : index
    %c0_80 = arith.constant 0 : index
    %149 = vector.load %arg4[%c8_78, %c0_79, %c0_80] : memref<9x3x32xbf16, #tpu.memory_space<vmem>>, vector<1x3x32xbf16>
    %150 = vector.shape_cast %149 : vector<1x3x32xbf16> to vector<3x32xbf16>
    %cst_81 = arith.constant dense<0.000000e+00> : vector<256x32xf32>
    %151 = tpu.matmul %148, %150, %cst_81 {dimension_numbers = #tpu.dot_dimension_numbers<[1], [0], [0], [1], [0, 0, 1, 1], [], []>} : vector<256x3xbf16>, vector<3x32xbf16>, vector<256x32xf32> -> vector<256x32xf32>
    %152 = arith.addf %134, %151 : vector<256x32xf32>
    %c0_82 = arith.constant 0 : index
    %c0_83 = arith.constant 0 : index
    %153 = vector.load %arg5[%c0_82, %c0_83] : memref<1x32xf32, #tpu.memory_space<vmem>>, vector<1x32xf32>
    %154 = vector.broadcast %153 : vector<1x32xf32> to vector<256x32xf32>
    %155 = arith.addf %152, %154 : vector<256x32xf32>
    %cst_84 = arith.constant 0.000000e+00 : f32
    %156 = vector.broadcast %cst_84 : f32 to vector<256x32xf32>
    %157 = arith.maximumf %155, %156 : vector<256x32xf32>
    %cst_85 = arith.constant 0.000000e+00 : bf16
    %158 = vector.broadcast %cst_85 : bf16 to vector<304x32xbf16>
    %c0_86 = arith.constant 0 : index
    %c0_87 = arith.constant 0 : index
    %159 = vector.load %arg12[%c0_86, %c0_87] : memref<304x32xbf16, #tpu.memory_space<vmem>>, vector<304x32xbf16>
    tpu.vector_store %arg12[%c0_86, %c0_87], %158 {strides = array<i32>} : memref<304x32xbf16, #tpu.memory_space<vmem>>, vector<304x32xbf16>,
    %160 = arith.truncf %157 : vector<256x32xf32> to vector<256x32xbf16>
    %c24_88 = arith.constant 24 : index
    %c0_89 = arith.constant 0 : index
    %161 = vector.load %arg12[%c24_88, %c0_89] : memref<304x32xbf16, #tpu.memory_space<vmem>>, vector<256x32xbf16>
    tpu.vector_store %arg12[%c24_88, %c0_89], %160 {strides = array<i32>} : memref<304x32xbf16, #tpu.memory_space<vmem>>, vector<256x32xbf16>,
    %cst_90 = arith.constant 0.000000e+00 : f32
    %162 = vector.broadcast %cst_90 : f32 to vector<256x32xf32>
    %c7_91 = arith.constant 7 : index
    %c0_92 = arith.constant 0 : index
    %163 = vector.load %arg12[%c7_91, %c0_92] : memref<304x32xbf16, #tpu.memory_space<vmem>>, vector<256x32xbf16>
    %c-1_i32_93 = arith.constant -1 : i32
    %164 = vector.broadcast %c-1_i32_93 : i32 to vector<256x1xi32>
    %165 = arith.addi %28, %164 : vector<256x1xi32>
    %c0_i32_94 = arith.constant 0 : i32
    %166 = vector.broadcast %c0_i32_94 : i32 to vector<256x1xi32>
    %167 = arith.cmpi sge, %165, %166 : vector<256x1xi32>
    %c-1_i32_95 = arith.constant -1 : i32
    %168 = vector.broadcast %c-1_i32_95 : i32 to vector<256x1xi32>
    %169 = arith.addi %28, %168 : vector<256x1xi32>
    %c16_i32_96 = arith.constant 16 : i32
    %170 = vector.broadcast %c16_i32_96 : i32 to vector<256x1xi32>
    %171 = arith.cmpi slt, %169, %170 : vector<256x1xi32>
    %172 = arith.andi %167, %171 : vector<256x1xi1>
    %cst_97 = arith.constant 0.000000e+00 : bf16
    %173 = vector.broadcast %cst_97 : bf16 to vector<256x32xbf16>
    %174 = vector.shape_cast %172 : vector<256x1xi1> to vector<256x1xi1>
    %175 = vector.broadcast %174 : vector<256x1xi1> to vector<256x32xi1>
    %176 = arith.select %175, %163, %173 : vector<256x32xi1>, vector<256x32xbf16>
    %c0_98 = arith.constant 0 : index
    %c0_99 = arith.constant 0 : index
    %c0_100 = arith.constant 0 : index
    %177 = vector.load %arg6[%c0_98, %c0_99, %c0_100] : memref<9x32x32xbf16, #tpu.memory_space<vmem>>, vector<1x32x32xbf16>
    %178 = vector.shape_cast %177 : vector<1x32x32xbf16> to vector<32x32xbf16>
    %cst_101 = arith.constant dense<0.000000e+00> : vector<256x32xf32>
    %179 = tpu.matmul %176, %178, %cst_101 {dimension_numbers = #tpu.dot_dimension_numbers<[1], [0], [0], [1], [0, 0, 1, 1], [], []>} : vector<256x32xbf16>, vector<32x32xbf16>, vector<256x32xf32> -> vector<256x32xf32>
    %180 = arith.addf %162, %179 : vector<256x32xf32>
    %c8_102 = arith.constant 8 : index
    %c0_103 = arith.constant 0 : index
    %181 = vector.load %arg12[%c8_102, %c0_103] : memref<304x32xbf16, #tpu.memory_space<vmem>>, vector<256x32xbf16>
    %c1_104 = arith.constant 1 : index
    %c0_105 = arith.constant 0 : index
    %c0_106 = arith.constant 0 : index
    %182 = vector.load %arg6[%c1_104, %c0_105, %c0_106] : memref<9x32x32xbf16, #tpu.memory_space<vmem>>, vector<1x32x32xbf16>
    %183 = vector.shape_cast %182 : vector<1x32x32xbf16> to vector<32x32xbf16>
    %cst_107 = arith.constant dense<0.000000e+00> : vector<256x32xf32>
    %184 = tpu.matmul %181, %183, %cst_107 {dimension_numbers = #tpu.dot_dimension_numbers<[1], [0], [0], [1], [0, 0, 1, 1], [], []>} : vector<256x32xbf16>, vector<32x32xbf16>, vector<256x32xf32> -> vector<256x32xf32>
    %185 = arith.addf %180, %184 : vector<256x32xf32>
    %c9_108 = arith.constant 9 : index
    %c0_109 = arith.constant 0 : index
    %186 = vector.load %arg12[%c9_108, %c0_109] : memref<304x32xbf16, #tpu.memory_space<vmem>>, vector<256x32xbf16>
    %c1_i32_110 = arith.constant 1 : i32
    %187 = vector.broadcast %c1_i32_110 : i32 to vector<256x1xi32>
    %188 = arith.addi %28, %187 : vector<256x1xi32>
    %c0_i32_111 = arith.constant 0 : i32
    %189 = vector.broadcast %c0_i32_111 : i32 to vector<256x1xi32>
    %190 = arith.cmpi sge, %188, %189 : vector<256x1xi32>
    %c1_i32_112 = arith.constant 1 : i32
    %191 = vector.broadcast %c1_i32_112 : i32 to vector<256x1xi32>
    %192 = arith.addi %28, %191 : vector<256x1xi32>
    %c16_i32_113 = arith.constant 16 : i32
    %193 = vector.broadcast %c16_i32_113 : i32 to vector<256x1xi32>
    %194 = arith.cmpi slt, %192, %193 : vector<256x1xi32>
    %195 = arith.andi %190, %194 : vector<256x1xi1>
    %cst_114 = arith.constant 0.000000e+00 : bf16
    %196 = vector.broadcast %cst_114 : bf16 to vector<256x32xbf16>
    %197 = vector.shape_cast %195 : vector<256x1xi1> to vector<256x1xi1>
    %198 = vector.broadcast %197 : vector<256x1xi1> to vector<256x32xi1>
    %199 = arith.select %198, %186, %196 : vector<256x32xi1>, vector<256x32xbf16>
    %c2_115 = arith.constant 2 : index
    %c0_116 = arith.constant 0 : index
    %c0_117 = arith.constant 0 : index
    %200 = vector.load %arg6[%c2_115, %c0_116, %c0_117] : memref<9x32x32xbf16, #tpu.memory_space<vmem>>, vector<1x32x32xbf16>
    %201 = vector.shape_cast %200 : vector<1x32x32xbf16> to vector<32x32xbf16>
    %cst_118 = arith.constant dense<0.000000e+00> : vector<256x32xf32>
    %202 = tpu.matmul %199, %201, %cst_118 {dimension_numbers = #tpu.dot_dimension_numbers<[1], [0], [0], [1], [0, 0, 1, 1], [], []>} : vector<256x32xbf16>, vector<32x32xbf16>, vector<256x32xf32> -> vector<256x32xf32>
    %203 = arith.addf %185, %202 : vector<256x32xf32>
    %c23_119 = arith.constant 23 : index
    %c0_120 = arith.constant 0 : index
    %204 = vector.load %arg12[%c23_119, %c0_120] : memref<304x32xbf16, #tpu.memory_space<vmem>>, vector<256x32xbf16>
    %c-1_i32_121 = arith.constant -1 : i32
    %205 = vector.broadcast %c-1_i32_121 : i32 to vector<256x1xi32>
    %206 = arith.addi %28, %205 : vector<256x1xi32>
    %c0_i32_122 = arith.constant 0 : i32
    %207 = vector.broadcast %c0_i32_122 : i32 to vector<256x1xi32>
    %208 = arith.cmpi sge, %206, %207 : vector<256x1xi32>
    %c-1_i32_123 = arith.constant -1 : i32
    %209 = vector.broadcast %c-1_i32_123 : i32 to vector<256x1xi32>
    %210 = arith.addi %28, %209 : vector<256x1xi32>
    %c16_i32_124 = arith.constant 16 : i32
    %211 = vector.broadcast %c16_i32_124 : i32 to vector<256x1xi32>
    %212 = arith.cmpi slt, %210, %211 : vector<256x1xi32>
    %213 = arith.andi %208, %212 : vector<256x1xi1>
    %cst_125 = arith.constant 0.000000e+00 : bf16
    %214 = vector.broadcast %cst_125 : bf16 to vector<256x32xbf16>
    %215 = vector.shape_cast %213 : vector<256x1xi1> to vector<256x1xi1>
    %216 = vector.broadcast %215 : vector<256x1xi1> to vector<256x32xi1>
    %217 = arith.select %216, %204, %214 : vector<256x32xi1>, vector<256x32xbf16>
    %c3_126 = arith.constant 3 : index
    %c0_127 = arith.constant 0 : index
    %c0_128 = arith.constant 0 : index
    %218 = vector.load %arg6[%c3_126, %c0_127, %c0_128] : memref<9x32x32xbf16, #tpu.memory_space<vmem>>, vector<1x32x32xbf16>
    %219 = vector.shape_cast %218 : vector<1x32x32xbf16> to vector<32x32xbf16>
    %cst_129 = arith.constant dense<0.000000e+00> : vector<256x32xf32>
    %220 = tpu.matmul %217, %219, %cst_129 {dimension_numbers = #tpu.dot_dimension_numbers<[1], [0], [0], [1], [0, 0, 1, 1], [], []>} : vector<256x32xbf16>, vector<32x32xbf16>, vector<256x32xf32> -> vector<256x32xf32>
    %221 = arith.addf %203, %220 : vector<256x32xf32>
    %c24_130 = arith.constant 24 : index
    %c0_131 = arith.constant 0 : index
    %222 = vector.load %arg12[%c24_130, %c0_131] : memref<304x32xbf16, #tpu.memory_space<vmem>>, vector<256x32xbf16>
    %c4_132 = arith.constant 4 : index
    %c0_133 = arith.constant 0 : index
    %c0_134 = arith.constant 0 : index
    %223 = vector.load %arg6[%c4_132, %c0_133, %c0_134] : memref<9x32x32xbf16, #tpu.memory_space<vmem>>, vector<1x32x32xbf16>
    %224 = vector.shape_cast %223 : vector<1x32x32xbf16> to vector<32x32xbf16>
    %cst_135 = arith.constant dense<0.000000e+00> : vector<256x32xf32>
    %225 = tpu.matmul %222, %224, %cst_135 {dimension_numbers = #tpu.dot_dimension_numbers<[1], [0], [0], [1], [0, 0, 1, 1], [], []>} : vector<256x32xbf16>, vector<32x32xbf16>, vector<256x32xf32> -> vector<256x32xf32>
    %226 = arith.addf %221, %225 : vector<256x32xf32>
    %c25_136 = arith.constant 25 : index
    %c0_137 = arith.constant 0 : index
    %227 = vector.load %arg12[%c25_136, %c0_137] : memref<304x32xbf16, #tpu.memory_space<vmem>>, vector<256x32xbf16>
    %c1_i32_138 = arith.constant 1 : i32
    %228 = vector.broadcast %c1_i32_138 : i32 to vector<256x1xi32>
    %229 = arith.addi %28, %228 : vector<256x1xi32>
    %c0_i32_139 = arith.constant 0 : i32
    %230 = vector.broadcast %c0_i32_139 : i32 to vector<256x1xi32>
    %231 = arith.cmpi sge, %229, %230 : vector<256x1xi32>
    %c1_i32_140 = arith.constant 1 : i32
    %232 = vector.broadcast %c1_i32_140 : i32 to vector<256x1xi32>
    %233 = arith.addi %28, %232 : vector<256x1xi32>
    %c16_i32_141 = arith.constant 16 : i32
    %234 = vector.broadcast %c16_i32_141 : i32 to vector<256x1xi32>
    %235 = arith.cmpi slt, %233, %234 : vector<256x1xi32>
    %236 = arith.andi %231, %235 : vector<256x1xi1>
    %cst_142 = arith.constant 0.000000e+00 : bf16
    %237 = vector.broadcast %cst_142 : bf16 to vector<256x32xbf16>
    %238 = vector.shape_cast %236 : vector<256x1xi1> to vector<256x1xi1>
    %239 = vector.broadcast %238 : vector<256x1xi1> to vector<256x32xi1>
    %240 = arith.select %239, %227, %237 : vector<256x32xi1>, vector<256x32xbf16>
    %c5_143 = arith.constant 5 : index
    %c0_144 = arith.constant 0 : index
    %c0_145 = arith.constant 0 : index
    %241 = vector.load %arg6[%c5_143, %c0_144, %c0_145] : memref<9x32x32xbf16, #tpu.memory_space<vmem>>, vector<1x32x32xbf16>
    %242 = vector.shape_cast %241 : vector<1x32x32xbf16> to vector<32x32xbf16>
    %cst_146 = arith.constant dense<0.000000e+00> : vector<256x32xf32>
    %243 = tpu.matmul %240, %242, %cst_146 {dimension_numbers = #tpu.dot_dimension_numbers<[1], [0], [0], [1], [0, 0, 1, 1], [], []>} : vector<256x32xbf16>, vector<32x32xbf16>, vector<256x32xf32> -> vector<256x32xf32>
    %244 = arith.addf %226, %243 : vector<256x32xf32>
    %c39_147 = arith.constant 39 : index
    %c0_148 = arith.constant 0 : index
    %245 = vector.load %arg12[%c39_147, %c0_148] : memref<304x32xbf16, #tpu.memory_space<vmem>>, vector<256x32xbf16>
    %c-1_i32_149 = arith.constant -1 : i32
    %246 = vector.broadcast %c-1_i32_149 : i32 to vector<256x1xi32>
    %247 = arith.addi %28, %246 : vector<256x1xi32>
    %c0_i32_150 = arith.constant 0 : i32
    %248 = vector.broadcast %c0_i32_150 : i32 to vector<256x1xi32>
    %249 = arith.cmpi sge, %247, %248 : vector<256x1xi32>
    %c-1_i32_151 = arith.constant -1 : i32
    %250 = vector.broadcast %c-1_i32_151 : i32 to vector<256x1xi32>
    %251 = arith.addi %28, %250 : vector<256x1xi32>
    %c16_i32_152 = arith.constant 16 : i32
    %252 = vector.broadcast %c16_i32_152 : i32 to vector<256x1xi32>
    %253 = arith.cmpi slt, %251, %252 : vector<256x1xi32>
    %254 = arith.andi %249, %253 : vector<256x1xi1>
    %cst_153 = arith.constant 0.000000e+00 : bf16
    %255 = vector.broadcast %cst_153 : bf16 to vector<256x32xbf16>
    %256 = vector.shape_cast %254 : vector<256x1xi1> to vector<256x1xi1>
    %257 = vector.broadcast %256 : vector<256x1xi1> to vector<256x32xi1>
    %258 = arith.select %257, %245, %255 : vector<256x32xi1>, vector<256x32xbf16>
    %c6_154 = arith.constant 6 : index
    %c0_155 = arith.constant 0 : index
    %c0_156 = arith.constant 0 : index
    %259 = vector.load %arg6[%c6_154, %c0_155, %c0_156] : memref<9x32x32xbf16, #tpu.memory_space<vmem>>, vector<1x32x32xbf16>
    %260 = vector.shape_cast %259 : vector<1x32x32xbf16> to vector<32x32xbf16>
    %cst_157 = arith.constant dense<0.000000e+00> : vector<256x32xf32>
    %261 = tpu.matmul %258, %260, %cst_157 {dimension_numbers = #tpu.dot_dimension_numbers<[1], [0], [0], [1], [0, 0, 1, 1], [], []>} : vector<256x32xbf16>, vector<32x32xbf16>, vector<256x32xf32> -> vector<256x32xf32>
    %262 = arith.addf %244, %261 : vector<256x32xf32>
    %c40_158 = arith.constant 40 : index
    %c0_159 = arith.constant 0 : index
    %263 = vector.load %arg12[%c40_158, %c0_159] : memref<304x32xbf16, #tpu.memory_space<vmem>>, vector<256x32xbf16>
    %c7_160 = arith.constant 7 : index
    %c0_161 = arith.constant 0 : index
    %c0_162 = arith.constant 0 : index
    %264 = vector.load %arg6[%c7_160, %c0_161, %c0_162] : memref<9x32x32xbf16, #tpu.memory_space<vmem>>, vector<1x32x32xbf16>
    %265 = vector.shape_cast %264 : vector<1x32x32xbf16> to vector<32x32xbf16>
    %cst_163 = arith.constant dense<0.000000e+00> : vector<256x32xf32>
    %266 = tpu.matmul %263, %265, %cst_163 {dimension_numbers = #tpu.dot_dimension_numbers<[1], [0], [0], [1], [0, 0, 1, 1], [], []>} : vector<256x32xbf16>, vector<32x32xbf16>, vector<256x32xf32> -> vector<256x32xf32>
    %267 = arith.addf %262, %266 : vector<256x32xf32>
    %c41_164 = arith.constant 41 : index
    %c0_165 = arith.constant 0 : index
    %268 = vector.load %arg12[%c41_164, %c0_165] : memref<304x32xbf16, #tpu.memory_space<vmem>>, vector<256x32xbf16>
    %c1_i32_166 = arith.constant 1 : i32
    %269 = vector.broadcast %c1_i32_166 : i32 to vector<256x1xi32>
    %270 = arith.addi %28, %269 : vector<256x1xi32>
    %c0_i32_167 = arith.constant 0 : i32
    %271 = vector.broadcast %c0_i32_167 : i32 to vector<256x1xi32>
    %272 = arith.cmpi sge, %270, %271 : vector<256x1xi32>
    %c1_i32_168 = arith.constant 1 : i32
    %273 = vector.broadcast %c1_i32_168 : i32 to vector<256x1xi32>
    %274 = arith.addi %28, %273 : vector<256x1xi32>
    %c16_i32_169 = arith.constant 16 : i32
    %275 = vector.broadcast %c16_i32_169 : i32 to vector<256x1xi32>
    %276 = arith.cmpi slt, %274, %275 : vector<256x1xi32>
    %277 = arith.andi %272, %276 : vector<256x1xi1>
    %cst_170 = arith.constant 0.000000e+00 : bf16
    %278 = vector.broadcast %cst_170 : bf16 to vector<256x32xbf16>
    %279 = vector.shape_cast %277 : vector<256x1xi1> to vector<256x1xi1>
    %280 = vector.broadcast %279 : vector<256x1xi1> to vector<256x32xi1>
    %281 = arith.select %280, %268, %278 : vector<256x32xi1>, vector<256x32xbf16>
    %c8_171 = arith.constant 8 : index
    %c0_172 = arith.constant 0 : index
    %c0_173 = arith.constant 0 : index
    %282 = vector.load %arg6[%c8_171, %c0_172, %c0_173] : memref<9x32x32xbf16, #tpu.memory_space<vmem>>, vector<1x32x32xbf16>
    %283 = vector.shape_cast %282 : vector<1x32x32xbf16> to vector<32x32xbf16>
    %cst_174 = arith.constant dense<0.000000e+00> : vector<256x32xf32>
    %284 = tpu.matmul %281, %283, %cst_174 {dimension_numbers = #tpu.dot_dimension_numbers<[1], [0], [0], [1], [0, 0, 1, 1], [], []>} : vector<256x32xbf16>, vector<32x32xbf16>, vector<256x32xf32> -> vector<256x32xf32>
    %285 = arith.addf %267, %284 : vector<256x32xf32>
    %c0_175 = arith.constant 0 : index
    %c0_176 = arith.constant 0 : index
    %286 = vector.load %arg7[%c0_175, %c0_176] : memref<1x32xf32, #tpu.memory_space<vmem>>, vector<1x32xf32>
    %287 = vector.broadcast %286 : vector<1x32xf32> to vector<256x32xf32>
    %288 = arith.addf %285, %287 : vector<256x32xf32>
    %cst_177 = arith.constant 0.000000e+00 : f32
    %289 = vector.broadcast %cst_177 : f32 to vector<256x32xf32>
    %290 = arith.maximumf %288, %289 : vector<256x32xf32>
    %291 = arith.truncf %290 : vector<256x32xf32> to vector<256x32xbf16>
    %c0_178 = arith.constant 0 : index
    %c0_179 = arith.constant 0 : index
    %292 = vector.load %arg8[%c0_178, %c0_179] : memref<32x128xbf16, #tpu.memory_space<vmem>>, vector<32x128xbf16>
    %cst_180 = arith.constant dense<0.000000e+00> : vector<256x128xf32>
    %293 = tpu.matmul %291, %292, %cst_180 {dimension_numbers = #tpu.dot_dimension_numbers<[1], [0], [0], [1], [0, 0, 1, 1], [], []>} : vector<256x32xbf16>, vector<32x128xbf16>, vector<256x128xf32> -> vector<256x128xf32>
    %c0_181 = arith.constant 0 : index
    %c0_182 = arith.constant 0 : index
    %294 = vector.load %arg9[%c0_181, %c0_182] : memref<1x128xf32, #tpu.memory_space<vmem>>, vector<1x128xf32>
    %295 = vector.broadcast %294 : vector<1x128xf32> to vector<256x128xf32>
    %296 = arith.addf %293, %295 : vector<256x128xf32>
    %c0_183 = arith.constant 0 : index
    %c0_184 = arith.constant 0 : index
    %c0_185 = arith.constant 0 : index
    %297 = vector.load %arg10[%c0_183, %c0_184, %c0_185] : memref<1x256x128xf32, #tpu.memory_space<vmem>>, vector<1x256x128xf32>
    %298 = vector.shape_cast %297 : vector<1x256x128xf32> to vector<256x128xf32>
    %299 = vector.shape_cast %296 : vector<256x128xf32> to vector<1x256x128xf32>
    tpu.vector_store %arg10[%c0_183, %c0_184, %c0_185], %299 {strides = array<i32>} : memref<1x256x128xf32, #tpu.memory_space<vmem>>, vector<1x256x128xf32>,
    return
  }
  func.func @transform_0(%arg0: i32) -> (i32, i32, i32) {
    %c0_i32 = arith.constant 0 : i32
    %c0_i32_0 = arith.constant 0 : i32
    %c0_i32_1 = arith.constant 0 : i32
    return %arg0, %c0_i32, %c0_i32_0 : i32, i32, i32
  }
  func.func @transform_1(%arg0: i32) -> (i32, i32) {
    %c0_i32 = arith.constant 0 : i32
    %c0_i32_0 = arith.constant 0 : i32
    %c0_i32_1 = arith.constant 0 : i32
    return %c0_i32, %c0_i32_0 : i32, i32
  }
  func.func @transform_2(%arg0: i32) -> (i32, i32) {
    %c0_i32 = arith.constant 0 : i32
    %c0_i32_0 = arith.constant 0 : i32
    %c0_i32_1 = arith.constant 0 : i32
    return %c0_i32, %c0_i32_0 : i32, i32
  }
  func.func @transform_3(%arg0: i32) -> (i32, i32, i32) {
    %c0_i32 = arith.constant 0 : i32
    %c0_i32_0 = arith.constant 0 : i32
    %c0_i32_1 = arith.constant 0 : i32
    %c0_i32_2 = arith.constant 0 : i32
    return %c0_i32, %c0_i32_0, %c0_i32_1 : i32, i32, i32
  }
  func.func @transform_4(%arg0: i32) -> (i32, i32) {
    %c0_i32 = arith.constant 0 : i32
    %c0_i32_0 = arith.constant 0 : i32
    %c0_i32_1 = arith.constant 0 : i32
    return %c0_i32, %c0_i32_0 : i32, i32
  }
  func.func @transform_5(%arg0: i32) -> (i32, i32, i32) {
    %c0_i32 = arith.constant 0 : i32
    %c0_i32_0 = arith.constant 0 : i32
    %c0_i32_1 = arith.constant 0 : i32
    %c0_i32_2 = arith.constant 0 : i32
    return %c0_i32, %c0_i32_0, %c0_i32_1 : i32, i32, i32
  }
  func.func @transform_6(%arg0: i32) -> (i32, i32) {
    %c0_i32 = arith.constant 0 : i32
    %c0_i32_0 = arith.constant 0 : i32
    %c0_i32_1 = arith.constant 0 : i32
    return %c0_i32, %c0_i32_0 : i32, i32
  }
  func.func @transform_7(%arg0: i32) -> (i32, i32) {
    %c0_i32 = arith.constant 0 : i32
    %c0_i32_0 = arith.constant 0 : i32
    %c0_i32_1 = arith.constant 0 : i32
    return %c0_i32, %c0_i32_0 : i32, i32
  }
  func.func @transform_8(%arg0: i32) -> (i32, i32) {
    %c0_i32 = arith.constant 0 : i32
    %c0_i32_0 = arith.constant 0 : i32
    %c0_i32_1 = arith.constant 0 : i32
    return %c0_i32, %c0_i32_0 : i32, i32
  }
  func.func @transform_9(%arg0: i32) -> (i32, i32, i32) {
    %c0_i32 = arith.constant 0 : i32
    %c0_i32_0 = arith.constant 0 : i32
    %c0_i32_1 = arith.constant 0 : i32
    return %arg0, %c0_i32, %c0_i32_0 : i32, i32, i32
  }
}

module attributes {stable_mosaic.version = 11 : i64} {
  func.func @_decode_clip_kernel(%arg0: i32, %arg1: i32, %arg2: memref<4x768xf32, #tpu.memory_space<vmem>>, %arg3: memref<1x4x768xf32, #tpu.memory_space<vmem>>, %arg4: memref<1x4x768xf32, #tpu.memory_space<vmem>>) attributes {dimension_semantics = [#tpu.dimension_semantics<parallel>, #tpu.dimension_semantics<parallel>], iteration_bounds = array<i64: 2, 1>, scalar_prefetch = 0 : i64, scratch_operands = 0 : i64, tpu.core_type = #tpu.core_type<tc>, window_params = [{transform_indices = @transform_0, window_bounds = array<i64: 4, 768>}, {transform_indices = @transform_1, window_bounds = array<i64: 1, 4, 768>}, {transform_indices = @transform_2, window_bounds = array<i64: 1, 4, 768>}]} {
    %c0 = arith.constant 0 : index
    %c0_0 = arith.constant 0 : index
    %0 = vector.load %arg2[%c0, %c0_0] : memref<4x768xf32, #tpu.memory_space<vmem>>, vector<4x768xf32>
    %c0_1 = arith.constant 0 : index
    %c0_2 = arith.constant 0 : index
    %c0_3 = arith.constant 0 : index
    %1 = vector.load %arg3[%c0_1, %c0_2, %c0_3] : memref<1x4x768xf32, #tpu.memory_space<vmem>>, vector<1x4x768xf32>
    %2 = vector.shape_cast %1 : vector<1x4x768xf32> to vector<4x768xf32>
    %3 = vector.extract_strided_slice %0 {offsets = [0, 0], sizes = [1, 768], strides = [1, 1]} : vector<4x768xf32> to vector<1x768xf32>
    %4 = vector.extract_strided_slice %0 {offsets = [1, 0], sizes = [1, 768], strides = [1, 1]} : vector<4x768xf32> to vector<1x768xf32>
    %5 = vector.extract_strided_slice %0 {offsets = [2, 0], sizes = [1, 768], strides = [1, 1]} : vector<4x768xf32> to vector<1x768xf32>
    %6 = vector.extract_strided_slice %0 {offsets = [3, 0], sizes = [1, 768], strides = [1, 1]} : vector<4x768xf32> to vector<1x768xf32>
    %7 = vector.extract_strided_slice %2 {offsets = [0, 0], sizes = [1, 768], strides = [1, 1]} : vector<4x768xf32> to vector<1x768xf32>
    %cst = arith.constant 1.000000e+00 : f32
    %8 = vector.broadcast %cst : f32 to vector<1x768xf32>
    %9 = arith.divf %7, %8 : vector<1x768xf32>
    %10 = vector.extract_strided_slice %2 {offsets = [1, 0], sizes = [1, 768], strides = [1, 1]} : vector<4x768xf32> to vector<1x768xf32>
    %cst_4 = arith.constant 1.000000e+00 : f32
    %11 = vector.broadcast %cst_4 : f32 to vector<1x768xf32>
    %12 = arith.divf %10, %11 : vector<1x768xf32>
    %13 = vector.extract_strided_slice %2 {offsets = [2, 0], sizes = [1, 768], strides = [1, 1]} : vector<4x768xf32> to vector<1x768xf32>
    %cst_5 = arith.constant 1.000000e+00 : f32
    %14 = vector.broadcast %cst_5 : f32 to vector<1x768xf32>
    %15 = arith.divf %13, %14 : vector<1x768xf32>
    %cst_6 = arith.constant 4.13516665 : f32
    %16 = vector.broadcast %cst_6 : f32 to vector<1x768xf32>
    %17 = arith.minimumf %15, %16 : vector<1x768xf32>
    %18 = vector.extract_strided_slice %2 {offsets = [3, 0], sizes = [1, 768], strides = [1, 1]} : vector<4x768xf32> to vector<1x768xf32>
    %cst_7 = arith.constant 1.000000e+00 : f32
    %19 = vector.broadcast %cst_7 : f32 to vector<1x768xf32>
    %20 = arith.divf %18, %19 : vector<1x768xf32>
    %cst_8 = arith.constant 4.13516665 : f32
    %21 = vector.broadcast %cst_8 : f32 to vector<1x768xf32>
    %22 = arith.minimumf %20, %21 : vector<1x768xf32>
    %23 = arith.subf %5, %3 : vector<1x768xf32>
    %24 = arith.subf %6, %4 : vector<1x768xf32>
    %cst_9 = arith.constant 5.000000e-01 : f32
    %25 = vector.broadcast %cst_9 : f32 to vector<1x768xf32>
    %26 = arith.mulf %25, %23 : vector<1x768xf32>
    %27 = arith.addf %3, %26 : vector<1x768xf32>
    %cst_10 = arith.constant 5.000000e-01 : f32
    %28 = vector.broadcast %cst_10 : f32 to vector<1x768xf32>
    %29 = arith.mulf %28, %24 : vector<1x768xf32>
    %30 = arith.addf %4, %29 : vector<1x768xf32>
    %31 = arith.mulf %9, %23 : vector<1x768xf32>
    %32 = arith.addf %31, %27 : vector<1x768xf32>
    %33 = arith.mulf %12, %24 : vector<1x768xf32>
    %34 = arith.addf %33, %30 : vector<1x768xf32>
    %35 = math.exp %17 : vector<1x768xf32>
    %36 = arith.mulf %35, %23 : vector<1x768xf32>
    %37 = math.exp %22 : vector<1x768xf32>
    %38 = arith.mulf %37, %24 : vector<1x768xf32>
    %cst_11 = arith.constant 5.000000e-01 : f32
    %39 = vector.broadcast %cst_11 : f32 to vector<1x768xf32>
    %40 = arith.mulf %39, %36 : vector<1x768xf32>
    %41 = arith.subf %32, %40 : vector<1x768xf32>
    %cst_12 = arith.constant 0.000000e+00 : f32
    %cst_13 = arith.constant 1.600000e+01 : f32
    %42 = vector.broadcast %cst_12 : f32 to vector<1x768xf32>
    %43 = arith.maximumf %42, %41 : vector<1x768xf32>
    %44 = vector.broadcast %cst_13 : f32 to vector<1x768xf32>
    %45 = arith.minimumf %44, %43 : vector<1x768xf32>
    %c0_14 = arith.constant 0 : index
    %c0_15 = arith.constant 0 : index
    %c0_16 = arith.constant 0 : index
    %46 = vector.load %arg4[%c0_14, %c0_15, %c0_16] : memref<1x4x768xf32, #tpu.memory_space<vmem>>, vector<1x1x768xf32>
    %47 = vector.shape_cast %46 : vector<1x1x768xf32> to vector<1x768xf32>
    %48 = vector.shape_cast %45 : vector<1x768xf32> to vector<1x1x768xf32>
    tpu.vector_store %arg4[%c0_14, %c0_15, %c0_16], %48 {strides = array<i32>} : memref<1x4x768xf32, #tpu.memory_space<vmem>>, vector<1x1x768xf32>,
    %cst_17 = arith.constant 5.000000e-01 : f32
    %49 = vector.broadcast %cst_17 : f32 to vector<1x768xf32>
    %50 = arith.mulf %49, %38 : vector<1x768xf32>
    %51 = arith.subf %34, %50 : vector<1x768xf32>
    %cst_18 = arith.constant 0.000000e+00 : f32
    %cst_19 = arith.constant 1.600000e+01 : f32
    %52 = vector.broadcast %cst_18 : f32 to vector<1x768xf32>
    %53 = arith.maximumf %52, %51 : vector<1x768xf32>
    %54 = vector.broadcast %cst_19 : f32 to vector<1x768xf32>
    %55 = arith.minimumf %54, %53 : vector<1x768xf32>
    %c0_20 = arith.constant 0 : index
    %c1 = arith.constant 1 : index
    %c0_21 = arith.constant 0 : index
    %56 = vector.load %arg4[%c0_20, %c1, %c0_21] : memref<1x4x768xf32, #tpu.memory_space<vmem>>, vector<1x1x768xf32>
    %57 = vector.shape_cast %56 : vector<1x1x768xf32> to vector<1x768xf32>
    %58 = vector.shape_cast %55 : vector<1x768xf32> to vector<1x1x768xf32>
    tpu.vector_store %arg4[%c0_20, %c1, %c0_21], %58 {strides = array<i32>} : memref<1x4x768xf32, #tpu.memory_space<vmem>>, vector<1x1x768xf32>,
    %cst_22 = arith.constant 5.000000e-01 : f32
    %59 = vector.broadcast %cst_22 : f32 to vector<1x768xf32>
    %60 = arith.mulf %59, %36 : vector<1x768xf32>
    %61 = arith.addf %32, %60 : vector<1x768xf32>
    %cst_23 = arith.constant 0.000000e+00 : f32
    %cst_24 = arith.constant 1.600000e+01 : f32
    %62 = vector.broadcast %cst_23 : f32 to vector<1x768xf32>
    %63 = arith.maximumf %62, %61 : vector<1x768xf32>
    %64 = vector.broadcast %cst_24 : f32 to vector<1x768xf32>
    %65 = arith.minimumf %64, %63 : vector<1x768xf32>
    %c0_25 = arith.constant 0 : index
    %c2 = arith.constant 2 : index
    %c0_26 = arith.constant 0 : index
    %66 = vector.load %arg4[%c0_25, %c2, %c0_26] : memref<1x4x768xf32, #tpu.memory_space<vmem>>, vector<1x1x768xf32>
    %67 = vector.shape_cast %66 : vector<1x1x768xf32> to vector<1x768xf32>
    %68 = vector.shape_cast %65 : vector<1x768xf32> to vector<1x1x768xf32>
    tpu.vector_store %arg4[%c0_25, %c2, %c0_26], %68 {strides = array<i32>} : memref<1x4x768xf32, #tpu.memory_space<vmem>>, vector<1x1x768xf32>,
    %cst_27 = arith.constant 5.000000e-01 : f32
    %69 = vector.broadcast %cst_27 : f32 to vector<1x768xf32>
    %70 = arith.mulf %69, %38 : vector<1x768xf32>
    %71 = arith.addf %34, %70 : vector<1x768xf32>
    %cst_28 = arith.constant 0.000000e+00 : f32
    %cst_29 = arith.constant 1.600000e+01 : f32
    %72 = vector.broadcast %cst_28 : f32 to vector<1x768xf32>
    %73 = arith.maximumf %72, %71 : vector<1x768xf32>
    %74 = vector.broadcast %cst_29 : f32 to vector<1x768xf32>
    %75 = arith.minimumf %74, %73 : vector<1x768xf32>
    %c0_30 = arith.constant 0 : index
    %c3 = arith.constant 3 : index
    %c0_31 = arith.constant 0 : index
    %76 = vector.load %arg4[%c0_30, %c3, %c0_31] : memref<1x4x768xf32, #tpu.memory_space<vmem>>, vector<1x1x768xf32>
    %77 = vector.shape_cast %76 : vector<1x1x768xf32> to vector<1x768xf32>
    %78 = vector.shape_cast %75 : vector<1x768xf32> to vector<1x1x768xf32>
    tpu.vector_store %arg4[%c0_30, %c3, %c0_31], %78 {strides = array<i32>} : memref<1x4x768xf32, #tpu.memory_space<vmem>>, vector<1x1x768xf32>,
    return
  }
  func.func @transform_0(%arg0: i32, %arg1: i32) -> (i32, i32) {
    %c0_i32 = arith.constant 0 : i32
    %c0_i32_0 = arith.constant 0 : i32
    return %c0_i32, %arg1 : i32, i32
  }
  func.func @transform_1(%arg0: i32, %arg1: i32) -> (i32, i32, i32) {
    %c0_i32 = arith.constant 0 : i32
    %c0_i32_0 = arith.constant 0 : i32
    return %arg0, %c0_i32, %arg1 : i32, i32, i32
  }
  func.func @transform_2(%arg0: i32, %arg1: i32) -> (i32, i32, i32) {
    %c0_i32 = arith.constant 0 : i32
    %c0_i32_0 = arith.constant 0 : i32
    return %arg0, %c0_i32, %arg1 : i32, i32, i32
  }
}

</mosaic_0001>

<llo_original>
// kernel: proposal_network_forward.3
$region0: #{proposal_network_forward.3}
  #allocation0 [shape = 'u32[]', space=smem, size = 0x4, offset = 0x4, fixed_abs, tag = 'smem constant byte address 0x4 - core index']
  #allocation1 [shape = 'u32[72,128]{1,0:T(1,128)}', space=vmem, size = 0x9000, scoped, tag = 'internal scratch']
  %s0 = inlined_call_operand.vmem [shape: f32[4,768], index: 0, kind: input, shape index: {}]
  %s1 = inlined_call_operand.vmem [shape: f32[2,4,768], index: 1, kind: input, shape index: {}]
  %s2 = inlined_call_operand.vmem [shape: f32[2,4,768], index: 2, kind: output, shape index: {}]
  %s3 = sld [smem:[#allocation0]]
  $region41: #{proposal_network_forward.3} parent=0
    _
  %s5 = ssub.s32 1, %s3
  %s6 = scalar_select 0, %s5, %s3
  loop: start=0, step=1, limit=4
  $region2: #{proposal_network_forward.3} parent=0 // loop_pre_header
    _
  $region3: #{proposal_network_forward.3} parent=0 // loop_header
    %s8 = sphi 0, %s12
    %p9 = scmp.ge.s32.totalorder %s8, 4
    %s15 = sphi 0, %s27
    %s16 = sphi 0, %s23
    %s17 = sphi 0, %s15
    %s18 = sphi 0, %s16
    %s19 = sphi 0, %s17
    %s20 = sphi 0, %s18
    %s30 = sphi 0, %s32
    %s33 = sphi 0, %s30
    %s34 = sphi 0, %s33
    %s50 = sphi 0, %s34
    %s58 = sphi 0, %s60
    %s61 = sphi 0, %s58
    %s62 = sphi 0, %s61
    %s78 = sphi 0, %s62
    %s86 = sphi 0, %s88
    %s89 = sphi 0, %s86
    %s90 = sphi 0, %s89
    %s106 = sphi 0, %s90
  $region4: #{proposal_network_forward.3} parent=0 // loop_header_branch
    %11 = sbr.rel (%p9) target = $region8
  $region5: #{proposal_network_forward.3} parent=0 // loop_body
    %s13 = ssub.s32 %s8, 1
    %s14 = ssub.s32 %s8, 2
    %s21 = sadd.s32 1, %s16
    %p22 = scmp.ge.s32.totalorder %s21, 1
    %s23 = scalar_select %p22, 0, %s21
    %s24 = sadd.s32 1, %s15
    %s25 = scalar_select %p22, %s24, %s15
    %p26 = scmp.ge.s32.totalorder %s25, 2
    %s27 = scalar_select %p26, 0, %s25
    %s28 = ssub.s32 %s16, %s23
    %p29 = scmp.eq.s32.totalorder %s28, 0
    %s31 = sadd.s32 %s30, 1
    %s32 = scalar_select %p29, %s30, %s31
    %p35 = pneg %p29
    %p36 = scmp.eq.s32.totalorder %s8, 1
    %p37 = por %p35, %p36
    %p38 = scmp.ne.s32.totalorder %s30, %s33
    %p39 = scmp.eq.s32.totalorder %s8, 0
    %p40 = por %p38, %p39
    %p41 = scmp.ne.s32.totalorder %s30, %s33
    %p42 = scmp.eq.s32.totalorder %s13, 1
    %p43 = por %p41, %p42
    %p44 = scmp.ne.s32.totalorder %s33, %s34
    %p45 = scmp.eq.s32.totalorder %s13, 0
    %p46 = por %p44, %p45
    %p47 = scmp.ne.s32.totalorder %s33, %s34
    %p48 = scmp.eq.s32.totalorder %s14, 1
    %p49 = por %p47, %p48
    %p51 = scmp.ne.s32.totalorder %s34, %s50
    %p52 = scmp.eq.s32.totalorder %s14, 0
    %p53 = por %p51, %p52
    %s54 = ssub.s32 %s15, %s27
    %s55 = ssub.s32 %s16, %s23
    %s56 = sor.u32 %s54, %s55
    %p57 = scmp.eq.s32.totalorder %s56, 0
    %s59 = sadd.s32 %s58, 1
    %s60 = scalar_select %p57, %s58, %s59
    %p63 = pneg %p57
    %p64 = scmp.eq.s32.totalorder %s8, 1
    %p65 = por %p63, %p64
    %p66 = scmp.ne.s32.totalorder %s58, %s61
    %p67 = scmp.eq.s32.totalorder %s8, 0
    %p68 = por %p66, %p67
    %p69 = scmp.ne.s32.totalorder %s58, %s61
    %p70 = scmp.eq.s32.totalorder %s13, 1
    %p71 = por %p69, %p70
    %p72 = scmp.ne.s32.totalorder %s61, %s62
    %p73 = scmp.eq.s32.totalorder %s13, 0
    %p74 = por %p72, %p73
    %p75 = scmp.ne.s32.totalorder %s61, %s62
    %p76 = scmp.eq.s32.totalorder %s14, 1
    %p77 = por %p75, %p76
    %p79 = scmp.ne.s32.totalorder %s62, %s78
    %p80 = scmp.eq.s32.totalorder %s14, 0
    %p81 = por %p79, %p80
    %s82 = ssub.s32 %s15, %s27
    %s83 = ssub.s32 %s16, %s23
    %s84 = sor.u32 %s82, %s83
    %p85 = scmp.eq.s32.totalorder %s84, 0
    %s87 = sadd.s32 %s86, 1
    %s88 = scalar_select %p85, %s86, %s87
    %p91 = pneg %p85
    %p92 = scmp.eq.s32.totalorder %s8, 1
    %p93 = por %p91, %p92
    %p94 = scmp.ne.s32.totalorder %s86, %s89
    %p95 = scmp.eq.s32.totalorder %s8, 0
    %p96 = por %p94, %p95
    %p97 = scmp.ne.s32.totalorder %s86, %s89
    %p98 = scmp.eq.s32.totalorder %s13, 1
    %p99 = por %p97, %p98
    %p100 = scmp.ne.s32.totalorder %s89, %s90
    %p101 = scmp.eq.s32.totalorder %s13, 0
    %p102 = por %p100, %p101
    %p103 = scmp.ne.s32.totalorder %s89, %s90
    %p104 = scmp.eq.s32.totalorder %s14, 1
    %p105 = por %p103, %p104
    %p107 = scmp.ne.s32.totalorder %s90, %s106
    %p108 = scmp.eq.s32.totalorder %s14, 0
    %p109 = por %p107, %p108
    %p110 = scmp.le.s32.totalorder 1, %s8
    %p111 = scmp.lt.s32.totalorder %s8, 3
    %p112 = pnand %p110, %p111
    %p113 = pneg %p112
    // Predicated region
    $region9: #{proposal_network_forward.3} parent=5 // pred_check
      _
    $region10: #{proposal_network_forward.3} parent=5 // pred_check_branch
      %115 = sbr.rel (%p112) target = $region12
    $region11: #{proposal_network_forward.3} parent=5 // pred_region
      %s116 = ssub.s32 %s8, 1
      // Predicated region
      $region13: #{proposal_network_forward.3} parent=11 // pred_check
        %p117 = pneg %p46
      $region14: #{proposal_network_forward.3} parent=11 // pred_check_branch
        %119 = sbr.rel (%p117) target = $region16
      $region15: #{proposal_network_forward.3} parent=11 // pred_region
        %s120 = smul.u32 6, %s18
        %p121 = scmp.lt.s32.totalorder %s120, 5
        %s122 = scalar_select %p121, %s120, 5
        %s123 = smul.addr %s122, 4
        %s124 = scalar_lea.vmem %s0, %s123
        %s125 = smul.u32 6, %s18
      $region16: #{proposal_network_forward.3} parent=11 // pred_fallthru
        _
    $region12: #{proposal_network_forward.3} parent=5 // pred_fallthru
      _
    %p126 = scmp.lt.s32.totalorder %s8, 2
    // Predicated region
    $region17: #{proposal_network_forward.3} parent=5 // pred_check
      %p127 = pneg %p126
    $region18: #{proposal_network_forward.3} parent=5 // pred_check_branch
      %129 = sbr.rel (%p127) target = $region20
    $region19: #{proposal_network_forward.3} parent=5 // pred_region
      // Predicated region
      $region21: #{proposal_network_forward.3} parent=19 // pred_check
        %p130 = pneg %p68
      $region22: #{proposal_network_forward.3} parent=19 // pred_check_branch
        %132 = sbr.rel (%p130) target = $region24
      $region23: #{proposal_network_forward.3} parent=19 // pred_region
        %s133 = smul.u32 6, %s16
        %p134 = scmp.lt.s32.totalorder %s15, 1
        %s135 = scalar_select %p134, %s15, 1
        %p136 = scmp.lt.s32.totalorder %s133, 5
        %s137 = scalar_select %p136, %s133, 5
        %s138 = smul.addr %s135, 6
        %s139 = sadd.s32 %s137, %s138
        %s140 = smul.addr %s139, 4
        %s141 = scalar_lea.vmem %s1, %s140
        %s142 = smul.u32 6, %s16
      $region24: #{proposal_network_forward.3} parent=19 // pred_fallthru
        _
    $region20: #{proposal_network_forward.3} parent=5 // pred_fallthru
      _
    %p143 = scmp.le.s32.totalorder 1, %s8
    %p144 = scmp.lt.s32.totalorder %s8, 3
    %p145 = pnand %p143, %p144
    %p146 = pneg %p145
    // Predicated region
    $region25: #{proposal_network_forward.3} parent=5 // pred_check
      _
    $region26: #{proposal_network_forward.3} parent=5 // pred_check_branch
      %148 = sbr.rel (%p145) target = $region28
    $region27: #{proposal_network_forward.3} parent=5 // pred_region
      %s149 = ssub.s32 %s8, 1
      %s150 = smul.u32 6, %s18
      %p151 = scmp.lt.s32.totalorder %s150, 5
      %s152 = scalar_select %p151, %s150, 5
      %s153 = smul.addr %s152, 4
      %s154 = scalar_lea.vmem %s0, %s153
      %p155 = pneg %p46
      %p156 = pneg %p43
      %s157 = smul.u32 6, %s18
      %p158 = scmp.lt.s32.totalorder %s17, 1
      %s159 = scalar_select %p158, %s17, 1
      %p160 = scmp.lt.s32.totalorder %s157, 5
      %s161 = scalar_select %p160, %s157, 5
      %s162 = smul.addr %s159, 6
      %s163 = sadd.s32 %s161, %s162
      %s164 = smul.addr %s163, 4
      %s165 = scalar_lea.vmem %s1, %s164
      %p166 = pneg %p74
      %p167 = pneg %p71
      %p168 = pneg %p102
      %p169 = pneg %p99
      %s170 = smul.u32 6, %s18
      %p171 = scmp.lt.s32.totalorder %s17, 1
      %s172 = scalar_select %p171, %s17, 1
      %p173 = scmp.lt.s32.totalorder %s170, 5
      %s174 = scalar_select %p173, %s170, 5
      %s175 = smul.addr %s172, 6
      %s176 = sadd.s32 %s174, %s175
      %s177 = smul.addr %s176, 4
      %s178 = scalar_lea.vmem %s2, %s177
      %s179 = smul.u32 6, %s18
      %p180 = scmp.lt.s32.totalorder %s179, 5
      %s181 = scalar_select %p180, %s179, 5
      %s182 = smul.addr %s181, 4
      %s183 = scalar_lea.vmem %s0, %s182
      %s184 = smul.u32 6, %s18
      %s185 = smul.u32 6, %s18
      %p186 = scmp.lt.s32.totalorder %s17, 1
      %s187 = scalar_select %p186, %s17, 1
      %p188 = scmp.lt.s32.totalorder %s185, 5
      %s189 = scalar_select %p188, %s185, 5
      %s190 = smul.addr %s187, 6
      %s191 = sadd.s32 %s189, %s190
      %s192 = smul.addr %s191, 4
      %s193 = scalar_lea.vmem %s1, %s192
      %s194 = smul.u32 6, %s18
      %s195 = smul.u32 6, %s18
      %p196 = scmp.lt.s32.totalorder %s17, 1
      %s197 = scalar_select %p196, %s17, 1
      %p198 = scmp.lt.s32.totalorder %s195, 5
      %s199 = scalar_select %p198, %s195, 5
      %s200 = smul.addr %s197, 6
      %s201 = sadd.s32 %s199, %s200
      %s202 = smul.addr %s201, 4
      %s203 = scalar_lea.vmem %s2, %s202
      %s204 = smul.u32 6, %s18
      %v205 = vld [vmem:[%s183] sm:$0xff]
      %v206 = vld [vmem:[%s183 + $0x8] sm:$0xff]
      %v207 = vld [vmem:[%s183 + $0x10] sm:$0xff]
      %v208 = vld [vmem:[%s193] sm:$0xff]
      %v209 = vld [vmem:[%s193 + $0x8] sm:$0xff]
      %v210 = vld [vmem:[%s193 + $0x10] sm:$0xff]
      %v211 = vmin.f32 %v208, 4.1351666
      %v212 = vmin.f32 %v209, 4.1351666
      %v213 = vmin.f32 %v210, 4.1351666
      %v217 = vrot.slane %v205, 6
      %v218 = vrot.slane %v206, 6
      %v219 = vrot.slane %v207, 6
      %v223 = vsub.f32 %v205, %v217
      %v224 = vsub.f32 %v206, %v218
      %v225 = vsub.f32 %v207, %v219
      %v226 = vmul.f32 %v223, 0.5
      %v227 = vmul.f32 %v224, 0.5
      %v228 = vmul.f32 %v225, 0.5
      %v232 = vrot.slane %v226, 6
      %v233 = vrot.slane %v232, 4
      %v234 = vrot.slane %v227, 6
      %v235 = vrot.slane %v234, 4
      %v236 = vrot.slane %v228, 6
      %v237 = vrot.slane %v236, 4
      %v241 = vadd.f32 %v205, %v233
      %v242 = vadd.f32 %v206, %v235
      %v243 = vadd.f32 %v207, %v237
      %v247 = vrot.slane %v223, 6
      %v248 = vrot.slane %v247, 4
      %v249 = vrot.slane %v224, 6
      %v250 = vrot.slane %v249, 4
      %v251 = vrot.slane %v225, 6
      %v252 = vrot.slane %v251, 4
      %v256 = vmul.f32 %v208, %v248
      %v257 = vmul.f32 %v209, %v250
      %v258 = vmul.f32 %v210, %v252
      %v259 = vadd.f32 %v256, %v241
      %v260 = vadd.f32 %v257, %v242
      %v261 = vadd.f32 %v258, %v243
      %v262 = vmul.f32 %v211, 1.442695
      %v263 = vpow.pop %v262
      %v264 = vmul.f32 %v212, 1.442695
      %v265 = vpow.pop %v264
      %v266 = vmul.f32 %v213, 1.442695
      %v267 = vpow.pop %v266
      %v268 = vmul.f32 %v263, %v223
      %v269 = vmul.f32 %v265, %v224
      %v270 = vmul.f32 %v267, %v225
      %v271 = vmul.f32 %v268, 0.5
      %v272 = vmul.f32 %v269, 0.5
      %v273 = vmul.f32 %v270, 0.5
      %v277 = vrot.slane %v271, 6
      %v278 = vrot.slane %v277, 4
      %v279 = vrot.slane %v272, 6
      %v280 = vrot.slane %v279, 4
      %v281 = vrot.slane %v273, 6
      %v282 = vrot.slane %v281, 4
      %v286 = vsub.f32 %v259, %v278
      %v287 = vsub.f32 %v260, %v280
      %v288 = vsub.f32 %v261, %v282
      %v289 = vmax.f32 %v286, 0.0
      %v290 = vmax.f32 %v287, 0.0
      %v291 = vmax.f32 %v288, 0.0
      %v292 = vmin.f32 %v289, 16.0
      %v293 = vmin.f32 %v290, 16.0
      %v294 = vmin.f32 %v291, 16.0
      %v298 = vrot.slane %v292, 3
      %v299 = vrot.slane %v293, 6
      %v300 = vrot.slane %v293, 1
      %v301 = vrot.slane %v294, 4
      %v302 = vrot.slane %v294, 7
      %vm303 = vcmask 1040384
      %v304 = vsel %vm303, %v292, %v298
      %vm305 = vcmask 1041408
      %v306 = vsel %vm305, %v304, %v299
      %vm307 = vcmask 1043459
      %v308 = vsel %vm307, %v300, %v301
      %vm309 = vcmask 1044483
      %v310 = vsel %vm309, %v308, %v302
      %vm311 = vcmask 1042432
      %v312 = vsel %vm311, %v306, %v310
      %v314 = vlaneseq
      %vm315 = vcmp.ge.s32.totalorder %v314, 0
      %vm316 = vcmp.lt.s32.totalorder %v314, 768
      %vm317 = vmand %vm315, %vm316
      %318 = vst.msk [vmem:[%s203] ss:$4 sm:$0x3f] %vm317, %v312
      %319 = vst [vmem:[#allocation1] sm:$0xff] %v292
      %320 = vst [vmem:[#allocation1 + $0x8] sm:$0xff] %v293
      %321 = vst [vmem:[#allocation1 + $0x10] sm:$0xff] %v294
      %s322 = scalar_lea.vmem [#allocation1], 1
      %v323 = vld [vmem:[%s322] ss:$4 sm:$0xff]
      %s325 = scalar_lea.vmem %s203, 1
      %326 = vst.msk [vmem:[%s325] ss:$4 sm:$0x3f] %vm317, %v323
      %v327 = vadd.f32 %v259, %v278
      %v328 = vadd.f32 %v260, %v280
      %v329 = vadd.f32 %v261, %v282
      %v330 = vmax.f32 %v327, 0.0
      %v331 = vmax.f32 %v328, 0.0
      %v332 = vmax.f32 %v329, 0.0
      %v333 = vmin.f32 %v330, 16.0
      %v334 = vmin.f32 %v331, 16.0
      %v335 = vmin.f32 %v332, 16.0
      %v339 = vrot.slane %v333, 3
      %v340 = vrot.slane %v334, 6
      %v341 = vrot.slane %v334, 1
      %v342 = vrot.slane %v335, 4
      %v343 = vrot.slane %v335, 7
      %v344 = vsel %vm303, %v333, %v339
      %v345 = vsel %vm305, %v344, %v340
      %v346 = vsel %vm307, %v341, %v342
      %v347 = vsel %vm309, %v346, %v343
      %v348 = vsel %vm311, %v345, %v347
      %s350 = scalar_lea.vmem %s203, 2
      %351 = vst.msk [vmem:[%s350] ss:$4 sm:$0x3f] %vm317, %v348
      %352 = vst [vmem:[#allocation1] sm:$0xff] %v333
      %353 = vst [vmem:[#allocation1 + $0x8] sm:$0xff] %v334
      %354 = vst [vmem:[#allocation1 + $0x10] sm:$0xff] %v335
      %s355 = scalar_lea.vmem [#allocation1], 1
      %v356 = vld [vmem:[%s355] ss:$4 sm:$0xff]
      %s358 = scalar_lea.vmem %s203, 3
      %359 = vst.msk [vmem:[%s358] ss:$4 sm:$0x3f] %vm317, %v356
      %s360 = smul.u32 6, %s18
      %p361 = scmp.lt.s32.totalorder %s17, 1
      %s362 = scalar_select %p361, %s17, 1
      %p363 = scmp.lt.s32.totalorder %s360, 5
      %s364 = scalar_select %p363, %s360, 5
      %s365 = smul.addr %s362, 6
      %s366 = sadd.s32 %s364, %s365
      %s367 = smul.addr %s366, 4
      %s368 = scalar_lea.vmem %s2, %s367
      // Predicated region
      $region29: #{proposal_network_forward.3} parent=27 // pred_check
        %p369 = pneg %p99
      $region30: #{proposal_network_forward.3} parent=27 // pred_check_branch
        %371 = sbr.rel (%p369) target = $region32
      $region31: #{proposal_network_forward.3} parent=27 // pred_region
        %s372 = smul.u32 6, %s18
      $region32: #{proposal_network_forward.3} parent=27 // pred_fallthru
        _
    $region28: #{proposal_network_forward.3} parent=5 // pred_fallthru
      _
    %p373 = scmp.le.s32.totalorder 2, %s8
    // Predicated region
    $region33: #{proposal_network_forward.3} parent=5 // pred_check
      %p374 = pneg %p373
    $region34: #{proposal_network_forward.3} parent=5 // pred_check_branch
      %376 = sbr.rel (%p374) target = $region36
    $region35: #{proposal_network_forward.3} parent=5 // pred_region
      %s377 = ssub.s32 %s8, 2
      // Predicated region
      $region37: #{proposal_network_forward.3} parent=35 // pred_check
        %p378 = pneg %p105
      $region38: #{proposal_network_forward.3} parent=35 // pred_check_branch
        %380 = sbr.rel (%p378) target = $region40
      $region39: #{proposal_network_forward.3} parent=35 // pred_region
        %s381 = smul.u32 6, %s20
        %p382 = scmp.lt.s32.totalorder %s19, 1
        %s383 = scalar_select %p382, %s19, 1
        %p384 = scmp.lt.s32.totalorder %s381, 5
        %s385 = scalar_select %p384, %s381, 5
        %s386 = smul.addr %s383, 6
        %s387 = sadd.s32 %s385, %s386
        %s388 = smul.addr %s387, 4
        %s389 = scalar_lea.vmem %s2, %s388
      $region40: #{proposal_network_forward.3} parent=35 // pred_fallthru
        _
    $region36: #{proposal_network_forward.3} parent=5 // pred_fallthru
      _
  $region6: #{proposal_network_forward.3} parent=0 // loop_footer
    %s12 = sadd.s32 1, %s8
  $region7: #{proposal_network_forward.3} parent=0 // loop_footer_branch
    %7 = sbr.rel target = $region3
  $region8: #{proposal_network_forward.3} parent=0 // loop_exit
    _

// kernel: proposal_network_forward.2
$region0: #{proposal_network_forward.2}
  #allocation0 [shape = 'u32[]', space=smem, size = 0x4, offset = 0x4, fixed_abs, tag = 'smem constant byte address 0x4 - core index']
  #allocation1 [shape = 'u32[72,128]{1,0:T(1,128)}', space=vmem, size = 0x9000, scoped, tag = 'internal scratch']
  #allocation2 [shape = 'bf16[304,3]{1,0:T(8,128)(2,1)}', space=vmem, size = 0x13000, scoped, tag = 'scratch operand']
  #allocation3 [shape = 'bf16[304,32]{1,0:T(8,128)(2,1)}', space=vmem, size = 0x13000, scoped, tag = 'scratch operand']
  %s0 = inlined_call_operand.vmem [shape: f32[2,256,3], index: 0, kind: input, shape index: {}]
  %s1 = inlined_call_operand.vmem [shape: f32[1,3], index: 1, kind: input, shape index: {}]
  %s2 = inlined_call_operand.vmem [shape: f32[1,3], index: 2, kind: input, shape index: {}]
  %s3 = inlined_call_operand.vmem [shape: bf16[9,3,32], index: 3, kind: input, shape index: {}]
  %s4 = inlined_call_operand.vmem [shape: f32[1,32], index: 4, kind: input, shape index: {}]
  %s5 = inlined_call_operand.vmem [shape: bf16[9,32,32], index: 5, kind: input, shape index: {}]
  %s6 = inlined_call_operand.vmem [shape: f32[1,32], index: 6, kind: input, shape index: {}]
  %s7 = inlined_call_operand.vmem [shape: bf16[32,128], index: 7, kind: input, shape index: {}]
  %s8 = inlined_call_operand.vmem [shape: f32[1,128], index: 8, kind: input, shape index: {}]
  %s9 = inlined_call_operand.vmem [shape: f32[2,256,128], index: 9, kind: output, shape index: {}]
  %s10 = sld [smem:[#allocation0]]
  $region69: #{proposal_network_forward.2} parent=0
    _
  %s12 = ssub.s32 1, %s10
  %s13 = scalar_select 0, %s12, %s10
  loop: start=0, step=1, limit=4
  $region2: #{proposal_network_forward.2} parent=0 // loop_pre_header
    _
  $region3: #{proposal_network_forward.2} parent=0 // loop_header
    %s15 = sphi 0, %s19
    %p16 = scmp.ge.s32.totalorder %s15, 4
    %s25 = sphi 0, %s27
    %s28 = sphi 0, %s25
    %s29 = sphi 0, %s28
    %s45 = sphi 0, %s29
    %s49 = sphi 0, %s49
    %s51 = sphi 0, %s49
    %s52 = sphi 0, %s51
    %s66 = sphi 0, %s52
    %s70 = sphi 0, %s70
    %s72 = sphi 0, %s70
    %s73 = sphi 0, %s72
    %s87 = sphi 0, %s73
    %s91 = sphi 0, %s91
    %s93 = sphi 0, %s91
    %s94 = sphi 0, %s93
    %s108 = sphi 0, %s94
    %s112 = sphi 0, %s112
    %s114 = sphi 0, %s112
    %s115 = sphi 0, %s114
    %s129 = sphi 0, %s115
    %s133 = sphi 0, %s133
    %s135 = sphi 0, %s133
    %s136 = sphi 0, %s135
    %s150 = sphi 0, %s136
    %s154 = sphi 0, %s154
    %s156 = sphi 0, %s154
    %s157 = sphi 0, %s156
    %s171 = sphi 0, %s157
    %s175 = sphi 0, %s175
    %s177 = sphi 0, %s175
    %s178 = sphi 0, %s177
    %s192 = sphi 0, %s178
    %s196 = sphi 0, %s196
    %s198 = sphi 0, %s196
    %s199 = sphi 0, %s198
    %s213 = sphi 0, %s199
    %s219 = sphi 0, %s221
    %s222 = sphi 0, %s219
    %s223 = sphi 0, %s222
    %s239 = sphi 0, %s223
  $region4: #{proposal_network_forward.2} parent=0 // loop_header_branch
    %18 = sbr.rel (%p16) target = $region8
  $region5: #{proposal_network_forward.2} parent=0 // loop_body
    %s20 = ssub.s32 %s15, 1
    %s21 = ssub.s32 %s15, 2
    %s22 = sadd.s32 %s15, 1
    %s23 = ssub.s32 %s15, %s22
    %p24 = scmp.eq.s32.totalorder %s23, 0
    %s26 = sadd.s32 %s25, 1
    %s27 = scalar_select %p24, %s25, %s26
    %p30 = pneg %p24
    %p31 = scmp.eq.s32.totalorder %s15, 1
    %p32 = por %p30, %p31
    %p33 = scmp.ne.s32.totalorder %s25, %s28
    %p34 = scmp.eq.s32.totalorder %s15, 0
    %p35 = por %p33, %p34
    %p36 = scmp.ne.s32.totalorder %s25, %s28
    %p37 = scmp.eq.s32.totalorder %s20, 1
    %p38 = por %p36, %p37
    %p39 = scmp.ne.s32.totalorder %s28, %s29
    %p40 = scmp.eq.s32.totalorder %s20, 0
    %p41 = por %p39, %p40
    %p42 = scmp.ne.s32.totalorder %s28, %s29
    %p43 = scmp.eq.s32.totalorder %s21, 1
    %p44 = por %p42, %p43
    %p46 = scmp.ne.s32.totalorder %s29, %s45
    %p47 = scmp.eq.s32.totalorder %s21, 0
    %p48 = por %p46, %p47
    %s50 = sadd.s32 %s49, 1
    %p53 = scmp.eq.s32.totalorder %s15, 1
    %p54 = scmp.ne.s32.totalorder %s49, %s51
    %p55 = scmp.eq.s32.totalorder %s15, 0
    %p56 = por %p54, %p55
    %p57 = scmp.ne.s32.totalorder %s49, %s51
    %p58 = scmp.eq.s32.totalorder %s20, 1
    %p59 = por %p57, %p58
    %p60 = scmp.ne.s32.totalorder %s51, %s52
    %p61 = scmp.eq.s32.totalorder %s20, 0
    %p62 = por %p60, %p61
    %p63 = scmp.ne.s32.totalorder %s51, %s52
    %p64 = scmp.eq.s32.totalorder %s21, 1
    %p65 = por %p63, %p64
    %p67 = scmp.ne.s32.totalorder %s52, %s66
    %p68 = scmp.eq.s32.totalorder %s21, 0
    %p69 = por %p67, %p68
    %s71 = sadd.s32 %s70, 1
    %p74 = scmp.eq.s32.totalorder %s15, 1
    %p75 = scmp.ne.s32.totalorder %s70, %s72
    %p76 = scmp.eq.s32.totalorder %s15, 0
    %p77 = por %p75, %p76
    %p78 = scmp.ne.s32.totalorder %s70, %s72
    %p79 = scmp.eq.s32.totalorder %s20, 1
    %p80 = por %p78, %p79
    %p81 = scmp.ne.s32.totalorder %s72, %s73
    %p82 = scmp.eq.s32.totalorder %s20, 0
    %p83 = por %p81, %p82
    %p84 = scmp.ne.s32.totalorder %s72, %s73
    %p85 = scmp.eq.s32.totalorder %s21, 1
    %p86 = por %p84, %p85
    %p88 = scmp.ne.s32.totalorder %s73, %s87
    %p89 = scmp.eq.s32.totalorder %s21, 0
    %p90 = por %p88, %p89
    %s92 = sadd.s32 %s91, 1
    %p95 = scmp.eq.s32.totalorder %s15, 1
    %p96 = scmp.ne.s32.totalorder %s91, %s93
    %p97 = scmp.eq.s32.totalorder %s15, 0
    %p98 = por %p96, %p97
    %p99 = scmp.ne.s32.totalorder %s91, %s93
    %p100 = scmp.eq.s32.totalorder %s20, 1
    %p101 = por %p99, %p100
    %p102 = scmp.ne.s32.totalorder %s93, %s94
    %p103 = scmp.eq.s32.totalorder %s20, 0
    %p104 = por %p102, %p103
    %p105 = scmp.ne.s32.totalorder %s93, %s94
    %p106 = scmp.eq.s32.totalorder %s21, 1
    %p107 = por %p105, %p106
    %p109 = scmp.ne.s32.totalorder %s94, %s108
    %p110 = scmp.eq.s32.totalorder %s21, 0
    %p111 = por %p109, %p110
    %s113 = sadd.s32 %s112, 1
    %p116 = scmp.eq.s32.totalorder %s15, 1
    %p117 = scmp.ne.s32.totalorder %s112, %s114
    %p118 = scmp.eq.s32.totalorder %s15, 0
    %p119 = por %p117, %p118
    %p120 = scmp.ne.s32.totalorder %s112, %s114
    %p121 = scmp.eq.s32.totalorder %s20, 1
    %p122 = por %p120, %p121
    %p123 = scmp.ne.s32.totalorder %s114, %s115
    %p124 = scmp.eq.s32.totalorder %s20, 0
    %p125 = por %p123, %p124
    %p126 = scmp.ne.s32.totalorder %s114, %s115
    %p127 = scmp.eq.s32.totalorder %s21, 1
    %p128 = por %p126, %p127
    %p130 = scmp.ne.s32.totalorder %s115, %s129
    %p131 = scmp.eq.s32.totalorder %s21, 0
    %p132 = por %p130, %p131
    %s134 = sadd.s32 %s133, 1
    %p137 = scmp.eq.s32.totalorder %s15, 1
    %p138 = scmp.ne.s32.totalorder %s133, %s135
    %p139 = scmp.eq.s32.totalorder %s15, 0
    %p140 = por %p138, %p139
    %p141 = scmp.ne.s32.totalorder %s133, %s135
    %p142 = scmp.eq.s32.totalorder %s20, 1
    %p143 = por %p141, %p142
    %p144 = scmp.ne.s32.totalorder %s135, %s136
    %p145 = scmp.eq.s32.totalorder %s20, 0
    %p146 = por %p144, %p145
    %p147 = scmp.ne.s32.totalorder %s135, %s136
    %p148 = scmp.eq.s32.totalorder %s21, 1
    %p149 = por %p147, %p148
    %p151 = scmp.ne.s32.totalorder %s136, %s150
    %p152 = scmp.eq.s32.totalorder %s21, 0
    %p153 = por %p151, %p152
    %s155 = sadd.s32 %s154, 1
    %p158 = scmp.eq.s32.totalorder %s15, 1
    %p159 = scmp.ne.s32.totalorder %s154, %s156
    %p160 = scmp.eq.s32.totalorder %s15, 0
    %p161 = por %p159, %p160
    %p162 = scmp.ne.s32.totalorder %s154, %s156
    %p163 = scmp.eq.s32.totalorder %s20, 1
    %p164 = por %p162, %p163
    %p165 = scmp.ne.s32.totalorder %s156, %s157
    %p166 = scmp.eq.s32.totalorder %s20, 0
    %p167 = por %p165, %p166
    %p168 = scmp.ne.s32.totalorder %s156, %s157
    %p169 = scmp.eq.s32.totalorder %s21, 1
    %p170 = por %p168, %p169
    %p172 = scmp.ne.s32.totalorder %s157, %s171
    %p173 = scmp.eq.s32.totalorder %s21, 0
    %p174 = por %p172, %p173
    %s176 = sadd.s32 %s175, 1
    %p179 = scmp.eq.s32.totalorder %s15, 1
    %p180 = scmp.ne.s32.totalorder %s175, %s177
    %p181 = scmp.eq.s32.totalorder %s15, 0
    %p182 = por %p180, %p181
    %p183 = scmp.ne.s32.totalorder %s175, %s177
    %p184 = scmp.eq.s32.totalorder %s20, 1
    %p185 = por %p183, %p184
    %p186 = scmp.ne.s32.totalorder %s177, %s178
    %p187 = scmp.eq.s32.totalorder %s20, 0
    %p188 = por %p186, %p187
    %p189 = scmp.ne.s32.totalorder %s177, %s178
    %p190 = scmp.eq.s32.totalorder %s21, 1
    %p191 = por %p189, %p190
    %p193 = scmp.ne.s32.totalorder %s178, %s192
    %p194 = scmp.eq.s32.totalorder %s21, 0
    %p195 = por %p193, %p194
    %s197 = sadd.s32 %s196, 1
    %p200 = scmp.eq.s32.totalorder %s15, 1
    %p201 = scmp.ne.s32.totalorder %s196, %s198
    %p202 = scmp.eq.s32.totalorder %s15, 0
    %p203 = por %p201, %p202
    %p204 = scmp.ne.s32.totalorder %s196, %s198
    %p205 = scmp.eq.s32.totalorder %s20, 1
    %p206 = por %p204, %p205
    %p207 = scmp.ne.s32.totalorder %s198, %s199
    %p208 = scmp.eq.s32.totalorder %s20, 0
    %p209 = por %p207, %p208
    %p210 = scmp.ne.s32.totalorder %s198, %s199
    %p211 = scmp.eq.s32.totalorder %s21, 1
    %p212 = por %p210, %p211
    %p214 = scmp.ne.s32.totalorder %s199, %s213
    %p215 = scmp.eq.s32.totalorder %s21, 0
    %p216 = por %p214, %p215
    %s217 = ssub.s32 %s15, %s22
    %p218 = scmp.eq.s32.totalorder %s217, 0
    %s220 = sadd.s32 %s219, 1
    %s221 = scalar_select %p218, %s219, %s220
    %p224 = pneg %p218
    %p225 = scmp.eq.s32.totalorder %s15, 1
    %p226 = por %p224, %p225
    %p227 = scmp.ne.s32.totalorder %s219, %s222
    %p228 = scmp.eq.s32.totalorder %s15, 0
    %p229 = por %p227, %p228
    %p230 = scmp.ne.s32.totalorder %s219, %s222
    %p231 = scmp.eq.s32.totalorder %s20, 1
    %p232 = por %p230, %p231
    %p233 = scmp.ne.s32.totalorder %s222, %s223
    %p234 = scmp.eq.s32.totalorder %s20, 0
    %p235 = por %p233, %p234
    %p236 = scmp.ne.s32.totalorder %s222, %s223
    %p237 = scmp.eq.s32.totalorder %s21, 1
    %p238 = por %p236, %p237
    %p240 = scmp.ne.s32.totalorder %s223, %s239
    %p241 = scmp.eq.s32.totalorder %s21, 0
    %p242 = por %p240, %p241
    %p243 = scmp.le.s32.totalorder 1, %s15
    %p244 = scmp.lt.s32.totalorder %s15, 3
    %p245 = pnand %p243, %p244
    %p246 = pneg %p245
    // Predicated region
    $region9: #{proposal_network_forward.2} parent=5 // pred_check
      _
    $region10: #{proposal_network_forward.2} parent=5 // pred_check_branch
      %248 = sbr.rel (%p245) target = $region12
    $region11: #{proposal_network_forward.2} parent=5 // pred_region
      %s249 = ssub.s32 %s15, 1
      // Predicated region
      $region13: #{proposal_network_forward.2} parent=11 // pred_check
        %p250 = pneg %p62
      $region14: #{proposal_network_forward.2} parent=11 // pred_check_branch
        %252 = sbr.rel (%p250) target = $region16
      $region15: #{proposal_network_forward.2} parent=11 // pred_region
        _
      $region16: #{proposal_network_forward.2} parent=11 // pred_fallthru
        _
      // Predicated region
      $region17: #{proposal_network_forward.2} parent=11 // pred_check
        %p253 = pneg %p83
      $region18: #{proposal_network_forward.2} parent=11 // pred_check_branch
        %255 = sbr.rel (%p253) target = $region20
      $region19: #{proposal_network_forward.2} parent=11 // pred_region
        _
      $region20: #{proposal_network_forward.2} parent=11 // pred_fallthru
        _
      // Predicated region
      $region21: #{proposal_network_forward.2} parent=11 // pred_check
        %p256 = pneg %p104
      $region22: #{proposal_network_forward.2} parent=11 // pred_check_branch
        %258 = sbr.rel (%p256) target = $region24
      $region23: #{proposal_network_forward.2} parent=11 // pred_region
        _
      $region24: #{proposal_network_forward.2} parent=11 // pred_fallthru
        _
      // Predicated region
      $region25: #{proposal_network_forward.2} parent=11 // pred_check
        %p259 = pneg %p125
      $region26: #{proposal_network_forward.2} parent=11 // pred_check_branch
        %261 = sbr.rel (%p259) target = $region28
      $region27: #{proposal_network_forward.2} parent=11 // pred_region
        _
      $region28: #{proposal_network_forward.2} parent=11 // pred_fallthru
        _
      // Predicated region
      $region29: #{proposal_network_forward.2} parent=11 // pred_check
        %p262 = pneg %p146
      $region30: #{proposal_network_forward.2} parent=11 // pred_check_branch
        %264 = sbr.rel (%p262) target = $region32
      $region31: #{proposal_network_forward.2} parent=11 // pred_region
        _
      $region32: #{proposal_network_forward.2} parent=11 // pred_fallthru
        _
      // Predicated region
      $region33: #{proposal_network_forward.2} parent=11 // pred_check
        %p265 = pneg %p167
      $region34: #{proposal_network_forward.2} parent=11 // pred_check_branch
        %267 = sbr.rel (%p265) target = $region36
      $region35: #{proposal_network_forward.2} parent=11 // pred_region
        _
      $region36: #{proposal_network_forward.2} parent=11 // pred_fallthru
        _
      // Predicated region
      $region37: #{proposal_network_forward.2} parent=11 // pred_check
        %p268 = pneg %p188
      $region38: #{proposal_network_forward.2} parent=11 // pred_check_branch
        %270 = sbr.rel (%p268) target = $region40
      $region39: #{proposal_network_forward.2} parent=11 // pred_region
        _
      $region40: #{proposal_network_forward.2} parent=11 // pred_fallthru
        _
      // Predicated region
      $region41: #{proposal_network_forward.2} parent=11 // pred_check
        %p271 = pneg %p209
      $region42: #{proposal_network_forward.2} parent=11 // pred_check_branch
        %273 = sbr.rel (%p271) target = $region44
      $region43: #{proposal_network_forward.2} parent=11 // pred_region
        _
      $region44: #{proposal_network_forward.2} parent=11 // pred_fallthru
        _
    $region12: #{proposal_network_forward.2} parent=5 // pred_fallthru
      _
    %p274 = scmp.lt.s32.totalorder %s15, 2
    // Predicated region
    $region45: #{proposal_network_forward.2} parent=5 // pred_check
      %p275 = pneg %p274
    $region46: #{proposal_network_forward.2} parent=5 // pred_check_branch
      %277 = sbr.rel (%p275) target = $region48
    $region47: #{proposal_network_forward.2} parent=5 // pred_region
      // Predicated region
      $region49: #{proposal_network_forward.2} parent=47 // pred_check
        %p278 = pneg %p35
      $region50: #{proposal_network_forward.2} parent=47 // pred_check_branch
        %280 = sbr.rel (%p278) target = $region52
      $region51: #{proposal_network_forward.2} parent=47 // pred_region
        %p281 = scmp.lt.s32.totalorder %s15, 1
        %s282 = scalar_select %p281, %s15, 1
        %s283 = smul.addr %s282, 32
        %s284 = smul.addr %s283, 8
        %s285 = scalar_lea.vmem %s0, %s284
      $region52: #{proposal_network_forward.2} parent=47 // pred_fallthru
        _
    $region48: #{proposal_network_forward.2} parent=5 // pred_fallthru
      _
    %p286 = scmp.le.s32.totalorder 1, %s15
    %p287 = scmp.lt.s32.totalorder %s15, 3
    %p288 = pnand %p286, %p287
    %p289 = pneg %p288
    // Predicated region
    $region53: #{proposal_network_forward.2} parent=5 // pred_check
      _
    $region54: #{proposal_network_forward.2} parent=5 // pred_check_branch
      %291 = sbr.rel (%p288) target = $region56
    $region55: #{proposal_network_forward.2} parent=5 // pred_region
      %s292 = ssub.s32 %s15, 1
      %p293 = scmp.lt.s32.totalorder %s20, 1
      %s294 = scalar_select %p293, %s20, 1
      %s295 = smul.addr %s294, 32
      %s296 = smul.addr %s295, 8
      %s297 = scalar_lea.vmem %s0, %s296
      %p298 = pneg %p41
      %p299 = pneg %p38
      %p300 = pneg %p62
      %p301 = pneg %p59
      %p302 = pneg %p83
      %p303 = pneg %p80
      %p304 = pneg %p104
      %p305 = pneg %p101
      %p306 = pneg %p125
      %p307 = pneg %p122
      %p308 = pneg %p146
      %p309 = pneg %p143
      %p310 = pneg %p167
      %p311 = pneg %p164
      %p312 = pneg %p188
      %p313 = pneg %p185
      %p314 = pneg %p209
      %p315 = pneg %p206
      %p316 = pneg %p235
      %p317 = pneg %p232
      %p318 = scmp.lt.s32.totalorder %s20, 1
      %s319 = scalar_select %p318, %s20, 1
      %s320 = smul.addr %s319, 32
      %s321 = smul.addr %s320, 8
      %s322 = scalar_lea.vmem %s9, %s321
      %p323 = scmp.lt.s32.totalorder %s20, 1
      %s324 = scalar_select %p323, %s20, 1
      %s325 = smul.addr %s324, 32
      %s326 = smul.addr %s325, 8
      %s327 = scalar_lea.vmem %s0, %s326
      %p328 = scmp.lt.s32.totalorder %s20, 1
      %s329 = scalar_select %p328, %s20, 1
      %s330 = smul.addr %s329, 32
      %s331 = smul.addr %s330, 8
      %s332 = scalar_lea.vmem %s9, %s331
      %v336 = vld [vmem:[%s327] sm:$0xff]
      %v337 = vld [vmem:[%s327 + $0x8] sm:$0xff]
      %v338 = vld [vmem:[%s327 + $0x10] sm:$0xff]
      %v339 = vld [vmem:[%s327 + $0x18] sm:$0xff]
      %v340 = vld [vmem:[%s327 + $0x20] sm:$0xff]
      %v341 = vld [vmem:[%s327 + $0x28] sm:$0xff]
      %v342 = vld [vmem:[%s327 + $0x30] sm:$0xff]
      %v343 = vld [vmem:[%s327 + $0x38] sm:$0xff]
      %v344 = vld [vmem:[%s327 + $0x40] sm:$0xff]
      %v345 = vld [vmem:[%s327 + $0x48] sm:$0xff]
      %v346 = vld [vmem:[%s327 + $0x50] sm:$0xff]
      %v347 = vld [vmem:[%s327 + $0x58] sm:$0xff]
      %v348 = vld [vmem:[%s327 + $0x60] sm:$0xff]
      %v349 = vld [vmem:[%s327 + $0x68] sm:$0xff]
      %v350 = vld [vmem:[%s327 + $0x70] sm:$0xff]
      %v351 = vld [vmem:[%s327 + $0x78] sm:$0xff]
      %v352 = vld [vmem:[%s327 + $0x80] sm:$0xff]
      %v353 = vld [vmem:[%s327 + $0x88] sm:$0xff]
      %v354 = vld [vmem:[%s327 + $0x90] sm:$0xff]
      %v355 = vld [vmem:[%s327 + $0x98] sm:$0xff]
      %v356 = vld [vmem:[%s327 + $0xa0] sm:$0xff]
      %v357 = vld [vmem:[%s327 + $0xa8] sm:$0xff]
      %v358 = vld [vmem:[%s327 + $0xb0] sm:$0xff]
      %v359 = vld [vmem:[%s327 + $0xb8] sm:$0xff]
      %v360 = vld [vmem:[%s327 + $0xc0] sm:$0xff]
      %v361 = vld [vmem:[%s327 + $0xc8] sm:$0xff]
      %v362 = vld [vmem:[%s327 + $0xd0] sm:$0xff]
      %v363 = vld [vmem:[%s327 + $0xd8] sm:$0xff]
      %v364 = vld [vmem:[%s327 + $0xe0] sm:$0xff]
      %v365 = vld [vmem:[%s327 + $0xe8] sm:$0xff]
      %v366 = vld [vmem:[%s327 + $0xf0] sm:$0xff]
      %v367 = vld [vmem:[%s327 + $0xf8] sm:$0xff]
      %v368 = vld [vmem:[%s1] sm:$0x1]
      %v370 = vperm.slane %v368, 0
      %v372 = vmul.f32 %v336, %v370
      %v373 = vmul.f32 %v337, %v370
      %v374 = vmul.f32 %v338, %v370
      %v375 = vmul.f32 %v339, %v370
      %v376 = vmul.f32 %v340, %v370
      %v377 = vmul.f32 %v341, %v370
      %v378 = vmul.f32 %v342, %v370
      %v379 = vmul.f32 %v343, %v370
      %v380 = vmul.f32 %v344, %v370
      %v381 = vmul.f32 %v345, %v370
      %v382 = vmul.f32 %v346, %v370
      %v383 = vmul.f32 %v347, %v370
      %v384 = vmul.f32 %v348, %v370
      %v385 = vmul.f32 %v349, %v370
      %v386 = vmul.f32 %v350, %v370
      %v387 = vmul.f32 %v351, %v370
      %v388 = vmul.f32 %v352, %v370
      %v389 = vmul.f32 %v353, %v370
      %v390 = vmul.f32 %v354, %v370
      %v391 = vmul.f32 %v355, %v370
      %v392 = vmul.f32 %v356, %v370
      %v393 = vmul.f32 %v357, %v370
      %v394 = vmul.f32 %v358, %v370
      %v395 = vmul.f32 %v359, %v370
      %v396 = vmul.f32 %v360, %v370
      %v397 = vmul.f32 %v361, %v370
      %v398 = vmul.f32 %v362, %v370
      %v399 = vmul.f32 %v363, %v370
      %v400 = vmul.f32 %v364, %v370
      %v401 = vmul.f32 %v365, %v370
      %v402 = vmul.f32 %v366, %v370
      %v403 = vmul.f32 %v367, %v370
      %v404 = vld [vmem:[%s2] sm:$0x1]
      %v406 = vperm.slane %v404, 0
      %v408 = vadd.f32 %v372, %v406
      %v409 = vadd.f32 %v373, %v406
      %v410 = vadd.f32 %v374, %v406
      %v411 = vadd.f32 %v375, %v406
      %v412 = vadd.f32 %v376, %v406
      %v413 = vadd.f32 %v377, %v406
      %v414 = vadd.f32 %v378, %v406
      %v415 = vadd.f32 %v379, %v406
      %v416 = vadd.f32 %v380, %v406
      %v417 = vadd.f32 %v381, %v406
      %v418 = vadd.f32 %v382, %v406
      %v419 = vadd.f32 %v383, %v406
      %v420 = vadd.f32 %v384, %v406
      %v421 = vadd.f32 %v385, %v406
      %v422 = vadd.f32 %v386, %v406
      %v423 = vadd.f32 %v387, %v406
      %v424 = vadd.f32 %v388, %v406
      %v425 = vadd.f32 %v389, %v406
      %v426 = vadd.f32 %v390, %v406
      %v427 = vadd.f32 %v391, %v406
      %v428 = vadd.f32 %v392, %v406
      %v429 = vadd.f32 %v393, %v406
      %v430 = vadd.f32 %v394, %v406
      %v431 = vadd.f32 %v395, %v406
      %v432 = vadd.f32 %v396, %v406
      %v433 = vadd.f32 %v397, %v406
      %v434 = vadd.f32 %v398, %v406
      %v435 = vadd.f32 %v399, %v406
      %v436 = vadd.f32 %v400, %v406
      %v437 = vadd.f32 %v401, %v406
      %v438 = vadd.f32 %v402, %v406
      %v439 = vadd.f32 %v403, %v406
      %vm440 = vcmask 19456
      %441 = vst.msk [vmem:[#allocation2] sm:$0xf] %vm440, 0
      %442 = vst.msk [vmem:[#allocation2 + $0x4] sm:$0xf] %vm440, 0
      %443 = vst.msk [vmem:[#allocation2 + $0x8] sm:$0xf] %vm440, 0
      %444 = vst.msk [vmem:[#allocation2 + $0xc] sm:$0xf] %vm440, 0
      %445 = vst.msk [vmem:[#allocation2 + $0x10] sm:$0xf] %vm440, 0
      %446 = vst.msk [vmem:[#allocation2 + $0x14] sm:$0xf] %vm440, 0
      %447 = vst.msk [vmem:[#allocation2 + $0x18] sm:$0xf] %vm440, 0
      %448 = vst.msk [vmem:[#allocation2 + $0x1c] sm:$0xf] %vm440, 0
      %449 = vst.msk [vmem:[#allocation2 + $0x20] sm:$0xf] %vm440, 0
      %450 = vst.msk [vmem:[#allocation2 + $0x24] sm:$0xf] %vm440, 0
      %451 = vst.msk [vmem:[#allocation2 + $0x28] sm:$0xf] %vm440, 0
      %452 = vst.msk [vmem:[#allocation2 + $0x2c] sm:$0xf] %vm440, 0
      %453 = vst.msk [vmem:[#allocation2 + $0x30] sm:$0xf] %vm440, 0
      %454 = vst.msk [vmem:[#allocation2 + $0x34] sm:$0xf] %vm440, 0
      %455 = vst.msk [vmem:[#allocation2 + $0x38] sm:$0xf] %vm440, 0
      %456 = vst.msk [vmem:[#allocation2 + $0x3c] sm:$0xf] %vm440, 0
      %457 = vst.msk [vmem:[#allocation2 + $0x40] sm:$0xf] %vm440, 0
      %458 = vst.msk [vmem:[#allocation2 + $0x44] sm:$0xf] %vm440, 0
      %459 = vst.msk [vmem:[#allocation2 + $0x48] sm:$0xf] %vm440, 0
      %460 = vst.msk [vmem:[#allocation2 + $0x4c] sm:$0xf] %vm440, 0
      %461 = vst.msk [vmem:[#allocation2 + $0x50] sm:$0xf] %vm440, 0
      %462 = vst.msk [vmem:[#allocation2 + $0x54] sm:$0xf] %vm440, 0
      %463 = vst.msk [vmem:[#allocation2 + $0x58] sm:$0xf] %vm440, 0
      %464 = vst.msk [vmem:[#allocation2 + $0x5c] sm:$0xf] %vm440, 0
      %465 = vst.msk [vmem:[#allocation2 + $0x60] sm:$0xf] %vm440, 0
      %466 = vst.msk [vmem:[#allocation2 + $0x64] sm:$0xf] %vm440, 0
      %467 = vst.msk [vmem:[#allocation2 + $0x68] sm:$0xf] %vm440, 0
      %468 = vst.msk [vmem:[#allocation2 + $0x6c] sm:$0xf] %vm440, 0
      %469 = vst.msk [vmem:[#allocation2 + $0x70] sm:$0xf] %vm440, 0
      %470 = vst.msk [vmem:[#allocation2 + $0x74] sm:$0xf] %vm440, 0
      %471 = vst.msk [vmem:[#allocation2 + $0x78] sm:$0xf] %vm440, 0
      %472 = vst.msk [vmem:[#allocation2 + $0x7c] sm:$0xf] %vm440, 0
      %473 = vst.msk [vmem:[#allocation2 + $0x80] sm:$0xf] %vm440, 0
      %474 = vst.msk [vmem:[#allocation2 + $0x84] sm:$0xf] %vm440, 0
      %475 = vst.msk [vmem:[#allocation2 + $0x88] sm:$0xf] %vm440, 0
      %476 = vst.msk [vmem:[#allocation2 + $0x8c] sm:$0xf] %vm440, 0
      %477 = vst.msk [vmem:[#allocation2 + $0x90] sm:$0xf] %vm440, 0
      %478 = vst.msk [vmem:[#allocation2 + $0x94] sm:$0xf] %vm440, 0
      %v479 = vpack.c.bf16 %v408, %v408
      %v480 = vpack.c.bf16 %v409, %v409
      %v481 = vpack.c.bf16 %v410, %v410
      %v482 = vpack.c.bf16 %v411, %v411
      %v483 = vpack.c.bf16 %v412, %v412
      %v484 = vpack.c.bf16 %v413, %v413
      %v485 = vpack.c.bf16 %v414, %v414
      %v486 = vpack.c.bf16 %v415, %v415
      %v487 = vpack.c.bf16 %v416, %v416
      %v488 = vpack.c.bf16 %v417, %v417
      %v489 = vpack.c.bf16 %v418, %v418
      %v490 = vpack.c.bf16 %v419, %v419
      %v491 = vpack.c.bf16 %v420, %v420
      %v492 = vpack.c.bf16 %v421, %v421
      %v493 = vpack.c.bf16 %v422, %v422
      %v494 = vpack.c.bf16 %v423, %v423
      %v495 = vpack.c.bf16 %v424, %v424
      %v496 = vpack.c.bf16 %v425, %v425
      %v497 = vpack.c.bf16 %v426, %v426
      %v498 = vpack.c.bf16 %v427, %v427
      %v499 = vpack.c.bf16 %v428, %v428
      %v500 = vpack.c.bf16 %v429, %v429
      %v501 = vpack.c.bf16 %v430, %v430
      %v502 = vpack.c.bf16 %v431, %v431
      %v503 = vpack.c.bf16 %v432, %v432
      %v504 = vpack.c.bf16 %v433, %v433
      %v505 = vpack.c.bf16 %v434, %v434
      %v506 = vpack.c.bf16 %v435, %v435
      %v507 = vpack.c.bf16 %v436, %v436
      %v508 = vpack.c.bf16 %v437, %v437
      %v509 = vpack.c.bf16 %v438, %v438
      %v510 = vpack.c.bf16 %v439, %v439
      %511 = vst.msk [vmem:[#allocation2 + $0xc] sm:$0xf] %vm440, %v479
      %512 = vst.msk [vmem:[#allocation2 + $0x10] sm:$0xf] %vm440, %v480
      %513 = vst.msk [vmem:[#allocation2 + $0x14] sm:$0xf] %vm440, %v481
      %514 = vst.msk [vmem:[#allocation2 + $0x18] sm:$0xf] %vm440, %v482
      %515 = vst.msk [vmem:[#allocation2 + $0x1c] sm:$0xf] %vm440, %v483
      %516 = vst.msk [vmem:[#allocation2 + $0x20] sm:$0xf] %vm440, %v484
      %517 = vst.msk [vmem:[#allocation2 + $0x24] sm:$0xf] %vm440, %v485
      %518 = vst.msk [vmem:[#allocation2 + $0x28] sm:$0xf] %vm440, %v486
      %519 = vst.msk [vmem:[#allocation2 + $0x2c] sm:$0xf] %vm440, %v487
      %520 = vst.msk [vmem:[#allocation2 + $0x30] sm:$0xf] %vm440, %v488
      %521 = vst.msk [vmem:[#allocation2 + $0x34] sm:$0xf] %vm440, %v489
      %522 = vst.msk [vmem:[#allocation2 + $0x38] sm:$0xf] %vm440, %v490
      %523 = vst.msk [vmem:[#allocation2 + $0x3c] sm:$0xf] %vm440, %v491
      %524 = vst.msk [vmem:[#allocation2 + $0x40] sm:$0xf] %vm440, %v492
      %525 = vst.msk [vmem:[#allocation2 + $0x44] sm:$0xf] %vm440, %v493
      %526 = vst.msk [vmem:[#allocation2 + $0x48] sm:$0xf] %vm440, %v494
      %527 = vst.msk [vmem:[#allocation2 + $0x4c] sm:$0xf] %vm440, %v495
      %528 = vst.msk [vmem:[#allocation2 + $0x50] sm:$0xf] %vm440, %v496
      %529 = vst.msk [vmem:[#allocation2 + $0x54] sm:$0xf] %vm440, %v497
      %530 = vst.msk [vmem:[#allocation2 + $0x58] sm:$0xf] %vm440, %v498
      %531 = vst.msk [vmem:[#allocation2 + $0x5c] sm:$0xf] %vm440, %v499
      %532 = vst.msk [vmem:[#allocation2 + $0x60] sm:$0xf] %vm440, %v500
      %533 = vst.msk [vmem:[#allocation2 + $0x64] sm:$0xf] %vm440, %v501
      %534 = vst.msk [vmem:[#allocation2 + $0x68] sm:$0xf] %vm440, %v502
      %535 = vst.msk [vmem:[#allocation2 + $0x6c] sm:$0xf] %vm440, %v503
      %536 = vst.msk [vmem:[#allocation2 + $0x70] sm:$0xf] %vm440, %v504
      %537 = vst.msk [vmem:[#allocation2 + $0x74] sm:$0xf] %vm440, %v505
      %538 = vst.msk [vmem:[#allocation2 + $0x78] sm:$0xf] %vm440, %v506
      %539 = vst.msk [vmem:[#allocation2 + $0x7c] sm:$0xf] %vm440, %v507
      %540 = vst.msk [vmem:[#allocation2 + $0x80] sm:$0xf] %vm440, %v508
      %541 = vst.msk [vmem:[#allocation2 + $0x84] sm:$0xf] %vm440, %v509
      %542 = vst.msk [vmem:[#allocation2 + $0x88] sm:$0xf] %vm440, %v510
      %v543 = vlaneseq
      %v544 = vshrl.u32 %v543, 7
      %v545 = vadd.s32 %v544, 8
      %v546 = vadd.s32 %v544, 16
      %v547 = vadd.s32 %v544, 24
      %v548 = vadd.s32 %v544, 32
      %v549 = vadd.s32 %v544, 40
      %v550 = vadd.s32 %v544, 48
      %v551 = vadd.s32 %v544, 56
      %v552 = vadd.s32 %v544, 64
      %v553 = vadd.s32 %v544, 72
      %v554 = vadd.s32 %v544, 80
      %v555 = vadd.s32 %v544, 88
      %v556 = vadd.s32 %v544, 96
      %v557 = vadd.s32 %v544, 104
      %v558 = vadd.s32 %v544, 112
      %v559 = vadd.s32 %v544, 120
      %v560 = vadd.s32 %v544, 128
      %v561 = vadd.s32 %v544, 136
      %v562 = vadd.s32 %v544, 144
      %v563 = vadd.s32 %v544, 152
      %v564 = vadd.s32 %v544, 160
      %v565 = vadd.s32 %v544, 168
      %v566 = vadd.s32 %v544, 176
      %v567 = vadd.s32 %v544, 184
      %v568 = vadd.s32 %v544, 192
      %v569 = vadd.s32 %v544, 200
      %v570 = vadd.s32 %v544, 208
      %v571 = vadd.s32 %v544, 216
      %v572 = vadd.s32 %v544, 224
      %v573 = vadd.s32 %v544, 232
      %v574 = vadd.s32 %v544, 240
      %v575 = vadd.s32 %v544, 248
      %vm576 = vcmp.lt.s32.totalorder %v544, 0
      %v577 = vsub.s32 0, %v544
      %v578 = vsel %vm576, %v577, %v544
      %v579 = vshrl.u32 %v578, 4
      %v580 = vand.u32 %v578, 15
      %v581 = vsub.s32 0, %v580
      %v582 = vsel %vm576, %v581, %v580
      %vm583 = vcmp.lt.s32.totalorder %v545, 0
      %v584 = vsub.s32 0, %v545
      %v585 = vsel %vm583, %v584, %v545
      %v586 = vshrl.u32 %v585, 4
      %v587 = vand.u32 %v585, 15
      %v588 = vsub.s32 0, %v587
      %v589 = vsel %vm583, %v588, %v587
      %vm590 = vcmp.lt.s32.totalorder %v546, 0
      %v591 = vsub.s32 0, %v546
      %v592 = vsel %vm590, %v591, %v546
      %v593 = vshrl.u32 %v592, 4
      %v594 = vand.u32 %v592, 15
      %v595 = vsub.s32 0, %v594
      %v596 = vsel %vm590, %v595, %v594
      %vm597 = vcmp.lt.s32.totalorder %v547, 0
      %v598 = vsub.s32 0, %v547
      %v599 = vsel %vm597, %v598, %v547
      %v600 = vshrl.u32 %v599, 4
      %v601 = vand.u32 %v599, 15
      %v602 = vsub.s32 0, %v601
      %v603 = vsel %vm597, %v602, %v601
      %vm604 = vcmp.lt.s32.totalorder %v548, 0
      %v605 = vsub.s32 0, %v548
      %v606 = vsel %vm604, %v605, %v548
      %v607 = vshrl.u32 %v606, 4
      %v608 = vand.u32 %v606, 15
      %v609 = vsub.s32 0, %v608
      %v610 = vsel %vm604, %v609, %v608
      %vm611 = vcmp.lt.s32.totalorder %v549, 0
      %v612 = vsub.s32 0, %v549
      %v613 = vsel %vm611, %v612, %v549
      %v614 = vshrl.u32 %v613, 4
      %v615 = vand.u32 %v613, 15
      %v616 = vsub.s32 0, %v615
      %v617 = vsel %vm611, %v616, %v615
      %vm618 = vcmp.lt.s32.totalorder %v550, 0
      %v619 = vsub.s32 0, %v550
      %v620 = vsel %vm618, %v619, %v550
      %v621 = vshrl.u32 %v620, 4
      %v622 = vand.u32 %v620, 15
      %v623 = vsub.s32 0, %v622
      %v624 = vsel %vm618, %v623, %v622
      %vm625 = vcmp.lt.s32.totalorder %v551, 0
      %v626 = vsub.s32 0, %v551
      %v627 = vsel %vm625, %v626, %v551
      %v628 = vshrl.u32 %v627, 4
      %v629 = vand.u32 %v627, 15
      %v630 = vsub.s32 0, %v629
      %v631 = vsel %vm625, %v630, %v629
      %vm632 = vcmp.lt.s32.totalorder %v552, 0
      %v633 = vsub.s32 0, %v552
      %v634 = vsel %vm632, %v633, %v552
      %v635 = vshrl.u32 %v634, 4
      %v636 = vand.u32 %v634, 15
      %v637 = vsub.s32 0, %v636
      %v638 = vsel %vm632, %v637, %v636
      %vm639 = vcmp.lt.s32.totalorder %v553, 0
      %v640 = vsub.s32 0, %v553
      %v641 = vsel %vm639, %v640, %v553
      %v642 = vshrl.u32 %v641, 4
      %v643 = vand.u32 %v641, 15
      %v644 = vsub.s32 0, %v643
      %v645 = vsel %vm639, %v644, %v643
      %vm646 = vcmp.lt.s32.totalorder %v554, 0
      %v647 = vsub.s32 0, %v554
      %v648 = vsel %vm646, %v647, %v554
      %v649 = vshrl.u32 %v648, 4
      %v650 = vand.u32 %v648, 15
      %v651 = vsub.s32 0, %v650
      %v652 = vsel %vm646, %v651, %v650
      %vm653 = vcmp.lt.s32.totalorder %v555, 0
      %v654 = vsub.s32 0, %v555
      %v655 = vsel %vm653, %v654, %v555
      %v656 = vshrl.u32 %v655, 4
      %v657 = vand.u32 %v655, 15
      %v658 = vsub.s32 0, %v657
      %v659 = vsel %vm653, %v658, %v657
      %vm660 = vcmp.lt.s32.totalorder %v556, 0
      %v661 = vsub.s32 0, %v556
      %v662 = vsel %vm660, %v661, %v556
      %v663 = vshrl.u32 %v662, 4
      %v664 = vand.u32 %v662, 15
      %v665 = vsub.s32 0, %v664
      %v666 = vsel %vm660, %v665, %v664
      %vm667 = vcmp.lt.s32.totalorder %v557, 0
      %v668 = vsub.s32 0, %v557
      %v669 = vsel %vm667, %v668, %v557
      %v670 = vshrl.u32 %v669, 4
      %v671 = vand.u32 %v669, 15
      %v672 = vsub.s32 0, %v671
      %v673 = vsel %vm667, %v672, %v671
      %vm674 = vcmp.lt.s32.totalorder %v558, 0
      %v675 = vsub.s32 0, %v558
      %v676 = vsel %vm674, %v675, %v558
      %v677 = vshrl.u32 %v676, 4
      %v678 = vand.u32 %v676, 15
      %v679 = vsub.s32 0, %v678
      %v680 = vsel %vm674, %v679, %v678
      %vm681 = vcmp.lt.s32.totalorder %v559, 0
      %v682 = vsub.s32 0, %v559
      %v683 = vsel %vm681, %v682, %v559
      %v684 = vshrl.u32 %v683, 4
      %v685 = vand.u32 %v683, 15
      %v686 = vsub.s32 0, %v685
      %v687 = vsel %vm681, %v686, %v685
      %vm688 = vcmp.lt.s32.totalorder %v560, 0
      %v689 = vsub.s32 0, %v560
      %v690 = vsel %vm688, %v689, %v560
      %v691 = vshrl.u32 %v690, 4
      %v692 = vand.u32 %v690, 15
      %v693 = vsub.s32 0, %v692
      %v694 = vsel %vm688, %v693, %v692
      %vm695 = vcmp.lt.s32.totalorder %v561, 0
      %v696 = vsub.s32 0, %v561
      %v697 = vsel %vm695, %v696, %v561
      %v698 = vshrl.u32 %v697, 4
      %v699 = vand.u32 %v697, 15
      %v700 = vsub.s32 0, %v699
      %v701 = vsel %vm695, %v700, %v699
      %vm702 = vcmp.lt.s32.totalorder %v562, 0
      %v703 = vsub.s32 0, %v562
      %v704 = vsel %vm702, %v703, %v562
      %v705 = vshrl.u32 %v704, 4
      %v706 = vand.u32 %v704, 15
      %v707 = vsub.s32 0, %v706
      %v708 = vsel %vm702, %v707, %v706
      %vm709 = vcmp.lt.s32.totalorder %v563, 0
      %v710 = vsub.s32 0, %v563
      %v711 = vsel %vm709, %v710, %v563
      %v712 = vshrl.u32 %v711, 4
      %v713 = vand.u32 %v711, 15
      %v714 = vsub.s32 0, %v713
      %v715 = vsel %vm709, %v714, %v713
      %vm716 = vcmp.lt.s32.totalorder %v564, 0
      %v717 = vsub.s32 0, %v564
      %v718 = vsel %vm716, %v717, %v564
      %v719 = vshrl.u32 %v718, 4
      %v720 = vand.u32 %v718, 15
      %v721 = vsub.s32 0, %v720
      %v722 = vsel %vm716, %v721, %v720
      %vm723 = vcmp.lt.s32.totalorder %v565, 0
      %v724 = vsub.s32 0, %v565
      %v725 = vsel %vm723, %v724, %v565
      %v726 = vshrl.u32 %v725, 4
      %v727 = vand.u32 %v725, 15
      %v728 = vsub.s32 0, %v727
      %v729 = vsel %vm723, %v728, %v727
      %vm730 = vcmp.lt.s32.totalorder %v566, 0
      %v731 = vsub.s32 0, %v566
      %v732 = vsel %vm730, %v731, %v566
      %v733 = vshrl.u32 %v732, 4
      %v734 = vand.u32 %v732, 15
      %v735 = vsub.s32 0, %v734
      %v736 = vsel %vm730, %v735, %v734
      %vm737 = vcmp.lt.s32.totalorder %v567, 0
      %v738 = vsub.s32 0, %v567
      %v739 = vsel %vm737, %v738, %v567
      %v740 = vshrl.u32 %v739, 4
      %v741 = vand.u32 %v739, 15
      %v742 = vsub.s32 0, %v741
      %v743 = vsel %vm737, %v742, %v741
      %vm744 = vcmp.lt.s32.totalorder %v568, 0
      %v745 = vsub.s32 0, %v568
      %v746 = vsel %vm744, %v745, %v568
      %v747 = vshrl.u32 %v746, 4
      %v748 = vand.u32 %v746, 15
      %v749 = vsub.s32 0, %v748
      %v750 = vsel %vm744, %v749, %v748
      %vm751 = vcmp.lt.s32.totalorder %v569, 0
      %v752 = vsub.s32 0, %v569
      %v753 = vsel %vm751, %v752, %v569
      %v754 = vshrl.u32 %v753, 4
      %v755 = vand.u32 %v753, 15
      %v756 = vsub.s32 0, %v755
      %v757 = vsel %vm751, %v756, %v755
      %vm758 = vcmp.lt.s32.totalorder %v570, 0
      %v759 = vsub.s32 0, %v570
      %v760 = vsel %vm758, %v759, %v570
      %v761 = vshrl.u32 %v760, 4
      %v762 = vand.u32 %v760, 15
      %v763 = vsub.s32 0, %v762
      %v764 = vsel %vm758, %v763, %v762
      %vm765 = vcmp.lt.s32.totalorder %v571, 0
      %v766 = vsub.s32 0, %v571
      %v767 = vsel %vm765, %v766, %v571
      %v768 = vshrl.u32 %v767, 4
      %v769 = vand.u32 %v767, 15
      %v770 = vsub.s32 0, %v769
      %v771 = vsel %vm765, %v770, %v769
      %vm772 = vcmp.lt.s32.totalorder %v572, 0
      %v773 = vsub.s32 0, %v572
      %v774 = vsel %vm772, %v773, %v572
      %v775 = vshrl.u32 %v774, 4
      %v776 = vand.u32 %v774, 15
      %v777 = vsub.s32 0, %v776
      %v778 = vsel %vm772, %v777, %v776
      %vm779 = vcmp.lt.s32.totalorder %v573, 0
      %v780 = vsub.s32 0, %v573
      %v781 = vsel %vm779, %v780, %v573
      %v782 = vshrl.u32 %v781, 4
      %v783 = vand.u32 %v781, 15
      %v784 = vsub.s32 0, %v783
      %v785 = vsel %vm779, %v784, %v783
      %vm786 = vcmp.lt.s32.totalorder %v574, 0
      %v787 = vsub.s32 0, %v574
      %v788 = vsel %vm786, %v787, %v574
      %v789 = vshrl.u32 %v788, 4
      %v790 = vand.u32 %v788, 15
      %v791 = vsub.s32 0, %v790
      %v792 = vsel %vm786, %v791, %v790
      %vm793 = vcmp.lt.s32.totalorder %v575, 0
      %v794 = vsub.s32 0, %v575
      %v795 = vsel %vm793, %v794, %v575
      %v796 = vshrl.u32 %v795, 4
      %v797 = vand.u32 %v795, 15
      %v798 = vsub.s32 0, %v797
      %v799 = vsel %vm793, %v798, %v797
      %vm800 = vcmp.ne.s32.totalorder %v582, 0
      %vm801 = vcmp.ne.s32.totalorder %v589, 0
      %vm802 = vcmp.ne.s32.totalorder %v596, 0
      %vm803 = vcmp.ne.s32.totalorder %v603, 0
      %vm804 = vcmp.ne.s32.totalorder %v610, 0
      %vm805 = vcmp.ne.s32.totalorder %v617, 0
      %vm806 = vcmp.ne.s32.totalorder %v624, 0
      %vm807 = vcmp.ne.s32.totalorder %v631, 0
      %vm808 = vcmp.ne.s32.totalorder %v638, 0
      %vm809 = vcmp.ne.s32.totalorder %v645, 0
      %vm810 = vcmp.ne.s32.totalorder %v652, 0
      %vm811 = vcmp.ne.s32.totalorder %v659, 0
      %vm812 = vcmp.ne.s32.totalorder %v666, 0
      %vm813 = vcmp.ne.s32.totalorder %v673, 0
      %vm814 = vcmp.ne.s32.totalorder %v680, 0
      %vm815 = vcmp.ne.s32.totalorder %v687, 0
      %vm816 = vcmp.ne.s32.totalorder %v694, 0
      %vm817 = vcmp.ne.s32.totalorder %v701, 0
      %vm818 = vcmp.ne.s32.totalorder %v708, 0
      %vm819 = vcmp.ne.s32.totalorder %v715, 0
      %vm820 = vcmp.ne.s32.totalorder %v722, 0
      %vm821 = vcmp.ne.s32.totalorder %v729, 0
      %vm822 = vcmp.ne.s32.totalorder %v736, 0
      %vm823 = vcmp.ne.s32.totalorder %v743, 0
      %vm824 = vcmp.ne.s32.totalorder %v750, 0
      %vm825 = vcmp.ne.s32.totalorder %v757, 0
      %vm826 = vcmp.ne.s32.totalorder %v764, 0
      %vm827 = vcmp.ne.s32.totalorder %v771, 0
      %vm828 = vcmp.ne.s32.totalorder %v778, 0
      %vm829 = vcmp.ne.s32.totalorder %v785, 0
      %vm830 = vcmp.ne.s32.totalorder %v792, 0
      %vm831 = vcmp.ne.s32.totalorder %v799, 0
      %vm832 = vcmp.lt.s32.totalorder %v582, 0
      %vm833 = vcmp.lt.s32.totalorder %v589, 0
      %vm834 = vcmp.lt.s32.totalorder %v596, 0
      %vm835 = vcmp.lt.s32.totalorder %v603, 0
      %vm836 = vcmp.lt.s32.totalorder %v610, 0
      %vm837 = vcmp.lt.s32.totalorder %v617, 0
      %vm838 = vcmp.lt.s32.totalorder %v624, 0
      %vm839 = vcmp.lt.s32.totalorder %v631, 0
      %vm840 = vcmp.lt.s32.totalorder %v638, 0
      %vm841 = vcmp.lt.s32.totalorder %v645, 0
      %vm842 = vcmp.lt.s32.totalorder %v652, 0
      %vm843 = vcmp.lt.s32.totalorder %v659, 0
      %vm844 = vcmp.lt.s32.totalorder %v666, 0
      %vm845 = vcmp.lt.s32.totalorder %v673, 0
      %vm846 = vcmp.lt.s32.totalorder %v680, 0
      %vm847 = vcmp.lt.s32.totalorder %v687, 0
      %vm848 = vcmp.lt.s32.totalorder %v694, 0
      %vm849 = vcmp.lt.s32.totalorder %v701, 0
      %vm850 = vcmp.lt.s32.totalorder %v708, 0
      %vm851 = vcmp.lt.s32.totalorder %v715, 0
      %vm852 = vcmp.lt.s32.totalorder %v722, 0
      %vm853 = vcmp.lt.s32.totalorder %v729, 0
      %vm854 = vcmp.lt.s32.totalorder %v736, 0
      %vm855 = vcmp.lt.s32.totalorder %v743, 0
      %vm856 = vcmp.lt.s32.totalorder %v750, 0
      %vm857 = vcmp.lt.s32.totalorder %v757, 0
      %vm858 = vcmp.lt.s32.totalorder %v764, 0
      %vm859 = vcmp.lt.s32.totalorder %v771, 0
      %vm860 = vcmp.lt.s32.totalorder %v778, 0
      %vm861 = vcmp.lt.s32.totalorder %v785, 0
      %vm862 = vcmp.lt.s32.totalorder %v792, 0
      %vm863 = vcmp.lt.s32.totalorder %v799, 0
      %vm864 = vmand %vm832, %vm800
      %vm865 = vmand %vm833, %vm801
      %vm866 = vmand %vm834, %vm802
      %vm867 = vmand %vm835, %vm803
      %vm868 = vmand %vm836, %vm804
      %vm869 = vmand %vm837, %vm805
      %vm870 = vmand %vm838, %vm806
      %vm871 = vmand %vm839, %vm807
      %vm872 = vmand %vm840, %vm808
      %vm873 = vmand %vm841, %vm809
      %vm874 = vmand %vm842, %vm810
      %vm875 = vmand %vm843, %vm811
      %vm876 = vmand %vm844, %vm812
      %vm877 = vmand %vm845, %vm813
      %vm878 = vmand %vm846, %vm814
      %vm879 = vmand %vm847, %vm815
      %vm880 = vmand %vm848, %vm816
      %vm881 = vmand %vm849, %vm817
      %vm882 = vmand %vm850, %vm818
      %vm883 = vmand %vm851, %vm819
      %vm884 = vmand %vm852, %vm820
      %vm885 = vmand %vm853, %vm821
      %vm886 = vmand %vm854, %vm822
      %vm887 = vmand %vm855, %vm823
      %vm888 = vmand %vm856, %vm824
      %vm889 = vmand %vm857, %vm825
      %vm890 = vmand %vm858, %vm826
      %vm891 = vmand %vm859, %vm827
      %vm892 = vmand %vm860, %vm828
      %vm893 = vmand %vm861, %vm829
      %vm894 = vmand %vm862, %vm830
      %vm895 = vmand %vm863, %vm831
      %v896 = vadd.s32 %v582, 16
      %v897 = vadd.s32 %v589, 16
      %v898 = vadd.s32 %v596, 16
      %v899 = vadd.s32 %v603, 16
      %v900 = vadd.s32 %v610, 16
      %v901 = vadd.s32 %v617, 16
      %v902 = vadd.s32 %v624, 16
      %v903 = vadd.s32 %v631, 16
      %v904 = vadd.s32 %v638, 16
      %v905 = vadd.s32 %v645, 16
      %v906 = vadd.s32 %v652, 16
      %v907 = vadd.s32 %v659, 16
      %v908 = vadd.s32 %v666, 16
      %v909 = vadd.s32 %v673, 16
      %v910 = vadd.s32 %v680, 16
      %v911 = vadd.s32 %v687, 16
      %v912 = vadd.s32 %v694, 16
      %v913 = vadd.s32 %v701, 16
      %v914 = vadd.s32 %v708, 16
      %v915 = vadd.s32 %v715, 16
      %v916 = vadd.s32 %v722, 16
      %v917 = vadd.s32 %v729, 16
      %v918 = vadd.s32 %v736, 16
      %v919 = vadd.s32 %v743, 16
      %v920 = vadd.s32 %v750, 16
      %v921 = vadd.s32 %v757, 16
      %v922 = vadd.s32 %v764, 16
      %v923 = vadd.s32 %v771, 16
      %v924 = vadd.s32 %v778, 16
      %v925 = vadd.s32 %v785, 16
      %v926 = vadd.s32 %v792, 16
      %v927 = vadd.s32 %v799, 16
      %v928 = vsel %vm864, %v896, %v582
      %v929 = vsel %vm865, %v897, %v589
      %v930 = vsel %vm866, %v898, %v596
      %v931 = vsel %vm867, %v899, %v603
      %v932 = vsel %vm868, %v900, %v610
      %v933 = vsel %vm869, %v901, %v617
      %v934 = vsel %vm870, %v902, %v624
      %v935 = vsel %vm871, %v903, %v631
      %v936 = vsel %vm872, %v904, %v638
      %v937 = vsel %vm873, %v905, %v645
      %v938 = vsel %vm874, %v906, %v652
      %v939 = vsel %vm875, %v907, %v659
      %v940 = vsel %vm876, %v908, %v666
      %v941 = vsel %vm877, %v909, %v673
      %v942 = vsel %vm878, %v910, %v680
      %v943 = vsel %vm879, %v911, %v687
      %v944 = vsel %vm880, %v912, %v694
      %v945 = vsel %vm881, %v913, %v701
      %v946 = vsel %vm882, %v914, %v708
      %v947 = vsel %vm883, %v915, %v715
      %v948 = vsel %vm884, %v916, %v722
      %v949 = vsel %vm885, %v917, %v729
      %v950 = vsel %vm886, %v918, %v736
      %v951 = vsel %vm887, %v919, %v743
      %v952 = vsel %vm888, %v920, %v750
      %v953 = vsel %vm889, %v921, %v757
      %v954 = vsel %vm890, %v922, %v764
      %v955 = vsel %vm891, %v923, %v771
      %v956 = vsel %vm892, %v924, %v778
      %v957 = vsel %vm893, %v925, %v785
      %v958 = vsel %vm894, %v926, %v792
      %v959 = vsel %vm895, %v927, %v799
      %v960 = vld [vmem:[#allocation2] sm:$0x8]
      %v961 = vld [vmem:[#allocation2 + $0x4] sm:$0xf]
      %v962 = vld [vmem:[#allocation2 + $0x8] sm:$0xf]
      %v963 = vld [vmem:[#allocation2 + $0xc] sm:$0xf]
      %v964 = vld [vmem:[#allocation2 + $0x10] sm:$0xf]
      %v965 = vld [vmem:[#allocation2 + $0x14] sm:$0xf]
      %v966 = vld [vmem:[#allocation2 + $0x18] sm:$0xf]
      %v967 = vld [vmem:[#allocation2 + $0x1c] sm:$0xf]
      %v968 = vld [vmem:[#allocation2 + $0x20] sm:$0xf]
      %v969 = vld [vmem:[#allocation2 + $0x24] sm:$0xf]
      %v970 = vld [vmem:[#allocation2 + $0x28] sm:$0xf]
      %v971 = vld [vmem:[#allocation2 + $0x2c] sm:$0xf]
      %v972 = vld [vmem:[#allocation2 + $0x30] sm:$0xf]
      %v973 = vld [vmem:[#allocation2 + $0x34] sm:$0xf]
      %v974 = vld [vmem:[#allocation2 + $0x38] sm:$0xf]
      %v975 = vld [vmem:[#allocation2 + $0x3c] sm:$0xf]
      %v976 = vld [vmem:[#allocation2 + $0x40] sm:$0xf]
      %v977 = vld [vmem:[#allocation2 + $0x44] sm:$0xf]
      %v978 = vld [vmem:[#allocation2 + $0x48] sm:$0xf]
      %v979 = vld [vmem:[#allocation2 + $0x4c] sm:$0xf]
      %v980 = vld [vmem:[#allocation2 + $0x50] sm:$0xf]
      %v981 = vld [vmem:[#allocation2 + $0x54] sm:$0xf]
      %v982 = vld [vmem:[#allocation2 + $0x58] sm:$0xf]
      %v983 = vld [vmem:[#allocation2 + $0x5c] sm:$0xf]
      %v984 = vld [vmem:[#allocation2 + $0x60] sm:$0xf]
      %v985 = vld [vmem:[#allocation2 + $0x64] sm:$0xf]
      %v986 = vld [vmem:[#allocation2 + $0x68] sm:$0xf]
      %v987 = vld [vmem:[#allocation2 + $0x6c] sm:$0xf]
      %v988 = vld [vmem:[#allocation2 + $0x70] sm:$0xf]
      %v989 = vld [vmem:[#allocation2 + $0x74] sm:$0xf]
      %v990 = vld [vmem:[#allocation2 + $0x78] sm:$0xf]
      %v991 = vld [vmem:[#allocation2 + $0x7c] sm:$0xf]
      %v992 = vld [vmem:[#allocation2 + $0x80] sm:$0xf]
      %v993 = vadd.s32 %v928, 4294967295
      %v994 = vadd.s32 %v929, 4294967295
      %v995 = vadd.s32 %v930, 4294967295
      %v996 = vadd.s32 %v931, 4294967295
      %v997 = vadd.s32 %v932, 4294967295
      %v998 = vadd.s32 %v933, 4294967295
      %v999 = vadd.s32 %v934, 4294967295
      %v1000 = vadd.s32 %v935, 4294967295
      %v1001 = vadd.s32 %v936, 4294967295
      %v1002 = vadd.s32 %v937, 4294967295
      %v1003 = vadd.s32 %v938, 4294967295
      %v1004 = vadd.s32 %v939, 4294967295
      %v1005 = vadd.s32 %v940, 4294967295
      %v1006 = vadd.s32 %v941, 4294967295
      %v1007 = vadd.s32 %v942, 4294967295
      %v1008 = vadd.s32 %v943, 4294967295
      %v1009 = vadd.s32 %v944, 4294967295
      %v1010 = vadd.s32 %v945, 4294967295
      %v1011 = vadd.s32 %v946, 4294967295
      %v1012 = vadd.s32 %v947, 4294967295
      %v1013 = vadd.s32 %v948, 4294967295
      %v1014 = vadd.s32 %v949, 4294967295
      %v1015 = vadd.s32 %v950, 4294967295
      %v1016 = vadd.s32 %v951, 4294967295
      %v1017 = vadd.s32 %v952, 4294967295
      %v1018 = vadd.s32 %v953, 4294967295
      %v1019 = vadd.s32 %v954, 4294967295
      %v1020 = vadd.s32 %v955, 4294967295
      %v1021 = vadd.s32 %v956, 4294967295
      %v1022 = vadd.s32 %v957, 4294967295
      %v1023 = vadd.s32 %v958, 4294967295
      %v1024 = vadd.s32 %v959, 4294967295
      %vm1025 = vcmp.ge.s32.totalorder %v993, 0
      %vm1026 = vcmp.ge.s32.totalorder %v994, 0
      %vm1027 = vcmp.ge.s32.totalorder %v995, 0
      %vm1028 = vcmp.ge.s32.totalorder %v996, 0
      %vm1029 = vcmp.ge.s32.totalorder %v997, 0
      %vm1030 = vcmp.ge.s32.totalorder %v998, 0
      %vm1031 = vcmp.ge.s32.totalorder %v999, 0
      %vm1032 = vcmp.ge.s32.totalorder %v1000, 0
      %vm1033 = vcmp.ge.s32.totalorder %v1001, 0
      %vm1034 = vcmp.ge.s32.totalorder %v1002, 0
      %vm1035 = vcmp.ge.s32.totalorder %v1003, 0
      %vm1036 = vcmp.ge.s32.totalorder %v1004, 0
      %vm1037 = vcmp.ge.s32.totalorder %v1005, 0
      %vm1038 = vcmp.ge.s32.totalorder %v1006, 0
      %vm1039 = vcmp.ge.s32.totalorder %v1007, 0
      %vm1040 = vcmp.ge.s32.totalorder %v1008, 0
      %vm1041 = vcmp.ge.s32.totalorder %v1009, 0
      %vm1042 = vcmp.ge.s32.totalorder %v1010, 0
      %vm1043 = vcmp.ge.s32.totalorder %v1011, 0
      %vm1044 = vcmp.ge.s32.totalorder %v1012, 0
      %vm1045 = vcmp.ge.s32.totalorder %v1013, 0
      %vm1046 = vcmp.ge.s32.totalorder %v1014, 0
      %vm1047 = vcmp.ge.s32.totalorder %v1015, 0
      %vm1048 = vcmp.ge.s32.totalorder %v1016, 0
      %vm1049 = vcmp.ge.s32.totalorder %v1017, 0
      %vm1050 = vcmp.ge.s32.totalorder %v1018, 0
      %vm1051 = vcmp.ge.s32.totalorder %v1019, 0
      %vm1052 = vcmp.ge.s32.totalorder %v1020, 0
      %vm1053 = vcmp.ge.s32.totalorder %v1021, 0
      %vm1054 = vcmp.ge.s32.totalorder %v1022, 0
      %vm1055 = vcmp.ge.s32.totalorder %v1023, 0
      %vm1056 = vcmp.ge.s32.totalorder %v1024, 0
      %vm1057 = vcmp.lt.s32.totalorder %v993, 16
      %vm1058 = vcmp.lt.s32.totalorder %v994, 16
      %vm1059 = vcmp.lt.s32.totalorder %v995, 16
      %vm1060 = vcmp.lt.s32.totalorder %v996, 16
      %vm1061 = vcmp.lt.s32.totalorder %v997, 16
      %vm1062 = vcmp.lt.s32.totalorder %v998, 16
      %vm1063 = vcmp.lt.s32.totalorder %v999, 16
      %vm1064 = vcmp.lt.s32.totalorder %v1000, 16
      %vm1065 = vcmp.lt.s32.totalorder %v1001, 16
      %vm1066 = vcmp.lt.s32.totalorder %v1002, 16
      %vm1067 = vcmp.lt.s32.totalorder %v1003, 16
      %vm1068 = vcmp.lt.s32.totalorder %v1004, 16
      %vm1069 = vcmp.lt.s32.totalorder %v1005, 16
      %vm1070 = vcmp.lt.s32.totalorder %v1006, 16
      %vm1071 = vcmp.lt.s32.totalorder %v1007, 16
      %vm1072 = vcmp.lt.s32.totalorder %v1008, 16
      %vm1073 = vcmp.lt.s32.totalorder %v1009, 16
      %vm1074 = vcmp.lt.s32.totalorder %v1010, 16
      %vm1075 = vcmp.lt.s32.totalorder %v1011, 16
      %vm1076 = vcmp.lt.s32.totalorder %v1012, 16
      %vm1077 = vcmp.lt.s32.totalorder %v1013, 16
      %vm1078 = vcmp.lt.s32.totalorder %v1014, 16
      %vm1079 = vcmp.lt.s32.totalorder %v1015, 16
      %vm1080 = vcmp.lt.s32.totalorder %v1016, 16
      %vm1081 = vcmp.lt.s32.totalorder %v1017, 16
      %vm1082 = vcmp.lt.s32.totalorder %v1018, 16
      %vm1083 = vcmp.lt.s32.totalorder %v1019, 16
      %vm1084 = vcmp.lt.s32.totalorder %v1020, 16
      %vm1085 = vcmp.lt.s32.totalorder %v1021, 16
      %vm1086 = vcmp.lt.s32.totalorder %v1022, 16
      %vm1087 = vcmp.lt.s32.totalorder %v1023, 16
      %vm1088 = vcmp.lt.s32.totalorder %v1024, 16
      %vm1089 = vmand %vm1025, %vm1057
      %vm1090 = vmand %vm1026, %vm1058
      %vm1091 = vmand %vm1027, %vm1059
      %vm1092 = vmand %vm1028, %vm1060
      %vm1093 = vmand %vm1029, %vm1061
      %vm1094 = vmand %vm1030, %vm1062
      %vm1095 = vmand %vm1031, %vm1063
      %vm1096 = vmand %vm1032, %vm1064
      %vm1097 = vmand %vm1033, %vm1065
      %vm1098 = vmand %vm1034, %vm1066
      %vm1099 = vmand %vm1035, %vm1067
      %vm1100 = vmand %vm1036, %vm1068
      %vm1101 = vmand %vm1037, %vm1069
      %vm1102 = vmand %vm1038, %vm1070
      %vm1103 = vmand %vm1039, %vm1071
      %vm1104 = vmand %vm1040, %vm1072
      %vm1105 = vmand %vm1041, %vm1073
      %vm1106 = vmand %vm1042, %vm1074
      %vm1107 = vmand %vm1043, %vm1075
      %vm1108 = vmand %vm1044, %vm1076
      %vm1109 = vmand %vm1045, %vm1077
      %vm1110 = vmand %vm1046, %vm1078
      %vm1111 = vmand %vm1047, %vm1079
      %vm1112 = vmand %vm1048, %vm1080
      %vm1113 = vmand %vm1049, %vm1081
      %vm1114 = vmand %vm1050, %vm1082
      %vm1115 = vmand %vm1051, %vm1083
      %vm1116 = vmand %vm1052, %vm1084
      %vm1117 = vmand %vm1053, %vm1085
      %vm1118 = vmand %vm1054, %vm1086
      %vm1119 = vmand %vm1055, %vm1087
      %vm1120 = vmand %vm1056, %vm1088
      %v1121 = vsel %vm1089, 1, 0
      %v1122 = vsel %vm1090, 1, 0
      %v1123 = vsel %vm1091, 1, 0
      %v1124 = vsel %vm1092, 1, 0
      %v1125 = vsel %vm1093, 1, 0
      %v1126 = vsel %vm1094, 1, 0
      %v1127 = vsel %vm1095, 1, 0
      %v1128 = vsel %vm1096, 1, 0
      %v1129 = vsel %vm1097, 1, 0
      %v1130 = vsel %vm1098, 1, 0
      %v1131 = vsel %vm1099, 1, 0
      %v1132 = vsel %vm1100, 1, 0
      %v1133 = vsel %vm1101, 1, 0
      %v1134 = vsel %vm1102, 1, 0
      %v1135 = vsel %vm1103, 1, 0
      %v1136 = vsel %vm1104, 1, 0
      %v1137 = vsel %vm1105, 1, 0
      %v1138 = vsel %vm1106, 1, 0
      %v1139 = vsel %vm1107, 1, 0
      %v1140 = vsel %vm1108, 1, 0
      %v1141 = vsel %vm1109, 1, 0
      %v1142 = vsel %vm1110, 1, 0
      %v1143 = vsel %vm1111, 1, 0
      %v1144 = vsel %vm1112, 1, 0
      %v1145 = vsel %vm1113, 1, 0
      %v1146 = vsel %vm1114, 1, 0
      %v1147 = vsel %vm1115, 1, 0
      %v1148 = vsel %vm1116, 1, 0
      %v1149 = vsel %vm1117, 1, 0
      %v1150 = vsel %vm1118, 1, 0
      %v1151 = vsel %vm1119, 1, 0
      %v1152 = vsel %vm1120, 1, 0
      %vm1153 = vcmp.eq.s32.totalorder %v1121, 1
      %vm1154 = vcmp.eq.s32.totalorder %v1122, 1
      %vm1155 = vcmp.eq.s32.totalorder %v1123, 1
      %vm1156 = vcmp.eq.s32.totalorder %v1124, 1
      %vm1157 = vcmp.eq.s32.totalorder %v1125, 1
      %vm1158 = vcmp.eq.s32.totalorder %v1126, 1
      %vm1159 = vcmp.eq.s32.totalorder %v1127, 1
      %vm1160 = vcmp.eq.s32.totalorder %v1128, 1
      %vm1161 = vcmp.eq.s32.totalorder %v1129, 1
      %vm1162 = vcmp.eq.s32.totalorder %v1130, 1
      %vm1163 = vcmp.eq.s32.totalorder %v1131, 1
      %vm1164 = vcmp.eq.s32.totalorder %v1132, 1
      %vm1165 = vcmp.eq.s32.totalorder %v1133, 1
      %vm1166 = vcmp.eq.s32.totalorder %v1134, 1
      %vm1167 = vcmp.eq.s32.totalorder %v1135, 1
      %vm1168 = vcmp.eq.s32.totalorder %v1136, 1
      %vm1169 = vcmp.eq.s32.totalorder %v1137, 1
      %vm1170 = vcmp.eq.s32.totalorder %v1138, 1
      %vm1171 = vcmp.eq.s32.totalorder %v1139, 1
      %vm1172 = vcmp.eq.s32.totalorder %v1140, 1
      %vm1173 = vcmp.eq.s32.totalorder %v1141, 1
      %vm1174 = vcmp.eq.s32.totalorder %v1142, 1
      %vm1175 = vcmp.eq.s32.totalorder %v1143, 1
      %vm1176 = vcmp.eq.s32.totalorder %v1144, 1
      %vm1177 = vcmp.eq.s32.totalorder %v1145, 1
      %vm1178 = vcmp.eq.s32.totalorder %v1146, 1
      %vm1179 = vcmp.eq.s32.totalorder %v1147, 1
      %vm1180 = vcmp.eq.s32.totalorder %v1148, 1
      %vm1181 = vcmp.eq.s32.totalorder %v1149, 1
      %vm1182 = vcmp.eq.s32.totalorder %v1150, 1
      %vm1183 = vcmp.eq.s32.totalorder %v1151, 1
      %vm1184 = vcmp.eq.s32.totalorder %v1152, 1
      %vm1185 = vmpackc.low %vm1153, %vm1153
      %vm1186 = vmpackc.low %vm1154, %vm1154
      %vm1187 = vmpackc.low %vm1155, %vm1155
      %vm1188 = vmpackc.low %vm1156, %vm1156
      %vm1189 = vmpackc.low %vm1157, %vm1157
      %vm1190 = vmpackc.low %vm1158, %vm1158
      %vm1191 = vmpackc.low %vm1159, %vm1159
      %vm1192 = vmpackc.low %vm1160, %vm1160
      %vm1193 = vmpackc.low %vm1161, %vm1161
      %vm1194 = vmpackc.low %vm1162, %vm1162
      %vm1195 = vmpackc.low %vm1163, %vm1163
      %vm1196 = vmpackc.low %vm1164, %vm1164
      %vm1197 = vmpackc.low %vm1165, %vm1165
      %vm1198 = vmpackc.low %vm1166, %vm1166
      %vm1199 = vmpackc.low %vm1167, %vm1167
      %vm1200 = vmpackc.low %vm1168, %vm1168
      %vm1201 = vmpackc.low %vm1169, %vm1169
      %vm1202 = vmpackc.low %vm1170, %vm1170
      %vm1203 = vmpackc.low %vm1171, %vm1171
      %vm1204 = vmpackc.low %vm1172, %vm1172
      %vm1205 = vmpackc.low %vm1173, %vm1173
      %vm1206 = vmpackc.low %vm1174, %vm1174
      %vm1207 = vmpackc.low %vm1175, %vm1175
      %vm1208 = vmpackc.low %vm1176, %vm1176
      %vm1209 = vmpackc.low %vm1177, %vm1177
      %vm1210 = vmpackc.low %vm1178, %vm1178
      %vm1211 = vmpackc.low %vm1179, %vm1179
      %vm1212 = vmpackc.low %vm1180, %vm1180
      %vm1213 = vmpackc.low %vm1181, %vm1181
      %vm1214 = vmpackc.low %vm1182, %vm1182
      %vm1215 = vmpackc.low %vm1183, %vm1183
      %vm1216 = vmpackc.low %vm1184, %vm1184
      %v1217 = vsel %vm1185, 65537, 0
      %v1218 = vsel %vm1186, 65537, 0
      %v1219 = vsel %vm1187, 65537, 0
      %v1220 = vsel %vm1188, 65537, 0
      %v1221 = vsel %vm1189, 65537, 0
      %v1222 = vsel %vm1190, 65537, 0
      %v1223 = vsel %vm1191, 65537, 0
      %v1224 = vsel %vm1192, 65537, 0
      %v1225 = vsel %vm1193, 65537, 0
      %v1226 = vsel %vm1194, 65537, 0
      %v1227 = vsel %vm1195, 65537, 0
      %v1228 = vsel %vm1196, 65537, 0
      %v1229 = vsel %vm1197, 65537, 0
      %v1230 = vsel %vm1198, 65537, 0
      %v1231 = vsel %vm1199, 65537, 0
      %v1232 = vsel %vm1200, 65537, 0
      %v1233 = vsel %vm1201, 65537, 0
      %v1234 = vsel %vm1202, 65537, 0
      %v1235 = vsel %vm1203, 65537, 0
      %v1236 = vsel %vm1204, 65537, 0
      %v1237 = vsel %vm1205, 65537, 0
      %v1238 = vsel %vm1206, 65537, 0
      %v1239 = vsel %vm1207, 65537, 0
      %v1240 = vsel %vm1208, 65537, 0
      %v1241 = vsel %vm1209, 65537, 0
      %v1242 = vsel %vm1210, 65537, 0
      %v1243 = vsel %vm1211, 65537, 0
      %v1244 = vsel %vm1212, 65537, 0
      %v1245 = vsel %vm1213, 65537, 0
      %v1246 = vsel %vm1214, 65537, 0
      %v1247 = vsel %vm1215, 65537, 0
      %v1248 = vsel %vm1216, 65537, 0
      %vm1249 = vsmask.f32 3328
      %vm1250 = vsmask.f32 7440
      %vm1251 = vmor %vm1249, %vm1250
      %v1253 = vshll.u32 %v1217, 16
      %v1255 = vrot.slane %v1253, 5
      %v1256 = vshrl.u32 %v1217, 16
      %v1258 = vrot.slane %v1256, 4
      %v1259 = vor.u32 %v1258, %v1255
      %v1260 = vrot.slane %v1259, 4
      %v1262 = vshll.u32 %v1218, 16
      %v1264 = vrot.slane %v1262, 5
      %v1265 = vsel %vm1251, %v1260, %v1264
      %v1266 = vshrl.u32 %v1218, 16
      %v1268 = vrot.slane %v1266, 4
      %v1269 = vor.u32 %v1268, %v1264
      %v1270 = vrot.slane %v1269, 4
      %v1272 = vshll.u32 %v1219, 16
      %v1274 = vrot.slane %v1272, 5
      %v1275 = vsel %vm1251, %v1270, %v1274
      %v1276 = vshrl.u32 %v1219, 16
      %v1278 = vrot.slane %v1276, 4
      %v1279 = vor.u32 %v1278, %v1274
      %v1280 = vrot.slane %v1279, 4
      %v1282 = vshll.u32 %v1220, 16
      %v1284 = vrot.slane %v1282, 5
      %v1285 = vsel %vm1251, %v1280, %v1284
      %v1286 = vshrl.u32 %v1220, 16
      %v1288 = vrot.slane %v1286, 4
      %v1289 = vor.u32 %v1288, %v1284
      %v1290 = vrot.slane %v1289, 4
      %v1292 = vshll.u32 %v1221, 16
      %v1294 = vrot.slane %v1292, 5
      %v1295 = vsel %vm1251, %v1290, %v1294
      %v1296 = vshrl.u32 %v1221, 16
      %v1298 = vrot.slane %v1296, 4
      %v1299 = vor.u32 %v1298, %v1294
      %v1300 = vrot.slane %v1299, 4
      %v1302 = vshll.u32 %v1222, 16
      %v1304 = vrot.slane %v1302, 5
      %v1305 = vsel %vm1251, %v1300, %v1304
      %v1306 = vshrl.u32 %v1222, 16
      %v1308 = vrot.slane %v1306, 4
      %v1309 = vor.u32 %v1308, %v1304
      %v1310 = vrot.slane %v1309, 4
      %v1312 = vshll.u32 %v1223, 16
      %v1314 = vrot.slane %v1312, 5
      %v1315 = vsel %vm1251, %v1310, %v1314
      %v1316 = vshrl.u32 %v1223, 16
      %v1318 = vrot.slane %v1316, 4
      %v1319 = vor.u32 %v1318, %v1314
      %v1320 = vrot.slane %v1319, 4
      %v1322 = vshll.u32 %v1224, 16
      %v1324 = vrot.slane %v1322, 5
      %v1325 = vsel %vm1251, %v1320, %v1324
      %v1326 = vshrl.u32 %v1224, 16
      %v1328 = vrot.slane %v1326, 4
      %v1329 = vor.u32 %v1328, %v1324
      %v1330 = vrot.slane %v1329, 4
      %v1332 = vshll.u32 %v1225, 16
      %v1334 = vrot.slane %v1332, 5
      %v1335 = vsel %vm1251, %v1330, %v1334
      %v1336 = vshrl.u32 %v1225, 16
      %v1338 = vrot.slane %v1336, 4
      %v1339 = vor.u32 %v1338, %v1334
      %v1340 = vrot.slane %v1339, 4
      %v1342 = vshll.u32 %v1226, 16
      %v1344 = vrot.slane %v1342, 5
      %v1345 = vsel %vm1251, %v1340, %v1344
      %v1346 = vshrl.u32 %v1226, 16
      %v1348 = vrot.slane %v1346, 4
      %v1349 = vor.u32 %v1348, %v1344
      %v1350 = vrot.slane %v1349, 4
      %v1352 = vshll.u32 %v1227, 16
      %v1354 = vrot.slane %v1352, 5
      %v1355 = vsel %vm1251, %v1350, %v1354
      %v1356 = vshrl.u32 %v1227, 16
      %v1358 = vrot.slane %v1356, 4
      %v1359 = vor.u32 %v1358, %v1354
      %v1360 = vrot.slane %v1359, 4
      %v1362 = vshll.u32 %v1228, 16
      %v1364 = vrot.slane %v1362, 5
      %v1365 = vsel %vm1251, %v1360, %v1364
      %v1366 = vshrl.u32 %v1228, 16
      %v1368 = vrot.slane %v1366, 4
      %v1369 = vor.u32 %v1368, %v1364
      %v1370 = vrot.slane %v1369, 4
      %v1372 = vshll.u32 %v1229, 16
      %v1374 = vrot.slane %v1372, 5
      %v1375 = vsel %vm1251, %v1370, %v1374
      %v1376 = vshrl.u32 %v1229, 16
      %v1378 = vrot.slane %v1376, 4
      %v1379 = vor.u32 %v1378, %v1374
      %v1380 = vrot.slane %v1379, 4
      %v1382 = vshll.u32 %v1230, 16
      %v1384 = vrot.slane %v1382, 5
      %v1385 = vsel %vm1251, %v1380, %v1384
      %v1386 = vshrl.u32 %v1230, 16
      %v1388 = vrot.slane %v1386, 4
      %v1389 = vor.u32 %v1388, %v1384
      %v1390 = vrot.slane %v1389, 4
      %v1392 = vshll.u32 %v1231, 16
      %v1394 = vrot.slane %v1392, 5
      %v1395 = vsel %vm1251, %v1390, %v1394
      %v1396 = vshrl.u32 %v1231, 16
      %v1398 = vrot.slane %v1396, 4
      %v1399 = vor.u32 %v1398, %v1394
      %v1400 = vrot.slane %v1399, 4
      %v1402 = vshll.u32 %v1232, 16
      %v1404 = vrot.slane %v1402, 5
      %v1405 = vsel %vm1251, %v1400, %v1404
      %v1406 = vshrl.u32 %v1232, 16
      %v1408 = vrot.slane %v1406, 4
      %v1409 = vor.u32 %v1408, %v1404
      %v1410 = vrot.slane %v1409, 4
      %v1412 = vshll.u32 %v1233, 16
      %v1414 = vrot.slane %v1412, 5
      %v1415 = vsel %vm1251, %v1410, %v1414
      %v1416 = vshrl.u32 %v1233, 16
      %v1418 = vrot.slane %v1416, 4
      %v1419 = vor.u32 %v1418, %v1414
      %v1420 = vrot.slane %v1419, 4
      %v1422 = vshll.u32 %v1234, 16
      %v1424 = vrot.slane %v1422, 5
      %v1425 = vsel %vm1251, %v1420, %v1424
      %v1426 = vshrl.u32 %v1234, 16
      %v1428 = vrot.slane %v1426, 4
      %v1429 = vor.u32 %v1428, %v1424
      %v1430 = vrot.slane %v1429, 4
      %v1432 = vshll.u32 %v1235, 16
      %v1434 = vrot.slane %v1432, 5
      %v1435 = vsel %vm1251, %v1430, %v1434
      %v1436 = vshrl.u32 %v1235, 16
      %v1438 = vrot.slane %v1436, 4
      %v1439 = vor.u32 %v1438, %v1434
      %v1440 = vrot.slane %v1439, 4
      %v1442 = vshll.u32 %v1236, 16
      %v1444 = vrot.slane %v1442, 5
      %v1445 = vsel %vm1251, %v1440, %v1444
      %v1446 = vshrl.u32 %v1236, 16
      %v1448 = vrot.slane %v1446, 4
      %v1449 = vor.u32 %v1448, %v1444
      %v1450 = vrot.slane %v1449, 4
      %v1452 = vshll.u32 %v1237, 16
      %v1454 = vrot.slane %v1452, 5
      %v1455 = vsel %vm1251, %v1450, %v1454
      %v1456 = vshrl.u32 %v1237, 16
      %v1458 = vrot.slane %v1456, 4
      %v1459 = vor.u32 %v1458, %v1454
      %v1460 = vrot.slane %v1459, 4
      %v1462 = vshll.u32 %v1238, 16
      %v1464 = vrot.slane %v1462, 5
      %v1465 = vsel %vm1251, %v1460, %v1464
      %v1466 = vshrl.u32 %v1238, 16
      %v1468 = vrot.slane %v1466, 4
      %v1469 = vor.u32 %v1468, %v1464
      %v1470 = vrot.slane %v1469, 4
      %v1472 = vshll.u32 %v1239, 16
      %v1474 = vrot.slane %v1472, 5
      %v1475 = vsel %vm1251, %v1470, %v1474
      %v1476 = vshrl.u32 %v1239, 16
      %v1478 = vrot.slane %v1476, 4
      %v1479 = vor.u32 %v1478, %v1474
      %v1480 = vrot.slane %v1479, 4
      %v1482 = vshll.u32 %v1240, 16
      %v1484 = vrot.slane %v1482, 5
      %v1485 = vsel %vm1251, %v1480, %v1484
      %v1486 = vshrl.u32 %v1240, 16
      %v1488 = vrot.slane %v1486, 4
      %v1489 = vor.u32 %v1488, %v1484
      %v1490 = vrot.slane %v1489, 4
      %v1492 = vshll.u32 %v1241, 16
      %v1494 = vrot.slane %v1492, 5
      %v1495 = vsel %vm1251, %v1490, %v1494
      %v1496 = vshrl.u32 %v1241, 16
      %v1498 = vrot.slane %v1496, 4
      %v1499 = vor.u32 %v1498, %v1494
      %v1500 = vrot.slane %v1499, 4
      %v1502 = vshll.u32 %v1242, 16
      %v1504 = vrot.slane %v1502, 5
      %v1505 = vsel %vm1251, %v1500, %v1504
      %v1506 = vshrl.u32 %v1242, 16
      %v1508 = vrot.slane %v1506, 4
      %v1509 = vor.u32 %v1508, %v1504
      %v1510 = vrot.slane %v1509, 4
      %v1512 = vshll.u32 %v1243, 16
      %v1514 = vrot.slane %v1512, 5
      %v1515 = vsel %vm1251, %v1510, %v1514
      %v1516 = vshrl.u32 %v1243, 16
      %v1518 = vrot.slane %v1516, 4
      %v1519 = vor.u32 %v1518, %v1514
      %v1520 = vrot.slane %v1519, 4
      %v1522 = vshll.u32 %v1244, 16
      %v1524 = vrot.slane %v1522, 5
      %v1525 = vsel %vm1251, %v1520, %v1524
      %v1526 = vshrl.u32 %v1244, 16
      %v1528 = vrot.slane %v1526, 4
      %v1529 = vor.u32 %v1528, %v1524
      %v1530 = vrot.slane %v1529, 4
      %v1532 = vshll.u32 %v1245, 16
      %v1534 = vrot.slane %v1532, 5
      %v1535 = vsel %vm1251, %v1530, %v1534
      %v1536 = vshrl.u32 %v1245, 16
      %v1538 = vrot.slane %v1536, 4
      %v1539 = vor.u32 %v1538, %v1534
      %v1540 = vrot.slane %v1539, 4
      %v1542 = vshll.u32 %v1246, 16
      %v1544 = vrot.slane %v1542, 5
      %v1545 = vsel %vm1251, %v1540, %v1544
      %v1546 = vshrl.u32 %v1246, 16
      %v1548 = vrot.slane %v1546, 4
      %v1549 = vor.u32 %v1548, %v1544
      %v1550 = vrot.slane %v1549, 4
      %v1552 = vshll.u32 %v1247, 16
      %v1554 = vrot.slane %v1552, 5
      %v1555 = vsel %vm1251, %v1550, %v1554
      %v1556 = vshrl.u32 %v1247, 16
      %v1558 = vrot.slane %v1556, 4
      %v1559 = vor.u32 %v1558, %v1554
      %v1560 = vrot.slane %v1559, 4
      %v1562 = vshll.u32 %v1248, 16
      %v1564 = vrot.slane %v1562, 5
      %v1565 = vsel %vm1251, %v1560, %v1564
      %v1566 = vshrl.u32 %v1248, 16
      %v1568 = vrot.slane %v1566, 4
      %v1569 = vor.u32 %v1568, %v1564
      %v1570 = vrot.slane %v1569, 4
      %v1571 = vunpack.c.l.b16 %v1255
      %v1572 = vunpack.c.h.b16 %v1255
      %v1573 = vunpack.c.l.b16 0
      %v1574 = vunpack.c.h.b16 0
      %vm1575 = vcmp.ne.s32.totalorder %v1571, %v1573
      %vm1576 = vcmp.ne.s32.totalorder %v1572, %v1574
      %vm1577 = vmpackc.low %vm1576, %vm1575
      %v1578 = vunpack.c.l.b16 %v1265
      %v1579 = vunpack.c.h.b16 %v1265
      %v1580 = vunpack.c.l.b16 0
      %v1581 = vunpack.c.h.b16 0
      %vm1582 = vcmp.ne.s32.totalorder %v1578, %v1580
      %vm1583 = vcmp.ne.s32.totalorder %v1579, %v1581
      %vm1584 = vmpackc.low %vm1583, %vm1582
      %v1585 = vunpack.c.l.b16 %v1275
      %v1586 = vunpack.c.h.b16 %v1275
      %v1587 = vunpack.c.l.b16 0
      %v1588 = vunpack.c.h.b16 0
      %vm1589 = vcmp.ne.s32.totalorder %v1585, %v1587
      %vm1590 = vcmp.ne.s32.totalorder %v1586, %v1588
      %vm1591 = vmpackc.low %vm1590, %vm1589
      %v1592 = vunpack.c.l.b16 %v1285
      %v1593 = vunpack.c.h.b16 %v1285
      %v1594 = vunpack.c.l.b16 0
      %v1595 = vunpack.c.h.b16 0
      %vm1596 = vcmp.ne.s32.totalorder %v1592, %v1594
      %vm1597 = vcmp.ne.s32.totalorder %v1593, %v1595
      %vm1598 = vmpackc.low %vm1597, %vm1596
      %v1599 = vunpack.c.l.b16 %v1295
      %v1600 = vunpack.c.h.b16 %v1295
      %v1601 = vunpack.c.l.b16 0
      %v1602 = vunpack.c.h.b16 0
      %vm1603 = vcmp.ne.s32.totalorder %v1599, %v1601
      %vm1604 = vcmp.ne.s32.totalorder %v1600, %v1602
      %vm1605 = vmpackc.low %vm1604, %vm1603
      %v1606 = vunpack.c.l.b16 %v1305
      %v1607 = vunpack.c.h.b16 %v1305
      %v1608 = vunpack.c.l.b16 0
      %v1609 = vunpack.c.h.b16 0
      %vm1610 = vcmp.ne.s32.totalorder %v1606, %v1608
      %vm1611 = vcmp.ne.s32.totalorder %v1607, %v1609
      %vm1612 = vmpackc.low %vm1611, %vm1610
      %v1613 = vunpack.c.l.b16 %v1315
      %v1614 = vunpack.c.h.b16 %v1315
      %v1615 = vunpack.c.l.b16 0
      %v1616 = vunpack.c.h.b16 0
      %vm1617 = vcmp.ne.s32.totalorder %v1613, %v1615
      %vm1618 = vcmp.ne.s32.totalorder %v1614, %v1616
      %vm1619 = vmpackc.low %vm1618, %vm1617
      %v1620 = vunpack.c.l.b16 %v1325
      %v1621 = vunpack.c.h.b16 %v1325
      %v1622 = vunpack.c.l.b16 0
      %v1623 = vunpack.c.h.b16 0
      %vm1624 = vcmp.ne.s32.totalorder %v1620, %v1622
      %vm1625 = vcmp.ne.s32.totalorder %v1621, %v1623
      %vm1626 = vmpackc.low %vm1625, %vm1624
      %v1627 = vunpack.c.l.b16 %v1335
      %v1628 = vunpack.c.h.b16 %v1335
      %v1629 = vunpack.c.l.b16 0
      %v1630 = vunpack.c.h.b16 0
      %vm1631 = vcmp.ne.s32.totalorder %v1627, %v1629
      %vm1632 = vcmp.ne.s32.totalorder %v1628, %v1630
      %vm1633 = vmpackc.low %vm1632, %vm1631
      %v1634 = vunpack.c.l.b16 %v1345
      %v1635 = vunpack.c.h.b16 %v1345
      %v1636 = vunpack.c.l.b16 0
      %v1637 = vunpack.c.h.b16 0
      %vm1638 = vcmp.ne.s32.totalorder %v1634, %v1636
      %vm1639 = vcmp.ne.s32.totalorder %v1635, %v1637
      %vm1640 = vmpackc.low %vm1639, %vm1638
      %v1641 = vunpack.c.l.b16 %v1355
      %v1642 = vunpack.c.h.b16 %v1355
      %v1643 = vunpack.c.l.b16 0
      %v1644 = vunpack.c.h.b16 0
      %vm1645 = vcmp.ne.s32.totalorder %v1641, %v1643
      %vm1646 = vcmp.ne.s32.totalorder %v1642, %v1644
      %vm1647 = vmpackc.low %vm1646, %vm1645
      %v1648 = vunpack.c.l.b16 %v1365
      %v1649 = vunpack.c.h.b16 %v1365
      %v1650 = vunpack.c.l.b16 0
      %v1651 = vunpack.c.h.b16 0
      %vm1652 = vcmp.ne.s32.totalorder %v1648, %v1650
      %vm1653 = vcmp.ne.s32.totalorder %v1649, %v1651
      %vm1654 = vmpackc.low %vm1653, %vm1652
      %v1655 = vunpack.c.l.b16 %v1375
      %v1656 = vunpack.c.h.b16 %v1375
      %v1657 = vunpack.c.l.b16 0
      %v1658 = vunpack.c.h.b16 0
      %vm1659 = vcmp.ne.s32.totalorder %v1655, %v1657
      %vm1660 = vcmp.ne.s32.totalorder %v1656, %v1658
      %vm1661 = vmpackc.low %vm1660, %vm1659
      %v1662 = vunpack.c.l.b16 %v1385
      %v1663 = vunpack.c.h.b16 %v1385
      %v1664 = vunpack.c.l.b16 0
      %v1665 = vunpack.c.h.b16 0
      %vm1666 = vcmp.ne.s32.totalorder %v1662, %v1664
      %vm1667 = vcmp.ne.s32.totalorder %v1663, %v1665
      %vm1668 = vmpackc.low %vm1667, %vm1666
      %v1669 = vunpack.c.l.b16 %v1395
      %v1670 = vunpack.c.h.b16 %v1395
      %v1671 = vunpack.c.l.b16 0
      %v1672 = vunpack.c.h.b16 0
      %vm1673 = vcmp.ne.s32.totalorder %v1669, %v1671
      %vm1674 = vcmp.ne.s32.totalorder %v1670, %v1672
      %vm1675 = vmpackc.low %vm1674, %vm1673
      %v1676 = vunpack.c.l.b16 %v1405
      %v1677 = vunpack.c.h.b16 %v1405
      %v1678 = vunpack.c.l.b16 0
      %v1679 = vunpack.c.h.b16 0
      %vm1680 = vcmp.ne.s32.totalorder %v1676, %v1678
      %vm1681 = vcmp.ne.s32.totalorder %v1677, %v1679
      %vm1682 = vmpackc.low %vm1681, %vm1680
      %v1683 = vunpack.c.l.b16 %v1415
      %v1684 = vunpack.c.h.b16 %v1415
      %v1685 = vunpack.c.l.b16 0
      %v1686 = vunpack.c.h.b16 0
      %vm1687 = vcmp.ne.s32.totalorder %v1683, %v1685
      %vm1688 = vcmp.ne.s32.totalorder %v1684, %v1686
      %vm1689 = vmpackc.low %vm1688, %vm1687
      %v1690 = vunpack.c.l.b16 %v1425
      %v1691 = vunpack.c.h.b16 %v1425
      %v1692 = vunpack.c.l.b16 0
      %v1693 = vunpack.c.h.b16 0
      %vm1694 = vcmp.ne.s32.totalorder %v1690, %v1692
      %vm1695 = vcmp.ne.s32.totalorder %v1691, %v1693
      %vm1696 = vmpackc.low %vm1695, %vm1694
      %v1697 = vunpack.c.l.b16 %v1435
      %v1698 = vunpack.c.h.b16 %v1435
      %v1699 = vunpack.c.l.b16 0
      %v1700 = vunpack.c.h.b16 0
      %vm1701 = vcmp.ne.s32.totalorder %v1697, %v1699
      %vm1702 = vcmp.ne.s32.totalorder %v1698, %v1700
      %vm1703 = vmpackc.low %vm1702, %vm1701
      %v1704 = vunpack.c.l.b16 %v1445
      %v1705 = vunpack.c.h.b16 %v1445
      %v1706 = vunpack.c.l.b16 0
      %v1707 = vunpack.c.h.b16 0
      %vm1708 = vcmp.ne.s32.totalorder %v1704, %v1706
      %vm1709 = vcmp.ne.s32.totalorder %v1705, %v1707
      %vm1710 = vmpackc.low %vm1709, %vm1708
      %v1711 = vunpack.c.l.b16 %v1455
      %v1712 = vunpack.c.h.b16 %v1455
      %v1713 = vunpack.c.l.b16 0
      %v1714 = vunpack.c.h.b16 0
      %vm1715 = vcmp.ne.s32.totalorder %v1711, %v1713
      %vm1716 = vcmp.ne.s32.totalorder %v1712, %v1714
      %vm1717 = vmpackc.low %vm1716, %vm1715
      %v1718 = vunpack.c.l.b16 %v1465
      %v1719 = vunpack.c.h.b16 %v1465
      %v1720 = vunpack.c.l.b16 0
      %v1721 = vunpack.c.h.b16 0
      %vm1722 = vcmp.ne.s32.totalorder %v1718, %v1720
      %vm1723 = vcmp.ne.s32.totalorder %v1719, %v1721
      %vm1724 = vmpackc.low %vm1723, %vm1722
      %v1725 = vunpack.c.l.b16 %v1475
      %v1726 = vunpack.c.h.b16 %v1475
      %v1727 = vunpack.c.l.b16 0
      %v1728 = vunpack.c.h.b16 0
      %vm1729 = vcmp.ne.s32.totalorder %v1725, %v1727
      %vm1730 = vcmp.ne.s32.totalorder %v1726, %v1728
      %vm1731 = vmpackc.low %vm1730, %vm1729
      %v1732 = vunpack.c.l.b16 %v1485
      %v1733 = vunpack.c.h.b16 %v1485
      %v1734 = vunpack.c.l.b16 0
      %v1735 = vunpack.c.h.b16 0
      %vm1736 = vcmp.ne.s32.totalorder %v1732, %v1734
      %vm1737 = vcmp.ne.s32.totalorder %v1733, %v1735
      %vm1738 = vmpackc.low %vm1737, %vm1736
      %v1739 = vunpack.c.l.b16 %v1495
      %v1740 = vunpack.c.h.b16 %v1495
      %v1741 = vunpack.c.l.b16 0
      %v1742 = vunpack.c.h.b16 0
      %vm1743 = vcmp.ne.s32.totalorder %v1739, %v1741
      %vm1744 = vcmp.ne.s32.totalorder %v1740, %v1742
      %vm1745 = vmpackc.low %vm1744, %vm1743
      %v1746 = vunpack.c.l.b16 %v1505
      %v1747 = vunpack.c.h.b16 %v1505
      %v1748 = vunpack.c.l.b16 0
      %v1749 = vunpack.c.h.b16 0
      %vm1750 = vcmp.ne.s32.totalorder %v1746, %v1748
      %vm1751 = vcmp.ne.s32.totalorder %v1747, %v1749
      %vm1752 = vmpackc.low %vm1751, %vm1750
      %v1753 = vunpack.c.l.b16 %v1515
      %v1754 = vunpack.c.h.b16 %v1515
      %v1755 = vunpack.c.l.b16 0
      %v1756 = vunpack.c.h.b16 0
      %vm1757 = vcmp.ne.s32.totalorder %v1753, %v1755
      %vm1758 = vcmp.ne.s32.totalorder %v1754, %v1756
      %vm1759 = vmpackc.low %vm1758, %vm1757
      %v1760 = vunpack.c.l.b16 %v1525
      %v1761 = vunpack.c.h.b16 %v1525
      %v1762 = vunpack.c.l.b16 0
      %v1763 = vunpack.c.h.b16 0
      %vm1764 = vcmp.ne.s32.totalorder %v1760, %v1762
      %vm1765 = vcmp.ne.s32.totalorder %v1761, %v1763
      %vm1766 = vmpackc.low %vm1765, %vm1764
      %v1767 = vunpack.c.l.b16 %v1535
      %v1768 = vunpack.c.h.b16 %v1535
      %v1769 = vunpack.c.l.b16 0
      %v1770 = vunpack.c.h.b16 0
      %vm1771 = vcmp.ne.s32.totalorder %v1767, %v1769
      %vm1772 = vcmp.ne.s32.totalorder %v1768, %v1770
      %vm1773 = vmpackc.low %vm1772, %vm1771
      %v1774 = vunpack.c.l.b16 %v1545
      %v1775 = vunpack.c.h.b16 %v1545
      %v1776 = vunpack.c.l.b16 0
      %v1777 = vunpack.c.h.b16 0
      %vm1778 = vcmp.ne.s32.totalorder %v1774, %v1776
      %vm1779 = vcmp.ne.s32.totalorder %v1775, %v1777
      %vm1780 = vmpackc.low %vm1779, %vm1778
      %v1781 = vunpack.c.l.b16 %v1555
      %v1782 = vunpack.c.h.b16 %v1555
      %v1783 = vunpack.c.l.b16 0
      %v1784 = vunpack.c.h.b16 0
      %vm1785 = vcmp.ne.s32.totalorder %v1781, %v1783
      %vm1786 = vcmp.ne.s32.totalorder %v1782, %v1784
      %vm1787 = vmpackc.low %vm1786, %vm1785
      %v1788 = vunpack.c.l.b16 %v1565
      %v1789 = vunpack.c.h.b16 %v1565
      %v1790 = vunpack.c.l.b16 0
      %v1791 = vunpack.c.h.b16 0
      %vm1792 = vcmp.ne.s32.totalorder %v1788, %v1790
      %vm1793 = vcmp.ne.s32.totalorder %v1789, %v1791
      %vm1794 = vmpackc.low %vm1793, %vm1792
      %v1795 = vunpack.c.l.b16 %v1570
      %v1796 = vunpack.c.h.b16 %v1570
      %v1797 = vunpack.c.l.b16 0
      %v1798 = vunpack.c.h.b16 0
      %vm1799 = vcmp.ne.s32.totalorder %v1795, %v1797
      %vm1800 = vcmp.ne.s32.totalorder %v1796, %v1798
      %vm1801 = vmpackc.low %vm1800, %vm1799
      %v1802 = vsel %vm1577, %v960, 0
      %v1803 = vsel %vm1584, %v961, 0
      %v1804 = vsel %vm1591, %v962, 0
      %v1805 = vsel %vm1598, %v963, 0
      %v1806 = vsel %vm1605, %v964, 0
      %v1807 = vsel %vm1612, %v965, 0
      %v1808 = vsel %vm1619, %v966, 0
      %v1809 = vsel %vm1626, %v967, 0
      %v1810 = vsel %vm1633, %v968, 0
      %v1811 = vsel %vm1640, %v969, 0
      %v1812 = vsel %vm1647, %v970, 0
      %v1813 = vsel %vm1654, %v971, 0
      %v1814 = vsel %vm1661, %v972, 0
      %v1815 = vsel %vm1668, %v973, 0
      %v1816 = vsel %vm1675, %v974, 0
      %v1817 = vsel %vm1682, %v975, 0
      %v1818 = vsel %vm1689, %v976, 0
      %v1819 = vsel %vm1696, %v977, 0
      %v1820 = vsel %vm1703, %v978, 0
      %v1821 = vsel %vm1710, %v979, 0
      %v1822 = vsel %vm1717, %v980, 0
      %v1823 = vsel %vm1724, %v981, 0
      %v1824 = vsel %vm1731, %v982, 0
      %v1825 = vsel %vm1738, %v983, 0
      %v1826 = vsel %vm1745, %v984, 0
      %v1827 = vsel %vm1752, %v985, 0
      %v1828 = vsel %vm1759, %v986, 0
      %v1829 = vsel %vm1766, %v987, 0
      %v1830 = vsel %vm1773, %v988, 0
      %v1831 = vsel %vm1780, %v989, 0
      %v1832 = vsel %vm1787, %v990, 0
      %v1833 = vsel %vm1794, %v991, 0
      %v1834 = vsel %vm1801, %v992, 0
      %v1835 = vld [vmem:[%s3] sm:$0x3]
      %s1836 = scalar_lea.vmem %s3, 2
      %v1837 = vld [vmem:[%s1836] sm:$0x3]
      %v1870 = vunpack.c.l.b16 %v961
      %v1871 = vunpack.c.l.b16 %v962
      %v1872 = vunpack.c.l.b16 %v963
      %v1873 = vunpack.c.l.b16 %v964
      %v1874 = vunpack.c.l.b16 %v965
      %v1875 = vunpack.c.l.b16 %v966
      %v1876 = vunpack.c.l.b16 %v967
      %v1877 = vunpack.c.l.b16 %v968
      %v1878 = vunpack.c.l.b16 %v969
      %v1879 = vunpack.c.l.b16 %v970
      %v1880 = vunpack.c.l.b16 %v971
      %v1881 = vunpack.c.l.b16 %v972
      %v1882 = vunpack.c.l.b16 %v973
      %v1883 = vunpack.c.l.b16 %v974
      %v1884 = vunpack.c.l.b16 %v975
      %v1885 = vunpack.c.l.b16 %v976
      %v1886 = vunpack.c.l.b16 %v977
      %v1887 = vunpack.c.l.b16 %v978
      %v1888 = vunpack.c.l.b16 %v979
      %v1889 = vunpack.c.l.b16 %v980
      %v1890 = vunpack.c.l.b16 %v981
      %v1891 = vunpack.c.l.b16 %v982
      %v1892 = vunpack.c.l.b16 %v983
      %v1893 = vunpack.c.l.b16 %v984
      %v1894 = vunpack.c.l.b16 %v985
      %v1895 = vunpack.c.l.b16 %v986
      %v1896 = vunpack.c.l.b16 %v987
      %v1897 = vunpack.c.l.b16 %v988
      %v1898 = vunpack.c.l.b16 %v989
      %v1899 = vunpack.c.l.b16 %v990
      %v1900 = vunpack.c.l.b16 %v991
      %v1901 = vunpack.c.l.b16 %v992
      %v1902 = vpack.c.b16 %v1871, %v1870
      %v1903 = vpack.c.b16 %v1873, %v1872
      %v1904 = vpack.c.b16 %v1875, %v1874
      %v1905 = vpack.c.b16 %v1877, %v1876
      %v1906 = vpack.c.b16 %v1879, %v1878
      %v1907 = vpack.c.b16 %v1881, %v1880
      %v1908 = vpack.c.b16 %v1883, %v1882
      %v1909 = vpack.c.b16 %v1885, %v1884
      %v1910 = vpack.c.b16 %v1887, %v1886
      %v1911 = vpack.c.b16 %v1889, %v1888
      %v1912 = vpack.c.b16 %v1891, %v1890
      %v1913 = vpack.c.b16 %v1893, %v1892
      %v1914 = vpack.c.b16 %v1895, %v1894
      %v1915 = vpack.c.b16 %v1897, %v1896
      %v1916 = vpack.c.b16 %v1899, %v1898
      %v1917 = vpack.c.b16 %v1901, %v1900
      %vm1918 = vcmask 23552
      %v1920 = vsel %vm1918, %v1902, 0
      %v1923 = vsel %vm1918, %v1903, 0
      %v1926 = vsel %vm1918, %v1904, 0
      %v1929 = vsel %vm1918, %v1905, 0
      %v1932 = vsel %vm1918, %v1906, 0
      %v1935 = vsel %vm1918, %v1907, 0
      %v1938 = vsel %vm1918, %v1908, 0
      %v1941 = vsel %vm1918, %v1909, 0
      %v1944 = vsel %vm1918, %v1910, 0
      %v1947 = vsel %vm1918, %v1911, 0
      %v1950 = vsel %vm1918, %v1912, 0
      %v1953 = vsel %vm1918, %v1913, 0
      %v1956 = vsel %vm1918, %v1914, 0
      %v1959 = vsel %vm1918, %v1915, 0
      %v1962 = vsel %vm1918, %v1916, 0
      %v1965 = vsel %vm1918, %v1917, 0
      %vm1967 = vcmask 1040384
      %vm1968 = vcmask 1041408
      %v1969 = vsel %vm1967, 4294967295, 65535
      %v1970 = vsel %vm1968, %v1969, 0
      %v1972 = vand.u32 %v1837, %v1970
      %1974 = vmatpush.bf16.msra.mxu0 0
      %1975 = vmatpush.bf16.msra.mxu0 0
      %1976 = vmatpush.bf16.msra.mxu0 0
      %1977 = vmatpush.bf16.msra.mxu0 0
      %1978 = vmatpush.bf16.msra.mxu0 0
      %1979 = vmatpush.bf16.msra.mxu0 0
      %1980 = vmatpush.bf16.msra.mxu0 0
      %1981 = vmatpush.bf16.msra.mxu0 %v1972
      %1982 = vmatmul.bf16.gmra.mxu0 %v1920
      %v1983 = vpop.f32.mrf.mxu0
      %v1984 = vadd.f32 0.0, %v1983
      %v1985 = vpop.f32.mrf.mxu0
      %v1986 = vadd.f32 0.0, %v1985
      %1987 = vmatmul.bf16.gmra.mxu0 %v1923
      %v1988 = vpop.f32.mrf.mxu0
      %v1989 = vadd.f32 0.0, %v1988
      %v1990 = vpop.f32.mrf.mxu0
      %v1991 = vadd.f32 0.0, %v1990
      %1992 = vmatmul.bf16.gmra.mxu0 %v1926
      %v1993 = vpop.f32.mrf.mxu0
      %v1994 = vadd.f32 0.0, %v1993
      %v1995 = vpop.f32.mrf.mxu0
      %v1996 = vadd.f32 0.0, %v1995
      %1997 = vmatmul.bf16.gmra.mxu0 %v1929
      %v1998 = vpop.f32.mrf.mxu0
      %v1999 = vadd.f32 0.0, %v1998
      %v2000 = vpop.f32.mrf.mxu0
      %v2001 = vadd.f32 0.0, %v2000
      %2002 = vmatmul.bf16.gmra.mxu0 %v1932
      %v2003 = vpop.f32.mrf.mxu0
      %v2004 = vadd.f32 0.0, %v2003
      %v2005 = vpop.f32.mrf.mxu0
      %v2006 = vadd.f32 0.0, %v2005
      %2007 = vmatmul.bf16.gmra.mxu0 %v1935
      %v2008 = vpop.f32.mrf.mxu0
      %v2009 = vadd.f32 0.0, %v2008
      %v2010 = vpop.f32.mrf.mxu0
      %v2011 = vadd.f32 0.0, %v2010
      %2012 = vmatmul.bf16.gmra.mxu0 %v1938
      %v2013 = vpop.f32.mrf.mxu0
      %v2014 = vadd.f32 0.0, %v2013
      %v2015 = vpop.f32.mrf.mxu0
      %v2016 = vadd.f32 0.0, %v2015
      %2017 = vmatmul.bf16.gmra.mxu0 %v1941
      %v2018 = vpop.f32.mrf.mxu0
      %v2019 = vadd.f32 0.0, %v2018
      %v2020 = vpop.f32.mrf.mxu0
      %v2021 = vadd.f32 0.0, %v2020
      %2022 = vmatmul.bf16.gmra.mxu0 %v1944
      %v2023 = vpop.f32.mrf.mxu0
      %v2024 = vadd.f32 0.0, %v2023
      %v2025 = vpop.f32.mrf.mxu0
      %v2026 = vadd.f32 0.0, %v2025
      %2027 = vmatmul.bf16.gmra.mxu0 %v1947
      %v2028 = vpop.f32.mrf.mxu0
      %v2029 = vadd.f32 0.0, %v2028
      %v2030 = vpop.f32.mrf.mxu0
      %v2031 = vadd.f32 0.0, %v2030
      %2032 = vmatmul.bf16.gmra.mxu0 %v1950
      %v2033 = vpop.f32.mrf.mxu0
      %v2034 = vadd.f32 0.0, %v2033
      %v2035 = vpop.f32.mrf.mxu0
      %v2036 = vadd.f32 0.0, %v2035
      %2037 = vmatmul.bf16.gmra.mxu0 %v1953
      %v2038 = vpop.f32.mrf.mxu0
      %v2039 = vadd.f32 0.0, %v2038
      %v2040 = vpop.f32.mrf.mxu0
      %v2041 = vadd.f32 0.0, %v2040
      %2042 = vmatmul.bf16.gmra.mxu0 %v1956
      %v2043 = vpop.f32.mrf.mxu0
      %v2044 = vadd.f32 0.0, %v2043
      %v2045 = vpop.f32.mrf.mxu0
      %v2046 = vadd.f32 0.0, %v2045
      %2047 = vmatmul.bf16.gmra.mxu0 %v1959
      %v2048 = vpop.f32.mrf.mxu0
      %v2049 = vadd.f32 0.0, %v2048
      %v2050 = vpop.f32.mrf.mxu0
      %v2051 = vadd.f32 0.0, %v2050
      %2052 = vmatmul.bf16.gmra.mxu0 %v1962
      %v2053 = vpop.f32.mrf.mxu0
      %v2054 = vadd.f32 0.0, %v2053
      %v2055 = vpop.f32.mrf.mxu0
      %v2056 = vadd.f32 0.0, %v2055
      %2057 = vmatmul.bf16.gmra.mxu0 %v1965
      %v2058 = vpop.f32.mrf.mxu0
      %v2059 = vadd.f32 0.0, %v2058
      %v2060 = vpop.f32.mrf.mxu0
      %v2061 = vadd.f32 0.0, %v2060
      %2062 = vdwg.mxu0
      %v2096 = vunpack.c.l.b16 %v1802
      %v2097 = vunpack.c.l.b16 %v1803
      %v2098 = vunpack.c.l.b16 %v1804
      %v2099 = vunpack.c.l.b16 %v1805
      %v2100 = vunpack.c.l.b16 %v1806
      %v2101 = vunpack.c.l.b16 %v1807
      %v2102 = vunpack.c.l.b16 %v1808
      %v2103 = vunpack.c.l.b16 %v1809
      %v2104 = vunpack.c.l.b16 %v1810
      %v2105 = vunpack.c.l.b16 %v1811
      %v2106 = vunpack.c.l.b16 %v1812
      %v2107 = vunpack.c.l.b16 %v1813
      %v2108 = vunpack.c.l.b16 %v1814
      %v2109 = vunpack.c.l.b16 %v1815
      %v2110 = vunpack.c.l.b16 %v1816
      %v2111 = vunpack.c.l.b16 %v1817
      %v2112 = vunpack.c.l.b16 %v1818
      %v2113 = vunpack.c.l.b16 %v1819
      %v2114 = vunpack.c.l.b16 %v1820
      %v2115 = vunpack.c.l.b16 %v1821
      %v2116 = vunpack.c.l.b16 %v1822
      %v2117 = vunpack.c.l.b16 %v1823
      %v2118 = vunpack.c.l.b16 %v1824
      %v2119 = vunpack.c.l.b16 %v1825
      %v2120 = vunpack.c.l.b16 %v1826
      %v2121 = vunpack.c.l.b16 %v1827
      %v2122 = vunpack.c.l.b16 %v1828
      %v2123 = vunpack.c.l.b16 %v1829
      %v2124 = vunpack.c.l.b16 %v1830
      %v2125 = vunpack.c.l.b16 %v1831
      %v2126 = vunpack.c.l.b16 %v1832
      %v2127 = vunpack.c.l.b16 %v1833
      %v2128 = vunpack.c.l.b16 %v1834
      %v2129 = vpack.c.b16 %v2097, %v2096
      %v2130 = vpack.c.b16 %v2099, %v2098
      %v2131 = vpack.c.b16 %v2101, %v2100
      %v2132 = vpack.c.b16 %v2103, %v2102
      %v2133 = vpack.c.b16 %v2105, %v2104
      %v2134 = vpack.c.b16 %v2107, %v2106
      %v2135 = vpack.c.b16 %v2109, %v2108
      %v2136 = vpack.c.b16 %v2111, %v2110
      %v2137 = vpack.c.b16 %v2113, %v2112
      %v2138 = vpack.c.b16 %v2115, %v2114
      %v2139 = vpack.c.b16 %v2117, %v2116
      %v2140 = vpack.c.b16 %v2119, %v2118
      %v2141 = vpack.c.b16 %v2121, %v2120
      %v2142 = vpack.c.b16 %v2123, %v2122
      %v2143 = vpack.c.b16 %v2125, %v2124
      %v2144 = vpack.c.b16 %v2127, %v2126
      %v2145 = vpack.c.b16 %v2128, %v2128
      %vm2146 = vsmask.f32 4352
      %v2148 = vshrl.u32 %v2129, 16
      %v2150 = vrot.slane %v2148, 3
      %v2151 = vshll.u32 %v2129, 16
      %v2153 = vrot.slane %v2151, 4
      %v2154 = vor.u32 %v2150, %v2153
      %v2156 = vshrl.u32 %v2130, 16
      %v2158 = vrot.slane %v2156, 3
      %v2159 = vshll.u32 %v2130, 16
      %v2161 = vrot.slane %v2159, 4
      %v2162 = vor.u32 %v2158, %v2161
      %v2163 = vsel %vm2146, %v2154, %v2162
      %v2165 = vshrl.u32 %v2131, 16
      %v2167 = vrot.slane %v2165, 3
      %v2168 = vshll.u32 %v2131, 16
      %v2170 = vrot.slane %v2168, 4
      %v2171 = vor.u32 %v2167, %v2170
      %v2172 = vsel %vm2146, %v2162, %v2171
      %v2174 = vshrl.u32 %v2132, 16
      %v2176 = vrot.slane %v2174, 3
      %v2177 = vshll.u32 %v2132, 16
      %v2179 = vrot.slane %v2177, 4
      %v2180 = vor.u32 %v2176, %v2179
      %v2181 = vsel %vm2146, %v2171, %v2180
      %v2183 = vshrl.u32 %v2133, 16
      %v2185 = vrot.slane %v2183, 3
      %v2186 = vshll.u32 %v2133, 16
      %v2188 = vrot.slane %v2186, 4
      %v2189 = vor.u32 %v2185, %v2188
      %v2190 = vsel %vm2146, %v2180, %v2189
      %v2192 = vshrl.u32 %v2134, 16
      %v2194 = vrot.slane %v2192, 3
      %v2195 = vshll.u32 %v2134, 16
      %v2197 = vrot.slane %v2195, 4
      %v2198 = vor.u32 %v2194, %v2197
      %v2199 = vsel %vm2146, %v2189, %v2198
      %v2201 = vshrl.u32 %v2135, 16
      %v2203 = vrot.slane %v2201, 3
      %v2204 = vshll.u32 %v2135, 16
      %v2206 = vrot.slane %v2204, 4
      %v2207 = vor.u32 %v2203, %v2206
      %v2208 = vsel %vm2146, %v2198, %v2207
      %v2210 = vshrl.u32 %v2136, 16
      %v2212 = vrot.slane %v2210, 3
      %v2213 = vshll.u32 %v2136, 16
      %v2215 = vrot.slane %v2213, 4
      %v2216 = vor.u32 %v2212, %v2215
      %v2217 = vsel %vm2146, %v2207, %v2216
      %v2219 = vshrl.u32 %v2137, 16
      %v2221 = vrot.slane %v2219, 3
      %v2222 = vshll.u32 %v2137, 16
      %v2224 = vrot.slane %v2222, 4
      %v2225 = vor.u32 %v2221, %v2224
      %v2226 = vsel %vm2146, %v2216, %v2225
      %v2228 = vshrl.u32 %v2138, 16
      %v2230 = vrot.slane %v2228, 3
      %v2231 = vshll.u32 %v2138, 16
      %v2233 = vrot.slane %v2231, 4
      %v2234 = vor.u32 %v2230, %v2233
      %v2235 = vsel %vm2146, %v2225, %v2234
      %v2237 = vshrl.u32 %v2139, 16
      %v2239 = vrot.slane %v2237, 3
      %v2240 = vshll.u32 %v2139, 16
      %v2242 = vrot.slane %v2240, 4
      %v2243 = vor.u32 %v2239, %v2242
      %v2244 = vsel %vm2146, %v2234, %v2243
      %v2246 = vshrl.u32 %v2140, 16
      %v2248 = vrot.slane %v2246, 3
      %v2249 = vshll.u32 %v2140, 16
      %v2251 = vrot.slane %v2249, 4
      %v2252 = vor.u32 %v2248, %v2251
      %v2253 = vsel %vm2146, %v2243, %v2252
      %v2255 = vshrl.u32 %v2141, 16
      %v2257 = vrot.slane %v2255, 3
      %v2258 = vshll.u32 %v2141, 16
      %v2260 = vrot.slane %v2258, 4
      %v2261 = vor.u32 %v2257, %v2260
      %v2262 = vsel %vm2146, %v2252, %v2261
      %v2264 = vshrl.u32 %v2142, 16
      %v2266 = vrot.slane %v2264, 3
      %v2267 = vshll.u32 %v2142, 16
      %v2269 = vrot.slane %v2267, 4
      %v2270 = vor.u32 %v2266, %v2269
      %v2271 = vsel %vm2146, %v2261, %v2270
      %v2273 = vshrl.u32 %v2143, 16
      %v2275 = vrot.slane %v2273, 3
      %v2276 = vshll.u32 %v2143, 16
      %v2278 = vrot.slane %v2276, 4
      %v2279 = vor.u32 %v2275, %v2278
      %v2280 = vsel %vm2146, %v2270, %v2279
      %v2282 = vshrl.u32 %v2144, 16
      %v2284 = vrot.slane %v2282, 3
      %v2285 = vshll.u32 %v2144, 16
      %v2287 = vrot.slane %v2285, 4
      %v2288 = vor.u32 %v2284, %v2287
      %v2289 = vsel %vm2146, %v2279, %v2288
      %v2291 = vshrl.u32 %v2145, 16
      %v2293 = vrot.slane %v2291, 3
      %v2294 = vshll.u32 %v2145, 16
      %v2296 = vrot.slane %v2294, 4
      %v2297 = vor.u32 %v2293, %v2296
      %v2298 = vsel %vm2146, %v2288, %v2297
      %v2300 = vsel %vm1918, %v2163, 0
      %v2303 = vsel %vm1918, %v2172, 0
      %v2306 = vsel %vm1918, %v2181, 0
      %v2309 = vsel %vm1918, %v2190, 0
      %v2312 = vsel %vm1918, %v2199, 0
      %v2315 = vsel %vm1918, %v2208, 0
      %v2318 = vsel %vm1918, %v2217, 0
      %v2321 = vsel %vm1918, %v2226, 0
      %v2324 = vsel %vm1918, %v2235, 0
      %v2327 = vsel %vm1918, %v2244, 0
      %v2330 = vsel %vm1918, %v2253, 0
      %v2333 = vsel %vm1918, %v2262, 0
      %v2336 = vsel %vm1918, %v2271, 0
      %v2339 = vsel %vm1918, %v2280, 0
      %v2342 = vsel %vm1918, %v2289, 0
      %v2345 = vsel %vm1918, %v2298, 0
      %v2348 = vand.u32 %v1835, %v1970
      %2350 = vmatpush.bf16.msra.mxu0 0
      %2351 = vmatpush.bf16.msra.mxu0 0
      %2352 = vmatpush.bf16.msra.mxu0 0
      %2353 = vmatpush.bf16.msra.mxu0 0
      %2354 = vmatpush.bf16.msra.mxu0 0
      %2355 = vmatpush.bf16.msra.mxu0 0
      %2356 = vmatpush.bf16.msra.mxu0 0
      %2357 = vmatpush.bf16.msra.mxu0 %v2348
      %2358 = vmatmul.bf16.gmra.mxu0 %v2300
      %v2359 = vpop.f32.mrf.mxu0
      %v2360 = vadd.f32 %v1984, %v2359
      %v2361 = vpop.f32.mrf.mxu0
      %v2362 = vadd.f32 %v1986, %v2361
      %2363 = vmatmul.bf16.gmra.mxu0 %v2303
      %v2364 = vpop.f32.mrf.mxu0
      %v2365 = vadd.f32 %v1989, %v2364
      %v2366 = vpop.f32.mrf.mxu0
      %v2367 = vadd.f32 %v1991, %v2366
      %2368 = vmatmul.bf16.gmra.mxu0 %v2306
      %v2369 = vpop.f32.mrf.mxu0
      %v2370 = vadd.f32 %v1994, %v2369
      %v2371 = vpop.f32.mrf.mxu0
      %v2372 = vadd.f32 %v1996, %v2371
      %2373 = vmatmul.bf16.gmra.mxu0 %v2309
      %v2374 = vpop.f32.mrf.mxu0
      %v2375 = vadd.f32 %v1999, %v2374
      %v2376 = vpop.f32.mrf.mxu0
      %v2377 = vadd.f32 %v2001, %v2376
      %2378 = vmatmul.bf16.gmra.mxu0 %v2312
      %v2379 = vpop.f32.mrf.mxu0
      %v2380 = vadd.f32 %v2004, %v2379
      %v2381 = vpop.f32.mrf.mxu0
      %v2382 = vadd.f32 %v2006, %v2381
      %2383 = vmatmul.bf16.gmra.mxu0 %v2315
      %v2384 = vpop.f32.mrf.mxu0
      %v2385 = vadd.f32 %v2009, %v2384
      %v2386 = vpop.f32.mrf.mxu0
      %v2387 = vadd.f32 %v2011, %v2386
      %2388 = vmatmul.bf16.gmra.mxu0 %v2318
      %v2389 = vpop.f32.mrf.mxu0
      %v2390 = vadd.f32 %v2014, %v2389
      %v2391 = vpop.f32.mrf.mxu0
      %v2392 = vadd.f32 %v2016, %v2391
      %2393 = vmatmul.bf16.gmra.mxu0 %v2321
      %v2394 = vpop.f32.mrf.mxu0
      %v2395 = vadd.f32 %v2019, %v2394
      %v2396 = vpop.f32.mrf.mxu0
      %v2397 = vadd.f32 %v2021, %v2396
      %2398 = vmatmul.bf16.gmra.mxu0 %v2324
      %v2399 = vpop.f32.mrf.mxu0
      %v2400 = vadd.f32 %v2024, %v2399
      %v2401 = vpop.f32.mrf.mxu0
      %v2402 = vadd.f32 %v2026, %v2401
      %2403 = vmatmul.bf16.gmra.mxu0 %v2327
      %v2404 = vpop.f32.mrf.mxu0
      %v2405 = vadd.f32 %v2029, %v2404
      %v2406 = vpop.f32.mrf.mxu0
      %v2407 = vadd.f32 %v2031, %v2406
      %2408 = vmatmul.bf16.gmra.mxu0 %v2330
      %v2409 = vpop.f32.mrf.mxu0
      %v2410 = vadd.f32 %v2034, %v2409
      %v2411 = vpop.f32.mrf.mxu0
      %v2412 = vadd.f32 %v2036, %v2411
      %2413 = vmatmul.bf16.gmra.mxu0 %v2333
      %v2414 = vpop.f32.mrf.mxu0
      %v2415 = vadd.f32 %v2039, %v2414
      %v2416 = vpop.f32.mrf.mxu0
      %v2417 = vadd.f32 %v2041, %v2416
      %2418 = vmatmul.bf16.gmra.mxu0 %v2336
      %v2419 = vpop.f32.mrf.mxu0
      %v2420 = vadd.f32 %v2044, %v2419
      %v2421 = vpop.f32.mrf.mxu0
      %v2422 = vadd.f32 %v2046, %v2421
      %2423 = vmatmul.bf16.gmra.mxu0 %v2339
      %v2424 = vpop.f32.mrf.mxu0
      %v2425 = vadd.f32 %v2049, %v2424
      %v2426 = vpop.f32.mrf.mxu0
      %v2427 = vadd.f32 %v2051, %v2426
      %2428 = vmatmul.bf16.gmra.mxu0 %v2342
      %v2429 = vpop.f32.mrf.mxu0
      %v2430 = vadd.f32 %v2054, %v2429
      %v2431 = vpop.f32.mrf.mxu0
      %v2432 = vadd.f32 %v2056, %v2431
      %2433 = vmatmul.bf16.gmra.mxu0 %v2345
      %v2434 = vpop.f32.mrf.mxu0
      %v2435 = vadd.f32 %v2059, %v2434
      %v2436 = vpop.f32.mrf.mxu0
      %v2437 = vadd.f32 %v2061, %v2436
      %2438 = vdwg.mxu0
      %v2439 = vld [vmem:[#allocation2 + $0x4] sm:$0xf]
      %v2440 = vld [vmem:[#allocation2 + $0x8] sm:$0xf]
      %v2441 = vld [vmem:[#allocation2 + $0xc] sm:$0xf]
      %v2442 = vld [vmem:[#allocation2 + $0x10] sm:$0xf]
      %v2443 = vld [vmem:[#allocation2 + $0x14] sm:$0xf]
      %v2444 = vld [vmem:[#allocation2 + $0x18] sm:$0xf]
      %v2445 = vld [vmem:[#allocation2 + $0x1c] sm:$0xf]
      %v2446 = vld [vmem:[#allocation2 + $0x20] sm:$0xf]
      %v2447 = vld [vmem:[#allocation2 + $0x24] sm:$0xf]
      %v2448 = vld [vmem:[#allocation2 + $0x28] sm:$0xf]
      %v2449 = vld [vmem:[#allocation2 + $0x2c] sm:$0xf]
      %v2450 = vld [vmem:[#allocation2 + $0x30] sm:$0xf]
      %v2451 = vld [vmem:[#allocation2 + $0x34] sm:$0xf]
      %v2452 = vld [vmem:[#allocation2 + $0x38] sm:$0xf]
      %v2453 = vld [vmem:[#allocation2 + $0x3c] sm:$0xf]
      %v2454 = vld [vmem:[#allocation2 + $0x40] sm:$0xf]
      %v2455 = vld [vmem:[#allocation2 + $0x44] sm:$0xf]
      %v2456 = vld [vmem:[#allocation2 + $0x48] sm:$0xf]
      %v2457 = vld [vmem:[#allocation2 + $0x4c] sm:$0xf]
      %v2458 = vld [vmem:[#allocation2 + $0x50] sm:$0xf]
      %v2459 = vld [vmem:[#allocation2 + $0x54] sm:$0xf]
      %v2460 = vld [vmem:[#allocation2 + $0x58] sm:$0xf]
      %v2461 = vld [vmem:[#allocation2 + $0x5c] sm:$0xf]
      %v2462 = vld [vmem:[#allocation2 + $0x60] sm:$0xf]
      %v2463 = vld [vmem:[#allocation2 + $0x64] sm:$0xf]
      %v2464 = vld [vmem:[#allocation2 + $0x68] sm:$0xf]
      %v2465 = vld [vmem:[#allocation2 + $0x6c] sm:$0xf]
      %v2466 = vld [vmem:[#allocation2 + $0x70] sm:$0xf]
      %v2467 = vld [vmem:[#allocation2 + $0x74] sm:$0xf]
      %v2468 = vld [vmem:[#allocation2 + $0x78] sm:$0xf]
      %v2469 = vld [vmem:[#allocation2 + $0x7c] sm:$0xf]
      %v2470 = vld [vmem:[#allocation2 + $0x80] sm:$0xf]
      %v2471 = vld [vmem:[#allocation2 + $0x84] sm:$0x1]
      %v2472 = vadd.s32 %v928, 1
      %v2473 = vadd.s32 %v929, 1
      %v2474 = vadd.s32 %v930, 1
      %v2475 = vadd.s32 %v931, 1
      %v2476 = vadd.s32 %v932, 1
      %v2477 = vadd.s32 %v933, 1
      %v2478 = vadd.s32 %v934, 1
      %v2479 = vadd.s32 %v935, 1
      %v2480 = vadd.s32 %v936, 1
      %v2481 = vadd.s32 %v937, 1
      %v2482 = vadd.s32 %v938, 1
      %v2483 = vadd.s32 %v939, 1
      %v2484 = vadd.s32 %v940, 1
      %v2485 = vadd.s32 %v941, 1
      %v2486 = vadd.s32 %v942, 1
      %v2487 = vadd.s32 %v943, 1
      %v2488 = vadd.s32 %v944, 1
      %v2489 = vadd.s32 %v945, 1
      %v2490 = vadd.s32 %v946, 1
      %v2491 = vadd.s32 %v947, 1
      %v2492 = vadd.s32 %v948, 1
      %v2493 = vadd.s32 %v949, 1
      %v2494 = vadd.s32 %v950, 1
      %v2495 = vadd.s32 %v951, 1
      %v2496 = vadd.s32 %v952, 1
      %v2497 = vadd.s32 %v953, 1
      %v2498 = vadd.s32 %v954, 1
      %v2499 = vadd.s32 %v955, 1
      %v2500 = vadd.s32 %v956, 1
      %v2501 = vadd.s32 %v957, 1
      %v2502 = vadd.s32 %v958, 1
      %v2503 = vadd.s32 %v959, 1
      %vm2504 = vcmp.ge.s32.totalorder %v2472, 0
      %vm2505 = vcmp.ge.s32.totalorder %v2473, 0
      %vm2506 = vcmp.ge.s32.totalorder %v2474, 0
      %vm2507 = vcmp.ge.s32.totalorder %v2475, 0
      %vm2508 = vcmp.ge.s32.totalorder %v2476, 0
      %vm2509 = vcmp.ge.s32.totalorder %v2477, 0
      %vm2510 = vcmp.ge.s32.totalorder %v2478, 0
      %vm2511 = vcmp.ge.s32.totalorder %v2479, 0
      %vm2512 = vcmp.ge.s32.totalorder %v2480, 0
      %vm2513 = vcmp.ge.s32.totalorder %v2481, 0
      %vm2514 = vcmp.ge.s32.totalorder %v2482, 0
      %vm2515 = vcmp.ge.s32.totalorder %v2483, 0
      %vm2516 = vcmp.ge.s32.totalorder %v2484, 0
      %vm2517 = vcmp.ge.s32.totalorder %v2485, 0
      %vm2518 = vcmp.ge.s32.totalorder %v2486, 0
      %vm2519 = vcmp.ge.s32.totalorder %v2487, 0
      %vm2520 = vcmp.ge.s32.totalorder %v2488, 0
      %vm2521 = vcmp.ge.s32.totalorder %v2489, 0
      %vm2522 = vcmp.ge.s32.totalorder %v2490, 0
      %vm2523 = vcmp.ge.s32.totalorder %v2491, 0
      %vm2524 = vcmp.ge.s32.totalorder %v2492, 0
      %vm2525 = vcmp.ge.s32.totalorder %v2493, 0
      %vm2526 = vcmp.ge.s32.totalorder %v2494, 0
      %vm2527 = vcmp.ge.s32.totalorder %v2495, 0
      %vm2528 = vcmp.ge.s32.totalorder %v2496, 0
      %vm2529 = vcmp.ge.s32.totalorder %v2497, 0
      %vm2530 = vcmp.ge.s32.totalorder %v2498, 0
      %vm2531 = vcmp.ge.s32.totalorder %v2499, 0
      %vm2532 = vcmp.ge.s32.totalorder %v2500, 0
      %vm2533 = vcmp.ge.s32.totalorder %v2501, 0
      %vm2534 = vcmp.ge.s32.totalorder %v2502, 0
      %vm2535 = vcmp.ge.s32.totalorder %v2503, 0
      %vm2536 = vcmp.lt.s32.totalorder %v2472, 16
      %vm2537 = vcmp.lt.s32.totalorder %v2473, 16
      %vm2538 = vcmp.lt.s32.totalorder %v2474, 16
      %vm2539 = vcmp.lt.s32.totalorder %v2475, 16
      %vm2540 = vcmp.lt.s32.totalorder %v2476, 16
      %vm2541 = vcmp.lt.s32.totalorder %v2477, 16
      %vm2542 = vcmp.lt.s32.totalorder %v2478, 16
      %vm2543 = vcmp.lt.s32.totalorder %v2479, 16
      %vm2544 = vcmp.lt.s32.totalorder %v2480, 16
      %vm2545 = vcmp.lt.s32.totalorder %v2481, 16
      %vm2546 = vcmp.lt.s32.totalorder %v2482, 16
      %vm2547 = vcmp.lt.s32.totalorder %v2483, 16
      %vm2548 = vcmp.lt.s32.totalorder %v2484, 16
      %vm2549 = vcmp.lt.s32.totalorder %v2485, 16
      %vm2550 = vcmp.lt.s32.totalorder %v2486, 16
      %vm2551 = vcmp.lt.s32.totalorder %v2487, 16
      %vm2552 = vcmp.lt.s32.totalorder %v2488, 16
      %vm2553 = vcmp.lt.s32.totalorder %v2489, 16
      %vm2554 = vcmp.lt.s32.totalorder %v2490, 16
      %vm2555 = vcmp.lt.s32.totalorder %v2491, 16
      %vm2556 = vcmp.lt.s32.totalorder %v2492, 16
      %vm2557 = vcmp.lt.s32.totalorder %v2493, 16
      %vm2558 = vcmp.lt.s32.totalorder %v2494, 16
      %vm2559 = vcmp.lt.s32.totalorder %v2495, 16
      %vm2560 = vcmp.lt.s32.totalorder %v2496, 16
      %vm2561 = vcmp.lt.s32.totalorder %v2497, 16
      %vm2562 = vcmp.lt.s32.totalorder %v2498, 16
      %vm2563 = vcmp.lt.s32.totalorder %v2499, 16
      %vm2564 = vcmp.lt.s32.totalorder %v2500, 16
      %vm2565 = vcmp.lt.s32.totalorder %v2501, 16
      %vm2566 = vcmp.lt.s32.totalorder %v2502, 16
      %vm2567 = vcmp.lt.s32.totalorder %v2503, 16
      %vm2568 = vmand %vm2504, %vm2536
      %vm2569 = vmand %vm2505, %vm2537
      %vm2570 = vmand %vm2506, %vm2538
      %vm2571 = vmand %vm2507, %vm2539
      %vm2572 = vmand %vm2508, %vm2540
      %vm2573 = vmand %vm2509, %vm2541
      %vm2574 = vmand %vm2510, %vm2542
      %vm2575 = vmand %vm2511, %vm2543
      %vm2576 = vmand %vm2512, %vm2544
      %vm2577 = vmand %vm2513, %vm2545
      %vm2578 = vmand %vm2514, %vm2546
      %vm2579 = vmand %vm2515, %vm2547
      %vm2580 = vmand %vm2516, %vm2548
      %vm2581 = vmand %vm2517, %vm2549
      %vm2582 = vmand %vm2518, %vm2550
      %vm2583 = vmand %vm2519, %vm2551
      %vm2584 = vmand %vm2520, %vm2552
      %vm2585 = vmand %vm2521, %vm2553
      %vm2586 = vmand %vm2522, %vm2554
      %vm2587 = vmand %vm2523, %vm2555
      %vm2588 = vmand %vm2524, %vm2556
      %vm2589 = vmand %vm2525, %vm2557
      %vm2590 = vmand %vm2526, %vm2558
      %vm2591 = vmand %vm2527, %vm2559
      %vm2592 = vmand %vm2528, %vm2560
      %vm2593 = vmand %vm2529, %vm2561
      %vm2594 = vmand %vm2530, %vm2562
      %vm2595 = vmand %vm2531, %vm2563
      %vm2596 = vmand %vm2532, %vm2564
      %vm2597 = vmand %vm2533, %vm2565
      %vm2598 = vmand %vm2534, %vm2566
      %vm2599 = vmand %vm2535, %vm2567
      %v2600 = vsel %vm2568, 1, 0
      %v2601 = vsel %vm2569, 1, 0
      %v2602 = vsel %vm2570, 1, 0
      %v2603 = vsel %vm2571, 1, 0
      %v2604 = vsel %vm2572, 1, 0
      %v2605 = vsel %vm2573, 1, 0
      %v2606 = vsel %vm2574, 1, 0
      %v2607 = vsel %vm2575, 1, 0
      %v2608 = vsel %vm2576, 1, 0
      %v2609 = vsel %vm2577, 1, 0
      %v2610 = vsel %vm2578, 1, 0
      %v2611 = vsel %vm2579, 1, 0
      %v2612 = vsel %vm2580, 1, 0
      %v2613 = vsel %vm2581, 1, 0
      %v2614 = vsel %vm2582, 1, 0
      %v2615 = vsel %vm2583, 1, 0
      %v2616 = vsel %vm2584, 1, 0
      %v2617 = vsel %vm2585, 1, 0
      %v2618 = vsel %vm2586, 1, 0
      %v2619 = vsel %vm2587, 1, 0
      %v2620 = vsel %vm2588, 1, 0
      %v2621 = vsel %vm2589, 1, 0
      %v2622 = vsel %vm2590, 1, 0
      %v2623 = vsel %vm2591, 1, 0
      %v2624 = vsel %vm2592, 1, 0
      %v2625 = vsel %vm2593, 1, 0
      %v2626 = vsel %vm2594, 1, 0
      %v2627 = vsel %vm2595, 1, 0
      %v2628 = vsel %vm2596, 1, 0
      %v2629 = vsel %vm2597, 1, 0
      %v2630 = vsel %vm2598, 1, 0
      %v2631 = vsel %vm2599, 1, 0
      %vm2632 = vcmp.eq.s32.totalorder %v2600, 1
      %vm2633 = vcmp.eq.s32.totalorder %v2601, 1
      %vm2634 = vcmp.eq.s32.totalorder %v2602, 1
      %vm2635 = vcmp.eq.s32.totalorder %v2603, 1
      %vm2636 = vcmp.eq.s32.totalorder %v2604, 1
      %vm2637 = vcmp.eq.s32.totalorder %v2605, 1
      %vm2638 = vcmp.eq.s32.totalorder %v2606, 1
      %vm2639 = vcmp.eq.s32.totalorder %v2607, 1
      %vm2640 = vcmp.eq.s32.totalorder %v2608, 1
      %vm2641 = vcmp.eq.s32.totalorder %v2609, 1
      %vm2642 = vcmp.eq.s32.totalorder %v2610, 1
      %vm2643 = vcmp.eq.s32.totalorder %v2611, 1
      %vm2644 = vcmp.eq.s32.totalorder %v2612, 1
      %vm2645 = vcmp.eq.s32.totalorder %v2613, 1
      %vm2646 = vcmp.eq.s32.totalorder %v2614, 1
      %vm2647 = vcmp.eq.s32.totalorder %v2615, 1
      %vm2648 = vcmp.eq.s32.totalorder %v2616, 1
      %vm2649 = vcmp.eq.s32.totalorder %v2617, 1
      %vm2650 = vcmp.eq.s32.totalorder %v2618, 1
      %vm2651 = vcmp.eq.s32.totalorder %v2619, 1
      %vm2652 = vcmp.eq.s32.totalorder %v2620, 1
      %vm2653 = vcmp.eq.s32.totalorder %v2621, 1
      %vm2654 = vcmp.eq.s32.totalorder %v2622, 1
      %vm2655 = vcmp.eq.s32.totalorder %v2623, 1
      %vm2656 = vcmp.eq.s32.totalorder %v2624, 1
      %vm2657 = vcmp.eq.s32.totalorder %v2625, 1
      %vm2658 = vcmp.eq.s32.totalorder %v2626, 1
      %vm2659 = vcmp.eq.s32.totalorder %v2627, 1
      %vm2660 = vcmp.eq.s32.totalorder %v2628, 1
      %vm2661 = vcmp.eq.s32.totalorder %v2629, 1
      %vm2662 = vcmp.eq.s32.totalorder %v2630, 1
      %vm2663 = vcmp.eq.s32.totalorder %v2631, 1
      %vm2664 = vmpackc.low %vm2632, %vm2632
      %vm2665 = vmpackc.low %vm2633, %vm2633
      %vm2666 = vmpackc.low %vm2634, %vm2634
      %vm2667 = vmpackc.low %vm2635, %vm2635
      %vm2668 = vmpackc.low %vm2636, %vm2636
      %vm2669 = vmpackc.low %vm2637, %vm2637
      %vm2670 = vmpackc.low %vm2638, %vm2638
      %vm2671 = vmpackc.low %vm2639, %vm2639
      %vm2672 = vmpackc.low %vm2640, %vm2640
      %vm2673 = vmpackc.low %vm2641, %vm2641
      %vm2674 = vmpackc.low %vm2642, %vm2642
      %vm2675 = vmpackc.low %vm2643, %vm2643
      %vm2676 = vmpackc.low %vm2644, %vm2644
      %vm2677 = vmpackc.low %vm2645, %vm2645
      %vm2678 = vmpackc.low %vm2646, %vm2646
      %vm2679 = vmpackc.low %vm2647, %vm2647
      %vm2680 = vmpackc.low %vm2648, %vm2648
      %vm2681 = vmpackc.low %vm2649, %vm2649
      %vm2682 = vmpackc.low %vm2650, %vm2650
      %vm2683 = vmpackc.low %vm2651, %vm2651
      %vm2684 = vmpackc.low %vm2652, %vm2652
      %vm2685 = vmpackc.low %vm2653, %vm2653
      %vm2686 = vmpackc.low %vm2654, %vm2654
      %vm2687 = vmpackc.low %vm2655, %vm2655
      %vm2688 = vmpackc.low %vm2656, %vm2656
      %vm2689 = vmpackc.low %vm2657, %vm2657
      %vm2690 = vmpackc.low %vm2658, %vm2658
      %vm2691 = vmpackc.low %vm2659, %vm2659
      %vm2692 = vmpackc.low %vm2660, %vm2660
      %vm2693 = vmpackc.low %vm2661, %vm2661
      %vm2694 = vmpackc.low %vm2662, %vm2662
      %vm2695 = vmpackc.low %vm2663, %vm2663
      %v2696 = vsel %vm2664, 65537, 0
      %v2697 = vsel %vm2665, 65537, 0
      %v2698 = vsel %vm2666, 65537, 0
      %v2699 = vsel %vm2667, 65537, 0
      %v2700 = vsel %vm2668, 65537, 0
      %v2701 = vsel %vm2669, 65537, 0
      %v2702 = vsel %vm2670, 65537, 0
      %v2703 = vsel %vm2671, 65537, 0
      %v2704 = vsel %vm2672, 65537, 0
      %v2705 = vsel %vm2673, 65537, 0
      %v2706 = vsel %vm2674, 65537, 0
      %v2707 = vsel %vm2675, 65537, 0
      %v2708 = vsel %vm2676, 65537, 0
      %v2709 = vsel %vm2677, 65537, 0
      %v2710 = vsel %vm2678, 65537, 0
      %v2711 = vsel %vm2679, 65537, 0
      %v2712 = vsel %vm2680, 65537, 0
      %v2713 = vsel %vm2681, 65537, 0
      %v2714 = vsel %vm2682, 65537, 0
      %v2715 = vsel %vm2683, 65537, 0
      %v2716 = vsel %vm2684, 65537, 0
      %v2717 = vsel %vm2685, 65537, 0
      %v2718 = vsel %vm2686, 65537, 0
      %v2719 = vsel %vm2687, 65537, 0
      %v2720 = vsel %vm2688, 65537, 0
      %v2721 = vsel %vm2689, 65537, 0
      %v2722 = vsel %vm2690, 65537, 0
      %v2723 = vsel %vm2691, 65537, 0
      %v2724 = vsel %vm2692, 65537, 0
      %v2725 = vsel %vm2693, 65537, 0
      %v2726 = vsel %vm2694, 65537, 0
      %v2727 = vsel %vm2695, 65537, 0
      %vm2728 = vsmask.f32 256
      %vm2729 = vsmask.f32 4368
      %vm2730 = vmor %vm2728, %vm2729
      %v2732 = vshrl.u32 %v2696, 16
      %v2734 = vrot.slane %v2732, 7
      %v2735 = vshll.u32 %v2696, 16
      %v2737 = vor.u32 %v2734, %v2735
      %v2738 = vrot.slane %v2734, 4
      %v2740 = vshrl.u32 %v2697, 16
      %v2742 = vrot.slane %v2740, 7
      %v2743 = vshll.u32 %v2697, 16
      %v2745 = vor.u32 %v2742, %v2743
      %v2746 = vsel %vm2730, %v2738, %v2745
      %v2747 = vrot.slane %v2742, 4
      %v2749 = vshrl.u32 %v2698, 16
      %v2751 = vrot.slane %v2749, 7
      %v2752 = vshll.u32 %v2698, 16
      %v2754 = vor.u32 %v2751, %v2752
      %v2755 = vsel %vm2730, %v2747, %v2754
      %v2756 = vrot.slane %v2751, 4
      %v2758 = vshrl.u32 %v2699, 16
      %v2760 = vrot.slane %v2758, 7
      %v2761 = vshll.u32 %v2699, 16
      %v2763 = vor.u32 %v2760, %v2761
      %v2764 = vsel %vm2730, %v2756, %v2763
      %v2765 = vrot.slane %v2760, 4
      %v2767 = vshrl.u32 %v2700, 16
      %v2769 = vrot.slane %v2767, 7
      %v2770 = vshll.u32 %v2700, 16
      %v2772 = vor.u32 %v2769, %v2770
      %v2773 = vsel %vm2730, %v2765, %v2772
      %v2774 = vrot.slane %v2769, 4
      %v2776 = vshrl.u32 %v2701, 16
      %v2778 = vrot.slane %v2776, 7
      %v2779 = vshll.u32 %v2701, 16
      %v2781 = vor.u32 %v2778, %v2779
      %v2782 = vsel %vm2730, %v2774, %v2781
      %v2783 = vrot.slane %v2778, 4
      %v2785 = vshrl.u32 %v2702, 16
      %v2787 = vrot.slane %v2785, 7
      %v2788 = vshll.u32 %v2702, 16
      %v2790 = vor.u32 %v2787, %v2788
      %v2791 = vsel %vm2730, %v2783, %v2790
      %v2792 = vrot.slane %v2787, 4
      %v2794 = vshrl.u32 %v2703, 16
      %v2796 = vrot.slane %v2794, 7
      %v2797 = vshll.u32 %v2703, 16
      %v2799 = vor.u32 %v2796, %v2797
      %v2800 = vsel %vm2730, %v2792, %v2799
      %v2801 = vrot.slane %v2796, 4
      %v2803 = vshrl.u32 %v2704, 16
      %v2805 = vrot.slane %v2803, 7
      %v2806 = vshll.u32 %v2704, 16
      %v2808 = vor.u32 %v2805, %v2806
      %v2809 = vsel %vm2730, %v2801, %v2808
      %v2810 = vrot.slane %v2805, 4
      %v2812 = vshrl.u32 %v2705, 16
      %v2814 = vrot.slane %v2812, 7
      %v2815 = vshll.u32 %v2705, 16
      %v2817 = vor.u32 %v2814, %v2815
      %v2818 = vsel %vm2730, %v2810, %v2817
      %v2819 = vrot.slane %v2814, 4
      %v2821 = vshrl.u32 %v2706, 16
      %v2823 = vrot.slane %v2821, 7
      %v2824 = vshll.u32 %v2706, 16
      %v2826 = vor.u32 %v2823, %v2824
      %v2827 = vsel %vm2730, %v2819, %v2826
      %v2828 = vrot.slane %v2823, 4
      %v2830 = vshrl.u32 %v2707, 16
      %v2832 = vrot.slane %v2830, 7
      %v2833 = vshll.u32 %v2707, 16
      %v2835 = vor.u32 %v2832, %v2833
      %v2836 = vsel %vm2730, %v2828, %v2835
      %v2837 = vrot.slane %v2832, 4
      %v2839 = vshrl.u32 %v2708, 16
      %v2841 = vrot.slane %v2839, 7
      %v2842 = vshll.u32 %v2708, 16
      %v2844 = vor.u32 %v2841, %v2842
      %v2845 = vsel %vm2730, %v2837, %v2844
      %v2846 = vrot.slane %v2841, 4
      %v2848 = vshrl.u32 %v2709, 16
      %v2850 = vrot.slane %v2848, 7
      %v2851 = vshll.u32 %v2709, 16
      %v2853 = vor.u32 %v2850, %v2851
      %v2854 = vsel %vm2730, %v2846, %v2853
      %v2855 = vrot.slane %v2850, 4
      %v2857 = vshrl.u32 %v2710, 16
      %v2859 = vrot.slane %v2857, 7
      %v2860 = vshll.u32 %v2710, 16
      %v2862 = vor.u32 %v2859, %v2860
      %v2863 = vsel %vm2730, %v2855, %v2862
      %v2864 = vrot.slane %v2859, 4
      %v2866 = vshrl.u32 %v2711, 16
      %v2868 = vrot.slane %v2866, 7
      %v2869 = vshll.u32 %v2711, 16
      %v2871 = vor.u32 %v2868, %v2869
      %v2872 = vsel %vm2730, %v2864, %v2871
      %v2873 = vrot.slane %v2868, 4
      %v2875 = vshrl.u32 %v2712, 16
      %v2877 = vrot.slane %v2875, 7
      %v2878 = vshll.u32 %v2712, 16
      %v2880 = vor.u32 %v2877, %v2878
      %v2881 = vsel %vm2730, %v2873, %v2880
      %v2882 = vrot.slane %v2877, 4
      %v2884 = vshrl.u32 %v2713, 16
      %v2886 = vrot.slane %v2884, 7
      %v2887 = vshll.u32 %v2713, 16
      %v2889 = vor.u32 %v2886, %v2887
      %v2890 = vsel %vm2730, %v2882, %v2889
      %v2891 = vrot.slane %v2886, 4
      %v2893 = vshrl.u32 %v2714, 16
      %v2895 = vrot.slane %v2893, 7
      %v2896 = vshll.u32 %v2714, 16
      %v2898 = vor.u32 %v2895, %v2896
      %v2899 = vsel %vm2730, %v2891, %v2898
      %v2900 = vrot.slane %v2895, 4
      %v2902 = vshrl.u32 %v2715, 16
      %v2904 = vrot.slane %v2902, 7
      %v2905 = vshll.u32 %v2715, 16
      %v2907 = vor.u32 %v2904, %v2905
      %v2908 = vsel %vm2730, %v2900, %v2907
      %v2909 = vrot.slane %v2904, 4
      %v2911 = vshrl.u32 %v2716, 16
      %v2913 = vrot.slane %v2911, 7
      %v2914 = vshll.u32 %v2716, 16
      %v2916 = vor.u32 %v2913, %v2914
      %v2917 = vsel %vm2730, %v2909, %v2916
      %v2918 = vrot.slane %v2913, 4
      %v2920 = vshrl.u32 %v2717, 16
      %v2922 = vrot.slane %v2920, 7
      %v2923 = vshll.u32 %v2717, 16
      %v2925 = vor.u32 %v2922, %v2923
      %v2926 = vsel %vm2730, %v2918, %v2925
      %v2927 = vrot.slane %v2922, 4
      %v2929 = vshrl.u32 %v2718, 16
      %v2931 = vrot.slane %v2929, 7
      %v2932 = vshll.u32 %v2718, 16
      %v2934 = vor.u32 %v2931, %v2932
      %v2935 = vsel %vm2730, %v2927, %v2934
      %v2936 = vrot.slane %v2931, 4
      %v2938 = vshrl.u32 %v2719, 16
      %v2940 = vrot.slane %v2938, 7
      %v2941 = vshll.u32 %v2719, 16
      %v2943 = vor.u32 %v2940, %v2941
      %v2944 = vsel %vm2730, %v2936, %v2943
      %v2945 = vrot.slane %v2940, 4
      %v2947 = vshrl.u32 %v2720, 16
      %v2949 = vrot.slane %v2947, 7
      %v2950 = vshll.u32 %v2720, 16
      %v2952 = vor.u32 %v2949, %v2950
      %v2953 = vsel %vm2730, %v2945, %v2952
      %v2954 = vrot.slane %v2949, 4
      %v2956 = vshrl.u32 %v2721, 16
      %v2958 = vrot.slane %v2956, 7
      %v2959 = vshll.u32 %v2721, 16
      %v2961 = vor.u32 %v2958, %v2959
      %v2962 = vsel %vm2730, %v2954, %v2961
      %v2963 = vrot.slane %v2958, 4
      %v2965 = vshrl.u32 %v2722, 16
      %v2967 = vrot.slane %v2965, 7
      %v2968 = vshll.u32 %v2722, 16
      %v2970 = vor.u32 %v2967, %v2968
      %v2971 = vsel %vm2730, %v2963, %v2970
      %v2972 = vrot.slane %v2967, 4
      %v2974 = vshrl.u32 %v2723, 16
      %v2976 = vrot.slane %v2974, 7
      %v2977 = vshll.u32 %v2723, 16
      %v2979 = vor.u32 %v2976, %v2977
      %v2980 = vsel %vm2730, %v2972, %v2979
      %v2981 = vrot.slane %v2976, 4
      %v2983 = vshrl.u32 %v2724, 16
      %v2985 = vrot.slane %v2983, 7
      %v2986 = vshll.u32 %v2724, 16
      %v2988 = vor.u32 %v2985, %v2986
      %v2989 = vsel %vm2730, %v2981, %v2988
      %v2990 = vrot.slane %v2985, 4
      %v2992 = vshrl.u32 %v2725, 16
      %v2994 = vrot.slane %v2992, 7
      %v2995 = vshll.u32 %v2725, 16
      %v2997 = vor.u32 %v2994, %v2995
      %v2998 = vsel %vm2730, %v2990, %v2997
      %v2999 = vrot.slane %v2994, 4
      %v3001 = vshrl.u32 %v2726, 16
      %v3003 = vrot.slane %v3001, 7
      %v3004 = vshll.u32 %v2726, 16
      %v3006 = vor.u32 %v3003, %v3004
      %v3007 = vsel %vm2730, %v2999, %v3006
      %v3008 = vrot.slane %v3003, 4
      %v3010 = vshrl.u32 %v2727, 16
      %v3012 = vrot.slane %v3010, 7
      %v3013 = vshll.u32 %v2727, 16
      %v3015 = vor.u32 %v3012, %v3013
      %v3016 = vsel %vm2730, %v3008, %v3015
      %v3017 = vrot.slane %v3012, 4
      %v3018 = vunpack.c.l.b16 %v2737
      %v3019 = vunpack.c.h.b16 %v2737
      %v3020 = vunpack.c.l.b16 0
      %v3021 = vunpack.c.h.b16 0
      %vm3022 = vcmp.ne.s32.totalorder %v3018, %v3020
      %vm3023 = vcmp.ne.s32.totalorder %v3019, %v3021
      %vm3024 = vmpackc.low %vm3023, %vm3022
      %v3025 = vunpack.c.l.b16 %v2746
      %v3026 = vunpack.c.h.b16 %v2746
      %v3027 = vunpack.c.l.b16 0
      %v3028 = vunpack.c.h.b16 0
      %vm3029 = vcmp.ne.s32.totalorder %v3025, %v3027
      %vm3030 = vcmp.ne.s32.totalorder %v3026, %v3028
      %vm3031 = vmpackc.low %vm3030, %vm3029
      %v3032 = vunpack.c.l.b16 %v2755
      %v3033 = vunpack.c.h.b16 %v2755
      %v3034 = vunpack.c.l.b16 0
      %v3035 = vunpack.c.h.b16 0
      %vm3036 = vcmp.ne.s32.totalorder %v3032, %v3034
      %vm3037 = vcmp.ne.s32.totalorder %v3033, %v3035
      %vm3038 = vmpackc.low %vm3037, %vm3036
      %v3039 = vunpack.c.l.b16 %v2764
      %v3040 = vunpack.c.h.b16 %v2764
      %v3041 = vunpack.c.l.b16 0
      %v3042 = vunpack.c.h.b16 0
      %vm3043 = vcmp.ne.s32.totalorder %v3039, %v3041
      %vm3044 = vcmp.ne.s32.totalorder %v3040, %v3042
      %vm3045 = vmpackc.low %vm3044, %vm3043
      %v3046 = vunpack.c.l.b16 %v2773
      %v3047 = vunpack.c.h.b16 %v2773
      %v3048 = vunpack.c.l.b16 0
      %v3049 = vunpack.c.h.b16 0
      %vm3050 = vcmp.ne.s32.totalorder %v3046, %v3048
      %vm3051 = vcmp.ne.s32.totalorder %v3047, %v3049
      %vm3052 = vmpackc.low %vm3051, %vm3050
      %v3053 = vunpack.c.l.b16 %v2782
      %v3054 = vunpack.c.h.b16 %v2782
      %v3055 = vunpack.c.l.b16 0
      %v3056 = vunpack.c.h.b16 0
      %vm3057 = vcmp.ne.s32.totalorder %v3053, %v3055
      %vm3058 = vcmp.ne.s32.totalorder %v3054, %v3056
      %vm3059 = vmpackc.low %vm3058, %vm3057
      %v3060 = vunpack.c.l.b16 %v2791
      %v3061 = vunpack.c.h.b16 %v2791
      %v3062 = vunpack.c.l.b16 0
      %v3063 = vunpack.c.h.b16 0
      %vm3064 = vcmp.ne.s32.totalorder %v3060, %v3062
      %vm3065 = vcmp.ne.s32.totalorder %v3061, %v3063
      %vm3066 = vmpackc.low %vm3065, %vm3064
      %v3067 = vunpack.c.l.b16 %v2800
      %v3068 = vunpack.c.h.b16 %v2800
      %v3069 = vunpack.c.l.b16 0
      %v3070 = vunpack.c.h.b16 0
      %vm3071 = vcmp.ne.s32.totalorder %v3067, %v3069
      %vm3072 = vcmp.ne.s32.totalorder %v3068, %v3070
      %vm3073 = vmpackc.low %vm3072, %vm3071
      %v3074 = vunpack.c.l.b16 %v2809
      %v3075 = vunpack.c.h.b16 %v2809
      %v3076 = vunpack.c.l.b16 0
      %v3077 = vunpack.c.h.b16 0
      %vm3078 = vcmp.ne.s32.totalorder %v3074, %v3076
      %vm3079 = vcmp.ne.s32.totalorder %v3075, %v3077
      %vm3080 = vmpackc.low %vm3079, %vm3078
      %v3081 = vunpack.c.l.b16 %v2818
      %v3082 = vunpack.c.h.b16 %v2818
      %v3083 = vunpack.c.l.b16 0
      %v3084 = vunpack.c.h.b16 0
      %vm3085 = vcmp.ne.s32.totalorder %v3081, %v3083
      %vm3086 = vcmp.ne.s32.totalorder %v3082, %v3084
      %vm3087 = vmpackc.low %vm3086, %vm3085
      %v3088 = vunpack.c.l.b16 %v2827
      %v3089 = vunpack.c.h.b16 %v2827
      %v3090 = vunpack.c.l.b16 0
      %v3091 = vunpack.c.h.b16 0
      %vm3092 = vcmp.ne.s32.totalorder %v3088, %v3090
      %vm3093 = vcmp.ne.s32.totalorder %v3089, %v3091
      %vm3094 = vmpackc.low %vm3093, %vm3092
      %v3095 = vunpack.c.l.b16 %v2836
      %v3096 = vunpack.c.h.b16 %v2836
      %v3097 = vunpack.c.l.b16 0
      %v3098 = vunpack.c.h.b16 0
      %vm3099 = vcmp.ne.s32.totalorder %v3095, %v3097
      %vm3100 = vcmp.ne.s32.totalorder %v3096, %v3098
      %vm3101 = vmpackc.low %vm3100, %vm3099
      %v3102 = vunpack.c.l.b16 %v2845
      %v3103 = vunpack.c.h.b16 %v2845
      %v3104 = vunpack.c.l.b16 0
      %v3105 = vunpack.c.h.b16 0
      %vm3106 = vcmp.ne.s32.totalorder %v3102, %v3104
      %vm3107 = vcmp.ne.s32.totalorder %v3103, %v3105
      %vm3108 = vmpackc.low %vm3107, %vm3106
      %v3109 = vunpack.c.l.b16 %v2854
      %v3110 = vunpack.c.h.b16 %v2854
      %v3111 = vunpack.c.l.b16 0
      %v3112 = vunpack.c.h.b16 0
      %vm3113 = vcmp.ne.s32.totalorder %v3109, %v3111
      %vm3114 = vcmp.ne.s32.totalorder %v3110, %v3112
      %vm3115 = vmpackc.low %vm3114, %vm3113
      %v3116 = vunpack.c.l.b16 %v2863
      %v3117 = vunpack.c.h.b16 %v2863
      %v3118 = vunpack.c.l.b16 0
      %v3119 = vunpack.c.h.b16 0
      %vm3120 = vcmp.ne.s32.totalorder %v3116, %v3118
      %vm3121 = vcmp.ne.s32.totalorder %v3117, %v3119
      %vm3122 = vmpackc.low %vm3121, %vm3120
      %v3123 = vunpack.c.l.b16 %v2872
      %v3124 = vunpack.c.h.b16 %v2872
      %v3125 = vunpack.c.l.b16 0
      %v3126 = vunpack.c.h.b16 0
      %vm3127 = vcmp.ne.s32.totalorder %v3123, %v3125
      %vm3128 = vcmp.ne.s32.totalorder %v3124, %v3126
      %vm3129 = vmpackc.low %vm3128, %vm3127
      %v3130 = vunpack.c.l.b16 %v2881
      %v3131 = vunpack.c.h.b16 %v2881
      %v3132 = vunpack.c.l.b16 0
      %v3133 = vunpack.c.h.b16 0
      %vm3134 = vcmp.ne.s32.totalorder %v3130, %v3132
      %vm3135 = vcmp.ne.s32.totalorder %v3131, %v3133
      %vm3136 = vmpackc.low %vm3135, %vm3134
      %v3137 = vunpack.c.l.b16 %v2890
      %v3138 = vunpack.c.h.b16 %v2890
      %v3139 = vunpack.c.l.b16 0
      %v3140 = vunpack.c.h.b16 0
      %vm3141 = vcmp.ne.s32.totalorder %v3137, %v3139
      %vm3142 = vcmp.ne.s32.totalorder %v3138, %v3140
      %vm3143 = vmpackc.low %vm3142, %vm3141
      %v3144 = vunpack.c.l.b16 %v2899
      %v3145 = vunpack.c.h.b16 %v2899
      %v3146 = vunpack.c.l.b16 0
      %v3147 = vunpack.c.h.b16 0
      %vm3148 = vcmp.ne.s32.totalorder %v3144, %v3146
      %vm3149 = vcmp.ne.s32.totalorder %v3145, %v3147
      %vm3150 = vmpackc.low %vm3149, %vm3148
      %v3151 = vunpack.c.l.b16 %v2908
      %v3152 = vunpack.c.h.b16 %v2908
      %v3153 = vunpack.c.l.b16 0
      %v3154 = vunpack.c.h.b16 0
      %vm3155 = vcmp.ne.s32.totalorder %v3151, %v3153
      %vm3156 = vcmp.ne.s32.totalorder %v3152, %v3154
      %vm3157 = vmpackc.low %vm3156, %vm3155
      %v3158 = vunpack.c.l.b16 %v2917
      %v3159 = vunpack.c.h.b16 %v2917
      %v3160 = vunpack.c.l.b16 0
      %v3161 = vunpack.c.h.b16 0
      %vm3162 = vcmp.ne.s32.totalorder %v3158, %v3160
      %vm3163 = vcmp.ne.s32.totalorder %v3159, %v3161
      %vm3164 = vmpackc.low %vm3163, %vm3162
      %v3165 = vunpack.c.l.b16 %v2926
      %v3166 = vunpack.c.h.b16 %v2926
      %v3167 = vunpack.c.l.b16 0
      %v3168 = vunpack.c.h.b16 0
      %vm3169 = vcmp.ne.s32.totalorder %v3165, %v3167
      %vm3170 = vcmp.ne.s32.totalorder %v3166, %v3168
      %vm3171 = vmpackc.low %vm3170, %vm3169
      %v3172 = vunpack.c.l.b16 %v2935
      %v3173 = vunpack.c.h.b16 %v2935
      %v3174 = vunpack.c.l.b16 0
      %v3175 = vunpack.c.h.b16 0
      %vm3176 = vcmp.ne.s32.totalorder %v3172, %v3174
      %vm3177 = vcmp.ne.s32.totalorder %v3173, %v3175
      %vm3178 = vmpackc.low %vm3177, %vm3176
      %v3179 = vunpack.c.l.b16 %v2944
      %v3180 = vunpack.c.h.b16 %v2944
      %v3181 = vunpack.c.l.b16 0
      %v3182 = vunpack.c.h.b16 0
      %vm3183 = vcmp.ne.s32.totalorder %v3179, %v3181
      %vm3184 = vcmp.ne.s32.totalorder %v3180, %v3182
      %vm3185 = vmpackc.low %vm3184, %vm3183
      %v3186 = vunpack.c.l.b16 %v2953
      %v3187 = vunpack.c.h.b16 %v2953
      %v3188 = vunpack.c.l.b16 0
      %v3189 = vunpack.c.h.b16 0
      %vm3190 = vcmp.ne.s32.totalorder %v3186, %v3188
      %vm3191 = vcmp.ne.s32.totalorder %v3187, %v3189
      %vm3192 = vmpackc.low %vm3191, %vm3190
      %v3193 = vunpack.c.l.b16 %v2962
      %v3194 = vunpack.c.h.b16 %v2962
      %v3195 = vunpack.c.l.b16 0
      %v3196 = vunpack.c.h.b16 0
      %vm3197 = vcmp.ne.s32.totalorder %v3193, %v3195
      %vm3198 = vcmp.ne.s32.totalorder %v3194, %v3196
      %vm3199 = vmpackc.low %vm3198, %vm3197
      %v3200 = vunpack.c.l.b16 %v2971
      %v3201 = vunpack.c.h.b16 %v2971
      %v3202 = vunpack.c.l.b16 0
      %v3203 = vunpack.c.h.b16 0
      %vm3204 = vcmp.ne.s32.totalorder %v3200, %v3202
      %vm3205 = vcmp.ne.s32.totalorder %v3201, %v3203
      %vm3206 = vmpackc.low %vm3205, %vm3204
      %v3207 = vunpack.c.l.b16 %v2980
      %v3208 = vunpack.c.h.b16 %v2980
      %v3209 = vunpack.c.l.b16 0
      %v3210 = vunpack.c.h.b16 0
      %vm3211 = vcmp.ne.s32.totalorder %v3207, %v3209
      %vm3212 = vcmp.ne.s32.totalorder %v3208, %v3210
      %vm3213 = vmpackc.low %vm3212, %vm3211
      %v3214 = vunpack.c.l.b16 %v2989
      %v3215 = vunpack.c.h.b16 %v2989
      %v3216 = vunpack.c.l.b16 0
      %v3217 = vunpack.c.h.b16 0
      %vm3218 = vcmp.ne.s32.totalorder %v3214, %v3216
      %vm3219 = vcmp.ne.s32.totalorder %v3215, %v3217
      %vm3220 = vmpackc.low %vm3219, %vm3218
      %v3221 = vunpack.c.l.b16 %v2998
      %v3222 = vunpack.c.h.b16 %v2998
      %v3223 = vunpack.c.l.b16 0
      %v3224 = vunpack.c.h.b16 0
      %vm3225 = vcmp.ne.s32.totalorder %v3221, %v3223
      %vm3226 = vcmp.ne.s32.totalorder %v3222, %v3224
      %vm3227 = vmpackc.low %vm3226, %vm3225
      %v3228 = vunpack.c.l.b16 %v3007
      %v3229 = vunpack.c.h.b16 %v3007
      %v3230 = vunpack.c.l.b16 0
      %v3231 = vunpack.c.h.b16 0
      %vm3232 = vcmp.ne.s32.totalorder %v3228, %v3230
      %vm3233 = vcmp.ne.s32.totalorder %v3229, %v3231
      %vm3234 = vmpackc.low %vm3233, %vm3232
      %v3235 = vunpack.c.l.b16 %v3016
      %v3236 = vunpack.c.h.b16 %v3016
      %v3237 = vunpack.c.l.b16 0
      %v3238 = vunpack.c.h.b16 0
      %vm3239 = vcmp.ne.s32.totalorder %v3235, %v3237
      %vm3240 = vcmp.ne.s32.totalorder %v3236, %v3238
      %vm3241 = vmpackc.low %vm3240, %vm3239
      %v3242 = vunpack.c.l.b16 %v3017
      %v3243 = vunpack.c.h.b16 %v3017
      %v3244 = vunpack.c.l.b16 0
      %v3245 = vunpack.c.h.b16 0
      %vm3246 = vcmp.ne.s32.totalorder %v3242, %v3244
      %vm3247 = vcmp.ne.s32.totalorder %v3243, %v3245
      %vm3248 = vmpackc.low %vm3247, %vm3246
      %v3249 = vsel %vm3024, %v2439, 0
      %v3250 = vsel %vm3031, %v2440, 0
      %v3251 = vsel %vm3038, %v2441, 0
      %v3252 = vsel %vm3045, %v2442, 0
      %v3253 = vsel %vm3052, %v2443, 0
      %v3254 = vsel %vm3059, %v2444, 0
      %v3255 = vsel %vm3066, %v2445, 0
      %v3256 = vsel %vm3073, %v2446, 0
      %v3257 = vsel %vm3080, %v2447, 0
      %v3258 = vsel %vm3087, %v2448, 0
      %v3259 = vsel %vm3094, %v2449, 0
      %v3260 = vsel %vm3101, %v2450, 0
      %v3261 = vsel %vm3108, %v2451, 0
      %v3262 = vsel %vm3115, %v2452, 0
      %v3263 = vsel %vm3122, %v2453, 0
      %v3264 = vsel %vm3129, %v2454, 0
      %v3265 = vsel %vm3136, %v2455, 0
      %v3266 = vsel %vm3143, %v2456, 0
      %v3267 = vsel %vm3150, %v2457, 0
      %v3268 = vsel %vm3157, %v2458, 0
      %v3269 = vsel %vm3164, %v2459, 0
      %v3270 = vsel %vm3171, %v2460, 0
      %v3271 = vsel %vm3178, %v2461, 0
      %v3272 = vsel %vm3185, %v2462, 0
      %v3273 = vsel %vm3192, %v2463, 0
      %v3274 = vsel %vm3199, %v2464, 0
      %v3275 = vsel %vm3206, %v2465, 0
      %v3276 = vsel %vm3213, %v2466, 0
      %v3277 = vsel %vm3220, %v2467, 0
      %v3278 = vsel %vm3227, %v2468, 0
      %v3279 = vsel %vm3234, %v2469, 0
      %v3280 = vsel %vm3241, %v2470, 0
      %v3281 = vsel %vm3248, %v2471, 0
      %s3282 = scalar_lea.vmem %s3, 4
      %v3283 = vld [vmem:[%s3282] sm:$0x3]
      %v3317 = vunpack.c.l.b16 %v3249
      %v3318 = vunpack.c.l.b16 %v3250
      %v3319 = vunpack.c.l.b16 %v3251
      %v3320 = vunpack.c.l.b16 %v3252
      %v3321 = vunpack.c.l.b16 %v3253
      %v3322 = vunpack.c.l.b16 %v3254
      %v3323 = vunpack.c.l.b16 %v3255
      %v3324 = vunpack.c.l.b16 %v3256
      %v3325 = vunpack.c.l.b16 %v3257
      %v3326 = vunpack.c.l.b16 %v3258
      %v3327 = vunpack.c.l.b16 %v3259
      %v3328 = vunpack.c.l.b16 %v3260
      %v3329 = vunpack.c.l.b16 %v3261
      %v3330 = vunpack.c.l.b16 %v3262
      %v3331 = vunpack.c.l.b16 %v3263
      %v3332 = vunpack.c.l.b16 %v3264
      %v3333 = vunpack.c.l.b16 %v3265
      %v3334 = vunpack.c.l.b16 %v3266
      %v3335 = vunpack.c.l.b16 %v3267
      %v3336 = vunpack.c.l.b16 %v3268
      %v3337 = vunpack.c.l.b16 %v3269
      %v3338 = vunpack.c.l.b16 %v3270
      %v3339 = vunpack.c.l.b16 %v3271
      %v3340 = vunpack.c.l.b16 %v3272
      %v3341 = vunpack.c.l.b16 %v3273
      %v3342 = vunpack.c.l.b16 %v3274
      %v3343 = vunpack.c.l.b16 %v3275
      %v3344 = vunpack.c.l.b16 %v3276
      %v3345 = vunpack.c.l.b16 %v3277
      %v3346 = vunpack.c.l.b16 %v3278
      %v3347 = vunpack.c.l.b16 %v3279
      %v3348 = vunpack.c.l.b16 %v3280
      %v3349 = vunpack.c.l.b16 %v3281
      %v3350 = vpack.c.b16 %v3318, %v3317
      %v3351 = vpack.c.b16 %v3320, %v3319
      %v3352 = vpack.c.b16 %v3322, %v3321
      %v3353 = vpack.c.b16 %v3324, %v3323
      %v3354 = vpack.c.b16 %v3326, %v3325
      %v3355 = vpack.c.b16 %v3328, %v3327
      %v3356 = vpack.c.b16 %v3330, %v3329
      %v3357 = vpack.c.b16 %v3332, %v3331
      %v3358 = vpack.c.b16 %v3334, %v3333
      %v3359 = vpack.c.b16 %v3336, %v3335
      %v3360 = vpack.c.b16 %v3338, %v3337
      %v3361 = vpack.c.b16 %v3340, %v3339
      %v3362 = vpack.c.b16 %v3342, %v3341
      %v3363 = vpack.c.b16 %v3344, %v3343
      %v3364 = vpack.c.b16 %v3346, %v3345
      %v3365 = vpack.c.b16 %v3348, %v3347
      %v3366 = vpack.c.b16 %v3349, %v3349
      %vm3367 = vsmask.f32 7424
      %v3369 = vshrl.u32 %v3350, 16
      %v3371 = vshll.u32 %v3350, 16
      %v3373 = vrot.slane %v3371, 1
      %v3374 = vor.u32 %v3369, %v3373
      %v3376 = vshll.u32 %v3351, 16
      %v3378 = vrot.slane %v3376, 1
      %v3379 = vsel %vm3367, %v3374, %v3378
      %v3380 = vshrl.u32 %v3351, 16
      %v3382 = vor.u32 %v3380, %v3378
      %v3384 = vshll.u32 %v3352, 16
      %v3386 = vrot.slane %v3384, 1
      %v3387 = vsel %vm3367, %v3382, %v3386
      %v3388 = vshrl.u32 %v3352, 16
      %v3390 = vor.u32 %v3388, %v3386
      %v3392 = vshll.u32 %v3353, 16
      %v3394 = vrot.slane %v3392, 1
      %v3395 = vsel %vm3367, %v3390, %v3394
      %v3396 = vshrl.u32 %v3353, 16
      %v3398 = vor.u32 %v3396, %v3394
      %v3400 = vshll.u32 %v3354, 16
      %v3402 = vrot.slane %v3400, 1
      %v3403 = vsel %vm3367, %v3398, %v3402
      %v3404 = vshrl.u32 %v3354, 16
      %v3406 = vor.u32 %v3404, %v3402
      %v3408 = vshll.u32 %v3355, 16
      %v3410 = vrot.slane %v3408, 1
      %v3411 = vsel %vm3367, %v3406, %v3410
      %v3412 = vshrl.u32 %v3355, 16
      %v3414 = vor.u32 %v3412, %v3410
      %v3416 = vshll.u32 %v3356, 16
      %v3418 = vrot.slane %v3416, 1
      %v3419 = vsel %vm3367, %v3414, %v3418
      %v3420 = vshrl.u32 %v3356, 16
      %v3422 = vor.u32 %v3420, %v3418
      %v3424 = vshll.u32 %v3357, 16
      %v3426 = vrot.slane %v3424, 1
      %v3427 = vsel %vm3367, %v3422, %v3426
      %v3428 = vshrl.u32 %v3357, 16
      %v3430 = vor.u32 %v3428, %v3426
      %v3432 = vshll.u32 %v3358, 16
      %v3434 = vrot.slane %v3432, 1
      %v3435 = vsel %vm3367, %v3430, %v3434
      %v3436 = vshrl.u32 %v3358, 16
      %v3438 = vor.u32 %v3436, %v3434
      %v3440 = vshll.u32 %v3359, 16
      %v3442 = vrot.slane %v3440, 1
      %v3443 = vsel %vm3367, %v3438, %v3442
      %v3444 = vshrl.u32 %v3359, 16
      %v3446 = vor.u32 %v3444, %v3442
      %v3448 = vshll.u32 %v3360, 16
      %v3450 = vrot.slane %v3448, 1
      %v3451 = vsel %vm3367, %v3446, %v3450
      %v3452 = vshrl.u32 %v3360, 16
      %v3454 = vor.u32 %v3452, %v3450
      %v3456 = vshll.u32 %v3361, 16
      %v3458 = vrot.slane %v3456, 1
      %v3459 = vsel %vm3367, %v3454, %v3458
      %v3460 = vshrl.u32 %v3361, 16
      %v3462 = vor.u32 %v3460, %v3458
      %v3464 = vshll.u32 %v3362, 16
      %v3466 = vrot.slane %v3464, 1
      %v3467 = vsel %vm3367, %v3462, %v3466
      %v3468 = vshrl.u32 %v3362, 16
      %v3470 = vor.u32 %v3468, %v3466
      %v3472 = vshll.u32 %v3363, 16
      %v3474 = vrot.slane %v3472, 1
      %v3475 = vsel %vm3367, %v3470, %v3474
      %v3476 = vshrl.u32 %v3363, 16
      %v3478 = vor.u32 %v3476, %v3474
      %v3480 = vshll.u32 %v3364, 16
      %v3482 = vrot.slane %v3480, 1
      %v3483 = vsel %vm3367, %v3478, %v3482
      %v3484 = vshrl.u32 %v3364, 16
      %v3486 = vor.u32 %v3484, %v3482
      %v3488 = vshll.u32 %v3365, 16
      %v3490 = vrot.slane %v3488, 1
      %v3491 = vsel %vm3367, %v3486, %v3490
      %v3492 = vshrl.u32 %v3365, 16
      %v3494 = vor.u32 %v3492, %v3490
      %v3496 = vshll.u32 %v3366, 16
      %v3498 = vrot.slane %v3496, 1
      %v3499 = vsel %vm3367, %v3494, %v3498
      %v3501 = vsel %vm1918, %v3379, 0
      %v3504 = vsel %vm1918, %v3387, 0
      %v3507 = vsel %vm1918, %v3395, 0
      %v3510 = vsel %vm1918, %v3403, 0
      %v3513 = vsel %vm1918, %v3411, 0
      %v3516 = vsel %vm1918, %v3419, 0
      %v3519 = vsel %vm1918, %v3427, 0
      %v3522 = vsel %vm1918, %v3435, 0
      %v3525 = vsel %vm1918, %v3443, 0
      %v3528 = vsel %vm1918, %v3451, 0
      %v3531 = vsel %vm1918, %v3459, 0
      %v3534 = vsel %vm1918, %v3467, 0
      %v3537 = vsel %vm1918, %v3475, 0
      %v3540 = vsel %vm1918, %v3483, 0
      %v3543 = vsel %vm1918, %v3491, 0
      %v3546 = vsel %vm1918, %v3499, 0
      %v3549 = vand.u32 %v3283, %v1970
      %3551 = vmatpush.bf16.msra.mxu0 0
      %3552 = vmatpush.bf16.msra.mxu0 0
      %3553 = vmatpush.bf16.msra.mxu0 0
      %3554 = vmatpush.bf16.msra.mxu0 0
      %3555 = vmatpush.bf16.msra.mxu0 0
      %3556 = vmatpush.bf16.msra.mxu0 0
      %3557 = vmatpush.bf16.msra.mxu0 0
      %3558 = vmatpush.bf16.msra.mxu0 %v3549
      %3559 = vmatmul.bf16.gmra.mxu0 %v3501
      %v3560 = vpop.f32.mrf.mxu0
      %v3561 = vadd.f32 0.0, %v3560
      %v3562 = vpop.f32.mrf.mxu0
      %v3563 = vadd.f32 0.0, %v3562
      %3564 = vmatmul.bf16.gmra.mxu0 %v3504
      %v3565 = vpop.f32.mrf.mxu0
      %v3566 = vadd.f32 0.0, %v3565
      %v3567 = vpop.f32.mrf.mxu0
      %v3568 = vadd.f32 0.0, %v3567
      %3569 = vmatmul.bf16.gmra.mxu0 %v3507
      %v3570 = vpop.f32.mrf.mxu0
      %v3571 = vadd.f32 0.0, %v3570
      %v3572 = vpop.f32.mrf.mxu0
      %v3573 = vadd.f32 0.0, %v3572
      %3574 = vmatmul.bf16.gmra.mxu0 %v3510
      %v3575 = vpop.f32.mrf.mxu0
      %v3576 = vadd.f32 0.0, %v3575
      %v3577 = vpop.f32.mrf.mxu0
      %v3578 = vadd.f32 0.0, %v3577
      %3579 = vmatmul.bf16.gmra.mxu0 %v3513
      %v3580 = vpop.f32.mrf.mxu0
      %v3581 = vadd.f32 0.0, %v3580
      %v3582 = vpop.f32.mrf.mxu0
      %v3583 = vadd.f32 0.0, %v3582
      %3584 = vmatmul.bf16.gmra.mxu0 %v3516
      %v3585 = vpop.f32.mrf.mxu0
      %v3586 = vadd.f32 0.0, %v3585
      %v3587 = vpop.f32.mrf.mxu0
      %v3588 = vadd.f32 0.0, %v3587
      %3589 = vmatmul.bf16.gmra.mxu0 %v3519
      %v3590 = vpop.f32.mrf.mxu0
      %v3591 = vadd.f32 0.0, %v3590
      %v3592 = vpop.f32.mrf.mxu0
      %v3593 = vadd.f32 0.0, %v3592
      %3594 = vmatmul.bf16.gmra.mxu0 %v3522
      %v3595 = vpop.f32.mrf.mxu0
      %v3596 = vadd.f32 0.0, %v3595
      %v3597 = vpop.f32.mrf.mxu0
      %v3598 = vadd.f32 0.0, %v3597
      %3599 = vmatmul.bf16.gmra.mxu0 %v3525
      %v3600 = vpop.f32.mrf.mxu0
      %v3601 = vadd.f32 0.0, %v3600
      %v3602 = vpop.f32.mrf.mxu0
      %v3603 = vadd.f32 0.0, %v3602
      %3604 = vmatmul.bf16.gmra.mxu0 %v3528
      %v3605 = vpop.f32.mrf.mxu0
      %v3606 = vadd.f32 0.0, %v3605
      %v3607 = vpop.f32.mrf.mxu0
      %v3608 = vadd.f32 0.0, %v3607
      %3609 = vmatmul.bf16.gmra.mxu0 %v3531
      %v3610 = vpop.f32.mrf.mxu0
      %v3611 = vadd.f32 0.0, %v3610
      %v3612 = vpop.f32.mrf.mxu0
      %v3613 = vadd.f32 0.0, %v3612
      %3614 = vmatmul.bf16.gmra.mxu0 %v3534
      %v3615 = vpop.f32.mrf.mxu0
      %v3616 = vadd.f32 0.0, %v3615
      %v3617 = vpop.f32.mrf.mxu0
      %v3618 = vadd.f32 0.0, %v3617
      %3619 = vmatmul.bf16.gmra.mxu0 %v3537
      %v3620 = vpop.f32.mrf.mxu0
      %v3621 = vadd.f32 0.0, %v3620
      %v3622 = vpop.f32.mrf.mxu0
      %v3623 = vadd.f32 0.0, %v3622
      %3624 = vmatmul.bf16.gmra.mxu0 %v3540
      %v3625 = vpop.f32.mrf.mxu0
      %v3626 = vadd.f32 0.0, %v3625
      %v3627 = vpop.f32.mrf.mxu0
      %v3628 = vadd.f32 0.0, %v3627
      %3629 = vmatmul.bf16.gmra.mxu0 %v3543
      %v3630 = vpop.f32.mrf.mxu0
      %v3631 = vadd.f32 0.0, %v3630
      %v3632 = vpop.f32.mrf.mxu0
      %v3633 = vadd.f32 0.0, %v3632
      %3634 = vmatmul.bf16.gmra.mxu0 %v3546
      %v3635 = vpop.f32.mrf.mxu0
      %v3636 = vadd.f32 0.0, %v3635
      %v3637 = vpop.f32.mrf.mxu0
      %v3638 = vadd.f32 0.0, %v3637
      %3639 = vdwg.mxu0
      %v3640 = vadd.f32 %v2360, %v3561
      %v3641 = vadd.f32 %v2362, %v3563
      %v3642 = vadd.f32 %v2365, %v3566
      %v3643 = vadd.f32 %v2367, %v3568
      %v3644 = vadd.f32 %v2370, %v3571
      %v3645 = vadd.f32 %v2372, %v3573
      %v3646 = vadd.f32 %v2375, %v3576
      %v3647 = vadd.f32 %v2377, %v3578
      %v3648 = vadd.f32 %v2380, %v3581
      %v3649 = vadd.f32 %v2382, %v3583
      %v3650 = vadd.f32 %v2385, %v3586
      %v3651 = vadd.f32 %v2387, %v3588
      %v3652 = vadd.f32 %v2390, %v3591
      %v3653 = vadd.f32 %v2392, %v3593
      %v3654 = vadd.f32 %v2395, %v3596
      %v3655 = vadd.f32 %v2397, %v3598
      %v3656 = vadd.f32 %v2400, %v3601
      %v3657 = vadd.f32 %v2402, %v3603
      %v3658 = vadd.f32 %v2405, %v3606
      %v3659 = vadd.f32 %v2407, %v3608
      %v3660 = vadd.f32 %v2410, %v3611
      %v3661 = vadd.f32 %v2412, %v3613
      %v3662 = vadd.f32 %v2415, %v3616
      %v3663 = vadd.f32 %v2417, %v3618
      %v3664 = vadd.f32 %v2420, %v3621
      %v3665 = vadd.f32 %v2422, %v3623
      %v3666 = vadd.f32 %v2425, %v3626
      %v3667 = vadd.f32 %v2427, %v3628
      %v3668 = vadd.f32 %v2430, %v3631
      %v3669 = vadd.f32 %v2432, %v3633
      %v3670 = vadd.f32 %v2435, %v3636
      %v3671 = vadd.f32 %v2437, %v3638
      %v3672 = vld [vmem:[#allocation2 + $0x8] sm:$0x8]
      %v3673 = vld [vmem:[#allocation2 + $0xc] sm:$0xf]
      %v3674 = vld [vmem:[#allocation2 + $0x10] sm:$0xf]
      %v3675 = vld [vmem:[#allocation2 + $0x14] sm:$0xf]
      %v3676 = vld [vmem:[#allocation2 + $0x18] sm:$0xf]
      %v3677 = vld [vmem:[#allocation2 + $0x1c] sm:$0xf]
      %v3678 = vld [vmem:[#allocation2 + $0x20] sm:$0xf]
      %v3679 = vld [vmem:[#allocation2 + $0x24] sm:$0xf]
      %v3680 = vld [vmem:[#allocation2 + $0x28] sm:$0xf]
      %v3681 = vld [vmem:[#allocation2 + $0x2c] sm:$0xf]
      %v3682 = vld [vmem:[#allocation2 + $0x30] sm:$0xf]
      %v3683 = vld [vmem:[#allocation2 + $0x34] sm:$0xf]
      %v3684 = vld [vmem:[#allocation2 + $0x38] sm:$0xf]
      %v3685 = vld [vmem:[#allocation2 + $0x3c] sm:$0xf]
      %v3686 = vld [vmem:[#allocation2 + $0x40] sm:$0xf]
      %v3687 = vld [vmem:[#allocation2 + $0x44] sm:$0xf]
      %v3688 = vld [vmem:[#allocation2 + $0x48] sm:$0xf]
      %v3689 = vld [vmem:[#allocation2 + $0x4c] sm:$0xf]
      %v3690 = vld [vmem:[#allocation2 + $0x50] sm:$0xf]
      %v3691 = vld [vmem:[#allocation2 + $0x54] sm:$0xf]
      %v3692 = vld [vmem:[#allocation2 + $0x58] sm:$0xf]
      %v3693 = vld [vmem:[#allocation2 + $0x5c] sm:$0xf]
      %v3694 = vld [vmem:[#allocation2 + $0x60] sm:$0xf]
      %v3695 = vld [vmem:[#allocation2 + $0x64] sm:$0xf]
      %v3696 = vld [vmem:[#allocation2 + $0x68] sm:$0xf]
      %v3697 = vld [vmem:[#allocation2 + $0x6c] sm:$0xf]
      %v3698 = vld [vmem:[#allocation2 + $0x70] sm:$0xf]
      %v3699 = vld [vmem:[#allocation2 + $0x74] sm:$0xf]
      %v3700 = vld [vmem:[#allocation2 + $0x78] sm:$0xf]
      %v3701 = vld [vmem:[#allocation2 + $0x7c] sm:$0xf]
      %v3702 = vld [vmem:[#allocation2 + $0x80] sm:$0xf]
      %v3703 = vld [vmem:[#allocation2 + $0x84] sm:$0xf]
      %v3704 = vld [vmem:[#allocation2 + $0x88] sm:$0xf]
      %v3705 = vsel %vm1577, %v3672, 0
      %v3706 = vsel %vm1584, %v3673, 0
      %v3707 = vsel %vm1591, %v3674, 0
      %v3708 = vsel %vm1598, %v3675, 0
      %v3709 = vsel %vm1605, %v3676, 0
      %v3710 = vsel %vm1612, %v3677, 0
      %v3711 = vsel %vm1619, %v3678, 0
      %v3712 = vsel %vm1626, %v3679, 0
      %v3713 = vsel %vm1633, %v3680, 0
      %v3714 = vsel %vm1640, %v3681, 0
      %v3715 = vsel %vm1647, %v3682, 0
      %v3716 = vsel %vm1654, %v3683, 0
      %v3717 = vsel %vm1661, %v3684, 0
      %v3718 = vsel %vm1668, %v3685, 0
      %v3719 = vsel %vm1675, %v3686, 0
      %v3720 = vsel %vm1682, %v3687, 0
      %v3721 = vsel %vm1689, %v3688, 0
      %v3722 = vsel %vm1696, %v3689, 0
      %v3723 = vsel %vm1703, %v3690, 0
      %v3724 = vsel %vm1710, %v3691, 0
      %v3725 = vsel %vm1717, %v3692, 0
      %v3726 = vsel %vm1724, %v3693, 0
      %v3727 = vsel %vm1731, %v3694, 0
      %v3728 = vsel %vm1738, %v3695, 0
      %v3729 = vsel %vm1745, %v3696, 0
      %v3730 = vsel %vm1752, %v3697, 0
      %v3731 = vsel %vm1759, %v3698, 0
      %v3732 = vsel %vm1766, %v3699, 0
      %v3733 = vsel %vm1773, %v3700, 0
      %v3734 = vsel %vm1780, %v3701, 0
      %v3735 = vsel %vm1787, %v3702, 0
      %v3736 = vsel %vm1794, %v3703, 0
      %v3737 = vsel %vm1801, %v3704, 0
      %s3738 = scalar_lea.vmem %s3, 6
      %v3739 = vld [vmem:[%s3738] sm:$0x3]
      %v3773 = vunpack.c.l.b16 %v3705
      %v3774 = vunpack.c.l.b16 %v3706
      %v3775 = vunpack.c.l.b16 %v3707
      %v3776 = vunpack.c.l.b16 %v3708
      %v3777 = vunpack.c.l.b16 %v3709
      %v3778 = vunpack.c.l.b16 %v3710
      %v3779 = vunpack.c.l.b16 %v3711
      %v3780 = vunpack.c.l.b16 %v3712
      %v3781 = vunpack.c.l.b16 %v3713
      %v3782 = vunpack.c.l.b16 %v3714
      %v3783 = vunpack.c.l.b16 %v3715
      %v3784 = vunpack.c.l.b16 %v3716
      %v3785 = vunpack.c.l.b16 %v3717
      %v3786 = vunpack.c.l.b16 %v3718
      %v3787 = vunpack.c.l.b16 %v3719
      %v3788 = vunpack.c.l.b16 %v3720
      %v3789 = vunpack.c.l.b16 %v3721
      %v3790 = vunpack.c.l.b16 %v3722
      %v3791 = vunpack.c.l.b16 %v3723
      %v3792 = vunpack.c.l.b16 %v3724
      %v3793 = vunpack.c.l.b16 %v3725
      %v3794 = vunpack.c.l.b16 %v3726
      %v3795 = vunpack.c.l.b16 %v3727
      %v3796 = vunpack.c.l.b16 %v3728
      %v3797 = vunpack.c.l.b16 %v3729
      %v3798 = vunpack.c.l.b16 %v3730
      %v3799 = vunpack.c.l.b16 %v3731
      %v3800 = vunpack.c.l.b16 %v3732
      %v3801 = vunpack.c.l.b16 %v3733
      %v3802 = vunpack.c.l.b16 %v3734
      %v3803 = vunpack.c.l.b16 %v3735
      %v3804 = vunpack.c.l.b16 %v3736
      %v3805 = vunpack.c.l.b16 %v3737
      %v3806 = vpack.c.b16 %v3774, %v3773
      %v3807 = vpack.c.b16 %v3776, %v3775
      %v3808 = vpack.c.b16 %v3778, %v3777
      %v3809 = vpack.c.b16 %v3780, %v3779
      %v3810 = vpack.c.b16 %v3782, %v3781
      %v3811 = vpack.c.b16 %v3784, %v3783
      %v3812 = vpack.c.b16 %v3786, %v3785
      %v3813 = vpack.c.b16 %v3788, %v3787
      %v3814 = vpack.c.b16 %v3790, %v3789
      %v3815 = vpack.c.b16 %v3792, %v3791
      %v3816 = vpack.c.b16 %v3794, %v3793
      %v3817 = vpack.c.b16 %v3796, %v3795
      %v3818 = vpack.c.b16 %v3798, %v3797
      %v3819 = vpack.c.b16 %v3800, %v3799
      %v3820 = vpack.c.b16 %v3802, %v3801
      %v3821 = vpack.c.b16 %v3804, %v3803
      %v3822 = vpack.c.b16 %v3805, %v3805
      %v3824 = vshrl.u32 %v3806, 16
      %v3826 = vrot.slane %v3824, 3
      %v3827 = vshll.u32 %v3806, 16
      %v3829 = vrot.slane %v3827, 4
      %v3830 = vor.u32 %v3826, %v3829
      %v3832 = vshrl.u32 %v3807, 16
      %v3834 = vrot.slane %v3832, 3
      %v3835 = vshll.u32 %v3807, 16
      %v3837 = vrot.slane %v3835, 4
      %v3838 = vor.u32 %v3834, %v3837
      %v3839 = vsel %vm2146, %v3830, %v3838
      %v3841 = vshrl.u32 %v3808, 16
      %v3843 = vrot.slane %v3841, 3
      %v3844 = vshll.u32 %v3808, 16
      %v3846 = vrot.slane %v3844, 4
      %v3847 = vor.u32 %v3843, %v3846
      %v3848 = vsel %vm2146, %v3838, %v3847
      %v3850 = vshrl.u32 %v3809, 16
      %v3852 = vrot.slane %v3850, 3
      %v3853 = vshll.u32 %v3809, 16
      %v3855 = vrot.slane %v3853, 4
      %v3856 = vor.u32 %v3852, %v3855
      %v3857 = vsel %vm2146, %v3847, %v3856
      %v3859 = vshrl.u32 %v3810, 16
      %v3861 = vrot.slane %v3859, 3
      %v3862 = vshll.u32 %v3810, 16
      %v3864 = vrot.slane %v3862, 4
      %v3865 = vor.u32 %v3861, %v3864
      %v3866 = vsel %vm2146, %v3856, %v3865
      %v3868 = vshrl.u32 %v3811, 16
      %v3870 = vrot.slane %v3868, 3
      %v3871 = vshll.u32 %v3811, 16
      %v3873 = vrot.slane %v3871, 4
      %v3874 = vor.u32 %v3870, %v3873
      %v3875 = vsel %vm2146, %v3865, %v3874
      %v3877 = vshrl.u32 %v3812, 16
      %v3879 = vrot.slane %v3877, 3
      %v3880 = vshll.u32 %v3812, 16
      %v3882 = vrot.slane %v3880, 4
      %v3883 = vor.u32 %v3879, %v3882
      %v3884 = vsel %vm2146, %v3874, %v3883
      %v3886 = vshrl.u32 %v3813, 16
      %v3888 = vrot.slane %v3886, 3
      %v3889 = vshll.u32 %v3813, 16
      %v3891 = vrot.slane %v3889, 4
      %v3892 = vor.u32 %v3888, %v3891
      %v3893 = vsel %vm2146, %v3883, %v3892
      %v3895 = vshrl.u32 %v3814, 16
      %v3897 = vrot.slane %v3895, 3
      %v3898 = vshll.u32 %v3814, 16
      %v3900 = vrot.slane %v3898, 4
      %v3901 = vor.u32 %v3897, %v3900
      %v3902 = vsel %vm2146, %v3892, %v3901
      %v3904 = vshrl.u32 %v3815, 16
      %v3906 = vrot.slane %v3904, 3
      %v3907 = vshll.u32 %v3815, 16
      %v3909 = vrot.slane %v3907, 4
      %v3910 = vor.u32 %v3906, %v3909
      %v3911 = vsel %vm2146, %v3901, %v3910
      %v3913 = vshrl.u32 %v3816, 16
      %v3915 = vrot.slane %v3913, 3
      %v3916 = vshll.u32 %v3816, 16
      %v3918 = vrot.slane %v3916, 4
      %v3919 = vor.u32 %v3915, %v3918
      %v3920 = vsel %vm2146, %v3910, %v3919
      %v3922 = vshrl.u32 %v3817, 16
      %v3924 = vrot.slane %v3922, 3
      %v3925 = vshll.u32 %v3817, 16
      %v3927 = vrot.slane %v3925, 4
      %v3928 = vor.u32 %v3924, %v3927
      %v3929 = vsel %vm2146, %v3919, %v3928
      %v3931 = vshrl.u32 %v3818, 16
      %v3933 = vrot.slane %v3931, 3
      %v3934 = vshll.u32 %v3818, 16
      %v3936 = vrot.slane %v3934, 4
      %v3937 = vor.u32 %v3933, %v3936
      %v3938 = vsel %vm2146, %v3928, %v3937
      %v3940 = vshrl.u32 %v3819, 16
      %v3942 = vrot.slane %v3940, 3
      %v3943 = vshll.u32 %v3819, 16
      %v3945 = vrot.slane %v3943, 4
      %v3946 = vor.u32 %v3942, %v3945
      %v3947 = vsel %vm2146, %v3937, %v3946
      %v3949 = vshrl.u32 %v3820, 16
      %v3951 = vrot.slane %v3949, 3
      %v3952 = vshll.u32 %v3820, 16
      %v3954 = vrot.slane %v3952, 4
      %v3955 = vor.u32 %v3951, %v3954
      %v3956 = vsel %vm2146, %v3946, %v3955
      %v3958 = vshrl.u32 %v3821, 16
      %v3960 = vrot.slane %v3958, 3
      %v3961 = vshll.u32 %v3821, 16
      %v3963 = vrot.slane %v3961, 4
      %v3964 = vor.u32 %v3960, %v3963
      %v3965 = vsel %vm2146, %v3955, %v3964
      %v3967 = vshrl.u32 %v3822, 16
      %v3969 = vrot.slane %v3967, 3
      %v3970 = vshll.u32 %v3822, 16
      %v3972 = vrot.slane %v3970, 4
      %v3973 = vor.u32 %v3969, %v3972
      %v3974 = vsel %vm2146, %v3964, %v3973
      %v3976 = vsel %vm1918, %v3839, 0
      %v3979 = vsel %vm1918, %v3848, 0
      %v3982 = vsel %vm1918, %v3857, 0
      %v3985 = vsel %vm1918, %v3866, 0
      %v3988 = vsel %vm1918, %v3875, 0
      %v3991 = vsel %vm1918, %v3884, 0
      %v3994 = vsel %vm1918, %v3893, 0
      %v3997 = vsel %vm1918, %v3902, 0
      %v4000 = vsel %vm1918, %v3911, 0
      %v4003 = vsel %vm1918, %v3920, 0
      %v4006 = vsel %vm1918, %v3929, 0
      %v4009 = vsel %vm1918, %v3938, 0
      %v4012 = vsel %vm1918, %v3947, 0
      %v4015 = vsel %vm1918, %v3956, 0
      %v4018 = vsel %vm1918, %v3965, 0
      %v4021 = vsel %vm1918, %v3974, 0
      %v4024 = vand.u32 %v3739, %v1970
      %4026 = vmatpush.bf16.msra.mxu0 0
      %4027 = vmatpush.bf16.msra.mxu0 0
      %4028 = vmatpush.bf16.msra.mxu0 0
      %4029 = vmatpush.bf16.msra.mxu0 0
      %4030 = vmatpush.bf16.msra.mxu0 0
      %4031 = vmatpush.bf16.msra.mxu0 0
      %4032 = vmatpush.bf16.msra.mxu0 0
      %4033 = vmatpush.bf16.msra.mxu0 %v4024
      %4034 = vmatmul.bf16.gmra.mxu0 %v3976
      %v4035 = vpop.f32.mrf.mxu0
      %v4036 = vadd.f32 0.0, %v4035
      %v4037 = vpop.f32.mrf.mxu0
      %v4038 = vadd.f32 0.0, %v4037
      %4039 = vmatmul.bf16.gmra.mxu0 %v3979
      %v4040 = vpop.f32.mrf.mxu0
      %v4041 = vadd.f32 0.0, %v4040
      %v4042 = vpop.f32.mrf.mxu0
      %v4043 = vadd.f32 0.0, %v4042
      %4044 = vmatmul.bf16.gmra.mxu0 %v3982
      %v4045 = vpop.f32.mrf.mxu0
      %v4046 = vadd.f32 0.0, %v4045
      %v4047 = vpop.f32.mrf.mxu0
      %v4048 = vadd.f32 0.0, %v4047
      %4049 = vmatmul.bf16.gmra.mxu0 %v3985
      %v4050 = vpop.f32.mrf.mxu0
      %v4051 = vadd.f32 0.0, %v4050
      %v4052 = vpop.f32.mrf.mxu0
      %v4053 = vadd.f32 0.0, %v4052
      %4054 = vmatmul.bf16.gmra.mxu0 %v3988
      %v4055 = vpop.f32.mrf.mxu0
      %v4056 = vadd.f32 0.0, %v4055
      %v4057 = vpop.f32.mrf.mxu0
      %v4058 = vadd.f32 0.0, %v4057
      %4059 = vmatmul.bf16.gmra.mxu0 %v3991
      %v4060 = vpop.f32.mrf.mxu0
      %v4061 = vadd.f32 0.0, %v4060
      %v4062 = vpop.f32.mrf.mxu0
      %v4063 = vadd.f32 0.0, %v4062
      %4064 = vmatmul.bf16.gmra.mxu0 %v3994
      %v4065 = vpop.f32.mrf.mxu0
      %v4066 = vadd.f32 0.0, %v4065
      %v4067 = vpop.f32.mrf.mxu0
      %v4068 = vadd.f32 0.0, %v4067
      %4069 = vmatmul.bf16.gmra.mxu0 %v3997
      %v4070 = vpop.f32.mrf.mxu0
      %v4071 = vadd.f32 0.0, %v4070
      %v4072 = vpop.f32.mrf.mxu0
      %v4073 = vadd.f32 0.0, %v4072
      %4074 = vmatmul.bf16.gmra.mxu0 %v4000
      %v4075 = vpop.f32.mrf.mxu0
      %v4076 = vadd.f32 0.0, %v4075
      %v4077 = vpop.f32.mrf.mxu0
      %v4078 = vadd.f32 0.0, %v4077
      %4079 = vmatmul.bf16.gmra.mxu0 %v4003
      %v4080 = vpop.f32.mrf.mxu0
      %v4081 = vadd.f32 0.0, %v4080
      %v4082 = vpop.f32.mrf.mxu0
      %v4083 = vadd.f32 0.0, %v4082
      %4084 = vmatmul.bf16.gmra.mxu0 %v4006
      %v4085 = vpop.f32.mrf.mxu0
      %v4086 = vadd.f32 0.0, %v4085
      %v4087 = vpop.f32.mrf.mxu0
      %v4088 = vadd.f32 0.0, %v4087
      %4089 = vmatmul.bf16.gmra.mxu0 %v4009
      %v4090 = vpop.f32.mrf.mxu0
      %v4091 = vadd.f32 0.0, %v4090
      %v4092 = vpop.f32.mrf.mxu0
      %v4093 = vadd.f32 0.0, %v4092
      %4094 = vmatmul.bf16.gmra.mxu0 %v4012
      %v4095 = vpop.f32.mrf.mxu0
      %v4096 = vadd.f32 0.0, %v4095
      %v4097 = vpop.f32.mrf.mxu0
      %v4098 = vadd.f32 0.0, %v4097
      %4099 = vmatmul.bf16.gmra.mxu0 %v4015
      %v4100 = vpop.f32.mrf.mxu0
      %v4101 = vadd.f32 0.0, %v4100
      %v4102 = vpop.f32.mrf.mxu0
      %v4103 = vadd.f32 0.0, %v4102
      %4104 = vmatmul.bf16.gmra.mxu0 %v4018
      %v4105 = vpop.f32.mrf.mxu0
      %v4106 = vadd.f32 0.0, %v4105
      %v4107 = vpop.f32.mrf.mxu0
      %v4108 = vadd.f32 0.0, %v4107
      %4109 = vmatmul.bf16.gmra.mxu0 %v4021
      %v4110 = vpop.f32.mrf.mxu0
      %v4111 = vadd.f32 0.0, %v4110
      %v4112 = vpop.f32.mrf.mxu0
      %v4113 = vadd.f32 0.0, %v4112
      %4114 = vdwg.mxu0
      %v4115 = vadd.f32 %v3640, %v4036
      %v4116 = vadd.f32 %v3641, %v4038
      %v4117 = vadd.f32 %v3642, %v4041
      %v4118 = vadd.f32 %v3643, %v4043
      %v4119 = vadd.f32 %v3644, %v4046
      %v4120 = vadd.f32 %v3645, %v4048
      %v4121 = vadd.f32 %v3646, %v4051
      %v4122 = vadd.f32 %v3647, %v4053
      %v4123 = vadd.f32 %v3648, %v4056
      %v4124 = vadd.f32 %v3649, %v4058
      %v4125 = vadd.f32 %v3650, %v4061
      %v4126 = vadd.f32 %v3651, %v4063
      %v4127 = vadd.f32 %v3652, %v4066
      %v4128 = vadd.f32 %v3653, %v4068
      %v4129 = vadd.f32 %v3654, %v4071
      %v4130 = vadd.f32 %v3655, %v4073
      %v4131 = vadd.f32 %v3656, %v4076
      %v4132 = vadd.f32 %v3657, %v4078
      %v4133 = vadd.f32 %v3658, %v4081
      %v4134 = vadd.f32 %v3659, %v4083
      %v4135 = vadd.f32 %v3660, %v4086
      %v4136 = vadd.f32 %v3661, %v4088
      %v4137 = vadd.f32 %v3662, %v4091
      %v4138 = vadd.f32 %v3663, %v4093
      %v4139 = vadd.f32 %v3664, %v4096
      %v4140 = vadd.f32 %v3665, %v4098
      %v4141 = vadd.f32 %v3666, %v4101
      %v4142 = vadd.f32 %v3667, %v4103
      %v4143 = vadd.f32 %v3668, %v4106
      %v4144 = vadd.f32 %v3669, %v4108
      %v4145 = vadd.f32 %v3670, %v4111
      %v4146 = vadd.f32 %v3671, %v4113
      %s4147 = scalar_lea.vmem %s3, 8
      %v4148 = vld [vmem:[%s4147] sm:$0x3]
      %v4181 = vunpack.c.l.b16 %v3673
      %v4182 = vunpack.c.l.b16 %v3674
      %v4183 = vunpack.c.l.b16 %v3675
      %v4184 = vunpack.c.l.b16 %v3676
      %v4185 = vunpack.c.l.b16 %v3677
      %v4186 = vunpack.c.l.b16 %v3678
      %v4187 = vunpack.c.l.b16 %v3679
      %v4188 = vunpack.c.l.b16 %v3680
      %v4189 = vunpack.c.l.b16 %v3681
      %v4190 = vunpack.c.l.b16 %v3682
      %v4191 = vunpack.c.l.b16 %v3683
      %v4192 = vunpack.c.l.b16 %v3684
      %v4193 = vunpack.c.l.b16 %v3685
      %v4194 = vunpack.c.l.b16 %v3686
      %v4195 = vunpack.c.l.b16 %v3687
      %v4196 = vunpack.c.l.b16 %v3688
      %v4197 = vunpack.c.l.b16 %v3689
      %v4198 = vunpack.c.l.b16 %v3690
      %v4199 = vunpack.c.l.b16 %v3691
      %v4200 = vunpack.c.l.b16 %v3692
      %v4201 = vunpack.c.l.b16 %v3693
      %v4202 = vunpack.c.l.b16 %v3694
      %v4203 = vunpack.c.l.b16 %v3695
      %v4204 = vunpack.c.l.b16 %v3696
      %v4205 = vunpack.c.l.b16 %v3697
      %v4206 = vunpack.c.l.b16 %v3698
      %v4207 = vunpack.c.l.b16 %v3699
      %v4208 = vunpack.c.l.b16 %v3700
      %v4209 = vunpack.c.l.b16 %v3701
      %v4210 = vunpack.c.l.b16 %v3702
      %v4211 = vunpack.c.l.b16 %v3703
      %v4212 = vunpack.c.l.b16 %v3704
      %v4213 = vpack.c.b16 %v4182, %v4181
      %v4214 = vpack.c.b16 %v4184, %v4183
      %v4215 = vpack.c.b16 %v4186, %v4185
      %v4216 = vpack.c.b16 %v4188, %v4187
      %v4217 = vpack.c.b16 %v4190, %v4189
      %v4218 = vpack.c.b16 %v4192, %v4191
      %v4219 = vpack.c.b16 %v4194, %v4193
      %v4220 = vpack.c.b16 %v4196, %v4195
      %v4221 = vpack.c.b16 %v4198, %v4197
      %v4222 = vpack.c.b16 %v4200, %v4199
      %v4223 = vpack.c.b16 %v4202, %v4201
      %v4224 = vpack.c.b16 %v4204, %v4203
      %v4225 = vpack.c.b16 %v4206, %v4205
      %v4226 = vpack.c.b16 %v4208, %v4207
      %v4227 = vpack.c.b16 %v4210, %v4209
      %v4228 = vpack.c.b16 %v4212, %v4211
      %v4230 = vsel %vm1918, %v4213, 0
      %v4233 = vsel %vm1918, %v4214, 0
      %v4236 = vsel %vm1918, %v4215, 0
      %v4239 = vsel %vm1918, %v4216, 0
      %v4242 = vsel %vm1918, %v4217, 0
      %v4245 = vsel %vm1918, %v4218, 0
      %v4248 = vsel %vm1918, %v4219, 0
      %v4251 = vsel %vm1918, %v4220, 0
      %v4254 = vsel %vm1918, %v4221, 0
      %v4257 = vsel %vm1918, %v4222, 0
      %v4260 = vsel %vm1918, %v4223, 0
      %v4263 = vsel %vm1918, %v4224, 0
      %v4266 = vsel %vm1918, %v4225, 0
      %v4269 = vsel %vm1918, %v4226, 0
      %v4272 = vsel %vm1918, %v4227, 0
      %v4275 = vsel %vm1918, %v4228, 0
      %v4278 = vand.u32 %v4148, %v1970
      %4280 = vmatpush.bf16.msra.mxu0 0
      %4281 = vmatpush.bf16.msra.mxu0 0
      %4282 = vmatpush.bf16.msra.mxu0 0
      %4283 = vmatpush.bf16.msra.mxu0 0
      %4284 = vmatpush.bf16.msra.mxu0 0
      %4285 = vmatpush.bf16.msra.mxu0 0
      %4286 = vmatpush.bf16.msra.mxu0 0
      %4287 = vmatpush.bf16.msra.mxu0 %v4278
      %4288 = vmatmul.bf16.gmra.mxu0 %v4230
      %v4289 = vpop.f32.mrf.mxu0
      %v4290 = vadd.f32 0.0, %v4289
      %v4291 = vpop.f32.mrf.mxu0
      %v4292 = vadd.f32 0.0, %v4291
      %4293 = vmatmul.bf16.gmra.mxu0 %v4233
      %v4294 = vpop.f32.mrf.mxu0
      %v4295 = vadd.f32 0.0, %v4294
      %v4296 = vpop.f32.mrf.mxu0
      %v4297 = vadd.f32 0.0, %v4296
      %4298 = vmatmul.bf16.gmra.mxu0 %v4236
      %v4299 = vpop.f32.mrf.mxu0
      %v4300 = vadd.f32 0.0, %v4299
      %v4301 = vpop.f32.mrf.mxu0
      %v4302 = vadd.f32 0.0, %v4301
      %4303 = vmatmul.bf16.gmra.mxu0 %v4239
      %v4304 = vpop.f32.mrf.mxu0
      %v4305 = vadd.f32 0.0, %v4304
      %v4306 = vpop.f32.mrf.mxu0
      %v4307 = vadd.f32 0.0, %v4306
      %4308 = vmatmul.bf16.gmra.mxu0 %v4242
      %v4309 = vpop.f32.mrf.mxu0
      %v4310 = vadd.f32 0.0, %v4309
      %v4311 = vpop.f32.mrf.mxu0
      %v4312 = vadd.f32 0.0, %v4311
      %4313 = vmatmul.bf16.gmra.mxu0 %v4245
      %v4314 = vpop.f32.mrf.mxu0
      %v4315 = vadd.f32 0.0, %v4314
      %v4316 = vpop.f32.mrf.mxu0
      %v4317 = vadd.f32 0.0, %v4316
      %4318 = vmatmul.bf16.gmra.mxu0 %v4248
      %v4319 = vpop.f32.mrf.mxu0
      %v4320 = vadd.f32 0.0, %v4319
      %v4321 = vpop.f32.mrf.mxu0
      %v4322 = vadd.f32 0.0, %v4321
      %4323 = vmatmul.bf16.gmra.mxu0 %v4251
      %v4324 = vpop.f32.mrf.mxu0
      %v4325 = vadd.f32 0.0, %v4324
      %v4326 = vpop.f32.mrf.mxu0
      %v4327 = vadd.f32 0.0, %v4326
      %4328 = vmatmul.bf16.gmra.mxu0 %v4254
      %v4329 = vpop.f32.mrf.mxu0
      %v4330 = vadd.f32 0.0, %v4329
      %v4331 = vpop.f32.mrf.mxu0
      %v4332 = vadd.f32 0.0, %v4331
      %4333 = vmatmul.bf16.gmra.mxu0 %v4257
      %v4334 = vpop.f32.mrf.mxu0
      %v4335 = vadd.f32 0.0, %v4334
      %v4336 = vpop.f32.mrf.mxu0
      %v4337 = vadd.f32 0.0, %v4336
      %4338 = vmatmul.bf16.gmra.mxu0 %v4260
      %v4339 = vpop.f32.mrf.mxu0
      %v4340 = vadd.f32 0.0, %v4339
      %v4341 = vpop.f32.mrf.mxu0
      %v4342 = vadd.f32 0.0, %v4341
      %4343 = vmatmul.bf16.gmra.mxu0 %v4263
      %v4344 = vpop.f32.mrf.mxu0
      %v4345 = vadd.f32 0.0, %v4344
      %v4346 = vpop.f32.mrf.mxu0
      %v4347 = vadd.f32 0.0, %v4346
      %4348 = vmatmul.bf16.gmra.mxu0 %v4266
      %v4349 = vpop.f32.mrf.mxu0
      %v4350 = vadd.f32 0.0, %v4349
      %v4351 = vpop.f32.mrf.mxu0
      %v4352 = vadd.f32 0.0, %v4351
      %4353 = vmatmul.bf16.gmra.mxu0 %v4269
      %v4354 = vpop.f32.mrf.mxu0
      %v4355 = vadd.f32 0.0, %v4354
      %v4356 = vpop.f32.mrf.mxu0
      %v4357 = vadd.f32 0.0, %v4356
      %4358 = vmatmul.bf16.gmra.mxu0 %v4272
      %v4359 = vpop.f32.mrf.mxu0
      %v4360 = vadd.f32 0.0, %v4359
      %v4361 = vpop.f32.mrf.mxu0
      %v4362 = vadd.f32 0.0, %v4361
      %4363 = vmatmul.bf16.gmra.mxu0 %v4275
      %v4364 = vpop.f32.mrf.mxu0
      %v4365 = vadd.f32 0.0, %v4364
      %v4366 = vpop.f32.mrf.mxu0
      %v4367 = vadd.f32 0.0, %v4366
      %4368 = vdwg.mxu0
      %v4369 = vadd.f32 %v4115, %v4290
      %v4370 = vadd.f32 %v4116, %v4292
      %v4371 = vadd.f32 %v4117, %v4295
      %v4372 = vadd.f32 %v4118, %v4297
      %v4373 = vadd.f32 %v4119, %v4300
      %v4374 = vadd.f32 %v4120, %v4302
      %v4375 = vadd.f32 %v4121, %v4305
      %v4376 = vadd.f32 %v4122, %v4307
      %v4377 = vadd.f32 %v4123, %v4310
      %v4378 = vadd.f32 %v4124, %v4312
      %v4379 = vadd.f32 %v4125, %v4315
      %v4380 = vadd.f32 %v4126, %v4317
      %v4381 = vadd.f32 %v4127, %v4320
      %v4382 = vadd.f32 %v4128, %v4322
      %v4383 = vadd.f32 %v4129, %v4325
      %v4384 = vadd.f32 %v4130, %v4327
      %v4385 = vadd.f32 %v4131, %v4330
      %v4386 = vadd.f32 %v4132, %v4332
      %v4387 = vadd.f32 %v4133, %v4335
      %v4388 = vadd.f32 %v4134, %v4337
      %v4389 = vadd.f32 %v4135, %v4340
      %v4390 = vadd.f32 %v4136, %v4342
      %v4391 = vadd.f32 %v4137, %v4345
      %v4392 = vadd.f32 %v4138, %v4347
      %v4393 = vadd.f32 %v4139, %v4350
      %v4394 = vadd.f32 %v4140, %v4352
      %v4395 = vadd.f32 %v4141, %v4355
      %v4396 = vadd.f32 %v4142, %v4357
      %v4397 = vadd.f32 %v4143, %v4360
      %v4398 = vadd.f32 %v4144, %v4362
      %v4399 = vadd.f32 %v4145, %v4365
      %v4400 = vadd.f32 %v4146, %v4367
      %v4401 = vld [vmem:[#allocation2 + $0xc] sm:$0xf]
      %v4402 = vld [vmem:[#allocation2 + $0x10] sm:$0xf]
      %v4403 = vld [vmem:[#allocation2 + $0x14] sm:$0xf]
      %v4404 = vld [vmem:[#allocation2 + $0x18] sm:$0xf]
      %v4405 = vld [vmem:[#allocation2 + $0x1c] sm:$0xf]
      %v4406 = vld [vmem:[#allocation2 + $0x20] sm:$0xf]
      %v4407 = vld [vmem:[#allocation2 + $0x24] sm:$0xf]
      %v4408 = vld [vmem:[#allocation2 + $0x28] sm:$0xf]
      %v4409 = vld [vmem:[#allocation2 + $0x2c] sm:$0xf]
      %v4410 = vld [vmem:[#allocation2 + $0x30] sm:$0xf]
      %v4411 = vld [vmem:[#allocation2 + $0x34] sm:$0xf]
      %v4412 = vld [vmem:[#allocation2 + $0x38] sm:$0xf]
      %v4413 = vld [vmem:[#allocation2 + $0x3c] sm:$0xf]
      %v4414 = vld [vmem:[#allocation2 + $0x40] sm:$0xf]
      %v4415 = vld [vmem:[#allocation2 + $0x44] sm:$0xf]
      %v4416 = vld [vmem:[#allocation2 + $0x48] sm:$0xf]
      %v4417 = vld [vmem:[#allocation2 + $0x4c] sm:$0xf]
      %v4418 = vld [vmem:[#allocation2 + $0x50] sm:$0xf]
      %v4419 = vld [vmem:[#allocation2 + $0x54] sm:$0xf]
      %v4420 = vld [vmem:[#allocation2 + $0x58] sm:$0xf]
      %v4421 = vld [vmem:[#allocation2 + $0x5c] sm:$0xf]
      %v4422 = vld [vmem:[#allocation2 + $0x60] sm:$0xf]
      %v4423 = vld [vmem:[#allocation2 + $0x64] sm:$0xf]
      %v4424 = vld [vmem:[#allocation2 + $0x68] sm:$0xf]
      %v4425 = vld [vmem:[#allocation2 + $0x6c] sm:$0xf]
      %v4426 = vld [vmem:[#allocation2 + $0x70] sm:$0xf]
      %v4427 = vld [vmem:[#allocation2 + $0x74] sm:$0xf]
      %v4428 = vld [vmem:[#allocation2 + $0x78] sm:$0xf]
      %v4429 = vld [vmem:[#allocation2 + $0x7c] sm:$0xf]
      %v4430 = vld [vmem:[#allocation2 + $0x80] sm:$0xf]
      %v4431 = vld [vmem:[#allocation2 + $0x84] sm:$0xf]
      %v4432 = vld [vmem:[#allocation2 + $0x88] sm:$0xf]
      %v4433 = vld [vmem:[#allocation2 + $0x8c] sm:$0x1]
      %v4434 = vsel %vm3024, %v4401, 0
      %v4435 = vsel %vm3031, %v4402, 0
      %v4436 = vsel %vm3038, %v4403, 0
      %v4437 = vsel %vm3045, %v4404, 0
      %v4438 = vsel %vm3052, %v4405, 0
      %v4439 = vsel %vm3059, %v4406, 0
      %v4440 = vsel %vm3066, %v4407, 0
      %v4441 = vsel %vm3073, %v4408, 0
      %v4442 = vsel %vm3080, %v4409, 0
      %v4443 = vsel %vm3087, %v4410, 0
      %v4444 = vsel %vm3094, %v4411, 0
      %v4445 = vsel %vm3101, %v4412, 0
      %v4446 = vsel %vm3108, %v4413, 0
      %v4447 = vsel %vm3115, %v4414, 0
      %v4448 = vsel %vm3122, %v4415, 0
      %v4449 = vsel %vm3129, %v4416, 0
      %v4450 = vsel %vm3136, %v4417, 0
      %v4451 = vsel %vm3143, %v4418, 0
      %v4452 = vsel %vm3150, %v4419, 0
      %v4453 = vsel %vm3157, %v4420, 0
      %v4454 = vsel %vm3164, %v4421, 0
      %v4455 = vsel %vm3171, %v4422, 0
      %v4456 = vsel %vm3178, %v4423, 0
      %v4457 = vsel %vm3185, %v4424, 0
      %v4458 = vsel %vm3192, %v4425, 0
      %v4459 = vsel %vm3199, %v4426, 0
      %v4460 = vsel %vm3206, %v4427, 0
      %v4461 = vsel %vm3213, %v4428, 0
      %v4462 = vsel %vm3220, %v4429, 0
      %v4463 = vsel %vm3227, %v4430, 0
      %v4464 = vsel %vm3234, %v4431, 0
      %v4465 = vsel %vm3241, %v4432, 0
      %v4466 = vsel %vm3248, %v4433, 0
      %s4467 = scalar_lea.vmem %s3, 10
      %v4468 = vld [vmem:[%s4467] sm:$0x3]
      %v4502 = vunpack.c.l.b16 %v4434
      %v4503 = vunpack.c.l.b16 %v4435
      %v4504 = vunpack.c.l.b16 %v4436
      %v4505 = vunpack.c.l.b16 %v4437
      %v4506 = vunpack.c.l.b16 %v4438
      %v4507 = vunpack.c.l.b16 %v4439
      %v4508 = vunpack.c.l.b16 %v4440
      %v4509 = vunpack.c.l.b16 %v4441
      %v4510 = vunpack.c.l.b16 %v4442
      %v4511 = vunpack.c.l.b16 %v4443
      %v4512 = vunpack.c.l.b16 %v4444
      %v4513 = vunpack.c.l.b16 %v4445
      %v4514 = vunpack.c.l.b16 %v4446
      %v4515 = vunpack.c.l.b16 %v4447
      %v4516 = vunpack.c.l.b16 %v4448
      %v4517 = vunpack.c.l.b16 %v4449
      %v4518 = vunpack.c.l.b16 %v4450
      %v4519 = vunpack.c.l.b16 %v4451
      %v4520 = vunpack.c.l.b16 %v4452
      %v4521 = vunpack.c.l.b16 %v4453
      %v4522 = vunpack.c.l.b16 %v4454
      %v4523 = vunpack.c.l.b16 %v4455
      %v4524 = vunpack.c.l.b16 %v4456
      %v4525 = vunpack.c.l.b16 %v4457
      %v4526 = vunpack.c.l.b16 %v4458
      %v4527 = vunpack.c.l.b16 %v4459
      %v4528 = vunpack.c.l.b16 %v4460
      %v4529 = vunpack.c.l.b16 %v4461
      %v4530 = vunpack.c.l.b16 %v4462
      %v4531 = vunpack.c.l.b16 %v4463
      %v4532 = vunpack.c.l.b16 %v4464
      %v4533 = vunpack.c.l.b16 %v4465
      %v4534 = vunpack.c.l.b16 %v4466
      %v4535 = vpack.c.b16 %v4503, %v4502
      %v4536 = vpack.c.b16 %v4505, %v4504
      %v4537 = vpack.c.b16 %v4507, %v4506
      %v4538 = vpack.c.b16 %v4509, %v4508
      %v4539 = vpack.c.b16 %v4511, %v4510
      %v4540 = vpack.c.b16 %v4513, %v4512
      %v4541 = vpack.c.b16 %v4515, %v4514
      %v4542 = vpack.c.b16 %v4517, %v4516
      %v4543 = vpack.c.b16 %v4519, %v4518
      %v4544 = vpack.c.b16 %v4521, %v4520
      %v4545 = vpack.c.b16 %v4523, %v4522
      %v4546 = vpack.c.b16 %v4525, %v4524
      %v4547 = vpack.c.b16 %v4527, %v4526
      %v4548 = vpack.c.b16 %v4529, %v4528
      %v4549 = vpack.c.b16 %v4531, %v4530
      %v4550 = vpack.c.b16 %v4533, %v4532
      %v4551 = vpack.c.b16 %v4534, %v4534
      %v4553 = vshrl.u32 %v4535, 16
      %v4555 = vshll.u32 %v4535, 16
      %v4557 = vrot.slane %v4555, 1
      %v4558 = vor.u32 %v4553, %v4557
      %v4560 = vshll.u32 %v4536, 16
      %v4562 = vrot.slane %v4560, 1
      %v4563 = vsel %vm3367, %v4558, %v4562
      %v4564 = vshrl.u32 %v4536, 16
      %v4566 = vor.u32 %v4564, %v4562
      %v4568 = vshll.u32 %v4537, 16
      %v4570 = vrot.slane %v4568, 1
      %v4571 = vsel %vm3367, %v4566, %v4570
      %v4572 = vshrl.u32 %v4537, 16
      %v4574 = vor.u32 %v4572, %v4570
      %v4576 = vshll.u32 %v4538, 16
      %v4578 = vrot.slane %v4576, 1
      %v4579 = vsel %vm3367, %v4574, %v4578
      %v4580 = vshrl.u32 %v4538, 16
      %v4582 = vor.u32 %v4580, %v4578
      %v4584 = vshll.u32 %v4539, 16
      %v4586 = vrot.slane %v4584, 1
      %v4587 = vsel %vm3367, %v4582, %v4586
      %v4588 = vshrl.u32 %v4539, 16
      %v4590 = vor.u32 %v4588, %v4586
      %v4592 = vshll.u32 %v4540, 16
      %v4594 = vrot.slane %v4592, 1
      %v4595 = vsel %vm3367, %v4590, %v4594
      %v4596 = vshrl.u32 %v4540, 16
      %v4598 = vor.u32 %v4596, %v4594
      %v4600 = vshll.u32 %v4541, 16
      %v4602 = vrot.slane %v4600, 1
      %v4603 = vsel %vm3367, %v4598, %v4602
      %v4604 = vshrl.u32 %v4541, 16
      %v4606 = vor.u32 %v4604, %v4602
      %v4608 = vshll.u32 %v4542, 16
      %v4610 = vrot.slane %v4608, 1
      %v4611 = vsel %vm3367, %v4606, %v4610
      %v4612 = vshrl.u32 %v4542, 16
      %v4614 = vor.u32 %v4612, %v4610
      %v4616 = vshll.u32 %v4543, 16
      %v4618 = vrot.slane %v4616, 1
      %v4619 = vsel %vm3367, %v4614, %v4618
      %v4620 = vshrl.u32 %v4543, 16
      %v4622 = vor.u32 %v4620, %v4618
      %v4624 = vshll.u32 %v4544, 16
      %v4626 = vrot.slane %v4624, 1
      %v4627 = vsel %vm3367, %v4622, %v4626
      %v4628 = vshrl.u32 %v4544, 16
      %v4630 = vor.u32 %v4628, %v4626
      %v4632 = vshll.u32 %v4545, 16
      %v4634 = vrot.slane %v4632, 1
      %v4635 = vsel %vm3367, %v4630, %v4634
      %v4636 = vshrl.u32 %v4545, 16
      %v4638 = vor.u32 %v4636, %v4634
      %v4640 = vshll.u32 %v4546, 16
      %v4642 = vrot.slane %v4640, 1
      %v4643 = vsel %vm3367, %v4638, %v4642
      %v4644 = vshrl.u32 %v4546, 16
      %v4646 = vor.u32 %v4644, %v4642
      %v4648 = vshll.u32 %v4547, 16
      %v4650 = vrot.slane %v4648, 1
      %v4651 = vsel %vm3367, %v4646, %v4650
      %v4652 = vshrl.u32 %v4547, 16
      %v4654 = vor.u32 %v4652, %v4650
      %v4656 = vshll.u32 %v4548, 16
      %v4658 = vrot.slane %v4656, 1
      %v4659 = vsel %vm3367, %v4654, %v4658
      %v4660 = vshrl.u32 %v4548, 16
      %v4662 = vor.u32 %v4660, %v4658
      %v4664 = vshll.u32 %v4549, 16
      %v4666 = vrot.slane %v4664, 1
      %v4667 = vsel %vm3367, %v4662, %v4666
      %v4668 = vshrl.u32 %v4549, 16
      %v4670 = vor.u32 %v4668, %v4666
      %v4672 = vshll.u32 %v4550, 16
      %v4674 = vrot.slane %v4672, 1
      %v4675 = vsel %vm3367, %v4670, %v4674
      %v4676 = vshrl.u32 %v4550, 16
      %v4678 = vor.u32 %v4676, %v4674
      %v4680 = vshll.u32 %v4551, 16
      %v4682 = vrot.slane %v4680, 1
      %v4683 = vsel %vm3367, %v4678, %v4682
      %v4685 = vsel %vm1918, %v4563, 0
      %v4688 = vsel %vm1918, %v4571, 0
      %v4691 = vsel %vm1918, %v4579, 0
      %v4694 = vsel %vm1918, %v4587, 0
      %v4697 = vsel %vm1918, %v4595, 0
      %v4700 = vsel %vm1918, %v4603, 0
      %v4703 = vsel %vm1918, %v4611, 0
      %v4706 = vsel %vm1918, %v4619, 0
      %v4709 = vsel %vm1918, %v4627, 0
      %v4712 = vsel %vm1918, %v4635, 0
      %v4715 = vsel %vm1918, %v4643, 0
      %v4718 = vsel %vm1918, %v4651, 0
      %v4721 = vsel %vm1918, %v4659, 0
      %v4724 = vsel %vm1918, %v4667, 0
      %v4727 = vsel %vm1918, %v4675, 0
      %v4730 = vsel %vm1918, %v4683, 0
      %v4733 = vand.u32 %v4468, %v1970
      %4735 = vmatpush.bf16.msra.mxu0 0
      %4736 = vmatpush.bf16.msra.mxu0 0
      %4737 = vmatpush.bf16.msra.mxu0 0
      %4738 = vmatpush.bf16.msra.mxu0 0
      %4739 = vmatpush.bf16.msra.mxu0 0
      %4740 = vmatpush.bf16.msra.mxu0 0
      %4741 = vmatpush.bf16.msra.mxu0 0
      %4742 = vmatpush.bf16.msra.mxu0 %v4733
      %4743 = vmatmul.bf16.gmra.mxu0 %v4685
      %v4744 = vpop.f32.mrf.mxu0
      %v4745 = vadd.f32 0.0, %v4744
      %v4746 = vpop.f32.mrf.mxu0
      %v4747 = vadd.f32 0.0, %v4746
      %4748 = vmatmul.bf16.gmra.mxu0 %v4688
      %v4749 = vpop.f32.mrf.mxu0
      %v4750 = vadd.f32 0.0, %v4749
      %v4751 = vpop.f32.mrf.mxu0
      %v4752 = vadd.f32 0.0, %v4751
      %4753 = vmatmul.bf16.gmra.mxu0 %v4691
      %v4754 = vpop.f32.mrf.mxu0
      %v4755 = vadd.f32 0.0, %v4754
      %v4756 = vpop.f32.mrf.mxu0
      %v4757 = vadd.f32 0.0, %v4756
      %4758 = vmatmul.bf16.gmra.mxu0 %v4694
      %v4759 = vpop.f32.mrf.mxu0
      %v4760 = vadd.f32 0.0, %v4759
      %v4761 = vpop.f32.mrf.mxu0
      %v4762 = vadd.f32 0.0, %v4761
      %4763 = vmatmul.bf16.gmra.mxu0 %v4697
      %v4764 = vpop.f32.mrf.mxu0
      %v4765 = vadd.f32 0.0, %v4764
      %v4766 = vpop.f32.mrf.mxu0
      %v4767 = vadd.f32 0.0, %v4766
      %4768 = vmatmul.bf16.gmra.mxu0 %v4700
      %v4769 = vpop.f32.mrf.mxu0
      %v4770 = vadd.f32 0.0, %v4769
      %v4771 = vpop.f32.mrf.mxu0
      %v4772 = vadd.f32 0.0, %v4771
      %4773 = vmatmul.bf16.gmra.mxu0 %v4703
      %v4774 = vpop.f32.mrf.mxu0
      %v4775 = vadd.f32 0.0, %v4774
      %v4776 = vpop.f32.mrf.mxu0
      %v4777 = vadd.f32 0.0, %v4776
      %4778 = vmatmul.bf16.gmra.mxu0 %v4706
      %v4779 = vpop.f32.mrf.mxu0
      %v4780 = vadd.f32 0.0, %v4779
      %v4781 = vpop.f32.mrf.mxu0
      %v4782 = vadd.f32 0.0, %v4781
      %4783 = vmatmul.bf16.gmra.mxu0 %v4709
      %v4784 = vpop.f32.mrf.mxu0
      %v4785 = vadd.f32 0.0, %v4784
      %v4786 = vpop.f32.mrf.mxu0
      %v4787 = vadd.f32 0.0, %v4786
      %4788 = vmatmul.bf16.gmra.mxu0 %v4712
      %v4789 = vpop.f32.mrf.mxu0
      %v4790 = vadd.f32 0.0, %v4789
      %v4791 = vpop.f32.mrf.mxu0
      %v4792 = vadd.f32 0.0, %v4791
      %4793 = vmatmul.bf16.gmra.mxu0 %v4715
      %v4794 = vpop.f32.mrf.mxu0
      %v4795 = vadd.f32 0.0, %v4794
      %v4796 = vpop.f32.mrf.mxu0
      %v4797 = vadd.f32 0.0, %v4796
      %4798 = vmatmul.bf16.gmra.mxu0 %v4718
      %v4799 = vpop.f32.mrf.mxu0
      %v4800 = vadd.f32 0.0, %v4799
      %v4801 = vpop.f32.mrf.mxu0
      %v4802 = vadd.f32 0.0, %v4801
      %4803 = vmatmul.bf16.gmra.mxu0 %v4721
      %v4804 = vpop.f32.mrf.mxu0
      %v4805 = vadd.f32 0.0, %v4804
      %v4806 = vpop.f32.mrf.mxu0
      %v4807 = vadd.f32 0.0, %v4806
      %4808 = vmatmul.bf16.gmra.mxu0 %v4724
      %v4809 = vpop.f32.mrf.mxu0
      %v4810 = vadd.f32 0.0, %v4809
      %v4811 = vpop.f32.mrf.mxu0
      %v4812 = vadd.f32 0.0, %v4811
      %4813 = vmatmul.bf16.gmra.mxu0 %v4727
      %v4814 = vpop.f32.mrf.mxu0
      %v4815 = vadd.f32 0.0, %v4814
      %v4816 = vpop.f32.mrf.mxu0
      %v4817 = vadd.f32 0.0, %v4816
      %4818 = vmatmul.bf16.gmra.mxu0 %v4730
      %v4819 = vpop.f32.mrf.mxu0
      %v4820 = vadd.f32 0.0, %v4819
      %v4821 = vpop.f32.mrf.mxu0
      %v4822 = vadd.f32 0.0, %v4821
      %4823 = vdwg.mxu0
      %v4824 = vadd.f32 %v4369, %v4745
      %v4825 = vadd.f32 %v4370, %v4747
      %v4826 = vadd.f32 %v4371, %v4750
      %v4827 = vadd.f32 %v4372, %v4752
      %v4828 = vadd.f32 %v4373, %v4755
      %v4829 = vadd.f32 %v4374, %v4757
      %v4830 = vadd.f32 %v4375, %v4760
      %v4831 = vadd.f32 %v4376, %v4762
      %v4832 = vadd.f32 %v4377, %v4765
      %v4833 = vadd.f32 %v4378, %v4767
      %v4834 = vadd.f32 %v4379, %v4770
      %v4835 = vadd.f32 %v4380, %v4772
      %v4836 = vadd.f32 %v4381, %v4775
      %v4837 = vadd.f32 %v4382, %v4777
      %v4838 = vadd.f32 %v4383, %v4780
      %v4839 = vadd.f32 %v4384, %v4782
      %v4840 = vadd.f32 %v4385, %v4785
      %v4841 = vadd.f32 %v4386, %v4787
      %v4842 = vadd.f32 %v4387, %v4790
      %v4843 = vadd.f32 %v4388, %v4792
      %v4844 = vadd.f32 %v4389, %v4795
      %v4845 = vadd.f32 %v4390, %v4797
      %v4846 = vadd.f32 %v4391, %v4800
      %v4847 = vadd.f32 %v4392, %v4802
      %v4848 = vadd.f32 %v4393, %v4805
      %v4849 = vadd.f32 %v4394, %v4807
      %v4850 = vadd.f32 %v4395, %v4810
      %v4851 = vadd.f32 %v4396, %v4812
      %v4852 = vadd.f32 %v4397, %v4815
      %v4853 = vadd.f32 %v4398, %v4817
      %v4854 = vadd.f32 %v4399, %v4820
      %v4855 = vadd.f32 %v4400, %v4822
      %v4856 = vld [vmem:[#allocation2 + $0x10] sm:$0x8]
      %v4857 = vld [vmem:[#allocation2 + $0x14] sm:$0xf]
      %v4858 = vld [vmem:[#allocation2 + $0x18] sm:$0xf]
      %v4859 = vld [vmem:[#allocation2 + $0x1c] sm:$0xf]
      %v4860 = vld [vmem:[#allocation2 + $0x20] sm:$0xf]
      %v4861 = vld [vmem:[#allocation2 + $0x24] sm:$0xf]
      %v4862 = vld [vmem:[#allocation2 + $0x28] sm:$0xf]
      %v4863 = vld [vmem:[#allocation2 + $0x2c] sm:$0xf]
      %v4864 = vld [vmem:[#allocation2 + $0x30] sm:$0xf]
      %v4865 = vld [vmem:[#allocation2 + $0x34] sm:$0xf]
      %v4866 = vld [vmem:[#allocation2 + $0x38] sm:$0xf]
      %v4867 = vld [vmem:[#allocation2 + $0x3c] sm:$0xf]
      %v4868 = vld [vmem:[#allocation2 + $0x40] sm:$0xf]
      %v4869 = vld [vmem:[#allocation2 + $0x44] sm:$0xf]
      %v4870 = vld [vmem:[#allocation2 + $0x48] sm:$0xf]
      %v4871 = vld [vmem:[#allocation2 + $0x4c] sm:$0xf]
      %v4872 = vld [vmem:[#allocation2 + $0x50] sm:$0xf]
      %v4873 = vld [vmem:[#allocation2 + $0x54] sm:$0xf]
      %v4874 = vld [vmem:[#allocation2 + $0x58] sm:$0xf]
      %v4875 = vld [vmem:[#allocation2 + $0x5c] sm:$0xf]
      %v4876 = vld [vmem:[#allocation2 + $0x60] sm:$0xf]
      %v4877 = vld [vmem:[#allocation2 + $0x64] sm:$0xf]
      %v4878 = vld [vmem:[#allocation2 + $0x68] sm:$0xf]
      %v4879 = vld [vmem:[#allocation2 + $0x6c] sm:$0xf]
      %v4880 = vld [vmem:[#allocation2 + $0x70] sm:$0xf]
      %v4881 = vld [vmem:[#allocation2 + $0x74] sm:$0xf]
      %v4882 = vld [vmem:[#allocation2 + $0x78] sm:$0xf]
      %v4883 = vld [vmem:[#allocation2 + $0x7c] sm:$0xf]
      %v4884 = vld [vmem:[#allocation2 + $0x80] sm:$0xf]
      %v4885 = vld [vmem:[#allocation2 + $0x84] sm:$0xf]
      %v4886 = vld [vmem:[#allocation2 + $0x88] sm:$0xf]
      %v4887 = vld [vmem:[#allocation2 + $0x8c] sm:$0xf]
      %v4888 = vld [vmem:[#allocation2 + $0x90] sm:$0xf]
      %v4889 = vsel %vm1577, %v4856, 0
      %v4890 = vsel %vm1584, %v4857, 0
      %v4891 = vsel %vm1591, %v4858, 0
      %v4892 = vsel %vm1598, %v4859, 0
      %v4893 = vsel %vm1605, %v4860, 0
      %v4894 = vsel %vm1612, %v4861, 0
      %v4895 = vsel %vm1619, %v4862, 0
      %v4896 = vsel %vm1626, %v4863, 0
      %v4897 = vsel %vm1633, %v4864, 0
      %v4898 = vsel %vm1640, %v4865, 0
      %v4899 = vsel %vm1647, %v4866, 0
      %v4900 = vsel %vm1654, %v4867, 0
      %v4901 = vsel %vm1661, %v4868, 0
      %v4902 = vsel %vm1668, %v4869, 0
      %v4903 = vsel %vm1675, %v4870, 0
      %v4904 = vsel %vm1682, %v4871, 0
      %v4905 = vsel %vm1689, %v4872, 0
      %v4906 = vsel %vm1696, %v4873, 0
      %v4907 = vsel %vm1703, %v4874, 0
      %v4908 = vsel %vm1710, %v4875, 0
      %v4909 = vsel %vm1717, %v4876, 0
      %v4910 = vsel %vm1724, %v4877, 0
      %v4911 = vsel %vm1731, %v4878, 0
      %v4912 = vsel %vm1738, %v4879, 0
      %v4913 = vsel %vm1745, %v4880, 0
      %v4914 = vsel %vm1752, %v4881, 0
      %v4915 = vsel %vm1759, %v4882, 0
      %v4916 = vsel %vm1766, %v4883, 0
      %v4917 = vsel %vm1773, %v4884, 0
      %v4918 = vsel %vm1780, %v4885, 0
      %v4919 = vsel %vm1787, %v4886, 0
      %v4920 = vsel %vm1794, %v4887, 0
      %v4921 = vsel %vm1801, %v4888, 0
      %s4922 = scalar_lea.vmem %s3, 12
      %v4923 = vld [vmem:[%s4922] sm:$0x3]
      %v4957 = vunpack.c.l.b16 %v4889
      %v4958 = vunpack.c.l.b16 %v4890
      %v4959 = vunpack.c.l.b16 %v4891
      %v4960 = vunpack.c.l.b16 %v4892
      %v4961 = vunpack.c.l.b16 %v4893
      %v4962 = vunpack.c.l.b16 %v4894
      %v4963 = vunpack.c.l.b16 %v4895
      %v4964 = vunpack.c.l.b16 %v4896
      %v4965 = vunpack.c.l.b16 %v4897
      %v4966 = vunpack.c.l.b16 %v4898
      %v4967 = vunpack.c.l.b16 %v4899
      %v4968 = vunpack.c.l.b16 %v4900
      %v4969 = vunpack.c.l.b16 %v4901
      %v4970 = vunpack.c.l.b16 %v4902
      %v4971 = vunpack.c.l.b16 %v4903
      %v4972 = vunpack.c.l.b16 %v4904
      %v4973 = vunpack.c.l.b16 %v4905
      %v4974 = vunpack.c.l.b16 %v4906
      %v4975 = vunpack.c.l.b16 %v4907
      %v4976 = vunpack.c.l.b16 %v4908
      %v4977 = vunpack.c.l.b16 %v4909
      %v4978 = vunpack.c.l.b16 %v4910
      %v4979 = vunpack.c.l.b16 %v4911
      %v4980 = vunpack.c.l.b16 %v4912
      %v4981 = vunpack.c.l.b16 %v4913
      %v4982 = vunpack.c.l.b16 %v4914
      %v4983 = vunpack.c.l.b16 %v4915
      %v4984 = vunpack.c.l.b16 %v4916
      %v4985 = vunpack.c.l.b16 %v4917
      %v4986 = vunpack.c.l.b16 %v4918
      %v4987 = vunpack.c.l.b16 %v4919
      %v4988 = vunpack.c.l.b16 %v4920
      %v4989 = vunpack.c.l.b16 %v4921
      %v4990 = vpack.c.b16 %v4958, %v4957
      %v4991 = vpack.c.b16 %v4960, %v4959
      %v4992 = vpack.c.b16 %v4962, %v4961
      %v4993 = vpack.c.b16 %v4964, %v4963
      %v4994 = vpack.c.b16 %v4966, %v4965
      %v4995 = vpack.c.b16 %v4968, %v4967
      %v4996 = vpack.c.b16 %v4970, %v4969
      %v4997 = vpack.c.b16 %v4972, %v4971
      %v4998 = vpack.c.b16 %v4974, %v4973
      %v4999 = vpack.c.b16 %v4976, %v4975
      %v5000 = vpack.c.b16 %v4978, %v4977
      %v5001 = vpack.c.b16 %v4980, %v4979
      %v5002 = vpack.c.b16 %v4982, %v4981
      %v5003 = vpack.c.b16 %v4984, %v4983
      %v5004 = vpack.c.b16 %v4986, %v4985
      %v5005 = vpack.c.b16 %v4988, %v4987
      %v5006 = vpack.c.b16 %v4989, %v4989
      %v5008 = vshrl.u32 %v4990, 16
      %v5010 = vrot.slane %v5008, 3
      %v5011 = vshll.u32 %v4990, 16
      %v5013 = vrot.slane %v5011, 4
      %v5014 = vor.u32 %v5010, %v5013
      %v5016 = vshrl.u32 %v4991, 16
      %v5018 = vrot.slane %v5016, 3
      %v5019 = vshll.u32 %v4991, 16
      %v5021 = vrot.slane %v5019, 4
      %v5022 = vor.u32 %v5018, %v5021
      %v5023 = vsel %vm2146, %v5014, %v5022
      %v5025 = vshrl.u32 %v4992, 16
      %v5027 = vrot.slane %v5025, 3
      %v5028 = vshll.u32 %v4992, 16
      %v5030 = vrot.slane %v5028, 4
      %v5031 = vor.u32 %v5027, %v5030
      %v5032 = vsel %vm2146, %v5022, %v5031
      %v5034 = vshrl.u32 %v4993, 16
      %v5036 = vrot.slane %v5034, 3
      %v5037 = vshll.u32 %v4993, 16
      %v5039 = vrot.slane %v5037, 4
      %v5040 = vor.u32 %v5036, %v5039
      %v5041 = vsel %vm2146, %v5031, %v5040
      %v5043 = vshrl.u32 %v4994, 16
      %v5045 = vrot.slane %v5043, 3
      %v5046 = vshll.u32 %v4994, 16
      %v5048 = vrot.slane %v5046, 4
      %v5049 = vor.u32 %v5045, %v5048
      %v5050 = vsel %vm2146, %v5040, %v5049
      %v5052 = vshrl.u32 %v4995, 16
      %v5054 = vrot.slane %v5052, 3
      %v5055 = vshll.u32 %v4995, 16
      %v5057 = vrot.slane %v5055, 4
      %v5058 = vor.u32 %v5054, %v5057
      %v5059 = vsel %vm2146, %v5049, %v5058
      %v5061 = vshrl.u32 %v4996, 16
      %v5063 = vrot.slane %v5061, 3
      %v5064 = vshll.u32 %v4996, 16
      %v5066 = vrot.slane %v5064, 4
      %v5067 = vor.u32 %v5063, %v5066
      %v5068 = vsel %vm2146, %v5058, %v5067
      %v5070 = vshrl.u32 %v4997, 16
      %v5072 = vrot.slane %v5070, 3
      %v5073 = vshll.u32 %v4997, 16
      %v5075 = vrot.slane %v5073, 4
      %v5076 = vor.u32 %v5072, %v5075
      %v5077 = vsel %vm2146, %v5067, %v5076
      %v5079 = vshrl.u32 %v4998, 16
      %v5081 = vrot.slane %v5079, 3
      %v5082 = vshll.u32 %v4998, 16
      %v5084 = vrot.slane %v5082, 4
      %v5085 = vor.u32 %v5081, %v5084
      %v5086 = vsel %vm2146, %v5076, %v5085
      %v5088 = vshrl.u32 %v4999, 16
      %v5090 = vrot.slane %v5088, 3
      %v5091 = vshll.u32 %v4999, 16
      %v5093 = vrot.slane %v5091, 4
      %v5094 = vor.u32 %v5090, %v5093
      %v5095 = vsel %vm2146, %v5085, %v5094
      %v5097 = vshrl.u32 %v5000, 16
      %v5099 = vrot.slane %v5097, 3
      %v5100 = vshll.u32 %v5000, 16
      %v5102 = vrot.slane %v5100, 4
      %v5103 = vor.u32 %v5099, %v5102
      %v5104 = vsel %vm2146, %v5094, %v5103
      %v5106 = vshrl.u32 %v5001, 16
      %v5108 = vrot.slane %v5106, 3
      %v5109 = vshll.u32 %v5001, 16
      %v5111 = vrot.slane %v5109, 4
      %v5112 = vor.u32 %v5108, %v5111
      %v5113 = vsel %vm2146, %v5103, %v5112
      %v5115 = vshrl.u32 %v5002, 16
      %v5117 = vrot.slane %v5115, 3
      %v5118 = vshll.u32 %v5002, 16
      %v5120 = vrot.slane %v5118, 4
      %v5121 = vor.u32 %v5117, %v5120
      %v5122 = vsel %vm2146, %v5112, %v5121
      %v5124 = vshrl.u32 %v5003, 16
      %v5126 = vrot.slane %v5124, 3
      %v5127 = vshll.u32 %v5003, 16
      %v5129 = vrot.slane %v5127, 4
      %v5130 = vor.u32 %v5126, %v5129
      %v5131 = vsel %vm2146, %v5121, %v5130
      %v5133 = vshrl.u32 %v5004, 16
      %v5135 = vrot.slane %v5133, 3
      %v5136 = vshll.u32 %v5004, 16
      %v5138 = vrot.slane %v5136, 4
      %v5139 = vor.u32 %v5135, %v5138
      %v5140 = vsel %vm2146, %v5130, %v5139
      %v5142 = vshrl.u32 %v5005, 16
      %v5144 = vrot.slane %v5142, 3
      %v5145 = vshll.u32 %v5005, 16
      %v5147 = vrot.slane %v5145, 4
      %v5148 = vor.u32 %v5144, %v5147
      %v5149 = vsel %vm2146, %v5139, %v5148
      %v5151 = vshrl.u32 %v5006, 16
      %v5153 = vrot.slane %v5151, 3
      %v5154 = vshll.u32 %v5006, 16
      %v5156 = vrot.slane %v5154, 4
      %v5157 = vor.u32 %v5153, %v5156
      %v5158 = vsel %vm2146, %v5148, %v5157
      %v5160 = vsel %vm1918, %v5023, 0
      %v5163 = vsel %vm1918, %v5032, 0
      %v5166 = vsel %vm1918, %v5041, 0
      %v5169 = vsel %vm1918, %v5050, 0
      %v5172 = vsel %vm1918, %v5059, 0
      %v5175 = vsel %vm1918, %v5068, 0
      %v5178 = vsel %vm1918, %v5077, 0
      %v5181 = vsel %vm1918, %v5086, 0
      %v5184 = vsel %vm1918, %v5095, 0
      %v5187 = vsel %vm1918, %v5104, 0
      %v5190 = vsel %vm1918, %v5113, 0
      %v5193 = vsel %vm1918, %v5122, 0
      %v5196 = vsel %vm1918, %v5131, 0
      %v5199 = vsel %vm1918, %v5140, 0
      %v5202 = vsel %vm1918, %v5149, 0
      %v5205 = vsel %vm1918, %v5158, 0
      %v5208 = vand.u32 %v4923, %v1970
      %5210 = vmatpush.bf16.msra.mxu0 0
      %5211 = vmatpush.bf16.msra.mxu0 0
      %5212 = vmatpush.bf16.msra.mxu0 0
      %5213 = vmatpush.bf16.msra.mxu0 0
      %5214 = vmatpush.bf16.msra.mxu0 0
      %5215 = vmatpush.bf16.msra.mxu0 0
      %5216 = vmatpush.bf16.msra.mxu0 0
      %5217 = vmatpush.bf16.msra.mxu0 %v5208
      %5218 = vmatmul.bf16.gmra.mxu0 %v5160
      %v5219 = vpop.f32.mrf.mxu0
      %v5220 = vadd.f32 0.0, %v5219
      %v5221 = vpop.f32.mrf.mxu0
      %v5222 = vadd.f32 0.0, %v5221
      %5223 = vmatmul.bf16.gmra.mxu0 %v5163
      %v5224 = vpop.f32.mrf.mxu0
      %v5225 = vadd.f32 0.0, %v5224
      %v5226 = vpop.f32.mrf.mxu0
      %v5227 = vadd.f32 0.0, %v5226
      %5228 = vmatmul.bf16.gmra.mxu0 %v5166
      %v5229 = vpop.f32.mrf.mxu0
      %v5230 = vadd.f32 0.0, %v5229
      %v5231 = vpop.f32.mrf.mxu0
      %v5232 = vadd.f32 0.0, %v5231
      %5233 = vmatmul.bf16.gmra.mxu0 %v5169
      %v5234 = vpop.f32.mrf.mxu0
      %v5235 = vadd.f32 0.0, %v5234
      %v5236 = vpop.f32.mrf.mxu0
      %v5237 = vadd.f32 0.0, %v5236
      %5238 = vmatmul.bf16.gmra.mxu0 %v5172
      %v5239 = vpop.f32.mrf.mxu0
      %v5240 = vadd.f32 0.0, %v5239
      %v5241 = vpop.f32.mrf.mxu0
      %v5242 = vadd.f32 0.0, %v5241
      %5243 = vmatmul.bf16.gmra.mxu0 %v5175
      %v5244 = vpop.f32.mrf.mxu0
      %v5245 = vadd.f32 0.0, %v5244
      %v5246 = vpop.f32.mrf.mxu0
      %v5247 = vadd.f32 0.0, %v5246
      %5248 = vmatmul.bf16.gmra.mxu0 %v5178
      %v5249 = vpop.f32.mrf.mxu0
      %v5250 = vadd.f32 0.0, %v5249
      %v5251 = vpop.f32.mrf.mxu0
      %v5252 = vadd.f32 0.0, %v5251
      %5253 = vmatmul.bf16.gmra.mxu0 %v5181
      %v5254 = vpop.f32.mrf.mxu0
      %v5255 = vadd.f32 0.0, %v5254
      %v5256 = vpop.f32.mrf.mxu0
      %v5257 = vadd.f32 0.0, %v5256
      %5258 = vmatmul.bf16.gmra.mxu0 %v5184
      %v5259 = vpop.f32.mrf.mxu0
      %v5260 = vadd.f32 0.0, %v5259
      %v5261 = vpop.f32.mrf.mxu0
      %v5262 = vadd.f32 0.0, %v5261
      %5263 = vmatmul.bf16.gmra.mxu0 %v5187
      %v5264 = vpop.f32.mrf.mxu0
      %v5265 = vadd.f32 0.0, %v5264
      %v5266 = vpop.f32.mrf.mxu0
      %v5267 = vadd.f32 0.0, %v5266
      %5268 = vmatmul.bf16.gmra.mxu0 %v5190
      %v5269 = vpop.f32.mrf.mxu0
      %v5270 = vadd.f32 0.0, %v5269
      %v5271 = vpop.f32.mrf.mxu0
      %v5272 = vadd.f32 0.0, %v5271
      %5273 = vmatmul.bf16.gmra.mxu0 %v5193
      %v5274 = vpop.f32.mrf.mxu0
      %v5275 = vadd.f32 0.0, %v5274
      %v5276 = vpop.f32.mrf.mxu0
      %v5277 = vadd.f32 0.0, %v5276
      %5278 = vmatmul.bf16.gmra.mxu0 %v5196
      %v5279 = vpop.f32.mrf.mxu0
      %v5280 = vadd.f32 0.0, %v5279
      %v5281 = vpop.f32.mrf.mxu0
      %v5282 = vadd.f32 0.0, %v5281
      %5283 = vmatmul.bf16.gmra.mxu0 %v5199
      %v5284 = vpop.f32.mrf.mxu0
      %v5285 = vadd.f32 0.0, %v5284
      %v5286 = vpop.f32.mrf.mxu0
      %v5287 = vadd.f32 0.0, %v5286
      %5288 = vmatmul.bf16.gmra.mxu0 %v5202
      %v5289 = vpop.f32.mrf.mxu0
      %v5290 = vadd.f32 0.0, %v5289
      %v5291 = vpop.f32.mrf.mxu0
      %v5292 = vadd.f32 0.0, %v5291
      %5293 = vmatmul.bf16.gmra.mxu0 %v5205
      %v5294 = vpop.f32.mrf.mxu0
      %v5295 = vadd.f32 0.0, %v5294
      %v5296 = vpop.f32.mrf.mxu0
      %v5297 = vadd.f32 0.0, %v5296
      %5298 = vdwg.mxu0
      %v5299 = vadd.f32 %v4824, %v5220
      %v5300 = vadd.f32 %v4825, %v5222
      %v5301 = vadd.f32 %v4826, %v5225
      %v5302 = vadd.f32 %v4827, %v5227
      %v5303 = vadd.f32 %v4828, %v5230
      %v5304 = vadd.f32 %v4829, %v5232
      %v5305 = vadd.f32 %v4830, %v5235
      %v5306 = vadd.f32 %v4831, %v5237
      %v5307 = vadd.f32 %v4832, %v5240
      %v5308 = vadd.f32 %v4833, %v5242
      %v5309 = vadd.f32 %v4834, %v5245
      %v5310 = vadd.f32 %v4835, %v5247
      %v5311 = vadd.f32 %v4836, %v5250
      %v5312 = vadd.f32 %v4837, %v5252
      %v5313 = vadd.f32 %v4838, %v5255
      %v5314 = vadd.f32 %v4839, %v5257
      %v5315 = vadd.f32 %v4840, %v5260
      %v5316 = vadd.f32 %v4841, %v5262
      %v5317 = vadd.f32 %v4842, %v5265
      %v5318 = vadd.f32 %v4843, %v5267
      %v5319 = vadd.f32 %v4844, %v5270
      %v5320 = vadd.f32 %v4845, %v5272
      %v5321 = vadd.f32 %v4846, %v5275
      %v5322 = vadd.f32 %v4847, %v5277
      %v5323 = vadd.f32 %v4848, %v5280
      %v5324 = vadd.f32 %v4849, %v5282
      %v5325 = vadd.f32 %v4850, %v5285
      %v5326 = vadd.f32 %v4851, %v5287
      %v5327 = vadd.f32 %v4852, %v5290
      %v5328 = vadd.f32 %v4853, %v5292
      %v5329 = vadd.f32 %v4854, %v5295
      %v5330 = vadd.f32 %v4855, %v5297
      %s5331 = scalar_lea.vmem %s3, 14
      %v5332 = vld [vmem:[%s5331] sm:$0x3]
      %v5365 = vunpack.c.l.b16 %v4857
      %v5366 = vunpack.c.l.b16 %v4858
      %v5367 = vunpack.c.l.b16 %v4859
      %v5368 = vunpack.c.l.b16 %v4860
      %v5369 = vunpack.c.l.b16 %v4861
      %v5370 = vunpack.c.l.b16 %v4862
      %v5371 = vunpack.c.l.b16 %v4863
      %v5372 = vunpack.c.l.b16 %v4864
      %v5373 = vunpack.c.l.b16 %v4865
      %v5374 = vunpack.c.l.b16 %v4866
      %v5375 = vunpack.c.l.b16 %v4867
      %v5376 = vunpack.c.l.b16 %v4868
      %v5377 = vunpack.c.l.b16 %v4869
      %v5378 = vunpack.c.l.b16 %v4870
      %v5379 = vunpack.c.l.b16 %v4871
      %v5380 = vunpack.c.l.b16 %v4872
      %v5381 = vunpack.c.l.b16 %v4873
      %v5382 = vunpack.c.l.b16 %v4874
      %v5383 = vunpack.c.l.b16 %v4875
      %v5384 = vunpack.c.l.b16 %v4876
      %v5385 = vunpack.c.l.b16 %v4877
      %v5386 = vunpack.c.l.b16 %v4878
      %v5387 = vunpack.c.l.b16 %v4879
      %v5388 = vunpack.c.l.b16 %v4880
      %v5389 = vunpack.c.l.b16 %v4881
      %v5390 = vunpack.c.l.b16 %v4882
      %v5391 = vunpack.c.l.b16 %v4883
      %v5392 = vunpack.c.l.b16 %v4884
      %v5393 = vunpack.c.l.b16 %v4885
      %v5394 = vunpack.c.l.b16 %v4886
      %v5395 = vunpack.c.l.b16 %v4887
      %v5396 = vunpack.c.l.b16 %v4888
      %v5397 = vpack.c.b16 %v5366, %v5365
      %v5398 = vpack.c.b16 %v5368, %v5367
      %v5399 = vpack.c.b16 %v5370, %v5369
      %v5400 = vpack.c.b16 %v5372, %v5371
      %v5401 = vpack.c.b16 %v5374, %v5373
      %v5402 = vpack.c.b16 %v5376, %v5375
      %v5403 = vpack.c.b16 %v5378, %v5377
      %v5404 = vpack.c.b16 %v5380, %v5379
      %v5405 = vpack.c.b16 %v5382, %v5381
      %v5406 = vpack.c.b16 %v5384, %v5383
      %v5407 = vpack.c.b16 %v5386, %v5385
      %v5408 = vpack.c.b16 %v5388, %v5387
      %v5409 = vpack.c.b16 %v5390, %v5389
      %v5410 = vpack.c.b16 %v5392, %v5391
      %v5411 = vpack.c.b16 %v5394, %v5393
      %v5412 = vpack.c.b16 %v5396, %v5395
      %v5414 = vsel %vm1918, %v5397, 0
      %v5417 = vsel %vm1918, %v5398, 0
      %v5420 = vsel %vm1918, %v5399, 0
      %v5423 = vsel %vm1918, %v5400, 0
      %v5426 = vsel %vm1918, %v5401, 0
      %v5429 = vsel %vm1918, %v5402, 0
      %v5432 = vsel %vm1918, %v5403, 0
      %v5435 = vsel %vm1918, %v5404, 0
      %v5438 = vsel %vm1918, %v5405, 0
      %v5441 = vsel %vm1918, %v5406, 0
      %v5444 = vsel %vm1918, %v5407, 0
      %v5447 = vsel %vm1918, %v5408, 0
      %v5450 = vsel %vm1918, %v5409, 0
      %v5453 = vsel %vm1918, %v5410, 0
      %v5456 = vsel %vm1918, %v5411, 0
      %v5459 = vsel %vm1918, %v5412, 0
      %v5462 = vand.u32 %v5332, %v1970
      %5464 = vmatpush.bf16.msra.mxu0 0
      %5465 = vmatpush.bf16.msra.mxu0 0
      %5466 = vmatpush.bf16.msra.mxu0 0
      %5467 = vmatpush.bf16.msra.mxu0 0
      %5468 = vmatpush.bf16.msra.mxu0 0
      %5469 = vmatpush.bf16.msra.mxu0 0
      %5470 = vmatpush.bf16.msra.mxu0 0
      %5471 = vmatpush.bf16.msra.mxu0 %v5462
      %5472 = vmatmul.bf16.gmra.mxu0 %v5414
      %v5473 = vpop.f32.mrf.mxu0
      %v5474 = vadd.f32 0.0, %v5473
      %v5475 = vpop.f32.mrf.mxu0
      %v5476 = vadd.f32 0.0, %v5475
      %5477 = vmatmul.bf16.gmra.mxu0 %v5417
      %v5478 = vpop.f32.mrf.mxu0
      %v5479 = vadd.f32 0.0, %v5478
      %v5480 = vpop.f32.mrf.mxu0
      %v5481 = vadd.f32 0.0, %v5480
      %5482 = vmatmul.bf16.gmra.mxu0 %v5420
      %v5483 = vpop.f32.mrf.mxu0
      %v5484 = vadd.f32 0.0, %v5483
      %v5485 = vpop.f32.mrf.mxu0
      %v5486 = vadd.f32 0.0, %v5485
      %5487 = vmatmul.bf16.gmra.mxu0 %v5423
      %v5488 = vpop.f32.mrf.mxu0
      %v5489 = vadd.f32 0.0, %v5488
      %v5490 = vpop.f32.mrf.mxu0
      %v5491 = vadd.f32 0.0, %v5490
      %5492 = vmatmul.bf16.gmra.mxu0 %v5426
      %v5493 = vpop.f32.mrf.mxu0
      %v5494 = vadd.f32 0.0, %v5493
      %v5495 = vpop.f32.mrf.mxu0
      %v5496 = vadd.f32 0.0, %v5495
      %5497 = vmatmul.bf16.gmra.mxu0 %v5429
      %v5498 = vpop.f32.mrf.mxu0
      %v5499 = vadd.f32 0.0, %v5498
      %v5500 = vpop.f32.mrf.mxu0
      %v5501 = vadd.f32 0.0, %v5500
      %5502 = vmatmul.bf16.gmra.mxu0 %v5432
      %v5503 = vpop.f32.mrf.mxu0
      %v5504 = vadd.f32 0.0, %v5503
      %v5505 = vpop.f32.mrf.mxu0
      %v5506 = vadd.f32 0.0, %v5505
      %5507 = vmatmul.bf16.gmra.mxu0 %v5435
      %v5508 = vpop.f32.mrf.mxu0
      %v5509 = vadd.f32 0.0, %v5508
      %v5510 = vpop.f32.mrf.mxu0
      %v5511 = vadd.f32 0.0, %v5510
      %5512 = vmatmul.bf16.gmra.mxu0 %v5438
      %v5513 = vpop.f32.mrf.mxu0
      %v5514 = vadd.f32 0.0, %v5513
      %v5515 = vpop.f32.mrf.mxu0
      %v5516 = vadd.f32 0.0, %v5515
      %5517 = vmatmul.bf16.gmra.mxu0 %v5441
      %v5518 = vpop.f32.mrf.mxu0
      %v5519 = vadd.f32 0.0, %v5518
      %v5520 = vpop.f32.mrf.mxu0
      %v5521 = vadd.f32 0.0, %v5520
      %5522 = vmatmul.bf16.gmra.mxu0 %v5444
      %v5523 = vpop.f32.mrf.mxu0
      %v5524 = vadd.f32 0.0, %v5523
      %v5525 = vpop.f32.mrf.mxu0
      %v5526 = vadd.f32 0.0, %v5525
      %5527 = vmatmul.bf16.gmra.mxu0 %v5447
      %v5528 = vpop.f32.mrf.mxu0
      %v5529 = vadd.f32 0.0, %v5528
      %v5530 = vpop.f32.mrf.mxu0
      %v5531 = vadd.f32 0.0, %v5530
      %5532 = vmatmul.bf16.gmra.mxu0 %v5450
      %v5533 = vpop.f32.mrf.mxu0
      %v5534 = vadd.f32 0.0, %v5533
      %v5535 = vpop.f32.mrf.mxu0
      %v5536 = vadd.f32 0.0, %v5535
      %5537 = vmatmul.bf16.gmra.mxu0 %v5453
      %v5538 = vpop.f32.mrf.mxu0
      %v5539 = vadd.f32 0.0, %v5538
      %v5540 = vpop.f32.mrf.mxu0
      %v5541 = vadd.f32 0.0, %v5540
      %5542 = vmatmul.bf16.gmra.mxu0 %v5456
      %v5543 = vpop.f32.mrf.mxu0
      %v5544 = vadd.f32 0.0, %v5543
      %v5545 = vpop.f32.mrf.mxu0
      %v5546 = vadd.f32 0.0, %v5545
      %5547 = vmatmul.bf16.gmra.mxu0 %v5459
      %v5548 = vpop.f32.mrf.mxu0
      %v5549 = vadd.f32 0.0, %v5548
      %v5550 = vpop.f32.mrf.mxu0
      %v5551 = vadd.f32 0.0, %v5550
      %5552 = vdwg.mxu0
      %v5553 = vadd.f32 %v5299, %v5474
      %v5554 = vadd.f32 %v5300, %v5476
      %v5555 = vadd.f32 %v5301, %v5479
      %v5556 = vadd.f32 %v5302, %v5481
      %v5557 = vadd.f32 %v5303, %v5484
      %v5558 = vadd.f32 %v5304, %v5486
      %v5559 = vadd.f32 %v5305, %v5489
      %v5560 = vadd.f32 %v5306, %v5491
      %v5561 = vadd.f32 %v5307, %v5494
      %v5562 = vadd.f32 %v5308, %v5496
      %v5563 = vadd.f32 %v5309, %v5499
      %v5564 = vadd.f32 %v5310, %v5501
      %v5565 = vadd.f32 %v5311, %v5504
      %v5566 = vadd.f32 %v5312, %v5506
      %v5567 = vadd.f32 %v5313, %v5509
      %v5568 = vadd.f32 %v5314, %v5511
      %v5569 = vadd.f32 %v5315, %v5514
      %v5570 = vadd.f32 %v5316, %v5516
      %v5571 = vadd.f32 %v5317, %v5519
      %v5572 = vadd.f32 %v5318, %v5521
      %v5573 = vadd.f32 %v5319, %v5524
      %v5574 = vadd.f32 %v5320, %v5526
      %v5575 = vadd.f32 %v5321, %v5529
      %v5576 = vadd.f32 %v5322, %v5531
      %v5577 = vadd.f32 %v5323, %v5534
      %v5578 = vadd.f32 %v5324, %v5536
      %v5579 = vadd.f32 %v5325, %v5539
      %v5580 = vadd.f32 %v5326, %v5541
      %v5581 = vadd.f32 %v5327, %v5544
      %v5582 = vadd.f32 %v5328, %v5546
      %v5583 = vadd.f32 %v5329, %v5549
      %v5584 = vadd.f32 %v5330, %v5551
      %v5585 = vld [vmem:[#allocation2 + $0x14] sm:$0xf]
      %v5586 = vld [vmem:[#allocation2 + $0x18] sm:$0xf]
      %v5587 = vld [vmem:[#allocation2 + $0x1c] sm:$0xf]
      %v5588 = vld [vmem:[#allocation2 + $0x20] sm:$0xf]
      %v5589 = vld [vmem:[#allocation2 + $0x24] sm:$0xf]
      %v5590 = vld [vmem:[#allocation2 + $0x28] sm:$0xf]
      %v5591 = vld [vmem:[#allocation2 + $0x2c] sm:$0xf]
      %v5592 = vld [vmem:[#allocation2 + $0x30] sm:$0xf]
      %v5593 = vld [vmem:[#allocation2 + $0x34] sm:$0xf]
      %v5594 = vld [vmem:[#allocation2 + $0x38] sm:$0xf]
      %v5595 = vld [vmem:[#allocation2 + $0x3c] sm:$0xf]
      %v5596 = vld [vmem:[#allocation2 + $0x40] sm:$0xf]
      %v5597 = vld [vmem:[#allocation2 + $0x44] sm:$0xf]
      %v5598 = vld [vmem:[#allocation2 + $0x48] sm:$0xf]
      %v5599 = vld [vmem:[#allocation2 + $0x4c] sm:$0xf]
      %v5600 = vld [vmem:[#allocation2 + $0x50] sm:$0xf]
      %v5601 = vld [vmem:[#allocation2 + $0x54] sm:$0xf]
      %v5602 = vld [vmem:[#allocation2 + $0x58] sm:$0xf]
      %v5603 = vld [vmem:[#allocation2 + $0x5c] sm:$0xf]
      %v5604 = vld [vmem:[#allocation2 + $0x60] sm:$0xf]
      %v5605 = vld [vmem:[#allocation2 + $0x64] sm:$0xf]
      %v5606 = vld [vmem:[#allocation2 + $0x68] sm:$0xf]
      %v5607 = vld [vmem:[#allocation2 + $0x6c] sm:$0xf]
      %v5608 = vld [vmem:[#allocation2 + $0x70] sm:$0xf]
      %v5609 = vld [vmem:[#allocation2 + $0x74] sm:$0xf]
      %v5610 = vld [vmem:[#allocation2 + $0x78] sm:$0xf]
      %v5611 = vld [vmem:[#allocation2 + $0x7c] sm:$0xf]
      %v5612 = vld [vmem:[#allocation2 + $0x80] sm:$0xf]
      %v5613 = vld [vmem:[#allocation2 + $0x84] sm:$0xf]
      %v5614 = vld [vmem:[#allocation2 + $0x88] sm:$0xf]
      %v5615 = vld [vmem:[#allocation2 + $0x8c] sm:$0xf]
      %v5616 = vld [vmem:[#allocation2 + $0x90] sm:$0xf]
      %v5617 = vld [vmem:[#allocation2 + $0x94] sm:$0x1]
      %v5618 = vsel %vm3024, %v5585, 0
      %v5619 = vsel %vm3031, %v5586, 0
      %v5620 = vsel %vm3038, %v5587, 0
      %v5621 = vsel %vm3045, %v5588, 0
      %v5622 = vsel %vm3052, %v5589, 0
      %v5623 = vsel %vm3059, %v5590, 0
      %v5624 = vsel %vm3066, %v5591, 0
      %v5625 = vsel %vm3073, %v5592, 0
      %v5626 = vsel %vm3080, %v5593, 0
      %v5627 = vsel %vm3087, %v5594, 0
      %v5628 = vsel %vm3094, %v5595, 0
      %v5629 = vsel %vm3101, %v5596, 0
      %v5630 = vsel %vm3108, %v5597, 0
      %v5631 = vsel %vm3115, %v5598, 0
      %v5632 = vsel %vm3122, %v5599, 0
      %v5633 = vsel %vm3129, %v5600, 0
      %v5634 = vsel %vm3136, %v5601, 0
      %v5635 = vsel %vm3143, %v5602, 0
      %v5636 = vsel %vm3150, %v5603, 0
      %v5637 = vsel %vm3157, %v5604, 0
      %v5638 = vsel %vm3164, %v5605, 0
      %v5639 = vsel %vm3171, %v5606, 0
      %v5640 = vsel %vm3178, %v5607, 0
      %v5641 = vsel %vm3185, %v5608, 0
      %v5642 = vsel %vm3192, %v5609, 0
      %v5643 = vsel %vm3199, %v5610, 0
      %v5644 = vsel %vm3206, %v5611, 0
      %v5645 = vsel %vm3213, %v5612, 0
      %v5646 = vsel %vm3220, %v5613, 0
      %v5647 = vsel %vm3227, %v5614, 0
      %v5648 = vsel %vm3234, %v5615, 0
      %v5649 = vsel %vm3241, %v5616, 0
      %v5650 = vsel %vm3248, %v5617, 0
      %s5651 = scalar_lea.vmem %s3, 16
      %v5652 = vld [vmem:[%s5651] sm:$0x3]
      %v5686 = vunpack.c.l.b16 %v5618
      %v5687 = vunpack.c.l.b16 %v5619
      %v5688 = vunpack.c.l.b16 %v5620
      %v5689 = vunpack.c.l.b16 %v5621
      %v5690 = vunpack.c.l.b16 %v5622
      %v5691 = vunpack.c.l.b16 %v5623
      %v5692 = vunpack.c.l.b16 %v5624
      %v5693 = vunpack.c.l.b16 %v5625
      %v5694 = vunpack.c.l.b16 %v5626
      %v5695 = vunpack.c.l.b16 %v5627
      %v5696 = vunpack.c.l.b16 %v5628
      %v5697 = vunpack.c.l.b16 %v5629
      %v5698 = vunpack.c.l.b16 %v5630
      %v5699 = vunpack.c.l.b16 %v5631
      %v5700 = vunpack.c.l.b16 %v5632
      %v5701 = vunpack.c.l.b16 %v5633
      %v5702 = vunpack.c.l.b16 %v5634
      %v5703 = vunpack.c.l.b16 %v5635
      %v5704 = vunpack.c.l.b16 %v5636
      %v5705 = vunpack.c.l.b16 %v5637
      %v5706 = vunpack.c.l.b16 %v5638
      %v5707 = vunpack.c.l.b16 %v5639
      %v5708 = vunpack.c.l.b16 %v5640
      %v5709 = vunpack.c.l.b16 %v5641
      %v5710 = vunpack.c.l.b16 %v5642
      %v5711 = vunpack.c.l.b16 %v5643
      %v5712 = vunpack.c.l.b16 %v5644
      %v5713 = vunpack.c.l.b16 %v5645
      %v5714 = vunpack.c.l.b16 %v5646
      %v5715 = vunpack.c.l.b16 %v5647
      %v5716 = vunpack.c.l.b16 %v5648
      %v5717 = vunpack.c.l.b16 %v5649
      %v5718 = vunpack.c.l.b16 %v5650
      %v5719 = vpack.c.b16 %v5687, %v5686
      %v5720 = vpack.c.b16 %v5689, %v5688
      %v5721 = vpack.c.b16 %v5691, %v5690
      %v5722 = vpack.c.b16 %v5693, %v5692
      %v5723 = vpack.c.b16 %v5695, %v5694
      %v5724 = vpack.c.b16 %v5697, %v5696
      %v5725 = vpack.c.b16 %v5699, %v5698
      %v5726 = vpack.c.b16 %v5701, %v5700
      %v5727 = vpack.c.b16 %v5703, %v5702
      %v5728 = vpack.c.b16 %v5705, %v5704
      %v5729 = vpack.c.b16 %v5707, %v5706
      %v5730 = vpack.c.b16 %v5709, %v5708
      %v5731 = vpack.c.b16 %v5711, %v5710
      %v5732 = vpack.c.b16 %v5713, %v5712
      %v5733 = vpack.c.b16 %v5715, %v5714
      %v5734 = vpack.c.b16 %v5717, %v5716
      %v5735 = vpack.c.b16 %v5718, %v5718
      %v5737 = vshrl.u32 %v5719, 16
      %v5739 = vshll.u32 %v5719, 16
      %v5741 = vrot.slane %v5739, 1
      %v5742 = vor.u32 %v5737, %v5741
      %v5744 = vshll.u32 %v5720, 16
      %v5746 = vrot.slane %v5744, 1
      %v5747 = vsel %vm3367, %v5742, %v5746
      %v5748 = vshrl.u32 %v5720, 16
      %v5750 = vor.u32 %v5748, %v5746
      %v5752 = vshll.u32 %v5721, 16
      %v5754 = vrot.slane %v5752, 1
      %v5755 = vsel %vm3367, %v5750, %v5754
      %v5756 = vshrl.u32 %v5721, 16
      %v5758 = vor.u32 %v5756, %v5754
      %v5760 = vshll.u32 %v5722, 16
      %v5762 = vrot.slane %v5760, 1
      %v5763 = vsel %vm3367, %v5758, %v5762
      %v5764 = vshrl.u32 %v5722, 16
      %v5766 = vor.u32 %v5764, %v5762
      %v5768 = vshll.u32 %v5723, 16
      %v5770 = vrot.slane %v5768, 1
      %v5771 = vsel %vm3367, %v5766, %v5770
      %v5772 = vshrl.u32 %v5723, 16
      %v5774 = vor.u32 %v5772, %v5770
      %v5776 = vshll.u32 %v5724, 16
      %v5778 = vrot.slane %v5776, 1
      %v5779 = vsel %vm3367, %v5774, %v5778
      %v5780 = vshrl.u32 %v5724, 16
      %v5782 = vor.u32 %v5780, %v5778
      %v5784 = vshll.u32 %v5725, 16
      %v5786 = vrot.slane %v5784, 1
      %v5787 = vsel %vm3367, %v5782, %v5786
      %v5788 = vshrl.u32 %v5725, 16
      %v5790 = vor.u32 %v5788, %v5786
      %v5792 = vshll.u32 %v5726, 16
      %v5794 = vrot.slane %v5792, 1
      %v5795 = vsel %vm3367, %v5790, %v5794
      %v5796 = vshrl.u32 %v5726, 16
      %v5798 = vor.u32 %v5796, %v5794
      %v5800 = vshll.u32 %v5727, 16
      %v5802 = vrot.slane %v5800, 1
      %v5803 = vsel %vm3367, %v5798, %v5802
      %v5804 = vshrl.u32 %v5727, 16
      %v5806 = vor.u32 %v5804, %v5802
      %v5808 = vshll.u32 %v5728, 16
      %v5810 = vrot.slane %v5808, 1
      %v5811 = vsel %vm3367, %v5806, %v5810
      %v5812 = vshrl.u32 %v5728, 16
      %v5814 = vor.u32 %v5812, %v5810
      %v5816 = vshll.u32 %v5729, 16
      %v5818 = vrot.slane %v5816, 1
      %v5819 = vsel %vm3367, %v5814, %v5818
      %v5820 = vshrl.u32 %v5729, 16
      %v5822 = vor.u32 %v5820, %v5818
      %v5824 = vshll.u32 %v5730, 16
      %v5826 = vrot.slane %v5824, 1
      %v5827 = vsel %vm3367, %v5822, %v5826
      %v5828 = vshrl.u32 %v5730, 16
      %v5830 = vor.u32 %v5828, %v5826
      %v5832 = vshll.u32 %v5731, 16
      %v5834 = vrot.slane %v5832, 1
      %v5835 = vsel %vm3367, %v5830, %v5834
      %v5836 = vshrl.u32 %v5731, 16
      %v5838 = vor.u32 %v5836, %v5834
      %v5840 = vshll.u32 %v5732, 16
      %v5842 = vrot.slane %v5840, 1
      %v5843 = vsel %vm3367, %v5838, %v5842
      %v5844 = vshrl.u32 %v5732, 16
      %v5846 = vor.u32 %v5844, %v5842
      %v5848 = vshll.u32 %v5733, 16
      %v5850 = vrot.slane %v5848, 1
      %v5851 = vsel %vm3367, %v5846, %v5850
      %v5852 = vshrl.u32 %v5733, 16
      %v5854 = vor.u32 %v5852, %v5850
      %v5856 = vshll.u32 %v5734, 16
      %v5858 = vrot.slane %v5856, 1
      %v5859 = vsel %vm3367, %v5854, %v5858
      %v5860 = vshrl.u32 %v5734, 16
      %v5862 = vor.u32 %v5860, %v5858
      %v5864 = vshll.u32 %v5735, 16
      %v5866 = vrot.slane %v5864, 1
      %v5867 = vsel %vm3367, %v5862, %v5866
      %v5869 = vsel %vm1918, %v5747, 0
      %v5872 = vsel %vm1918, %v5755, 0
      %v5875 = vsel %vm1918, %v5763, 0
      %v5878 = vsel %vm1918, %v5771, 0
      %v5881 = vsel %vm1918, %v5779, 0
      %v5884 = vsel %vm1918, %v5787, 0
      %v5887 = vsel %vm1918, %v5795, 0
      %v5890 = vsel %vm1918, %v5803, 0
      %v5893 = vsel %vm1918, %v5811, 0
      %v5896 = vsel %vm1918, %v5819, 0
      %v5899 = vsel %vm1918, %v5827, 0
      %v5902 = vsel %vm1918, %v5835, 0
      %v5905 = vsel %vm1918, %v5843, 0
      %v5908 = vsel %vm1918, %v5851, 0
      %v5911 = vsel %vm1918, %v5859, 0
      %v5914 = vsel %vm1918, %v5867, 0
      %v5917 = vand.u32 %v5652, %v1970
      %5919 = vmatpush.bf16.msra.mxu0 0
      %5920 = vmatpush.bf16.msra.mxu0 0
      %5921 = vmatpush.bf16.msra.mxu0 0
      %5922 = vmatpush.bf16.msra.mxu0 0
      %5923 = vmatpush.bf16.msra.mxu0 0
      %5924 = vmatpush.bf16.msra.mxu0 0
      %5925 = vmatpush.bf16.msra.mxu0 0
      %5926 = vmatpush.bf16.msra.mxu0 %v5917
      %5927 = vmatmul.bf16.gmra.mxu0 %v5869
      %v5928 = vpop.f32.mrf.mxu0
      %v5929 = vadd.f32 0.0, %v5928
      %v5930 = vpop.f32.mrf.mxu0
      %v5931 = vadd.f32 0.0, %v5930
      %5932 = vmatmul.bf16.gmra.mxu0 %v5872
      %v5933 = vpop.f32.mrf.mxu0
      %v5934 = vadd.f32 0.0, %v5933
      %v5935 = vpop.f32.mrf.mxu0
      %v5936 = vadd.f32 0.0, %v5935
      %5937 = vmatmul.bf16.gmra.mxu0 %v5875
      %v5938 = vpop.f32.mrf.mxu0
      %v5939 = vadd.f32 0.0, %v5938
      %v5940 = vpop.f32.mrf.mxu0
      %v5941 = vadd.f32 0.0, %v5940
      %5942 = vmatmul.bf16.gmra.mxu0 %v5878
      %v5943 = vpop.f32.mrf.mxu0
      %v5944 = vadd.f32 0.0, %v5943
      %v5945 = vpop.f32.mrf.mxu0
      %v5946 = vadd.f32 0.0, %v5945
      %5947 = vmatmul.bf16.gmra.mxu0 %v5881
      %v5948 = vpop.f32.mrf.mxu0
      %v5949 = vadd.f32 0.0, %v5948
      %v5950 = vpop.f32.mrf.mxu0
      %v5951 = vadd.f32 0.0, %v5950
      %5952 = vmatmul.bf16.gmra.mxu0 %v5884
      %v5953 = vpop.f32.mrf.mxu0
      %v5954 = vadd.f32 0.0, %v5953
      %v5955 = vpop.f32.mrf.mxu0
      %v5956 = vadd.f32 0.0, %v5955
      %5957 = vmatmul.bf16.gmra.mxu0 %v5887
      %v5958 = vpop.f32.mrf.mxu0
      %v5959 = vadd.f32 0.0, %v5958
      %v5960 = vpop.f32.mrf.mxu0
      %v5961 = vadd.f32 0.0, %v5960
      %5962 = vmatmul.bf16.gmra.mxu0 %v5890
      %v5963 = vpop.f32.mrf.mxu0
      %v5964 = vadd.f32 0.0, %v5963
      %v5965 = vpop.f32.mrf.mxu0
      %v5966 = vadd.f32 0.0, %v5965
      %5967 = vmatmul.bf16.gmra.mxu0 %v5893
      %v5968 = vpop.f32.mrf.mxu0
      %v5969 = vadd.f32 0.0, %v5968
      %v5970 = vpop.f32.mrf.mxu0
      %v5971 = vadd.f32 0.0, %v5970
      %5972 = vmatmul.bf16.gmra.mxu0 %v5896
      %v5973 = vpop.f32.mrf.mxu0
      %v5974 = vadd.f32 0.0, %v5973
      %v5975 = vpop.f32.mrf.mxu0
      %v5976 = vadd.f32 0.0, %v5975
      %5977 = vmatmul.bf16.gmra.mxu0 %v5899
      %v5978 = vpop.f32.mrf.mxu0
      %v5979 = vadd.f32 0.0, %v5978
      %v5980 = vpop.f32.mrf.mxu0
      %v5981 = vadd.f32 0.0, %v5980
      %5982 = vmatmul.bf16.gmra.mxu0 %v5902
      %v5983 = vpop.f32.mrf.mxu0
      %v5984 = vadd.f32 0.0, %v5983
      %v5985 = vpop.f32.mrf.mxu0
      %v5986 = vadd.f32 0.0, %v5985
      %5987 = vmatmul.bf16.gmra.mxu0 %v5905
      %v5988 = vpop.f32.mrf.mxu0
      %v5989 = vadd.f32 0.0, %v5988
      %v5990 = vpop.f32.mrf.mxu0
      %v5991 = vadd.f32 0.0, %v5990
      %5992 = vmatmul.bf16.gmra.mxu0 %v5908
      %v5993 = vpop.f32.mrf.mxu0
      %v5994 = vadd.f32 0.0, %v5993
      %v5995 = vpop.f32.mrf.mxu0
      %v5996 = vadd.f32 0.0, %v5995
      %5997 = vmatmul.bf16.gmra.mxu0 %v5911
      %v5998 = vpop.f32.mrf.mxu0
      %v5999 = vadd.f32 0.0, %v5998
      %v6000 = vpop.f32.mrf.mxu0
      %v6001 = vadd.f32 0.0, %v6000
      %6002 = vmatmul.bf16.gmra.mxu0 %v5914
      %v6003 = vpop.f32.mrf.mxu0
      %v6004 = vadd.f32 0.0, %v6003
      %v6005 = vpop.f32.mrf.mxu0
      %v6006 = vadd.f32 0.0, %v6005
      %6007 = vdwg.mxu0
      %v6008 = vadd.f32 %v5553, %v5929
      %v6009 = vadd.f32 %v5554, %v5931
      %v6010 = vadd.f32 %v5555, %v5934
      %v6011 = vadd.f32 %v5556, %v5936
      %v6012 = vadd.f32 %v5557, %v5939
      %v6013 = vadd.f32 %v5558, %v5941
      %v6014 = vadd.f32 %v5559, %v5944
      %v6015 = vadd.f32 %v5560, %v5946
      %v6016 = vadd.f32 %v5561, %v5949
      %v6017 = vadd.f32 %v5562, %v5951
      %v6018 = vadd.f32 %v5563, %v5954
      %v6019 = vadd.f32 %v5564, %v5956
      %v6020 = vadd.f32 %v5565, %v5959
      %v6021 = vadd.f32 %v5566, %v5961
      %v6022 = vadd.f32 %v5567, %v5964
      %v6023 = vadd.f32 %v5568, %v5966
      %v6024 = vadd.f32 %v5569, %v5969
      %v6025 = vadd.f32 %v5570, %v5971
      %v6026 = vadd.f32 %v5571, %v5974
      %v6027 = vadd.f32 %v5572, %v5976
      %v6028 = vadd.f32 %v5573, %v5979
      %v6029 = vadd.f32 %v5574, %v5981
      %v6030 = vadd.f32 %v5575, %v5984
      %v6031 = vadd.f32 %v5576, %v5986
      %v6032 = vadd.f32 %v5577, %v5989
      %v6033 = vadd.f32 %v5578, %v5991
      %v6034 = vadd.f32 %v5579, %v5994
      %v6035 = vadd.f32 %v5580, %v5996
      %v6036 = vadd.f32 %v5581, %v5999
      %v6037 = vadd.f32 %v5582, %v6001
      %v6038 = vadd.f32 %v5583, %v6004
      %v6039 = vadd.f32 %v5584, %v6006
      %v6040 = vld [vmem:[%s4] sm:$0x1]
      %v6042 = vperm.slane %v6040, 0
      %v6044 = vadd.f32 %v6008, %v6042
      %v6045 = vadd.f32 %v6009, %v6042
      %v6046 = vadd.f32 %v6010, %v6042
      %v6047 = vadd.f32 %v6011, %v6042
      %v6048 = vadd.f32 %v6012, %v6042
      %v6049 = vadd.f32 %v6013, %v6042
      %v6050 = vadd.f32 %v6014, %v6042
      %v6051 = vadd.f32 %v6015, %v6042
      %v6052 = vadd.f32 %v6016, %v6042
      %v6053 = vadd.f32 %v6017, %v6042
      %v6054 = vadd.f32 %v6018, %v6042
      %v6055 = vadd.f32 %v6019, %v6042
      %v6056 = vadd.f32 %v6020, %v6042
      %v6057 = vadd.f32 %v6021, %v6042
      %v6058 = vadd.f32 %v6022, %v6042
      %v6059 = vadd.f32 %v6023, %v6042
      %v6060 = vadd.f32 %v6024, %v6042
      %v6061 = vadd.f32 %v6025, %v6042
      %v6062 = vadd.f32 %v6026, %v6042
      %v6063 = vadd.f32 %v6027, %v6042
      %v6064 = vadd.f32 %v6028, %v6042
      %v6065 = vadd.f32 %v6029, %v6042
      %v6066 = vadd.f32 %v6030, %v6042
      %v6067 = vadd.f32 %v6031, %v6042
      %v6068 = vadd.f32 %v6032, %v6042
      %v6069 = vadd.f32 %v6033, %v6042
      %v6070 = vadd.f32 %v6034, %v6042
      %v6071 = vadd.f32 %v6035, %v6042
      %v6072 = vadd.f32 %v6036, %v6042
      %v6073 = vadd.f32 %v6037, %v6042
      %v6074 = vadd.f32 %v6038, %v6042
      %v6075 = vadd.f32 %v6039, %v6042
      %v6076 = vmax.f32 %v6044, 0.0
      %v6077 = vmax.f32 %v6045, 0.0
      %v6078 = vmax.f32 %v6046, 0.0
      %v6079 = vmax.f32 %v6047, 0.0
      %v6080 = vmax.f32 %v6048, 0.0
      %v6081 = vmax.f32 %v6049, 0.0
      %v6082 = vmax.f32 %v6050, 0.0
      %v6083 = vmax.f32 %v6051, 0.0
      %v6084 = vmax.f32 %v6052, 0.0
      %v6085 = vmax.f32 %v6053, 0.0
      %v6086 = vmax.f32 %v6054, 0.0
      %v6087 = vmax.f32 %v6055, 0.0
      %v6088 = vmax.f32 %v6056, 0.0
      %v6089 = vmax.f32 %v6057, 0.0
      %v6090 = vmax.f32 %v6058, 0.0
      %v6091 = vmax.f32 %v6059, 0.0
      %v6092 = vmax.f32 %v6060, 0.0
      %v6093 = vmax.f32 %v6061, 0.0
      %v6094 = vmax.f32 %v6062, 0.0
      %v6095 = vmax.f32 %v6063, 0.0
      %v6096 = vmax.f32 %v6064, 0.0
      %v6097 = vmax.f32 %v6065, 0.0
      %v6098 = vmax.f32 %v6066, 0.0
      %v6099 = vmax.f32 %v6067, 0.0
      %v6100 = vmax.f32 %v6068, 0.0
      %v6101 = vmax.f32 %v6069, 0.0
      %v6102 = vmax.f32 %v6070, 0.0
      %v6103 = vmax.f32 %v6071, 0.0
      %v6104 = vmax.f32 %v6072, 0.0
      %v6105 = vmax.f32 %v6073, 0.0
      %v6106 = vmax.f32 %v6074, 0.0
      %v6107 = vmax.f32 %v6075, 0.0
      %vm6108 = vcmask 257024
      %6109 = vst.msk [vmem:[#allocation3] sm:$0xf] %vm6108, 0
      %6110 = vst.msk [vmem:[#allocation3 + $0x4] sm:$0xf] %vm6108, 0
      %6111 = vst.msk [vmem:[#allocation3 + $0x8] sm:$0xf] %vm6108, 0
      %6112 = vst.msk [vmem:[#allocation3 + $0xc] sm:$0xf] %vm6108, 0
      %6113 = vst.msk [vmem:[#allocation3 + $0x10] sm:$0xf] %vm6108, 0
      %6114 = vst.msk [vmem:[#allocation3 + $0x14] sm:$0xf] %vm6108, 0
      %6115 = vst.msk [vmem:[#allocation3 + $0x18] sm:$0xf] %vm6108, 0
      %6116 = vst.msk [vmem:[#allocation3 + $0x1c] sm:$0xf] %vm6108, 0
      %6117 = vst.msk [vmem:[#allocation3 + $0x20] sm:$0xf] %vm6108, 0
      %6118 = vst.msk [vmem:[#allocation3 + $0x24] sm:$0xf] %vm6108, 0
      %6119 = vst.msk [vmem:[#allocation3 + $0x28] sm:$0xf] %vm6108, 0
      %6120 = vst.msk [vmem:[#allocation3 + $0x2c] sm:$0xf] %vm6108, 0
      %6121 = vst.msk [vmem:[#allocation3 + $0x30] sm:$0xf] %vm6108, 0
      %6122 = vst.msk [vmem:[#allocation3 + $0x34] sm:$0xf] %vm6108, 0
      %6123 = vst.msk [vmem:[#allocation3 + $0x38] sm:$0xf] %vm6108, 0
      %6124 = vst.msk [vmem:[#allocation3 + $0x3c] sm:$0xf] %vm6108, 0
      %6125 = vst.msk [vmem:[#allocation3 + $0x40] sm:$0xf] %vm6108, 0
      %6126 = vst.msk [vmem:[#allocation3 + $0x44] sm:$0xf] %vm6108, 0
      %6127 = vst.msk [vmem:[#allocation3 + $0x48] sm:$0xf] %vm6108, 0
      %6128 = vst.msk [vmem:[#allocation3 + $0x4c] sm:$0xf] %vm6108, 0
      %6129 = vst.msk [vmem:[#allocation3 + $0x50] sm:$0xf] %vm6108, 0
      %6130 = vst.msk [vmem:[#allocation3 + $0x54] sm:$0xf] %vm6108, 0
      %6131 = vst.msk [vmem:[#allocation3 + $0x58] sm:$0xf] %vm6108, 0
      %6132 = vst.msk [vmem:[#allocation3 + $0x5c] sm:$0xf] %vm6108, 0
      %6133 = vst.msk [vmem:[#allocation3 + $0x60] sm:$0xf] %vm6108, 0
      %6134 = vst.msk [vmem:[#allocation3 + $0x64] sm:$0xf] %vm6108, 0
      %6135 = vst.msk [vmem:[#allocation3 + $0x68] sm:$0xf] %vm6108, 0
      %6136 = vst.msk [vmem:[#allocation3 + $0x6c] sm:$0xf] %vm6108, 0
      %6137 = vst.msk [vmem:[#allocation3 + $0x70] sm:$0xf] %vm6108, 0
      %6138 = vst.msk [vmem:[#allocation3 + $0x74] sm:$0xf] %vm6108, 0
      %6139 = vst.msk [vmem:[#allocation3 + $0x78] sm:$0xf] %vm6108, 0
      %6140 = vst.msk [vmem:[#allocation3 + $0x7c] sm:$0xf] %vm6108, 0
      %6141 = vst.msk [vmem:[#allocation3 + $0x80] sm:$0xf] %vm6108, 0
      %6142 = vst.msk [vmem:[#allocation3 + $0x84] sm:$0xf] %vm6108, 0
      %6143 = vst.msk [vmem:[#allocation3 + $0x88] sm:$0xf] %vm6108, 0
      %6144 = vst.msk [vmem:[#allocation3 + $0x8c] sm:$0xf] %vm6108, 0
      %6145 = vst.msk [vmem:[#allocation3 + $0x90] sm:$0xf] %vm6108, 0
      %6146 = vst.msk [vmem:[#allocation3 + $0x94] sm:$0xf] %vm6108, 0
      %v6147 = vpack.c.bf16 %v6076, %v6076
      %v6148 = vpack.c.bf16 %v6077, %v6077
      %v6149 = vpack.c.bf16 %v6078, %v6078
      %v6150 = vpack.c.bf16 %v6079, %v6079
      %v6151 = vpack.c.bf16 %v6080, %v6080
      %v6152 = vpack.c.bf16 %v6081, %v6081
      %v6153 = vpack.c.bf16 %v6082, %v6082
      %v6154 = vpack.c.bf16 %v6083, %v6083
      %v6155 = vpack.c.bf16 %v6084, %v6084
      %v6156 = vpack.c.bf16 %v6085, %v6085
      %v6157 = vpack.c.bf16 %v6086, %v6086
      %v6158 = vpack.c.bf16 %v6087, %v6087
      %v6159 = vpack.c.bf16 %v6088, %v6088
      %v6160 = vpack.c.bf16 %v6089, %v6089
      %v6161 = vpack.c.bf16 %v6090, %v6090
      %v6162 = vpack.c.bf16 %v6091, %v6091
      %v6163 = vpack.c.bf16 %v6092, %v6092
      %v6164 = vpack.c.bf16 %v6093, %v6093
      %v6165 = vpack.c.bf16 %v6094, %v6094
      %v6166 = vpack.c.bf16 %v6095, %v6095
      %v6167 = vpack.c.bf16 %v6096, %v6096
      %v6168 = vpack.c.bf16 %v6097, %v6097
      %v6169 = vpack.c.bf16 %v6098, %v6098
      %v6170 = vpack.c.bf16 %v6099, %v6099
      %v6171 = vpack.c.bf16 %v6100, %v6100
      %v6172 = vpack.c.bf16 %v6101, %v6101
      %v6173 = vpack.c.bf16 %v6102, %v6102
      %v6174 = vpack.c.bf16 %v6103, %v6103
      %v6175 = vpack.c.bf16 %v6104, %v6104
      %v6176 = vpack.c.bf16 %v6105, %v6105
      %v6177 = vpack.c.bf16 %v6106, %v6106
      %v6178 = vpack.c.bf16 %v6107, %v6107
      %6179 = vst.msk [vmem:[#allocation3 + $0xc] sm:$0xf] %vm6108, %v6147
      %6180 = vst.msk [vmem:[#allocation3 + $0x10] sm:$0xf] %vm6108, %v6148
      %6181 = vst.msk [vmem:[#allocation3 + $0x14] sm:$0xf] %vm6108, %v6149
      %6182 = vst.msk [vmem:[#allocation3 + $0x18] sm:$0xf] %vm6108, %v6150
      %6183 = vst.msk [vmem:[#allocation3 + $0x1c] sm:$0xf] %vm6108, %v6151
      %6184 = vst.msk [vmem:[#allocation3 + $0x20] sm:$0xf] %vm6108, %v6152
      %6185 = vst.msk [vmem:[#allocation3 + $0x24] sm:$0xf] %vm6108, %v6153
      %6186 = vst.msk [vmem:[#allocation3 + $0x28] sm:$0xf] %vm6108, %v6154
      %6187 = vst.msk [vmem:[#allocation3 + $0x2c] sm:$0xf] %vm6108, %v6155
      %6188 = vst.msk [vmem:[#allocation3 + $0x30] sm:$0xf] %vm6108, %v6156
      %6189 = vst.msk [vmem:[#allocation3 + $0x34] sm:$0xf] %vm6108, %v6157
      %6190 = vst.msk [vmem:[#allocation3 + $0x38] sm:$0xf] %vm6108, %v6158
      %6191 = vst.msk [vmem:[#allocation3 + $0x3c] sm:$0xf] %vm6108, %v6159
      %6192 = vst.msk [vmem:[#allocation3 + $0x40] sm:$0xf] %vm6108, %v6160
      %6193 = vst.msk [vmem:[#allocation3 + $0x44] sm:$0xf] %vm6108, %v6161
      %6194 = vst.msk [vmem:[#allocation3 + $0x48] sm:$0xf] %vm6108, %v6162
      %6195 = vst.msk [vmem:[#allocation3 + $0x4c] sm:$0xf] %vm6108, %v6163
      %6196 = vst.msk [vmem:[#allocation3 + $0x50] sm:$0xf] %vm6108, %v6164
      %6197 = vst.msk [vmem:[#allocation3 + $0x54] sm:$0xf] %vm6108, %v6165
      %6198 = vst.msk [vmem:[#allocation3 + $0x58] sm:$0xf] %vm6108, %v6166
      %6199 = vst.msk [vmem:[#allocation3 + $0x5c] sm:$0xf] %vm6108, %v6167
      %6200 = vst.msk [vmem:[#allocation3 + $0x60] sm:$0xf] %vm6108, %v6168
      %6201 = vst.msk [vmem:[#allocation3 + $0x64] sm:$0xf] %vm6108, %v6169
      %6202 = vst.msk [vmem:[#allocation3 + $0x68] sm:$0xf] %vm6108, %v6170
      %6203 = vst.msk [vmem:[#allocation3 + $0x6c] sm:$0xf] %vm6108, %v6171
      %6204 = vst.msk [vmem:[#allocation3 + $0x70] sm:$0xf] %vm6108, %v6172
      %6205 = vst.msk [vmem:[#allocation3 + $0x74] sm:$0xf] %vm6108, %v6173
      %6206 = vst.msk [vmem:[#allocation3 + $0x78] sm:$0xf] %vm6108, %v6174
      %6207 = vst.msk [vmem:[#allocation3 + $0x7c] sm:$0xf] %vm6108, %v6175
      %6208 = vst.msk [vmem:[#allocation3 + $0x80] sm:$0xf] %vm6108, %v6176
      %6209 = vst.msk [vmem:[#allocation3 + $0x84] sm:$0xf] %vm6108, %v6177
      %6210 = vst.msk [vmem:[#allocation3 + $0x88] sm:$0xf] %vm6108, %v6178
      %v6211 = vld [vmem:[#allocation3] sm:$0x8]
      %v6212 = vld [vmem:[#allocation3 + $0x4] sm:$0xf]
      %v6213 = vld [vmem:[#allocation3 + $0x8] sm:$0xf]
      %v6214 = vld [vmem:[#allocation3 + $0xc] sm:$0xf]
      %v6215 = vld [vmem:[#allocation3 + $0x10] sm:$0xf]
      %v6216 = vld [vmem:[#allocation3 + $0x14] sm:$0xf]
      %v6217 = vld [vmem:[#allocation3 + $0x18] sm:$0xf]
      %v6218 = vld [vmem:[#allocation3 + $0x1c] sm:$0xf]
      %v6219 = vld [vmem:[#allocation3 + $0x20] sm:$0xf]
      %v6220 = vld [vmem:[#allocation3 + $0x24] sm:$0xf]
      %v6221 = vld [vmem:[#allocation3 + $0x28] sm:$0xf]
      %v6222 = vld [vmem:[#allocation3 + $0x2c] sm:$0xf]
      %v6223 = vld [vmem:[#allocation3 + $0x30] sm:$0xf]
      %v6224 = vld [vmem:[#allocation3 + $0x34] sm:$0xf]
      %v6225 = vld [vmem:[#allocation3 + $0x38] sm:$0xf]
      %v6226 = vld [vmem:[#allocation3 + $0x3c] sm:$0xf]
      %v6227 = vld [vmem:[#allocation3 + $0x40] sm:$0xf]
      %v6228 = vld [vmem:[#allocation3 + $0x44] sm:$0xf]
      %v6229 = vld [vmem:[#allocation3 + $0x48] sm:$0xf]
      %v6230 = vld [vmem:[#allocation3 + $0x4c] sm:$0xf]
      %v6231 = vld [vmem:[#allocation3 + $0x50] sm:$0xf]
      %v6232 = vld [vmem:[#allocation3 + $0x54] sm:$0xf]
      %v6233 = vld [vmem:[#allocation3 + $0x58] sm:$0xf]
      %v6234 = vld [vmem:[#allocation3 + $0x5c] sm:$0xf]
      %v6235 = vld [vmem:[#allocation3 + $0x60] sm:$0xf]
      %v6236 = vld [vmem:[#allocation3 + $0x64] sm:$0xf]
      %v6237 = vld [vmem:[#allocation3 + $0x68] sm:$0xf]
      %v6238 = vld [vmem:[#allocation3 + $0x6c] sm:$0xf]
      %v6239 = vld [vmem:[#allocation3 + $0x70] sm:$0xf]
      %v6240 = vld [vmem:[#allocation3 + $0x74] sm:$0xf]
      %v6241 = vld [vmem:[#allocation3 + $0x78] sm:$0xf]
      %v6242 = vld [vmem:[#allocation3 + $0x7c] sm:$0xf]
      %v6243 = vld [vmem:[#allocation3 + $0x80] sm:$0xf]
      %v6244 = vsel %vm1577, %v6211, 0
      %v6245 = vsel %vm1584, %v6212, 0
      %v6246 = vsel %vm1591, %v6213, 0
      %v6247 = vsel %vm1598, %v6214, 0
      %v6248 = vsel %vm1605, %v6215, 0
      %v6249 = vsel %vm1612, %v6216, 0
      %v6250 = vsel %vm1619, %v6217, 0
      %v6251 = vsel %vm1626, %v6218, 0
      %v6252 = vsel %vm1633, %v6219, 0
      %v6253 = vsel %vm1640, %v6220, 0
      %v6254 = vsel %vm1647, %v6221, 0
      %v6255 = vsel %vm1654, %v6222, 0
      %v6256 = vsel %vm1661, %v6223, 0
      %v6257 = vsel %vm1668, %v6224, 0
      %v6258 = vsel %vm1675, %v6225, 0
      %v6259 = vsel %vm1682, %v6226, 0
      %v6260 = vsel %vm1689, %v6227, 0
      %v6261 = vsel %vm1696, %v6228, 0
      %v6262 = vsel %vm1703, %v6229, 0
      %v6263 = vsel %vm1710, %v6230, 0
      %v6264 = vsel %vm1717, %v6231, 0
      %v6265 = vsel %vm1724, %v6232, 0
      %v6266 = vsel %vm1731, %v6233, 0
      %v6267 = vsel %vm1738, %v6234, 0
      %v6268 = vsel %vm1745, %v6235, 0
      %v6269 = vsel %vm1752, %v6236, 0
      %v6270 = vsel %vm1759, %v6237, 0
      %v6271 = vsel %vm1766, %v6238, 0
      %v6272 = vsel %vm1773, %v6239, 0
      %v6273 = vsel %vm1780, %v6240, 0
      %v6274 = vsel %vm1787, %v6241, 0
      %v6275 = vsel %vm1794, %v6242, 0
      %v6276 = vsel %vm1801, %v6243, 0
      %v6277 = vld [vmem:[%s5] sm:$0xf]
      %v6278 = vld [vmem:[%s5 + $0x4] sm:$0xf]
      %v6279 = vld [vmem:[%s5 + $0x8] sm:$0xf]
      %v6280 = vld [vmem:[%s5 + $0xc] sm:$0xf]
      %s6281 = scalar_lea.vmem %s5, 16
      %v6282 = vld [vmem:[%s6281] sm:$0xf]
      %v6283 = vld [vmem:[%s6281 + $0x4] sm:$0xf]
      %v6284 = vld [vmem:[%s6281 + $0x8] sm:$0xf]
      %v6285 = vld [vmem:[%s6281 + $0xc] sm:$0xf]
      %v6318 = vunpack.c.l.b16 %v6212
      %v6319 = vunpack.c.l.b16 %v6213
      %v6320 = vunpack.c.l.b16 %v6214
      %v6321 = vunpack.c.l.b16 %v6215
      %v6322 = vunpack.c.l.b16 %v6216
      %v6323 = vunpack.c.l.b16 %v6217
      %v6324 = vunpack.c.l.b16 %v6218
      %v6325 = vunpack.c.l.b16 %v6219
      %v6326 = vunpack.c.l.b16 %v6220
      %v6327 = vunpack.c.l.b16 %v6221
      %v6328 = vunpack.c.l.b16 %v6222
      %v6329 = vunpack.c.l.b16 %v6223
      %v6330 = vunpack.c.l.b16 %v6224
      %v6331 = vunpack.c.l.b16 %v6225
      %v6332 = vunpack.c.l.b16 %v6226
      %v6333 = vunpack.c.l.b16 %v6227
      %v6334 = vunpack.c.l.b16 %v6228
      %v6335 = vunpack.c.l.b16 %v6229
      %v6336 = vunpack.c.l.b16 %v6230
      %v6337 = vunpack.c.l.b16 %v6231
      %v6338 = vunpack.c.l.b16 %v6232
      %v6339 = vunpack.c.l.b16 %v6233
      %v6340 = vunpack.c.l.b16 %v6234
      %v6341 = vunpack.c.l.b16 %v6235
      %v6342 = vunpack.c.l.b16 %v6236
      %v6343 = vunpack.c.l.b16 %v6237
      %v6344 = vunpack.c.l.b16 %v6238
      %v6345 = vunpack.c.l.b16 %v6239
      %v6346 = vunpack.c.l.b16 %v6240
      %v6347 = vunpack.c.l.b16 %v6241
      %v6348 = vunpack.c.l.b16 %v6242
      %v6349 = vunpack.c.l.b16 %v6243
      %v6350 = vpack.c.b16 %v6319, %v6318
      %v6351 = vpack.c.b16 %v6321, %v6320
      %v6352 = vpack.c.b16 %v6323, %v6322
      %v6353 = vpack.c.b16 %v6325, %v6324
      %v6354 = vpack.c.b16 %v6327, %v6326
      %v6355 = vpack.c.b16 %v6329, %v6328
      %v6356 = vpack.c.b16 %v6331, %v6330
      %v6357 = vpack.c.b16 %v6333, %v6332
      %v6358 = vpack.c.b16 %v6335, %v6334
      %v6359 = vpack.c.b16 %v6337, %v6336
      %v6360 = vpack.c.b16 %v6339, %v6338
      %v6361 = vpack.c.b16 %v6341, %v6340
      %v6362 = vpack.c.b16 %v6343, %v6342
      %v6363 = vpack.c.b16 %v6345, %v6344
      %v6364 = vpack.c.b16 %v6347, %v6346
      %v6365 = vpack.c.b16 %v6349, %v6348
      %v6370 = vunpack.c.l.b16 %v6282
      %v6371 = vunpack.c.l.b16 %v6283
      %v6372 = vunpack.c.l.b16 %v6284
      %v6373 = vunpack.c.l.b16 %v6285
      %v6374 = vpack.c.b16 %v6371, %v6370
      %v6375 = vpack.c.b16 %v6373, %v6372
      %vm6378 = vcmask 261120
      %v6380 = vsel %vm6378, %v6350, 0
      %v6383 = vsel %vm6378, %v6351, 0
      %v6386 = vsel %vm6378, %v6352, 0
      %v6389 = vsel %vm6378, %v6353, 0
      %v6392 = vsel %vm6378, %v6354, 0
      %v6395 = vsel %vm6378, %v6355, 0
      %v6398 = vsel %vm6378, %v6356, 0
      %v6401 = vsel %vm6378, %v6357, 0
      %v6404 = vsel %vm6378, %v6358, 0
      %v6407 = vsel %vm6378, %v6359, 0
      %v6410 = vsel %vm6378, %v6360, 0
      %v6413 = vsel %vm6378, %v6361, 0
      %v6416 = vsel %vm6378, %v6362, 0
      %v6419 = vsel %vm6378, %v6363, 0
      %v6422 = vsel %vm6378, %v6364, 0
      %v6425 = vsel %vm6378, %v6365, 0
      %6427 = vmatpush.bf16.msra.mxu0 0
      %6428 = vmatpush.bf16.msra.mxu0 0
      %6429 = vmatpush.bf16.msra.mxu0 0
      %6430 = vmatpush.bf16.msra.mxu0 0
      %6431 = vmatpush.bf16.msra.mxu0 0
      %6432 = vmatpush.bf16.msra.mxu0 0
      %6433 = vmatpush.bf16.msra.mxu0 %v6375
      %6434 = vmatpush.bf16.msra.mxu0 %v6374
      %6435 = vmatmul.bf16.gmra.mxu0 %v6380
      %v6436 = vpop.f32.mrf.mxu0
      %v6437 = vadd.f32 0.0, %v6436
      %v6438 = vpop.f32.mrf.mxu0
      %v6439 = vadd.f32 0.0, %v6438
      %6440 = vmatmul.bf16.gmra.mxu0 %v6383
      %v6441 = vpop.f32.mrf.mxu0
      %v6442 = vadd.f32 0.0, %v6441
      %v6443 = vpop.f32.mrf.mxu0
      %v6444 = vadd.f32 0.0, %v6443
      %6445 = vmatmul.bf16.gmra.mxu0 %v6386
      %v6446 = vpop.f32.mrf.mxu0
      %v6447 = vadd.f32 0.0, %v6446
      %v6448 = vpop.f32.mrf.mxu0
      %v6449 = vadd.f32 0.0, %v6448
      %6450 = vmatmul.bf16.gmra.mxu0 %v6389
      %v6451 = vpop.f32.mrf.mxu0
      %v6452 = vadd.f32 0.0, %v6451
      %v6453 = vpop.f32.mrf.mxu0
      %v6454 = vadd.f32 0.0, %v6453
      %6455 = vmatmul.bf16.gmra.mxu0 %v6392
      %v6456 = vpop.f32.mrf.mxu0
      %v6457 = vadd.f32 0.0, %v6456
      %v6458 = vpop.f32.mrf.mxu0
      %v6459 = vadd.f32 0.0, %v6458
      %6460 = vmatmul.bf16.gmra.mxu0 %v6395
      %v6461 = vpop.f32.mrf.mxu0
      %v6462 = vadd.f32 0.0, %v6461
      %v6463 = vpop.f32.mrf.mxu0
      %v6464 = vadd.f32 0.0, %v6463
      %6465 = vmatmul.bf16.gmra.mxu0 %v6398
      %v6466 = vpop.f32.mrf.mxu0
      %v6467 = vadd.f32 0.0, %v6466
      %v6468 = vpop.f32.mrf.mxu0
      %v6469 = vadd.f32 0.0, %v6468
      %6470 = vmatmul.bf16.gmra.mxu0 %v6401
      %v6471 = vpop.f32.mrf.mxu0
      %v6472 = vadd.f32 0.0, %v6471
      %v6473 = vpop.f32.mrf.mxu0
      %v6474 = vadd.f32 0.0, %v6473
      %6475 = vmatmul.bf16.gmra.mxu0 %v6404
      %v6476 = vpop.f32.mrf.mxu0
      %v6477 = vadd.f32 0.0, %v6476
      %v6478 = vpop.f32.mrf.mxu0
      %v6479 = vadd.f32 0.0, %v6478
      %6480 = vmatmul.bf16.gmra.mxu0 %v6407
      %v6481 = vpop.f32.mrf.mxu0
      %v6482 = vadd.f32 0.0, %v6481
      %v6483 = vpop.f32.mrf.mxu0
      %v6484 = vadd.f32 0.0, %v6483
      %6485 = vmatmul.bf16.gmra.mxu0 %v6410
      %v6486 = vpop.f32.mrf.mxu0
      %v6487 = vadd.f32 0.0, %v6486
      %v6488 = vpop.f32.mrf.mxu0
      %v6489 = vadd.f32 0.0, %v6488
      %6490 = vmatmul.bf16.gmra.mxu0 %v6413
      %v6491 = vpop.f32.mrf.mxu0
      %v6492 = vadd.f32 0.0, %v6491
      %v6493 = vpop.f32.mrf.mxu0
      %v6494 = vadd.f32 0.0, %v6493
      %6495 = vmatmul.bf16.gmra.mxu0 %v6416
      %v6496 = vpop.f32.mrf.mxu0
      %v6497 = vadd.f32 0.0, %v6496
      %v6498 = vpop.f32.mrf.mxu0
      %v6499 = vadd.f32 0.0, %v6498
      %6500 = vmatmul.bf16.gmra.mxu0 %v6419
      %v6501 = vpop.f32.mrf.mxu0
      %v6502 = vadd.f32 0.0, %v6501
      %v6503 = vpop.f32.mrf.mxu0
      %v6504 = vadd.f32 0.0, %v6503
      %6505 = vmatmul.bf16.gmra.mxu0 %v6422
      %v6506 = vpop.f32.mrf.mxu0
      %v6507 = vadd.f32 0.0, %v6506
      %v6508 = vpop.f32.mrf.mxu0
      %v6509 = vadd.f32 0.0, %v6508
      %6510 = vmatmul.bf16.gmra.mxu0 %v6425
      %v6511 = vpop.f32.mrf.mxu0
      %v6512 = vadd.f32 0.0, %v6511
      %v6513 = vpop.f32.mrf.mxu0
      %v6514 = vadd.f32 0.0, %v6513
      %6515 = vdwg.mxu0
      %v6549 = vunpack.c.l.b16 %v6244
      %v6550 = vunpack.c.l.b16 %v6245
      %v6551 = vunpack.c.l.b16 %v6246
      %v6552 = vunpack.c.l.b16 %v6247
      %v6553 = vunpack.c.l.b16 %v6248
      %v6554 = vunpack.c.l.b16 %v6249
      %v6555 = vunpack.c.l.b16 %v6250
      %v6556 = vunpack.c.l.b16 %v6251
      %v6557 = vunpack.c.l.b16 %v6252
      %v6558 = vunpack.c.l.b16 %v6253
      %v6559 = vunpack.c.l.b16 %v6254
      %v6560 = vunpack.c.l.b16 %v6255
      %v6561 = vunpack.c.l.b16 %v6256
      %v6562 = vunpack.c.l.b16 %v6257
      %v6563 = vunpack.c.l.b16 %v6258
      %v6564 = vunpack.c.l.b16 %v6259
      %v6565 = vunpack.c.l.b16 %v6260
      %v6566 = vunpack.c.l.b16 %v6261
      %v6567 = vunpack.c.l.b16 %v6262
      %v6568 = vunpack.c.l.b16 %v6263
      %v6569 = vunpack.c.l.b16 %v6264
      %v6570 = vunpack.c.l.b16 %v6265
      %v6571 = vunpack.c.l.b16 %v6266
      %v6572 = vunpack.c.l.b16 %v6267
      %v6573 = vunpack.c.l.b16 %v6268
      %v6574 = vunpack.c.l.b16 %v6269
      %v6575 = vunpack.c.l.b16 %v6270
      %v6576 = vunpack.c.l.b16 %v6271
      %v6577 = vunpack.c.l.b16 %v6272
      %v6578 = vunpack.c.l.b16 %v6273
      %v6579 = vunpack.c.l.b16 %v6274
      %v6580 = vunpack.c.l.b16 %v6275
      %v6581 = vunpack.c.l.b16 %v6276
      %v6582 = vpack.c.b16 %v6550, %v6549
      %v6583 = vpack.c.b16 %v6552, %v6551
      %v6584 = vpack.c.b16 %v6554, %v6553
      %v6585 = vpack.c.b16 %v6556, %v6555
      %v6586 = vpack.c.b16 %v6558, %v6557
      %v6587 = vpack.c.b16 %v6560, %v6559
      %v6588 = vpack.c.b16 %v6562, %v6561
      %v6589 = vpack.c.b16 %v6564, %v6563
      %v6590 = vpack.c.b16 %v6566, %v6565
      %v6591 = vpack.c.b16 %v6568, %v6567
      %v6592 = vpack.c.b16 %v6570, %v6569
      %v6593 = vpack.c.b16 %v6572, %v6571
      %v6594 = vpack.c.b16 %v6574, %v6573
      %v6595 = vpack.c.b16 %v6576, %v6575
      %v6596 = vpack.c.b16 %v6578, %v6577
      %v6597 = vpack.c.b16 %v6580, %v6579
      %v6598 = vpack.c.b16 %v6581, %v6581
      %v6600 = vshrl.u32 %v6582, 16
      %v6602 = vrot.slane %v6600, 3
      %v6603 = vshll.u32 %v6582, 16
      %v6605 = vrot.slane %v6603, 4
      %v6606 = vor.u32 %v6602, %v6605
      %v6608 = vshrl.u32 %v6583, 16
      %v6610 = vrot.slane %v6608, 3
      %v6611 = vshll.u32 %v6583, 16
      %v6613 = vrot.slane %v6611, 4
      %v6614 = vor.u32 %v6610, %v6613
      %v6615 = vsel %vm2146, %v6606, %v6614
      %v6617 = vshrl.u32 %v6584, 16
      %v6619 = vrot.slane %v6617, 3
      %v6620 = vshll.u32 %v6584, 16
      %v6622 = vrot.slane %v6620, 4
      %v6623 = vor.u32 %v6619, %v6622
      %v6624 = vsel %vm2146, %v6614, %v6623
      %v6626 = vshrl.u32 %v6585, 16
      %v6628 = vrot.slane %v6626, 3
      %v6629 = vshll.u32 %v6585, 16
      %v6631 = vrot.slane %v6629, 4
      %v6632 = vor.u32 %v6628, %v6631
      %v6633 = vsel %vm2146, %v6623, %v6632
      %v6635 = vshrl.u32 %v6586, 16
      %v6637 = vrot.slane %v6635, 3
      %v6638 = vshll.u32 %v6586, 16
      %v6640 = vrot.slane %v6638, 4
      %v6641 = vor.u32 %v6637, %v6640
      %v6642 = vsel %vm2146, %v6632, %v6641
      %v6644 = vshrl.u32 %v6587, 16
      %v6646 = vrot.slane %v6644, 3
      %v6647 = vshll.u32 %v6587, 16
      %v6649 = vrot.slane %v6647, 4
      %v6650 = vor.u32 %v6646, %v6649
      %v6651 = vsel %vm2146, %v6641, %v6650
      %v6653 = vshrl.u32 %v6588, 16
      %v6655 = vrot.slane %v6653, 3
      %v6656 = vshll.u32 %v6588, 16
      %v6658 = vrot.slane %v6656, 4
      %v6659 = vor.u32 %v6655, %v6658
      %v6660 = vsel %vm2146, %v6650, %v6659
      %v6662 = vshrl.u32 %v6589, 16
      %v6664 = vrot.slane %v6662, 3
      %v6665 = vshll.u32 %v6589, 16
      %v6667 = vrot.slane %v6665, 4
      %v6668 = vor.u32 %v6664, %v6667
      %v6669 = vsel %vm2146, %v6659, %v6668
      %v6671 = vshrl.u32 %v6590, 16
      %v6673 = vrot.slane %v6671, 3
      %v6674 = vshll.u32 %v6590, 16
      %v6676 = vrot.slane %v6674, 4
      %v6677 = vor.u32 %v6673, %v6676
      %v6678 = vsel %vm2146, %v6668, %v6677
      %v6680 = vshrl.u32 %v6591, 16
      %v6682 = vrot.slane %v6680, 3
      %v6683 = vshll.u32 %v6591, 16
      %v6685 = vrot.slane %v6683, 4
      %v6686 = vor.u32 %v6682, %v6685
      %v6687 = vsel %vm2146, %v6677, %v6686
      %v6689 = vshrl.u32 %v6592, 16
      %v6691 = vrot.slane %v6689, 3
      %v6692 = vshll.u32 %v6592, 16
      %v6694 = vrot.slane %v6692, 4
      %v6695 = vor.u32 %v6691, %v6694
      %v6696 = vsel %vm2146, %v6686, %v6695
      %v6698 = vshrl.u32 %v6593, 16
      %v6700 = vrot.slane %v6698, 3
      %v6701 = vshll.u32 %v6593, 16
      %v6703 = vrot.slane %v6701, 4
      %v6704 = vor.u32 %v6700, %v6703
      %v6705 = vsel %vm2146, %v6695, %v6704
      %v6707 = vshrl.u32 %v6594, 16
      %v6709 = vrot.slane %v6707, 3
      %v6710 = vshll.u32 %v6594, 16
      %v6712 = vrot.slane %v6710, 4
      %v6713 = vor.u32 %v6709, %v6712
      %v6714 = vsel %vm2146, %v6704, %v6713
      %v6716 = vshrl.u32 %v6595, 16
      %v6718 = vrot.slane %v6716, 3
      %v6719 = vshll.u32 %v6595, 16
      %v6721 = vrot.slane %v6719, 4
      %v6722 = vor.u32 %v6718, %v6721
      %v6723 = vsel %vm2146, %v6713, %v6722
      %v6725 = vshrl.u32 %v6596, 16
      %v6727 = vrot.slane %v6725, 3
      %v6728 = vshll.u32 %v6596, 16
      %v6730 = vrot.slane %v6728, 4
      %v6731 = vor.u32 %v6727, %v6730
      %v6732 = vsel %vm2146, %v6722, %v6731
      %v6734 = vshrl.u32 %v6597, 16
      %v6736 = vrot.slane %v6734, 3
      %v6737 = vshll.u32 %v6597, 16
      %v6739 = vrot.slane %v6737, 4
      %v6740 = vor.u32 %v6736, %v6739
      %v6741 = vsel %vm2146, %v6731, %v6740
      %v6743 = vshrl.u32 %v6598, 16
      %v6745 = vrot.slane %v6743, 3
      %v6746 = vshll.u32 %v6598, 16
      %v6748 = vrot.slane %v6746, 4
      %v6749 = vor.u32 %v6745, %v6748
      %v6750 = vsel %vm2146, %v6740, %v6749
      %v6755 = vunpack.c.l.b16 %v6277
      %v6756 = vunpack.c.l.b16 %v6278
      %v6757 = vunpack.c.l.b16 %v6279
      %v6758 = vunpack.c.l.b16 %v6280
      %v6759 = vpack.c.b16 %v6756, %v6755
      %v6760 = vpack.c.b16 %v6758, %v6757
      %v6764 = vsel %vm6378, %v6615, 0
      %v6767 = vsel %vm6378, %v6624, 0
      %v6770 = vsel %vm6378, %v6633, 0
      %v6773 = vsel %vm6378, %v6642, 0
      %v6776 = vsel %vm6378, %v6651, 0
      %v6779 = vsel %vm6378, %v6660, 0
      %v6782 = vsel %vm6378, %v6669, 0
      %v6785 = vsel %vm6378, %v6678, 0
      %v6788 = vsel %vm6378, %v6687, 0
      %v6791 = vsel %vm6378, %v6696, 0
      %v6794 = vsel %vm6378, %v6705, 0
      %v6797 = vsel %vm6378, %v6714, 0
      %v6800 = vsel %vm6378, %v6723, 0
      %v6803 = vsel %vm6378, %v6732, 0
      %v6806 = vsel %vm6378, %v6741, 0
      %v6809 = vsel %vm6378, %v6750, 0
      %6811 = vmatpush.bf16.msra.mxu0 0
      %6812 = vmatpush.bf16.msra.mxu0 0
      %6813 = vmatpush.bf16.msra.mxu0 0
      %6814 = vmatpush.bf16.msra.mxu0 0
      %6815 = vmatpush.bf16.msra.mxu0 0
      %6816 = vmatpush.bf16.msra.mxu0 0
      %6817 = vmatpush.bf16.msra.mxu0 %v6760
      %6818 = vmatpush.bf16.msra.mxu0 %v6759
      %6819 = vmatmul.bf16.gmra.mxu0 %v6764
      %v6820 = vpop.f32.mrf.mxu0
      %v6821 = vadd.f32 %v6437, %v6820
      %v6822 = vpop.f32.mrf.mxu0
      %v6823 = vadd.f32 %v6439, %v6822
      %6824 = vmatmul.bf16.gmra.mxu0 %v6767
      %v6825 = vpop.f32.mrf.mxu0
      %v6826 = vadd.f32 %v6442, %v6825
      %v6827 = vpop.f32.mrf.mxu0
      %v6828 = vadd.f32 %v6444, %v6827
      %6829 = vmatmul.bf16.gmra.mxu0 %v6770
      %v6830 = vpop.f32.mrf.mxu0
      %v6831 = vadd.f32 %v6447, %v6830
      %v6832 = vpop.f32.mrf.mxu0
      %v6833 = vadd.f32 %v6449, %v6832
      %6834 = vmatmul.bf16.gmra.mxu0 %v6773
      %v6835 = vpop.f32.mrf.mxu0
      %v6836 = vadd.f32 %v6452, %v6835
      %v6837 = vpop.f32.mrf.mxu0
      %v6838 = vadd.f32 %v6454, %v6837
      %6839 = vmatmul.bf16.gmra.mxu0 %v6776
      %v6840 = vpop.f32.mrf.mxu0
      %v6841 = vadd.f32 %v6457, %v6840
      %v6842 = vpop.f32.mrf.mxu0
      %v6843 = vadd.f32 %v6459, %v6842
      %6844 = vmatmul.bf16.gmra.mxu0 %v6779
      %v6845 = vpop.f32.mrf.mxu0
      %v6846 = vadd.f32 %v6462, %v6845
      %v6847 = vpop.f32.mrf.mxu0
      %v6848 = vadd.f32 %v6464, %v6847
      %6849 = vmatmul.bf16.gmra.mxu0 %v6782
      %v6850 = vpop.f32.mrf.mxu0
      %v6851 = vadd.f32 %v6467, %v6850
      %v6852 = vpop.f32.mrf.mxu0
      %v6853 = vadd.f32 %v6469, %v6852
      %6854 = vmatmul.bf16.gmra.mxu0 %v6785
      %v6855 = vpop.f32.mrf.mxu0
      %v6856 = vadd.f32 %v6472, %v6855
      %v6857 = vpop.f32.mrf.mxu0
      %v6858 = vadd.f32 %v6474, %v6857
      %6859 = vmatmul.bf16.gmra.mxu0 %v6788
      %v6860 = vpop.f32.mrf.mxu0
      %v6861 = vadd.f32 %v6477, %v6860
      %v6862 = vpop.f32.mrf.mxu0
      %v6863 = vadd.f32 %v6479, %v6862
      %6864 = vmatmul.bf16.gmra.mxu0 %v6791
      %v6865 = vpop.f32.mrf.mxu0
      %v6866 = vadd.f32 %v6482, %v6865
      %v6867 = vpop.f32.mrf.mxu0
      %v6868 = vadd.f32 %v6484, %v6867
      %6869 = vmatmul.bf16.gmra.mxu0 %v6794
      %v6870 = vpop.f32.mrf.mxu0
      %v6871 = vadd.f32 %v6487, %v6870
      %v6872 = vpop.f32.mrf.mxu0
      %v6873 = vadd.f32 %v6489, %v6872
      %6874 = vmatmul.bf16.gmra.mxu0 %v6797
      %v6875 = vpop.f32.mrf.mxu0
      %v6876 = vadd.f32 %v6492, %v6875
      %v6877 = vpop.f32.mrf.mxu0
      %v6878 = vadd.f32 %v6494, %v6877
      %6879 = vmatmul.bf16.gmra.mxu0 %v6800
      %v6880 = vpop.f32.mrf.mxu0
      %v6881 = vadd.f32 %v6497, %v6880
      %v6882 = vpop.f32.mrf.mxu0
      %v6883 = vadd.f32 %v6499, %v6882
      %6884 = vmatmul.bf16.gmra.mxu0 %v6803
      %v6885 = vpop.f32.mrf.mxu0
      %v6886 = vadd.f32 %v6502, %v6885
      %v6887 = vpop.f32.mrf.mxu0
      %v6888 = vadd.f32 %v6504, %v6887
      %6889 = vmatmul.bf16.gmra.mxu0 %v6806
      %v6890 = vpop.f32.mrf.mxu0
      %v6891 = vadd.f32 %v6507, %v6890
      %v6892 = vpop.f32.mrf.mxu0
      %v6893 = vadd.f32 %v6509, %v6892
      %6894 = vmatmul.bf16.gmra.mxu0 %v6809
      %v6895 = vpop.f32.mrf.mxu0
      %v6896 = vadd.f32 %v6512, %v6895
      %v6897 = vpop.f32.mrf.mxu0
      %v6898 = vadd.f32 %v6514, %v6897
      %6899 = vdwg.mxu0
      %v6900 = vld [vmem:[#allocation3 + $0x4] sm:$0xf]
      %v6901 = vld [vmem:[#allocation3 + $0x8] sm:$0xf]
      %v6902 = vld [vmem:[#allocation3 + $0xc] sm:$0xf]
      %v6903 = vld [vmem:[#allocation3 + $0x10] sm:$0xf]
      %v6904 = vld [vmem:[#allocation3 + $0x14] sm:$0xf]
      %v6905 = vld [vmem:[#allocation3 + $0x18] sm:$0xf]
      %v6906 = vld [vmem:[#allocation3 + $0x1c] sm:$0xf]
      %v6907 = vld [vmem:[#allocation3 + $0x20] sm:$0xf]
      %v6908 = vld [vmem:[#allocation3 + $0x24] sm:$0xf]
      %v6909 = vld [vmem:[#allocation3 + $0x28] sm:$0xf]
      %v6910 = vld [vmem:[#allocation3 + $0x2c] sm:$0xf]
      %v6911 = vld [vmem:[#allocation3 + $0x30] sm:$0xf]
      %v6912 = vld [vmem:[#allocation3 + $0x34] sm:$0xf]
      %v6913 = vld [vmem:[#allocation3 + $0x38] sm:$0xf]
      %v6914 = vld [vmem:[#allocation3 + $0x3c] sm:$0xf]
      %v6915 = vld [vmem:[#allocation3 + $0x40] sm:$0xf]
      %v6916 = vld [vmem:[#allocation3 + $0x44] sm:$0xf]
      %v6917 = vld [vmem:[#allocation3 + $0x48] sm:$0xf]
      %v6918 = vld [vmem:[#allocation3 + $0x4c] sm:$0xf]
      %v6919 = vld [vmem:[#allocation3 + $0x50] sm:$0xf]
      %v6920 = vld [vmem:[#allocation3 + $0x54] sm:$0xf]
      %v6921 = vld [vmem:[#allocation3 + $0x58] sm:$0xf]
      %v6922 = vld [vmem:[#allocation3 + $0x5c] sm:$0xf]
      %v6923 = vld [vmem:[#allocation3 + $0x60] sm:$0xf]
      %v6924 = vld [vmem:[#allocation3 + $0x64] sm:$0xf]
      %v6925 = vld [vmem:[#allocation3 + $0x68] sm:$0xf]
      %v6926 = vld [vmem:[#allocation3 + $0x6c] sm:$0xf]
      %v6927 = vld [vmem:[#allocation3 + $0x70] sm:$0xf]
      %v6928 = vld [vmem:[#allocation3 + $0x74] sm:$0xf]
      %v6929 = vld [vmem:[#allocation3 + $0x78] sm:$0xf]
      %v6930 = vld [vmem:[#allocation3 + $0x7c] sm:$0xf]
      %v6931 = vld [vmem:[#allocation3 + $0x80] sm:$0xf]
      %v6932 = vld [vmem:[#allocation3 + $0x84] sm:$0x1]
      %v6933 = vsel %vm3024, %v6900, 0
      %v6934 = vsel %vm3031, %v6901, 0
      %v6935 = vsel %vm3038, %v6902, 0
      %v6936 = vsel %vm3045, %v6903, 0
      %v6937 = vsel %vm3052, %v6904, 0
      %v6938 = vsel %vm3059, %v6905, 0
      %v6939 = vsel %vm3066, %v6906, 0
      %v6940 = vsel %vm3073, %v6907, 0
      %v6941 = vsel %vm3080, %v6908, 0
      %v6942 = vsel %vm3087, %v6909, 0
      %v6943 = vsel %vm3094, %v6910, 0
      %v6944 = vsel %vm3101, %v6911, 0
      %v6945 = vsel %vm3108, %v6912, 0
      %v6946 = vsel %vm3115, %v6913, 0
      %v6947 = vsel %vm3122, %v6914, 0
      %v6948 = vsel %vm3129, %v6915, 0
      %v6949 = vsel %vm3136, %v6916, 0
      %v6950 = vsel %vm3143, %v6917, 0
      %v6951 = vsel %vm3150, %v6918, 0
      %v6952 = vsel %vm3157, %v6919, 0
      %v6953 = vsel %vm3164, %v6920, 0
      %v6954 = vsel %vm3171, %v6921, 0
      %v6955 = vsel %vm3178, %v6922, 0
      %v6956 = vsel %vm3185, %v6923, 0
      %v6957 = vsel %vm3192, %v6924, 0
      %v6958 = vsel %vm3199, %v6925, 0
      %v6959 = vsel %vm3206, %v6926, 0
      %v6960 = vsel %vm3213, %v6927, 0
      %v6961 = vsel %vm3220, %v6928, 0
      %v6962 = vsel %vm3227, %v6929, 0
      %v6963 = vsel %vm3234, %v6930, 0
      %v6964 = vsel %vm3241, %v6931, 0
      %v6965 = vsel %vm3248, %v6932, 0
      %s6966 = scalar_lea.vmem %s5, 32
      %v6967 = vld [vmem:[%s6966] sm:$0xf]
      %v6968 = vld [vmem:[%s6966 + $0x4] sm:$0xf]
      %v6969 = vld [vmem:[%s6966 + $0x8] sm:$0xf]
      %v6970 = vld [vmem:[%s6966 + $0xc] sm:$0xf]
      %v7004 = vunpack.c.l.b16 %v6933
      %v7005 = vunpack.c.l.b16 %v6934
      %v7006 = vunpack.c.l.b16 %v6935
      %v7007 = vunpack.c.l.b16 %v6936
      %v7008 = vunpack.c.l.b16 %v6937
      %v7009 = vunpack.c.l.b16 %v6938
      %v7010 = vunpack.c.l.b16 %v6939
      %v7011 = vunpack.c.l.b16 %v6940
      %v7012 = vunpack.c.l.b16 %v6941
      %v7013 = vunpack.c.l.b16 %v6942
      %v7014 = vunpack.c.l.b16 %v6943
      %v7015 = vunpack.c.l.b16 %v6944
      %v7016 = vunpack.c.l.b16 %v6945
      %v7017 = vunpack.c.l.b16 %v6946
      %v7018 = vunpack.c.l.b16 %v6947
      %v7019 = vunpack.c.l.b16 %v6948
      %v7020 = vunpack.c.l.b16 %v6949
      %v7021 = vunpack.c.l.b16 %v6950
      %v7022 = vunpack.c.l.b16 %v6951
      %v7023 = vunpack.c.l.b16 %v6952
      %v7024 = vunpack.c.l.b16 %v6953
      %v7025 = vunpack.c.l.b16 %v6954
      %v7026 = vunpack.c.l.b16 %v6955
      %v7027 = vunpack.c.l.b16 %v6956
      %v7028 = vunpack.c.l.b16 %v6957
      %v7029 = vunpack.c.l.b16 %v6958
      %v7030 = vunpack.c.l.b16 %v6959
      %v7031 = vunpack.c.l.b16 %v6960
      %v7032 = vunpack.c.l.b16 %v6961
      %v7033 = vunpack.c.l.b16 %v6962
      %v7034 = vunpack.c.l.b16 %v6963
      %v7035 = vunpack.c.l.b16 %v6964
      %v7036 = vunpack.c.l.b16 %v6965
      %v7037 = vpack.c.b16 %v7005, %v7004
      %v7038 = vpack.c.b16 %v7007, %v7006
      %v7039 = vpack.c.b16 %v7009, %v7008
      %v7040 = vpack.c.b16 %v7011, %v7010
      %v7041 = vpack.c.b16 %v7013, %v7012
      %v7042 = vpack.c.b16 %v7015, %v7014
      %v7043 = vpack.c.b16 %v7017, %v7016
      %v7044 = vpack.c.b16 %v7019, %v7018
      %v7045 = vpack.c.b16 %v7021, %v7020
      %v7046 = vpack.c.b16 %v7023, %v7022
      %v7047 = vpack.c.b16 %v7025, %v7024
      %v7048 = vpack.c.b16 %v7027, %v7026
      %v7049 = vpack.c.b16 %v7029, %v7028
      %v7050 = vpack.c.b16 %v7031, %v7030
      %v7051 = vpack.c.b16 %v7033, %v7032
      %v7052 = vpack.c.b16 %v7035, %v7034
      %v7053 = vpack.c.b16 %v7036, %v7036
      %v7055 = vshrl.u32 %v7037, 16
      %v7057 = vshll.u32 %v7037, 16
      %v7059 = vrot.slane %v7057, 1
      %v7060 = vor.u32 %v7055, %v7059
      %v7062 = vshll.u32 %v7038, 16
      %v7064 = vrot.slane %v7062, 1
      %v7065 = vsel %vm3367, %v7060, %v7064
      %v7066 = vshrl.u32 %v7038, 16
      %v7068 = vor.u32 %v7066, %v7064
      %v7070 = vshll.u32 %v7039, 16
      %v7072 = vrot.slane %v7070, 1
      %v7073 = vsel %vm3367, %v7068, %v7072
      %v7074 = vshrl.u32 %v7039, 16
      %v7076 = vor.u32 %v7074, %v7072
      %v7078 = vshll.u32 %v7040, 16
      %v7080 = vrot.slane %v7078, 1
      %v7081 = vsel %vm3367, %v7076, %v7080
      %v7082 = vshrl.u32 %v7040, 16
      %v7084 = vor.u32 %v7082, %v7080
      %v7086 = vshll.u32 %v7041, 16
      %v7088 = vrot.slane %v7086, 1
      %v7089 = vsel %vm3367, %v7084, %v7088
      %v7090 = vshrl.u32 %v7041, 16
      %v7092 = vor.u32 %v7090, %v7088
      %v7094 = vshll.u32 %v7042, 16
      %v7096 = vrot.slane %v7094, 1
      %v7097 = vsel %vm3367, %v7092, %v7096
      %v7098 = vshrl.u32 %v7042, 16
      %v7100 = vor.u32 %v7098, %v7096
      %v7102 = vshll.u32 %v7043, 16
      %v7104 = vrot.slane %v7102, 1
      %v7105 = vsel %vm3367, %v7100, %v7104
      %v7106 = vshrl.u32 %v7043, 16
      %v7108 = vor.u32 %v7106, %v7104
      %v7110 = vshll.u32 %v7044, 16
      %v7112 = vrot.slane %v7110, 1
      %v7113 = vsel %vm3367, %v7108, %v7112
      %v7114 = vshrl.u32 %v7044, 16
      %v7116 = vor.u32 %v7114, %v7112
      %v7118 = vshll.u32 %v7045, 16
      %v7120 = vrot.slane %v7118, 1
      %v7121 = vsel %vm3367, %v7116, %v7120
      %v7122 = vshrl.u32 %v7045, 16
      %v7124 = vor.u32 %v7122, %v7120
      %v7126 = vshll.u32 %v7046, 16
      %v7128 = vrot.slane %v7126, 1
      %v7129 = vsel %vm3367, %v7124, %v7128
      %v7130 = vshrl.u32 %v7046, 16
      %v7132 = vor.u32 %v7130, %v7128
      %v7134 = vshll.u32 %v7047, 16
      %v7136 = vrot.slane %v7134, 1
      %v7137 = vsel %vm3367, %v7132, %v7136
      %v7138 = vshrl.u32 %v7047, 16
      %v7140 = vor.u32 %v7138, %v7136
      %v7142 = vshll.u32 %v7048, 16
      %v7144 = vrot.slane %v7142, 1
      %v7145 = vsel %vm3367, %v7140, %v7144
      %v7146 = vshrl.u32 %v7048, 16
      %v7148 = vor.u32 %v7146, %v7144
      %v7150 = vshll.u32 %v7049, 16
      %v7152 = vrot.slane %v7150, 1
      %v7153 = vsel %vm3367, %v7148, %v7152
      %v7154 = vshrl.u32 %v7049, 16
      %v7156 = vor.u32 %v7154, %v7152
      %v7158 = vshll.u32 %v7050, 16
      %v7160 = vrot.slane %v7158, 1
      %v7161 = vsel %vm3367, %v7156, %v7160
      %v7162 = vshrl.u32 %v7050, 16
      %v7164 = vor.u32 %v7162, %v7160
      %v7166 = vshll.u32 %v7051, 16
      %v7168 = vrot.slane %v7166, 1
      %v7169 = vsel %vm3367, %v7164, %v7168
      %v7170 = vshrl.u32 %v7051, 16
      %v7172 = vor.u32 %v7170, %v7168
      %v7174 = vshll.u32 %v7052, 16
      %v7176 = vrot.slane %v7174, 1
      %v7177 = vsel %vm3367, %v7172, %v7176
      %v7178 = vshrl.u32 %v7052, 16
      %v7180 = vor.u32 %v7178, %v7176
      %v7182 = vshll.u32 %v7053, 16
      %v7184 = vrot.slane %v7182, 1
      %v7185 = vsel %vm3367, %v7180, %v7184
      %v7190 = vunpack.c.l.b16 %v6967
      %v7191 = vunpack.c.l.b16 %v6968
      %v7192 = vunpack.c.l.b16 %v6969
      %v7193 = vunpack.c.l.b16 %v6970
      %v7194 = vpack.c.b16 %v7191, %v7190
      %v7195 = vpack.c.b16 %v7193, %v7192
      %v7199 = vsel %vm6378, %v7065, 0
      %v7202 = vsel %vm6378, %v7073, 0
      %v7205 = vsel %vm6378, %v7081, 0
      %v7208 = vsel %vm6378, %v7089, 0
      %v7211 = vsel %vm6378, %v7097, 0
      %v7214 = vsel %vm6378, %v7105, 0
      %v7217 = vsel %vm6378, %v7113, 0
      %v7220 = vsel %vm6378, %v7121, 0
      %v7223 = vsel %vm6378, %v7129, 0
      %v7226 = vsel %vm6378, %v7137, 0
      %v7229 = vsel %vm6378, %v7145, 0
      %v7232 = vsel %vm6378, %v7153, 0
      %v7235 = vsel %vm6378, %v7161, 0
      %v7238 = vsel %vm6378, %v7169, 0
      %v7241 = vsel %vm6378, %v7177, 0
      %v7244 = vsel %vm6378, %v7185, 0
      %7246 = vmatpush.bf16.msra.mxu0 0
      %7247 = vmatpush.bf16.msra.mxu0 0
      %7248 = vmatpush.bf16.msra.mxu0 0
      %7249 = vmatpush.bf16.msra.mxu0 0
      %7250 = vmatpush.bf16.msra.mxu0 0
      %7251 = vmatpush.bf16.msra.mxu0 0
      %7252 = vmatpush.bf16.msra.mxu0 %v7195
      %7253 = vmatpush.bf16.msra.mxu0 %v7194
      %7254 = vmatmul.bf16.gmra.mxu0 %v7199
      %v7255 = vpop.f32.mrf.mxu0
      %v7256 = vadd.f32 0.0, %v7255
      %v7257 = vpop.f32.mrf.mxu0
      %v7258 = vadd.f32 0.0, %v7257
      %7259 = vmatmul.bf16.gmra.mxu0 %v7202
      %v7260 = vpop.f32.mrf.mxu0
      %v7261 = vadd.f32 0.0, %v7260
      %v7262 = vpop.f32.mrf.mxu0
      %v7263 = vadd.f32 0.0, %v7262
      %7264 = vmatmul.bf16.gmra.mxu0 %v7205
      %v7265 = vpop.f32.mrf.mxu0
      %v7266 = vadd.f32 0.0, %v7265
      %v7267 = vpop.f32.mrf.mxu0
      %v7268 = vadd.f32 0.0, %v7267
      %7269 = vmatmul.bf16.gmra.mxu0 %v7208
      %v7270 = vpop.f32.mrf.mxu0
      %v7271 = vadd.f32 0.0, %v7270
      %v7272 = vpop.f32.mrf.mxu0
      %v7273 = vadd.f32 0.0, %v7272
      %7274 = vmatmul.bf16.gmra.mxu0 %v7211
      %v7275 = vpop.f32.mrf.mxu0
      %v7276 = vadd.f32 0.0, %v7275
      %v7277 = vpop.f32.mrf.mxu0
      %v7278 = vadd.f32 0.0, %v7277
      %7279 = vmatmul.bf16.gmra.mxu0 %v7214
      %v7280 = vpop.f32.mrf.mxu0
      %v7281 = vadd.f32 0.0, %v7280
      %v7282 = vpop.f32.mrf.mxu0
      %v7283 = vadd.f32 0.0, %v7282
      %7284 = vmatmul.bf16.gmra.mxu0 %v7217
      %v7285 = vpop.f32.mrf.mxu0
      %v7286 = vadd.f32 0.0, %v7285
      %v7287 = vpop.f32.mrf.mxu0
      %v7288 = vadd.f32 0.0, %v7287
      %7289 = vmatmul.bf16.gmra.mxu0 %v7220
      %v7290 = vpop.f32.mrf.mxu0
      %v7291 = vadd.f32 0.0, %v7290
      %v7292 = vpop.f32.mrf.mxu0
      %v7293 = vadd.f32 0.0, %v7292
      %7294 = vmatmul.bf16.gmra.mxu0 %v7223
      %v7295 = vpop.f32.mrf.mxu0
      %v7296 = vadd.f32 0.0, %v7295
      %v7297 = vpop.f32.mrf.mxu0
      %v7298 = vadd.f32 0.0, %v7297
      %7299 = vmatmul.bf16.gmra.mxu0 %v7226
      %v7300 = vpop.f32.mrf.mxu0
      %v7301 = vadd.f32 0.0, %v7300
      %v7302 = vpop.f32.mrf.mxu0
      %v7303 = vadd.f32 0.0, %v7302
      %7304 = vmatmul.bf16.gmra.mxu0 %v7229
      %v7305 = vpop.f32.mrf.mxu0
      %v7306 = vadd.f32 0.0, %v7305
      %v7307 = vpop.f32.mrf.mxu0
      %v7308 = vadd.f32 0.0, %v7307
      %7309 = vmatmul.bf16.gmra.mxu0 %v7232
      %v7310 = vpop.f32.mrf.mxu0
      %v7311 = vadd.f32 0.0, %v7310
      %v7312 = vpop.f32.mrf.mxu0
      %v7313 = vadd.f32 0.0, %v7312
      %7314 = vmatmul.bf16.gmra.mxu0 %v7235
      %v7315 = vpop.f32.mrf.mxu0
      %v7316 = vadd.f32 0.0, %v7315
      %v7317 = vpop.f32.mrf.mxu0
      %v7318 = vadd.f32 0.0, %v7317
      %7319 = vmatmul.bf16.gmra.mxu0 %v7238
      %v7320 = vpop.f32.mrf.mxu0
      %v7321 = vadd.f32 0.0, %v7320
      %v7322 = vpop.f32.mrf.mxu0
      %v7323 = vadd.f32 0.0, %v7322
      %7324 = vmatmul.bf16.gmra.mxu0 %v7241
      %v7325 = vpop.f32.mrf.mxu0
      %v7326 = vadd.f32 0.0, %v7325
      %v7327 = vpop.f32.mrf.mxu0
      %v7328 = vadd.f32 0.0, %v7327
      %7329 = vmatmul.bf16.gmra.mxu0 %v7244
      %v7330 = vpop.f32.mrf.mxu0
      %v7331 = vadd.f32 0.0, %v7330
      %v7332 = vpop.f32.mrf.mxu0
      %v7333 = vadd.f32 0.0, %v7332
      %7334 = vdwg.mxu0
      %v7335 = vadd.f32 %v6821, %v7256
      %v7336 = vadd.f32 %v6823, %v7258
      %v7337 = vadd.f32 %v6826, %v7261
      %v7338 = vadd.f32 %v6828, %v7263
      %v7339 = vadd.f32 %v6831, %v7266
      %v7340 = vadd.f32 %v6833, %v7268
      %v7341 = vadd.f32 %v6836, %v7271
      %v7342 = vadd.f32 %v6838, %v7273
      %v7343 = vadd.f32 %v6841, %v7276
      %v7344 = vadd.f32 %v6843, %v7278
      %v7345 = vadd.f32 %v6846, %v7281
      %v7346 = vadd.f32 %v6848, %v7283
      %v7347 = vadd.f32 %v6851, %v7286
      %v7348 = vadd.f32 %v6853, %v7288
      %v7349 = vadd.f32 %v6856, %v7291
      %v7350 = vadd.f32 %v6858, %v7293
      %v7351 = vadd.f32 %v6861, %v7296
      %v7352 = vadd.f32 %v6863, %v7298
      %v7353 = vadd.f32 %v6866, %v7301
      %v7354 = vadd.f32 %v6868, %v7303
      %v7355 = vadd.f32 %v6871, %v7306
      %v7356 = vadd.f32 %v6873, %v7308
      %v7357 = vadd.f32 %v6876, %v7311
      %v7358 = vadd.f32 %v6878, %v7313
      %v7359 = vadd.f32 %v6881, %v7316
      %v7360 = vadd.f32 %v6883, %v7318
      %v7361 = vadd.f32 %v6886, %v7321
      %v7362 = vadd.f32 %v6888, %v7323
      %v7363 = vadd.f32 %v6891, %v7326
      %v7364 = vadd.f32 %v6893, %v7328
      %v7365 = vadd.f32 %v6896, %v7331
      %v7366 = vadd.f32 %v6898, %v7333
      %v7367 = vld [vmem:[#allocation3 + $0x8] sm:$0x8]
      %v7368 = vld [vmem:[#allocation3 + $0xc] sm:$0xf]
      %v7369 = vld [vmem:[#allocation3 + $0x10] sm:$0xf]
      %v7370 = vld [vmem:[#allocation3 + $0x14] sm:$0xf]
      %v7371 = vld [vmem:[#allocation3 + $0x18] sm:$0xf]
      %v7372 = vld [vmem:[#allocation3 + $0x1c] sm:$0xf]
      %v7373 = vld [vmem:[#allocation3 + $0x20] sm:$0xf]
      %v7374 = vld [vmem:[#allocation3 + $0x24] sm:$0xf]
      %v7375 = vld [vmem:[#allocation3 + $0x28] sm:$0xf]
      %v7376 = vld [vmem:[#allocation3 + $0x2c] sm:$0xf]
      %v7377 = vld [vmem:[#allocation3 + $0x30] sm:$0xf]
      %v7378 = vld [vmem:[#allocation3 + $0x34] sm:$0xf]
      %v7379 = vld [vmem:[#allocation3 + $0x38] sm:$0xf]
      %v7380 = vld [vmem:[#allocation3 + $0x3c] sm:$0xf]
      %v7381 = vld [vmem:[#allocation3 + $0x40] sm:$0xf]
      %v7382 = vld [vmem:[#allocation3 + $0x44] sm:$0xf]
      %v7383 = vld [vmem:[#allocation3 + $0x48] sm:$0xf]
      %v7384 = vld [vmem:[#allocation3 + $0x4c] sm:$0xf]
      %v7385 = vld [vmem:[#allocation3 + $0x50] sm:$0xf]
      %v7386 = vld [vmem:[#allocation3 + $0x54] sm:$0xf]
      %v7387 = vld [vmem:[#allocation3 + $0x58] sm:$0xf]
      %v7388 = vld [vmem:[#allocation3 + $0x5c] sm:$0xf]
      %v7389 = vld [vmem:[#allocation3 + $0x60] sm:$0xf]
      %v7390 = vld [vmem:[#allocation3 + $0x64] sm:$0xf]
      %v7391 = vld [vmem:[#allocation3 + $0x68] sm:$0xf]
      %v7392 = vld [vmem:[#allocation3 + $0x6c] sm:$0xf]
      %v7393 = vld [vmem:[#allocation3 + $0x70] sm:$0xf]
      %v7394 = vld [vmem:[#allocation3 + $0x74] sm:$0xf]
      %v7395 = vld [vmem:[#allocation3 + $0x78] sm:$0xf]
      %v7396 = vld [vmem:[#allocation3 + $0x7c] sm:$0xf]
      %v7397 = vld [vmem:[#allocation3 + $0x80] sm:$0xf]
      %v7398 = vld [vmem:[#allocation3 + $0x84] sm:$0xf]
      %v7399 = vld [vmem:[#allocation3 + $0x88] sm:$0xf]
      %v7400 = vsel %vm1577, %v7367, 0
      %v7401 = vsel %vm1584, %v7368, 0
      %v7402 = vsel %vm1591, %v7369, 0
      %v7403 = vsel %vm1598, %v7370, 0
      %v7404 = vsel %vm1605, %v7371, 0
      %v7405 = vsel %vm1612, %v7372, 0
      %v7406 = vsel %vm1619, %v7373, 0
      %v7407 = vsel %vm1626, %v7374, 0
      %v7408 = vsel %vm1633, %v7375, 0
      %v7409 = vsel %vm1640, %v7376, 0
      %v7410 = vsel %vm1647, %v7377, 0
      %v7411 = vsel %vm1654, %v7378, 0
      %v7412 = vsel %vm1661, %v7379, 0
      %v7413 = vsel %vm1668, %v7380, 0
      %v7414 = vsel %vm1675, %v7381, 0
      %v7415 = vsel %vm1682, %v7382, 0
      %v7416 = vsel %vm1689, %v7383, 0
      %v7417 = vsel %vm1696, %v7384, 0
      %v7418 = vsel %vm1703, %v7385, 0
      %v7419 = vsel %vm1710, %v7386, 0
      %v7420 = vsel %vm1717, %v7387, 0
      %v7421 = vsel %vm1724, %v7388, 0
      %v7422 = vsel %vm1731, %v7389, 0
      %v7423 = vsel %vm1738, %v7390, 0
      %v7424 = vsel %vm1745, %v7391, 0
      %v7425 = vsel %vm1752, %v7392, 0
      %v7426 = vsel %vm1759, %v7393, 0
      %v7427 = vsel %vm1766, %v7394, 0
      %v7428 = vsel %vm1773, %v7395, 0
      %v7429 = vsel %vm1780, %v7396, 0
      %v7430 = vsel %vm1787, %v7397, 0
      %v7431 = vsel %vm1794, %v7398, 0
      %v7432 = vsel %vm1801, %v7399, 0
      %s7433 = scalar_lea.vmem %s5, 48
      %v7434 = vld [vmem:[%s7433] sm:$0xf]
      %v7435 = vld [vmem:[%s7433 + $0x4] sm:$0xf]
      %v7436 = vld [vmem:[%s7433 + $0x8] sm:$0xf]
      %v7437 = vld [vmem:[%s7433 + $0xc] sm:$0xf]
      %v7471 = vunpack.c.l.b16 %v7400
      %v7472 = vunpack.c.l.b16 %v7401
      %v7473 = vunpack.c.l.b16 %v7402
      %v7474 = vunpack.c.l.b16 %v7403
      %v7475 = vunpack.c.l.b16 %v7404
      %v7476 = vunpack.c.l.b16 %v7405
      %v7477 = vunpack.c.l.b16 %v7406
      %v7478 = vunpack.c.l.b16 %v7407
      %v7479 = vunpack.c.l.b16 %v7408
      %v7480 = vunpack.c.l.b16 %v7409
      %v7481 = vunpack.c.l.b16 %v7410
      %v7482 = vunpack.c.l.b16 %v7411
      %v7483 = vunpack.c.l.b16 %v7412
      %v7484 = vunpack.c.l.b16 %v7413
      %v7485 = vunpack.c.l.b16 %v7414
      %v7486 = vunpack.c.l.b16 %v7415
      %v7487 = vunpack.c.l.b16 %v7416
      %v7488 = vunpack.c.l.b16 %v7417
      %v7489 = vunpack.c.l.b16 %v7418
      %v7490 = vunpack.c.l.b16 %v7419
      %v7491 = vunpack.c.l.b16 %v7420
      %v7492 = vunpack.c.l.b16 %v7421
      %v7493 = vunpack.c.l.b16 %v7422
      %v7494 = vunpack.c.l.b16 %v7423
      %v7495 = vunpack.c.l.b16 %v7424
      %v7496 = vunpack.c.l.b16 %v7425
      %v7497 = vunpack.c.l.b16 %v7426
      %v7498 = vunpack.c.l.b16 %v7427
      %v7499 = vunpack.c.l.b16 %v7428
      %v7500 = vunpack.c.l.b16 %v7429
      %v7501 = vunpack.c.l.b16 %v7430
      %v7502 = vunpack.c.l.b16 %v7431
      %v7503 = vunpack.c.l.b16 %v7432
      %v7504 = vpack.c.b16 %v7472, %v7471
      %v7505 = vpack.c.b16 %v7474, %v7473
      %v7506 = vpack.c.b16 %v7476, %v7475
      %v7507 = vpack.c.b16 %v7478, %v7477
      %v7508 = vpack.c.b16 %v7480, %v7479
      %v7509 = vpack.c.b16 %v7482, %v7481
      %v7510 = vpack.c.b16 %v7484, %v7483
      %v7511 = vpack.c.b16 %v7486, %v7485
      %v7512 = vpack.c.b16 %v7488, %v7487
      %v7513 = vpack.c.b16 %v7490, %v7489
      %v7514 = vpack.c.b16 %v7492, %v7491
      %v7515 = vpack.c.b16 %v7494, %v7493
      %v7516 = vpack.c.b16 %v7496, %v7495
      %v7517 = vpack.c.b16 %v7498, %v7497
      %v7518 = vpack.c.b16 %v7500, %v7499
      %v7519 = vpack.c.b16 %v7502, %v7501
      %v7520 = vpack.c.b16 %v7503, %v7503
      %v7522 = vshrl.u32 %v7504, 16
      %v7524 = vrot.slane %v7522, 3
      %v7525 = vshll.u32 %v7504, 16
      %v7527 = vrot.slane %v7525, 4
      %v7528 = vor.u32 %v7524, %v7527
      %v7530 = vshrl.u32 %v7505, 16
      %v7532 = vrot.slane %v7530, 3
      %v7533 = vshll.u32 %v7505, 16
      %v7535 = vrot.slane %v7533, 4
      %v7536 = vor.u32 %v7532, %v7535
      %v7537 = vsel %vm2146, %v7528, %v7536
      %v7539 = vshrl.u32 %v7506, 16
      %v7541 = vrot.slane %v7539, 3
      %v7542 = vshll.u32 %v7506, 16
      %v7544 = vrot.slane %v7542, 4
      %v7545 = vor.u32 %v7541, %v7544
      %v7546 = vsel %vm2146, %v7536, %v7545
      %v7548 = vshrl.u32 %v7507, 16
      %v7550 = vrot.slane %v7548, 3
      %v7551 = vshll.u32 %v7507, 16
      %v7553 = vrot.slane %v7551, 4
      %v7554 = vor.u32 %v7550, %v7553
      %v7555 = vsel %vm2146, %v7545, %v7554
      %v7557 = vshrl.u32 %v7508, 16
      %v7559 = vrot.slane %v7557, 3
      %v7560 = vshll.u32 %v7508, 16
      %v7562 = vrot.slane %v7560, 4
      %v7563 = vor.u32 %v7559, %v7562
      %v7564 = vsel %vm2146, %v7554, %v7563
      %v7566 = vshrl.u32 %v7509, 16
      %v7568 = vrot.slane %v7566, 3
      %v7569 = vshll.u32 %v7509, 16
      %v7571 = vrot.slane %v7569, 4
      %v7572 = vor.u32 %v7568, %v7571
      %v7573 = vsel %vm2146, %v7563, %v7572
      %v7575 = vshrl.u32 %v7510, 16
      %v7577 = vrot.slane %v7575, 3
      %v7578 = vshll.u32 %v7510, 16
      %v7580 = vrot.slane %v7578, 4
      %v7581 = vor.u32 %v7577, %v7580
      %v7582 = vsel %vm2146, %v7572, %v7581
      %v7584 = vshrl.u32 %v7511, 16
      %v7586 = vrot.slane %v7584, 3
      %v7587 = vshll.u32 %v7511, 16
      %v7589 = vrot.slane %v7587, 4
      %v7590 = vor.u32 %v7586, %v7589
      %v7591 = vsel %vm2146, %v7581, %v7590
      %v7593 = vshrl.u32 %v7512, 16
      %v7595 = vrot.slane %v7593, 3
      %v7596 = vshll.u32 %v7512, 16
      %v7598 = vrot.slane %v7596, 4
      %v7599 = vor.u32 %v7595, %v7598
      %v7600 = vsel %vm2146, %v7590, %v7599
      %v7602 = vshrl.u32 %v7513, 16
      %v7604 = vrot.slane %v7602, 3
      %v7605 = vshll.u32 %v7513, 16
      %v7607 = vrot.slane %v7605, 4
      %v7608 = vor.u32 %v7604, %v7607
      %v7609 = vsel %vm2146, %v7599, %v7608
      %v7611 = vshrl.u32 %v7514, 16
      %v7613 = vrot.slane %v7611, 3
      %v7614 = vshll.u32 %v7514, 16
      %v7616 = vrot.slane %v7614, 4
      %v7617 = vor.u32 %v7613, %v7616
      %v7618 = vsel %vm2146, %v7608, %v7617
      %v7620 = vshrl.u32 %v7515, 16
      %v7622 = vrot.slane %v7620, 3
      %v7623 = vshll.u32 %v7515, 16
      %v7625 = vrot.slane %v7623, 4
      %v7626 = vor.u32 %v7622, %v7625
      %v7627 = vsel %vm2146, %v7617, %v7626
      %v7629 = vshrl.u32 %v7516, 16
      %v7631 = vrot.slane %v7629, 3
      %v7632 = vshll.u32 %v7516, 16
      %v7634 = vrot.slane %v7632, 4
      %v7635 = vor.u32 %v7631, %v7634
      %v7636 = vsel %vm2146, %v7626, %v7635
      %v7638 = vshrl.u32 %v7517, 16
      %v7640 = vrot.slane %v7638, 3
      %v7641 = vshll.u32 %v7517, 16
      %v7643 = vrot.slane %v7641, 4
      %v7644 = vor.u32 %v7640, %v7643
      %v7645 = vsel %vm2146, %v7635, %v7644
      %v7647 = vshrl.u32 %v7518, 16
      %v7649 = vrot.slane %v7647, 3
      %v7650 = vshll.u32 %v7518, 16
      %v7652 = vrot.slane %v7650, 4
      %v7653 = vor.u32 %v7649, %v7652
      %v7654 = vsel %vm2146, %v7644, %v7653
      %v7656 = vshrl.u32 %v7519, 16
      %v7658 = vrot.slane %v7656, 3
      %v7659 = vshll.u32 %v7519, 16
      %v7661 = vrot.slane %v7659, 4
      %v7662 = vor.u32 %v7658, %v7661
      %v7663 = vsel %vm2146, %v7653, %v7662
      %v7665 = vshrl.u32 %v7520, 16
      %v7667 = vrot.slane %v7665, 3
      %v7668 = vshll.u32 %v7520, 16
      %v7670 = vrot.slane %v7668, 4
      %v7671 = vor.u32 %v7667, %v7670
      %v7672 = vsel %vm2146, %v7662, %v7671
      %v7677 = vunpack.c.l.b16 %v7434
      %v7678 = vunpack.c.l.b16 %v7435
      %v7679 = vunpack.c.l.b16 %v7436
      %v7680 = vunpack.c.l.b16 %v7437
      %v7681 = vpack.c.b16 %v7678, %v7677
      %v7682 = vpack.c.b16 %v7680, %v7679
      %v7686 = vsel %vm6378, %v7537, 0
      %v7689 = vsel %vm6378, %v7546, 0
      %v7692 = vsel %vm6378, %v7555, 0
      %v7695 = vsel %vm6378, %v7564, 0
      %v7698 = vsel %vm6378, %v7573, 0
      %v7701 = vsel %vm6378, %v7582, 0
      %v7704 = vsel %vm6378, %v7591, 0
      %v7707 = vsel %vm6378, %v7600, 0
      %v7710 = vsel %vm6378, %v7609, 0
      %v7713 = vsel %vm6378, %v7618, 0
      %v7716 = vsel %vm6378, %v7627, 0
      %v7719 = vsel %vm6378, %v7636, 0
      %v7722 = vsel %vm6378, %v7645, 0
      %v7725 = vsel %vm6378, %v7654, 0
      %v7728 = vsel %vm6378, %v7663, 0
      %v7731 = vsel %vm6378, %v7672, 0
      %7733 = vmatpush.bf16.msra.mxu0 0
      %7734 = vmatpush.bf16.msra.mxu0 0
      %7735 = vmatpush.bf16.msra.mxu0 0
      %7736 = vmatpush.bf16.msra.mxu0 0
      %7737 = vmatpush.bf16.msra.mxu0 0
      %7738 = vmatpush.bf16.msra.mxu0 0
      %7739 = vmatpush.bf16.msra.mxu0 %v7682
      %7740 = vmatpush.bf16.msra.mxu0 %v7681
      %7741 = vmatmul.bf16.gmra.mxu0 %v7686
      %v7742 = vpop.f32.mrf.mxu0
      %v7743 = vadd.f32 0.0, %v7742
      %v7744 = vpop.f32.mrf.mxu0
      %v7745 = vadd.f32 0.0, %v7744
      %7746 = vmatmul.bf16.gmra.mxu0 %v7689
      %v7747 = vpop.f32.mrf.mxu0
      %v7748 = vadd.f32 0.0, %v7747
      %v7749 = vpop.f32.mrf.mxu0
      %v7750 = vadd.f32 0.0, %v7749
      %7751 = vmatmul.bf16.gmra.mxu0 %v7692
      %v7752 = vpop.f32.mrf.mxu0
      %v7753 = vadd.f32 0.0, %v7752
      %v7754 = vpop.f32.mrf.mxu0
      %v7755 = vadd.f32 0.0, %v7754
      %7756 = vmatmul.bf16.gmra.mxu0 %v7695
      %v7757 = vpop.f32.mrf.mxu0
      %v7758 = vadd.f32 0.0, %v7757
      %v7759 = vpop.f32.mrf.mxu0
      %v7760 = vadd.f32 0.0, %v7759
      %7761 = vmatmul.bf16.gmra.mxu0 %v7698
      %v7762 = vpop.f32.mrf.mxu0
      %v7763 = vadd.f32 0.0, %v7762
      %v7764 = vpop.f32.mrf.mxu0
      %v7765 = vadd.f32 0.0, %v7764
      %7766 = vmatmul.bf16.gmra.mxu0 %v7701
      %v7767 = vpop.f32.mrf.mxu0
      %v7768 = vadd.f32 0.0, %v7767
      %v7769 = vpop.f32.mrf.mxu0
      %v7770 = vadd.f32 0.0, %v7769
      %7771 = vmatmul.bf16.gmra.mxu0 %v7704
      %v7772 = vpop.f32.mrf.mxu0
      %v7773 = vadd.f32 0.0, %v7772
      %v7774 = vpop.f32.mrf.mxu0
      %v7775 = vadd.f32 0.0, %v7774
      %7776 = vmatmul.bf16.gmra.mxu0 %v7707
      %v7777 = vpop.f32.mrf.mxu0
      %v7778 = vadd.f32 0.0, %v7777
      %v7779 = vpop.f32.mrf.mxu0
      %v7780 = vadd.f32 0.0, %v7779
      %7781 = vmatmul.bf16.gmra.mxu0 %v7710
      %v7782 = vpop.f32.mrf.mxu0
      %v7783 = vadd.f32 0.0, %v7782
      %v7784 = vpop.f32.mrf.mxu0
      %v7785 = vadd.f32 0.0, %v7784
      %7786 = vmatmul.bf16.gmra.mxu0 %v7713
      %v7787 = vpop.f32.mrf.mxu0
      %v7788 = vadd.f32 0.0, %v7787
      %v7789 = vpop.f32.mrf.mxu0
      %v7790 = vadd.f32 0.0, %v7789
      %7791 = vmatmul.bf16.gmra.mxu0 %v7716
      %v7792 = vpop.f32.mrf.mxu0
      %v7793 = vadd.f32 0.0, %v7792
      %v7794 = vpop.f32.mrf.mxu0
      %v7795 = vadd.f32 0.0, %v7794
      %7796 = vmatmul.bf16.gmra.mxu0 %v7719
      %v7797 = vpop.f32.mrf.mxu0
      %v7798 = vadd.f32 0.0, %v7797
      %v7799 = vpop.f32.mrf.mxu0
      %v7800 = vadd.f32 0.0, %v7799
      %7801 = vmatmul.bf16.gmra.mxu0 %v7722
      %v7802 = vpop.f32.mrf.mxu0
      %v7803 = vadd.f32 0.0, %v7802
      %v7804 = vpop.f32.mrf.mxu0
      %v7805 = vadd.f32 0.0, %v7804
      %7806 = vmatmul.bf16.gmra.mxu0 %v7725
      %v7807 = vpop.f32.mrf.mxu0
      %v7808 = vadd.f32 0.0, %v7807
      %v7809 = vpop.f32.mrf.mxu0
      %v7810 = vadd.f32 0.0, %v7809
      %7811 = vmatmul.bf16.gmra.mxu0 %v7728
      %v7812 = vpop.f32.mrf.mxu0
      %v7813 = vadd.f32 0.0, %v7812
      %v7814 = vpop.f32.mrf.mxu0
      %v7815 = vadd.f32 0.0, %v7814
      %7816 = vmatmul.bf16.gmra.mxu0 %v7731
      %v7817 = vpop.f32.mrf.mxu0
      %v7818 = vadd.f32 0.0, %v7817
      %v7819 = vpop.f32.mrf.mxu0
      %v7820 = vadd.f32 0.0, %v7819
      %7821 = vdwg.mxu0
      %v7822 = vadd.f32 %v7335, %v7743
      %v7823 = vadd.f32 %v7336, %v7745
      %v7824 = vadd.f32 %v7337, %v7748
      %v7825 = vadd.f32 %v7338, %v7750
      %v7826 = vadd.f32 %v7339, %v7753
      %v7827 = vadd.f32 %v7340, %v7755
      %v7828 = vadd.f32 %v7341, %v7758
      %v7829 = vadd.f32 %v7342, %v7760
      %v7830 = vadd.f32 %v7343, %v7763
      %v7831 = vadd.f32 %v7344, %v7765
      %v7832 = vadd.f32 %v7345, %v7768
      %v7833 = vadd.f32 %v7346, %v7770
      %v7834 = vadd.f32 %v7347, %v7773
      %v7835 = vadd.f32 %v7348, %v7775
      %v7836 = vadd.f32 %v7349, %v7778
      %v7837 = vadd.f32 %v7350, %v7780
      %v7838 = vadd.f32 %v7351, %v7783
      %v7839 = vadd.f32 %v7352, %v7785
      %v7840 = vadd.f32 %v7353, %v7788
      %v7841 = vadd.f32 %v7354, %v7790
      %v7842 = vadd.f32 %v7355, %v7793
      %v7843 = vadd.f32 %v7356, %v7795
      %v7844 = vadd.f32 %v7357, %v7798
      %v7845 = vadd.f32 %v7358, %v7800
      %v7846 = vadd.f32 %v7359, %v7803
      %v7847 = vadd.f32 %v7360, %v7805
      %v7848 = vadd.f32 %v7361, %v7808
      %v7849 = vadd.f32 %v7362, %v7810
      %v7850 = vadd.f32 %v7363, %v7813
      %v7851 = vadd.f32 %v7364, %v7815
      %v7852 = vadd.f32 %v7365, %v7818
      %v7853 = vadd.f32 %v7366, %v7820
      %s7854 = scalar_lea.vmem %s5, 64
      %v7855 = vld [vmem:[%s7854] sm:$0xf]
      %v7856 = vld [vmem:[%s7854 + $0x4] sm:$0xf]
      %v7857 = vld [vmem:[%s7854 + $0x8] sm:$0xf]
      %v7858 = vld [vmem:[%s7854 + $0xc] sm:$0xf]
      %v7891 = vunpack.c.l.b16 %v7368
      %v7892 = vunpack.c.l.b16 %v7369
      %v7893 = vunpack.c.l.b16 %v7370
      %v7894 = vunpack.c.l.b16 %v7371
      %v7895 = vunpack.c.l.b16 %v7372
      %v7896 = vunpack.c.l.b16 %v7373
      %v7897 = vunpack.c.l.b16 %v7374
      %v7898 = vunpack.c.l.b16 %v7375
      %v7899 = vunpack.c.l.b16 %v7376
      %v7900 = vunpack.c.l.b16 %v7377
      %v7901 = vunpack.c.l.b16 %v7378
      %v7902 = vunpack.c.l.b16 %v7379
      %v7903 = vunpack.c.l.b16 %v7380
      %v7904 = vunpack.c.l.b16 %v7381
      %v7905 = vunpack.c.l.b16 %v7382
      %v7906 = vunpack.c.l.b16 %v7383
      %v7907 = vunpack.c.l.b16 %v7384
      %v7908 = vunpack.c.l.b16 %v7385
      %v7909 = vunpack.c.l.b16 %v7386
      %v7910 = vunpack.c.l.b16 %v7387
      %v7911 = vunpack.c.l.b16 %v7388
      %v7912 = vunpack.c.l.b16 %v7389
      %v7913 = vunpack.c.l.b16 %v7390
      %v7914 = vunpack.c.l.b16 %v7391
      %v7915 = vunpack.c.l.b16 %v7392
      %v7916 = vunpack.c.l.b16 %v7393
      %v7917 = vunpack.c.l.b16 %v7394
      %v7918 = vunpack.c.l.b16 %v7395
      %v7919 = vunpack.c.l.b16 %v7396
      %v7920 = vunpack.c.l.b16 %v7397
      %v7921 = vunpack.c.l.b16 %v7398
      %v7922 = vunpack.c.l.b16 %v7399
      %v7923 = vpack.c.b16 %v7892, %v7891
      %v7924 = vpack.c.b16 %v7894, %v7893
      %v7925 = vpack.c.b16 %v7896, %v7895
      %v7926 = vpack.c.b16 %v7898, %v7897
      %v7927 = vpack.c.b16 %v7900, %v7899
      %v7928 = vpack.c.b16 %v7902, %v7901
      %v7929 = vpack.c.b16 %v7904, %v7903
      %v7930 = vpack.c.b16 %v7906, %v7905
      %v7931 = vpack.c.b16 %v7908, %v7907
      %v7932 = vpack.c.b16 %v7910, %v7909
      %v7933 = vpack.c.b16 %v7912, %v7911
      %v7934 = vpack.c.b16 %v7914, %v7913
      %v7935 = vpack.c.b16 %v7916, %v7915
      %v7936 = vpack.c.b16 %v7918, %v7917
      %v7937 = vpack.c.b16 %v7920, %v7919
      %v7938 = vpack.c.b16 %v7922, %v7921
      %v7943 = vunpack.c.l.b16 %v7855
      %v7944 = vunpack.c.l.b16 %v7856
      %v7945 = vunpack.c.l.b16 %v7857
      %v7946 = vunpack.c.l.b16 %v7858
      %v7947 = vpack.c.b16 %v7944, %v7943
      %v7948 = vpack.c.b16 %v7946, %v7945
      %v7952 = vsel %vm6378, %v7923, 0
      %v7955 = vsel %vm6378, %v7924, 0
      %v7958 = vsel %vm6378, %v7925, 0
      %v7961 = vsel %vm6378, %v7926, 0
      %v7964 = vsel %vm6378, %v7927, 0
      %v7967 = vsel %vm6378, %v7928, 0
      %v7970 = vsel %vm6378, %v7929, 0
      %v7973 = vsel %vm6378, %v7930, 0
      %v7976 = vsel %vm6378, %v7931, 0
      %v7979 = vsel %vm6378, %v7932, 0
      %v7982 = vsel %vm6378, %v7933, 0
      %v7985 = vsel %vm6378, %v7934, 0
      %v7988 = vsel %vm6378, %v7935, 0
      %v7991 = vsel %vm6378, %v7936, 0
      %v7994 = vsel %vm6378, %v7937, 0
      %v7997 = vsel %vm6378, %v7938, 0
      %7999 = vmatpush.bf16.msra.mxu0 0
      %8000 = vmatpush.bf16.msra.mxu0 0
      %8001 = vmatpush.bf16.msra.mxu0 0
      %8002 = vmatpush.bf16.msra.mxu0 0
      %8003 = vmatpush.bf16.msra.mxu0 0
      %8004 = vmatpush.bf16.msra.mxu0 0
      %8005 = vmatpush.bf16.msra.mxu0 %v7948
      %8006 = vmatpush.bf16.msra.mxu0 %v7947
      %8007 = vmatmul.bf16.gmra.mxu0 %v7952
      %v8008 = vpop.f32.mrf.mxu0
      %v8009 = vadd.f32 0.0, %v8008
      %v8010 = vpop.f32.mrf.mxu0
      %v8011 = vadd.f32 0.0, %v8010
      %8012 = vmatmul.bf16.gmra.mxu0 %v7955
      %v8013 = vpop.f32.mrf.mxu0
      %v8014 = vadd.f32 0.0, %v8013
      %v8015 = vpop.f32.mrf.mxu0
      %v8016 = vadd.f32 0.0, %v8015
      %8017 = vmatmul.bf16.gmra.mxu0 %v7958
      %v8018 = vpop.f32.mrf.mxu0
      %v8019 = vadd.f32 0.0, %v8018
      %v8020 = vpop.f32.mrf.mxu0
      %v8021 = vadd.f32 0.0, %v8020
      %8022 = vmatmul.bf16.gmra.mxu0 %v7961
      %v8023 = vpop.f32.mrf.mxu0
      %v8024 = vadd.f32 0.0, %v8023
      %v8025 = vpop.f32.mrf.mxu0
      %v8026 = vadd.f32 0.0, %v8025
      %8027 = vmatmul.bf16.gmra.mxu0 %v7964
      %v8028 = vpop.f32.mrf.mxu0
      %v8029 = vadd.f32 0.0, %v8028
      %v8030 = vpop.f32.mrf.mxu0
      %v8031 = vadd.f32 0.0, %v8030
      %8032 = vmatmul.bf16.gmra.mxu0 %v7967
      %v8033 = vpop.f32.mrf.mxu0
      %v8034 = vadd.f32 0.0, %v8033
      %v8035 = vpop.f32.mrf.mxu0
      %v8036 = vadd.f32 0.0, %v8035
      %8037 = vmatmul.bf16.gmra.mxu0 %v7970
      %v8038 = vpop.f32.mrf.mxu0
      %v8039 = vadd.f32 0.0, %v8038
      %v8040 = vpop.f32.mrf.mxu0
      %v8041 = vadd.f32 0.0, %v8040
      %8042 = vmatmul.bf16.gmra.mxu0 %v7973
      %v8043 = vpop.f32.mrf.mxu0
      %v8044 = vadd.f32 0.0, %v8043
      %v8045 = vpop.f32.mrf.mxu0
      %v8046 = vadd.f32 0.0, %v8045
      %8047 = vmatmul.bf16.gmra.mxu0 %v7976
      %v8048 = vpop.f32.mrf.mxu0
      %v8049 = vadd.f32 0.0, %v8048
      %v8050 = vpop.f32.mrf.mxu0
      %v8051 = vadd.f32 0.0, %v8050
      %8052 = vmatmul.bf16.gmra.mxu0 %v7979
      %v8053 = vpop.f32.mrf.mxu0
      %v8054 = vadd.f32 0.0, %v8053
      %v8055 = vpop.f32.mrf.mxu0
      %v8056 = vadd.f32 0.0, %v8055
      %8057 = vmatmul.bf16.gmra.mxu0 %v7982
      %v8058 = vpop.f32.mrf.mxu0
      %v8059 = vadd.f32 0.0, %v8058
      %v8060 = vpop.f32.mrf.mxu0
      %v8061 = vadd.f32 0.0, %v8060
      %8062 = vmatmul.bf16.gmra.mxu0 %v7985
      %v8063 = vpop.f32.mrf.mxu0
      %v8064 = vadd.f32 0.0, %v8063
      %v8065 = vpop.f32.mrf.mxu0
      %v8066 = vadd.f32 0.0, %v8065
      %8067 = vmatmul.bf16.gmra.mxu0 %v7988
      %v8068 = vpop.f32.mrf.mxu0
      %v8069 = vadd.f32 0.0, %v8068
      %v8070 = vpop.f32.mrf.mxu0
      %v8071 = vadd.f32 0.0, %v8070
      %8072 = vmatmul.bf16.gmra.mxu0 %v7991
      %v8073 = vpop.f32.mrf.mxu0
      %v8074 = vadd.f32 0.0, %v8073
      %v8075 = vpop.f32.mrf.mxu0
      %v8076 = vadd.f32 0.0, %v8075
      %8077 = vmatmul.bf16.gmra.mxu0 %v7994
      %v8078 = vpop.f32.mrf.mxu0
      %v8079 = vadd.f32 0.0, %v8078
      %v8080 = vpop.f32.mrf.mxu0
      %v8081 = vadd.f32 0.0, %v8080
      %8082 = vmatmul.bf16.gmra.mxu0 %v7997
      %v8083 = vpop.f32.mrf.mxu0
      %v8084 = vadd.f32 0.0, %v8083
      %v8085 = vpop.f32.mrf.mxu0
      %v8086 = vadd.f32 0.0, %v8085
      %8087 = vdwg.mxu0
      %v8088 = vadd.f32 %v7822, %v8009
      %v8089 = vadd.f32 %v7823, %v8011
      %v8090 = vadd.f32 %v7824, %v8014
      %v8091 = vadd.f32 %v7825, %v8016
      %v8092 = vadd.f32 %v7826, %v8019
      %v8093 = vadd.f32 %v7827, %v8021
      %v8094 = vadd.f32 %v7828, %v8024
      %v8095 = vadd.f32 %v7829, %v8026
      %v8096 = vadd.f32 %v7830, %v8029
      %v8097 = vadd.f32 %v7831, %v8031
      %v8098 = vadd.f32 %v7832, %v8034
      %v8099 = vadd.f32 %v7833, %v8036
      %v8100 = vadd.f32 %v7834, %v8039
      %v8101 = vadd.f32 %v7835, %v8041
      %v8102 = vadd.f32 %v7836, %v8044
      %v8103 = vadd.f32 %v7837, %v8046
      %v8104 = vadd.f32 %v7838, %v8049
      %v8105 = vadd.f32 %v7839, %v8051
      %v8106 = vadd.f32 %v7840, %v8054
      %v8107 = vadd.f32 %v7841, %v8056
      %v8108 = vadd.f32 %v7842, %v8059
      %v8109 = vadd.f32 %v7843, %v8061
      %v8110 = vadd.f32 %v7844, %v8064
      %v8111 = vadd.f32 %v7845, %v8066
      %v8112 = vadd.f32 %v7846, %v8069
      %v8113 = vadd.f32 %v7847, %v8071
      %v8114 = vadd.f32 %v7848, %v8074
      %v8115 = vadd.f32 %v7849, %v8076
      %v8116 = vadd.f32 %v7850, %v8079
      %v8117 = vadd.f32 %v7851, %v8081
      %v8118 = vadd.f32 %v7852, %v8084
      %v8119 = vadd.f32 %v7853, %v8086
      %v8120 = vld [vmem:[#allocation3 + $0xc] sm:$0xf]
      %v8121 = vld [vmem:[#allocation3 + $0x10] sm:$0xf]
      %v8122 = vld [vmem:[#allocation3 + $0x14] sm:$0xf]
      %v8123 = vld [vmem:[#allocation3 + $0x18] sm:$0xf]
      %v8124 = vld [vmem:[#allocation3 + $0x1c] sm:$0xf]
      %v8125 = vld [vmem:[#allocation3 + $0x20] sm:$0xf]
      %v8126 = vld [vmem:[#allocation3 + $0x24] sm:$0xf]
      %v8127 = vld [vmem:[#allocation3 + $0x28] sm:$0xf]
      %v8128 = vld [vmem:[#allocation3 + $0x2c] sm:$0xf]
      %v8129 = vld [vmem:[#allocation3 + $0x30] sm:$0xf]
      %v8130 = vld [vmem:[#allocation3 + $0x34] sm:$0xf]
      %v8131 = vld [vmem:[#allocation3 + $0x38] sm:$0xf]
      %v8132 = vld [vmem:[#allocation3 + $0x3c] sm:$0xf]
      %v8133 = vld [vmem:[#allocation3 + $0x40] sm:$0xf]
      %v8134 = vld [vmem:[#allocation3 + $0x44] sm:$0xf]
      %v8135 = vld [vmem:[#allocation3 + $0x48] sm:$0xf]
      %v8136 = vld [vmem:[#allocation3 + $0x4c] sm:$0xf]
      %v8137 = vld [vmem:[#allocation3 + $0x50] sm:$0xf]
      %v8138 = vld [vmem:[#allocation3 + $0x54] sm:$0xf]
      %v8139 = vld [vmem:[#allocation3 + $0x58] sm:$0xf]
      %v8140 = vld [vmem:[#allocation3 + $0x5c] sm:$0xf]
      %v8141 = vld [vmem:[#allocation3 + $0x60] sm:$0xf]
      %v8142 = vld [vmem:[#allocation3 + $0x64] sm:$0xf]
      %v8143 = vld [vmem:[#allocation3 + $0x68] sm:$0xf]
      %v8144 = vld [vmem:[#allocation3 + $0x6c] sm:$0xf]
      %v8145 = vld [vmem:[#allocation3 + $0x70] sm:$0xf]
      %v8146 = vld [vmem:[#allocation3 + $0x74] sm:$0xf]
      %v8147 = vld [vmem:[#allocation3 + $0x78] sm:$0xf]
      %v8148 = vld [vmem:[#allocation3 + $0x7c] sm:$0xf]
      %v8149 = vld [vmem:[#allocation3 + $0x80] sm:$0xf]
      %v8150 = vld [vmem:[#allocation3 + $0x84] sm:$0xf]
      %v8151 = vld [vmem:[#allocation3 + $0x88] sm:$0xf]
      %v8152 = vld [vmem:[#allocation3 + $0x8c] sm:$0x1]
      %v8153 = vsel %vm3024, %v8120, 0
      %v8154 = vsel %vm3031, %v8121, 0
      %v8155 = vsel %vm3038, %v8122, 0
      %v8156 = vsel %vm3045, %v8123, 0
      %v8157 = vsel %vm3052, %v8124, 0
      %v8158 = vsel %vm3059, %v8125, 0
      %v8159 = vsel %vm3066, %v8126, 0
      %v8160 = vsel %vm3073, %v8127, 0
      %v8161 = vsel %vm3080, %v8128, 0
      %v8162 = vsel %vm3087, %v8129, 0
      %v8163 = vsel %vm3094, %v8130, 0
      %v8164 = vsel %vm3101, %v8131, 0
      %v8165 = vsel %vm3108, %v8132, 0
      %v8166 = vsel %vm3115, %v8133, 0
      %v8167 = vsel %vm3122, %v8134, 0
      %v8168 = vsel %vm3129, %v8135, 0
      %v8169 = vsel %vm3136, %v8136, 0
      %v8170 = vsel %vm3143, %v8137, 0
      %v8171 = vsel %vm3150, %v8138, 0
      %v8172 = vsel %vm3157, %v8139, 0
      %v8173 = vsel %vm3164, %v8140, 0
      %v8174 = vsel %vm3171, %v8141, 0
      %v8175 = vsel %vm3178, %v8142, 0
      %v8176 = vsel %vm3185, %v8143, 0
      %v8177 = vsel %vm3192, %v8144, 0
      %v8178 = vsel %vm3199, %v8145, 0
      %v8179 = vsel %vm3206, %v8146, 0
      %v8180 = vsel %vm3213, %v8147, 0
      %v8181 = vsel %vm3220, %v8148, 0
      %v8182 = vsel %vm3227, %v8149, 0
      %v8183 = vsel %vm3234, %v8150, 0
      %v8184 = vsel %vm3241, %v8151, 0
      %v8185 = vsel %vm3248, %v8152, 0
      %s8186 = scalar_lea.vmem %s5, 80
      %v8187 = vld [vmem:[%s8186] sm:$0xf]
      %v8188 = vld [vmem:[%s8186 + $0x4] sm:$0xf]
      %v8189 = vld [vmem:[%s8186 + $0x8] sm:$0xf]
      %v8190 = vld [vmem:[%s8186 + $0xc] sm:$0xf]
      %v8224 = vunpack.c.l.b16 %v8153
      %v8225 = vunpack.c.l.b16 %v8154
      %v8226 = vunpack.c.l.b16 %v8155
      %v8227 = vunpack.c.l.b16 %v8156
      %v8228 = vunpack.c.l.b16 %v8157
      %v8229 = vunpack.c.l.b16 %v8158
      %v8230 = vunpack.c.l.b16 %v8159
      %v8231 = vunpack.c.l.b16 %v8160
      %v8232 = vunpack.c.l.b16 %v8161
      %v8233 = vunpack.c.l.b16 %v8162
      %v8234 = vunpack.c.l.b16 %v8163
      %v8235 = vunpack.c.l.b16 %v8164
      %v8236 = vunpack.c.l.b16 %v8165
      %v8237 = vunpack.c.l.b16 %v8166
      %v8238 = vunpack.c.l.b16 %v8167
      %v8239 = vunpack.c.l.b16 %v8168
      %v8240 = vunpack.c.l.b16 %v8169
      %v8241 = vunpack.c.l.b16 %v8170
      %v8242 = vunpack.c.l.b16 %v8171
      %v8243 = vunpack.c.l.b16 %v8172
      %v8244 = vunpack.c.l.b16 %v8173
      %v8245 = vunpack.c.l.b16 %v8174
      %v8246 = vunpack.c.l.b16 %v8175
      %v8247 = vunpack.c.l.b16 %v8176
      %v8248 = vunpack.c.l.b16 %v8177
      %v8249 = vunpack.c.l.b16 %v8178
      %v8250 = vunpack.c.l.b16 %v8179
      %v8251 = vunpack.c.l.b16 %v8180
      %v8252 = vunpack.c.l.b16 %v8181
      %v8253 = vunpack.c.l.b16 %v8182
      %v8254 = vunpack.c.l.b16 %v8183
      %v8255 = vunpack.c.l.b16 %v8184
      %v8256 = vunpack.c.l.b16 %v8185
      %v8257 = vpack.c.b16 %v8225, %v8224
      %v8258 = vpack.c.b16 %v8227, %v8226
      %v8259 = vpack.c.b16 %v8229, %v8228
      %v8260 = vpack.c.b16 %v8231, %v8230
      %v8261 = vpack.c.b16 %v8233, %v8232
      %v8262 = vpack.c.b16 %v8235, %v8234
      %v8263 = vpack.c.b16 %v8237, %v8236
      %v8264 = vpack.c.b16 %v8239, %v8238
      %v8265 = vpack.c.b16 %v8241, %v8240
      %v8266 = vpack.c.b16 %v8243, %v8242
      %v8267 = vpack.c.b16 %v8245, %v8244
      %v8268 = vpack.c.b16 %v8247, %v8246
      %v8269 = vpack.c.b16 %v8249, %v8248
      %v8270 = vpack.c.b16 %v8251, %v8250
      %v8271 = vpack.c.b16 %v8253, %v8252
      %v8272 = vpack.c.b16 %v8255, %v8254
      %v8273 = vpack.c.b16 %v8256, %v8256
      %v8275 = vshrl.u32 %v8257, 16
      %v8277 = vshll.u32 %v8257, 16
      %v8279 = vrot.slane %v8277, 1
      %v8280 = vor.u32 %v8275, %v8279
      %v8282 = vshll.u32 %v8258, 16
      %v8284 = vrot.slane %v8282, 1
      %v8285 = vsel %vm3367, %v8280, %v8284
      %v8286 = vshrl.u32 %v8258, 16
      %v8288 = vor.u32 %v8286, %v8284
      %v8290 = vshll.u32 %v8259, 16
      %v8292 = vrot.slane %v8290, 1
      %v8293 = vsel %vm3367, %v8288, %v8292
      %v8294 = vshrl.u32 %v8259, 16
      %v8296 = vor.u32 %v8294, %v8292
      %v8298 = vshll.u32 %v8260, 16
      %v8300 = vrot.slane %v8298, 1
      %v8301 = vsel %vm3367, %v8296, %v8300
      %v8302 = vshrl.u32 %v8260, 16
      %v8304 = vor.u32 %v8302, %v8300
      %v8306 = vshll.u32 %v8261, 16
      %v8308 = vrot.slane %v8306, 1
      %v8309 = vsel %vm3367, %v8304, %v8308
      %v8310 = vshrl.u32 %v8261, 16
      %v8312 = vor.u32 %v8310, %v8308
      %v8314 = vshll.u32 %v8262, 16
      %v8316 = vrot.slane %v8314, 1
      %v8317 = vsel %vm3367, %v8312, %v8316
      %v8318 = vshrl.u32 %v8262, 16
      %v8320 = vor.u32 %v8318, %v8316
      %v8322 = vshll.u32 %v8263, 16
      %v8324 = vrot.slane %v8322, 1
      %v8325 = vsel %vm3367, %v8320, %v8324
      %v8326 = vshrl.u32 %v8263, 16
      %v8328 = vor.u32 %v8326, %v8324
      %v8330 = vshll.u32 %v8264, 16
      %v8332 = vrot.slane %v8330, 1
      %v8333 = vsel %vm3367, %v8328, %v8332
      %v8334 = vshrl.u32 %v8264, 16
      %v8336 = vor.u32 %v8334, %v8332
      %v8338 = vshll.u32 %v8265, 16
      %v8340 = vrot.slane %v8338, 1
      %v8341 = vsel %vm3367, %v8336, %v8340
      %v8342 = vshrl.u32 %v8265, 16
      %v8344 = vor.u32 %v8342, %v8340
      %v8346 = vshll.u32 %v8266, 16
      %v8348 = vrot.slane %v8346, 1
      %v8349 = vsel %vm3367, %v8344, %v8348
      %v8350 = vshrl.u32 %v8266, 16
      %v8352 = vor.u32 %v8350, %v8348
      %v8354 = vshll.u32 %v8267, 16
      %v8356 = vrot.slane %v8354, 1
      %v8357 = vsel %vm3367, %v8352, %v8356
      %v8358 = vshrl.u32 %v8267, 16
      %v8360 = vor.u32 %v8358, %v8356
      %v8362 = vshll.u32 %v8268, 16
      %v8364 = vrot.slane %v8362, 1
      %v8365 = vsel %vm3367, %v8360, %v8364
      %v8366 = vshrl.u32 %v8268, 16
      %v8368 = vor.u32 %v8366, %v8364
      %v8370 = vshll.u32 %v8269, 16
      %v8372 = vrot.slane %v8370, 1
      %v8373 = vsel %vm3367, %v8368, %v8372
      %v8374 = vshrl.u32 %v8269, 16
      %v8376 = vor.u32 %v8374, %v8372
      %v8378 = vshll.u32 %v8270, 16
      %v8380 = vrot.slane %v8378, 1
      %v8381 = vsel %vm3367, %v8376, %v8380
      %v8382 = vshrl.u32 %v8270, 16
      %v8384 = vor.u32 %v8382, %v8380
      %v8386 = vshll.u32 %v8271, 16
      %v8388 = vrot.slane %v8386, 1
      %v8389 = vsel %vm3367, %v8384, %v8388
      %v8390 = vshrl.u32 %v8271, 16
      %v8392 = vor.u32 %v8390, %v8388
      %v8394 = vshll.u32 %v8272, 16
      %v8396 = vrot.slane %v8394, 1
      %v8397 = vsel %vm3367, %v8392, %v8396
      %v8398 = vshrl.u32 %v8272, 16
      %v8400 = vor.u32 %v8398, %v8396
      %v8402 = vshll.u32 %v8273, 16
      %v8404 = vrot.slane %v8402, 1
      %v8405 = vsel %vm3367, %v8400, %v8404
      %v8410 = vunpack.c.l.b16 %v8187
      %v8411 = vunpack.c.l.b16 %v8188
      %v8412 = vunpack.c.l.b16 %v8189
      %v8413 = vunpack.c.l.b16 %v8190
      %v8414 = vpack.c.b16 %v8411, %v8410
      %v8415 = vpack.c.b16 %v8413, %v8412
      %v8419 = vsel %vm6378, %v8285, 0
      %v8422 = vsel %vm6378, %v8293, 0
      %v8425 = vsel %vm6378, %v8301, 0
      %v8428 = vsel %vm6378, %v8309, 0
      %v8431 = vsel %vm6378, %v8317, 0
      %v8434 = vsel %vm6378, %v8325, 0
      %v8437 = vsel %vm6378, %v8333, 0
      %v8440 = vsel %vm6378, %v8341, 0
      %v8443 = vsel %vm6378, %v8349, 0
      %v8446 = vsel %vm6378, %v8357, 0
      %v8449 = vsel %vm6378, %v8365, 0
      %v8452 = vsel %vm6378, %v8373, 0
      %v8455 = vsel %vm6378, %v8381, 0
      %v8458 = vsel %vm6378, %v8389, 0
      %v8461 = vsel %vm6378, %v8397, 0
      %v8464 = vsel %vm6378, %v8405, 0
      %8466 = vmatpush.bf16.msra.mxu0 0
      %8467 = vmatpush.bf16.msra.mxu0 0
      %8468 = vmatpush.bf16.msra.mxu0 0
      %8469 = vmatpush.bf16.msra.mxu0 0
      %8470 = vmatpush.bf16.msra.mxu0 0
      %8471 = vmatpush.bf16.msra.mxu0 0
      %8472 = vmatpush.bf16.msra.mxu0 %v8415
      %8473 = vmatpush.bf16.msra.mxu0 %v8414
      %8474 = vmatmul.bf16.gmra.mxu0 %v8419
      %v8475 = vpop.f32.mrf.mxu0
      %v8476 = vadd.f32 0.0, %v8475
      %v8477 = vpop.f32.mrf.mxu0
      %v8478 = vadd.f32 0.0, %v8477
      %8479 = vmatmul.bf16.gmra.mxu0 %v8422
      %v8480 = vpop.f32.mrf.mxu0
      %v8481 = vadd.f32 0.0, %v8480
      %v8482 = vpop.f32.mrf.mxu0
      %v8483 = vadd.f32 0.0, %v8482
      %8484 = vmatmul.bf16.gmra.mxu0 %v8425
      %v8485 = vpop.f32.mrf.mxu0
      %v8486 = vadd.f32 0.0, %v8485
      %v8487 = vpop.f32.mrf.mxu0
      %v8488 = vadd.f32 0.0, %v8487
      %8489 = vmatmul.bf16.gmra.mxu0 %v8428
      %v8490 = vpop.f32.mrf.mxu0
      %v8491 = vadd.f32 0.0, %v8490
      %v8492 = vpop.f32.mrf.mxu0
      %v8493 = vadd.f32 0.0, %v8492
      %8494 = vmatmul.bf16.gmra.mxu0 %v8431
      %v8495 = vpop.f32.mrf.mxu0
      %v8496 = vadd.f32 0.0, %v8495
      %v8497 = vpop.f32.mrf.mxu0
      %v8498 = vadd.f32 0.0, %v8497
      %8499 = vmatmul.bf16.gmra.mxu0 %v8434
      %v8500 = vpop.f32.mrf.mxu0
      %v8501 = vadd.f32 0.0, %v8500
      %v8502 = vpop.f32.mrf.mxu0
      %v8503 = vadd.f32 0.0, %v8502
      %8504 = vmatmul.bf16.gmra.mxu0 %v8437
      %v8505 = vpop.f32.mrf.mxu0
      %v8506 = vadd.f32 0.0, %v8505
      %v8507 = vpop.f32.mrf.mxu0
      %v8508 = vadd.f32 0.0, %v8507
      %8509 = vmatmul.bf16.gmra.mxu0 %v8440
      %v8510 = vpop.f32.mrf.mxu0
      %v8511 = vadd.f32 0.0, %v8510
      %v8512 = vpop.f32.mrf.mxu0
      %v8513 = vadd.f32 0.0, %v8512
      %8514 = vmatmul.bf16.gmra.mxu0 %v8443
      %v8515 = vpop.f32.mrf.mxu0
      %v8516 = vadd.f32 0.0, %v8515
      %v8517 = vpop.f32.mrf.mxu0
      %v8518 = vadd.f32 0.0, %v8517
      %8519 = vmatmul.bf16.gmra.mxu0 %v8446
      %v8520 = vpop.f32.mrf.mxu0
      %v8521 = vadd.f32 0.0, %v8520
      %v8522 = vpop.f32.mrf.mxu0
      %v8523 = vadd.f32 0.0, %v8522
      %8524 = vmatmul.bf16.gmra.mxu0 %v8449
      %v8525 = vpop.f32.mrf.mxu0
      %v8526 = vadd.f32 0.0, %v8525
      %v8527 = vpop.f32.mrf.mxu0
      %v8528 = vadd.f32 0.0, %v8527
      %8529 = vmatmul.bf16.gmra.mxu0 %v8452
      %v8530 = vpop.f32.mrf.mxu0
      %v8531 = vadd.f32 0.0, %v8530
      %v8532 = vpop.f32.mrf.mxu0
      %v8533 = vadd.f32 0.0, %v8532
      %8534 = vmatmul.bf16.gmra.mxu0 %v8455
      %v8535 = vpop.f32.mrf.mxu0
      %v8536 = vadd.f32 0.0, %v8535
      %v8537 = vpop.f32.mrf.mxu0
      %v8538 = vadd.f32 0.0, %v8537
      %8539 = vmatmul.bf16.gmra.mxu0 %v8458
      %v8540 = vpop.f32.mrf.mxu0
      %v8541 = vadd.f32 0.0, %v8540
      %v8542 = vpop.f32.mrf.mxu0
      %v8543 = vadd.f32 0.0, %v8542
      %8544 = vmatmul.bf16.gmra.mxu0 %v8461
      %v8545 = vpop.f32.mrf.mxu0
      %v8546 = vadd.f32 0.0, %v8545
      %v8547 = vpop.f32.mrf.mxu0
      %v8548 = vadd.f32 0.0, %v8547
      %8549 = vmatmul.bf16.gmra.mxu0 %v8464
      %v8550 = vpop.f32.mrf.mxu0
      %v8551 = vadd.f32 0.0, %v8550
      %v8552 = vpop.f32.mrf.mxu0
      %v8553 = vadd.f32 0.0, %v8552
      %8554 = vdwg.mxu0
      %v8555 = vadd.f32 %v8088, %v8476
      %v8556 = vadd.f32 %v8089, %v8478
      %v8557 = vadd.f32 %v8090, %v8481
      %v8558 = vadd.f32 %v8091, %v8483
      %v8559 = vadd.f32 %v8092, %v8486
      %v8560 = vadd.f32 %v8093, %v8488
      %v8561 = vadd.f32 %v8094, %v8491
      %v8562 = vadd.f32 %v8095, %v8493
      %v8563 = vadd.f32 %v8096, %v8496
      %v8564 = vadd.f32 %v8097, %v8498
      %v8565 = vadd.f32 %v8098, %v8501
      %v8566 = vadd.f32 %v8099, %v8503
      %v8567 = vadd.f32 %v8100, %v8506
      %v8568 = vadd.f32 %v8101, %v8508
      %v8569 = vadd.f32 %v8102, %v8511
      %v8570 = vadd.f32 %v8103, %v8513
      %v8571 = vadd.f32 %v8104, %v8516
      %v8572 = vadd.f32 %v8105, %v8518
      %v8573 = vadd.f32 %v8106, %v8521
      %v8574 = vadd.f32 %v8107, %v8523
      %v8575 = vadd.f32 %v8108, %v8526
      %v8576 = vadd.f32 %v8109, %v8528
      %v8577 = vadd.f32 %v8110, %v8531
      %v8578 = vadd.f32 %v8111, %v8533
      %v8579 = vadd.f32 %v8112, %v8536
      %v8580 = vadd.f32 %v8113, %v8538
      %v8581 = vadd.f32 %v8114, %v8541
      %v8582 = vadd.f32 %v8115, %v8543
      %v8583 = vadd.f32 %v8116, %v8546
      %v8584 = vadd.f32 %v8117, %v8548
      %v8585 = vadd.f32 %v8118, %v8551
      %v8586 = vadd.f32 %v8119, %v8553
      %v8587 = vld [vmem:[#allocation3 + $0x10] sm:$0x8]
      %v8588 = vld [vmem:[#allocation3 + $0x14] sm:$0xf]
      %v8589 = vld [vmem:[#allocation3 + $0x18] sm:$0xf]
      %v8590 = vld [vmem:[#allocation3 + $0x1c] sm:$0xf]
      %v8591 = vld [vmem:[#allocation3 + $0x20] sm:$0xf]
      %v8592 = vld [vmem:[#allocation3 + $0x24] sm:$0xf]
      %v8593 = vld [vmem:[#allocation3 + $0x28] sm:$0xf]
      %v8594 = vld [vmem:[#allocation3 + $0x2c] sm:$0xf]
      %v8595 = vld [vmem:[#allocation3 + $0x30] sm:$0xf]
      %v8596 = vld [vmem:[#allocation3 + $0x34] sm:$0xf]
      %v8597 = vld [vmem:[#allocation3 + $0x38] sm:$0xf]
      %v8598 = vld [vmem:[#allocation3 + $0x3c] sm:$0xf]
      %v8599 = vld [vmem:[#allocation3 + $0x40] sm:$0xf]
      %v8600 = vld [vmem:[#allocation3 + $0x44] sm:$0xf]
      %v8601 = vld [vmem:[#allocation3 + $0x48] sm:$0xf]
      %v8602 = vld [vmem:[#allocation3 + $0x4c] sm:$0xf]
      %v8603 = vld [vmem:[#allocation3 + $0x50] sm:$0xf]
      %v8604 = vld [vmem:[#allocation3 + $0x54] sm:$0xf]
      %v8605 = vld [vmem:[#allocation3 + $0x58] sm:$0xf]
      %v8606 = vld [vmem:[#allocation3 + $0x5c] sm:$0xf]
      %v8607 = vld [vmem:[#allocation3 + $0x60] sm:$0xf]
      %v8608 = vld [vmem:[#allocation3 + $0x64] sm:$0xf]
      %v8609 = vld [vmem:[#allocation3 + $0x68] sm:$0xf]
      %v8610 = vld [vmem:[#allocation3 + $0x6c] sm:$0xf]
      %v8611 = vld [vmem:[#allocation3 + $0x70] sm:$0xf]
      %v8612 = vld [vmem:[#allocation3 + $0x74] sm:$0xf]
      %v8613 = vld [vmem:[#allocation3 + $0x78] sm:$0xf]
      %v8614 = vld [vmem:[#allocation3 + $0x7c] sm:$0xf]
      %v8615 = vld [vmem:[#allocation3 + $0x80] sm:$0xf]
      %v8616 = vld [vmem:[#allocation3 + $0x84] sm:$0xf]
      %v8617 = vld [vmem:[#allocation3 + $0x88] sm:$0xf]
      %v8618 = vld [vmem:[#allocation3 + $0x8c] sm:$0xf]
      %v8619 = vld [vmem:[#allocation3 + $0x90] sm:$0xf]
      %v8620 = vsel %vm1577, %v8587, 0
      %v8621 = vsel %vm1584, %v8588, 0
      %v8622 = vsel %vm1591, %v8589, 0
      %v8623 = vsel %vm1598, %v8590, 0
      %v8624 = vsel %vm1605, %v8591, 0
      %v8625 = vsel %vm1612, %v8592, 0
      %v8626 = vsel %vm1619, %v8593, 0
      %v8627 = vsel %vm1626, %v8594, 0
      %v8628 = vsel %vm1633, %v8595, 0
      %v8629 = vsel %vm1640, %v8596, 0
      %v8630 = vsel %vm1647, %v8597, 0
      %v8631 = vsel %vm1654, %v8598, 0
      %v8632 = vsel %vm1661, %v8599, 0
      %v8633 = vsel %vm1668, %v8600, 0
      %v8634 = vsel %vm1675, %v8601, 0
      %v8635 = vsel %vm1682, %v8602, 0
      %v8636 = vsel %vm1689, %v8603, 0
      %v8637 = vsel %vm1696, %v8604, 0
      %v8638 = vsel %vm1703, %v8605, 0
      %v8639 = vsel %vm1710, %v8606, 0
      %v8640 = vsel %vm1717, %v8607, 0
      %v8641 = vsel %vm1724, %v8608, 0
      %v8642 = vsel %vm1731, %v8609, 0
      %v8643 = vsel %vm1738, %v8610, 0
      %v8644 = vsel %vm1745, %v8611, 0
      %v8645 = vsel %vm1752, %v8612, 0
      %v8646 = vsel %vm1759, %v8613, 0
      %v8647 = vsel %vm1766, %v8614, 0
      %v8648 = vsel %vm1773, %v8615, 0
      %v8649 = vsel %vm1780, %v8616, 0
      %v8650 = vsel %vm1787, %v8617, 0
      %v8651 = vsel %vm1794, %v8618, 0
      %v8652 = vsel %vm1801, %v8619, 0
      %s8653 = scalar_lea.vmem %s5, 96
      %v8654 = vld [vmem:[%s8653] sm:$0xf]
      %v8655 = vld [vmem:[%s8653 + $0x4] sm:$0xf]
      %v8656 = vld [vmem:[%s8653 + $0x8] sm:$0xf]
      %v8657 = vld [vmem:[%s8653 + $0xc] sm:$0xf]
      %v8691 = vunpack.c.l.b16 %v8620
      %v8692 = vunpack.c.l.b16 %v8621
      %v8693 = vunpack.c.l.b16 %v8622
      %v8694 = vunpack.c.l.b16 %v8623
      %v8695 = vunpack.c.l.b16 %v8624
      %v8696 = vunpack.c.l.b16 %v8625
      %v8697 = vunpack.c.l.b16 %v8626
      %v8698 = vunpack.c.l.b16 %v8627
      %v8699 = vunpack.c.l.b16 %v8628
      %v8700 = vunpack.c.l.b16 %v8629
      %v8701 = vunpack.c.l.b16 %v8630
      %v8702 = vunpack.c.l.b16 %v8631
      %v8703 = vunpack.c.l.b16 %v8632
      %v8704 = vunpack.c.l.b16 %v8633
      %v8705 = vunpack.c.l.b16 %v8634
      %v8706 = vunpack.c.l.b16 %v8635
      %v8707 = vunpack.c.l.b16 %v8636
      %v8708 = vunpack.c.l.b16 %v8637
      %v8709 = vunpack.c.l.b16 %v8638
      %v8710 = vunpack.c.l.b16 %v8639
      %v8711 = vunpack.c.l.b16 %v8640
      %v8712 = vunpack.c.l.b16 %v8641
      %v8713 = vunpack.c.l.b16 %v8642
      %v8714 = vunpack.c.l.b16 %v8643
      %v8715 = vunpack.c.l.b16 %v8644
      %v8716 = vunpack.c.l.b16 %v8645
      %v8717 = vunpack.c.l.b16 %v8646
      %v8718 = vunpack.c.l.b16 %v8647
      %v8719 = vunpack.c.l.b16 %v8648
      %v8720 = vunpack.c.l.b16 %v8649
      %v8721 = vunpack.c.l.b16 %v8650
      %v8722 = vunpack.c.l.b16 %v8651
      %v8723 = vunpack.c.l.b16 %v8652
      %v8724 = vpack.c.b16 %v8692, %v8691
      %v8725 = vpack.c.b16 %v8694, %v8693
      %v8726 = vpack.c.b16 %v8696, %v8695
      %v8727 = vpack.c.b16 %v8698, %v8697
      %v8728 = vpack.c.b16 %v8700, %v8699
      %v8729 = vpack.c.b16 %v8702, %v8701
      %v8730 = vpack.c.b16 %v8704, %v8703
      %v8731 = vpack.c.b16 %v8706, %v8705
      %v8732 = vpack.c.b16 %v8708, %v8707
      %v8733 = vpack.c.b16 %v8710, %v8709
      %v8734 = vpack.c.b16 %v8712, %v8711
      %v8735 = vpack.c.b16 %v8714, %v8713
      %v8736 = vpack.c.b16 %v8716, %v8715
      %v8737 = vpack.c.b16 %v8718, %v8717
      %v8738 = vpack.c.b16 %v8720, %v8719
      %v8739 = vpack.c.b16 %v8722, %v8721
      %v8740 = vpack.c.b16 %v8723, %v8723
      %v8742 = vshrl.u32 %v8724, 16
      %v8744 = vrot.slane %v8742, 3
      %v8745 = vshll.u32 %v8724, 16
      %v8747 = vrot.slane %v8745, 4
      %v8748 = vor.u32 %v8744, %v8747
      %v8750 = vshrl.u32 %v8725, 16
      %v8752 = vrot.slane %v8750, 3
      %v8753 = vshll.u32 %v8725, 16
      %v8755 = vrot.slane %v8753, 4
      %v8756 = vor.u32 %v8752, %v8755
      %v8757 = vsel %vm2146, %v8748, %v8756
      %v8759 = vshrl.u32 %v8726, 16
      %v8761 = vrot.slane %v8759, 3
      %v8762 = vshll.u32 %v8726, 16
      %v8764 = vrot.slane %v8762, 4
      %v8765 = vor.u32 %v8761, %v8764
      %v8766 = vsel %vm2146, %v8756, %v8765
      %v8768 = vshrl.u32 %v8727, 16
      %v8770 = vrot.slane %v8768, 3
      %v8771 = vshll.u32 %v8727, 16
      %v8773 = vrot.slane %v8771, 4
      %v8774 = vor.u32 %v8770, %v8773
      %v8775 = vsel %vm2146, %v8765, %v8774
      %v8777 = vshrl.u32 %v8728, 16
      %v8779 = vrot.slane %v8777, 3
      %v8780 = vshll.u32 %v8728, 16
      %v8782 = vrot.slane %v8780, 4
      %v8783 = vor.u32 %v8779, %v8782
      %v8784 = vsel %vm2146, %v8774, %v8783
      %v8786 = vshrl.u32 %v8729, 16
      %v8788 = vrot.slane %v8786, 3
      %v8789 = vshll.u32 %v8729, 16
      %v8791 = vrot.slane %v8789, 4
      %v8792 = vor.u32 %v8788, %v8791
      %v8793 = vsel %vm2146, %v8783, %v8792
      %v8795 = vshrl.u32 %v8730, 16
      %v8797 = vrot.slane %v8795, 3
      %v8798 = vshll.u32 %v8730, 16
      %v8800 = vrot.slane %v8798, 4
      %v8801 = vor.u32 %v8797, %v8800
      %v8802 = vsel %vm2146, %v8792, %v8801
      %v8804 = vshrl.u32 %v8731, 16
      %v8806 = vrot.slane %v8804, 3
      %v8807 = vshll.u32 %v8731, 16
      %v8809 = vrot.slane %v8807, 4
      %v8810 = vor.u32 %v8806, %v8809
      %v8811 = vsel %vm2146, %v8801, %v8810
      %v8813 = vshrl.u32 %v8732, 16
      %v8815 = vrot.slane %v8813, 3
      %v8816 = vshll.u32 %v8732, 16
      %v8818 = vrot.slane %v8816, 4
      %v8819 = vor.u32 %v8815, %v8818
      %v8820 = vsel %vm2146, %v8810, %v8819
      %v8822 = vshrl.u32 %v8733, 16
      %v8824 = vrot.slane %v8822, 3
      %v8825 = vshll.u32 %v8733, 16
      %v8827 = vrot.slane %v8825, 4
      %v8828 = vor.u32 %v8824, %v8827
      %v8829 = vsel %vm2146, %v8819, %v8828
      %v8831 = vshrl.u32 %v8734, 16
      %v8833 = vrot.slane %v8831, 3
      %v8834 = vshll.u32 %v8734, 16
      %v8836 = vrot.slane %v8834, 4
      %v8837 = vor.u32 %v8833, %v8836
      %v8838 = vsel %vm2146, %v8828, %v8837
      %v8840 = vshrl.u32 %v8735, 16
      %v8842 = vrot.slane %v8840, 3
      %v8843 = vshll.u32 %v8735, 16
      %v8845 = vrot.slane %v8843, 4
      %v8846 = vor.u32 %v8842, %v8845
      %v8847 = vsel %vm2146, %v8837, %v8846
      %v8849 = vshrl.u32 %v8736, 16
      %v8851 = vrot.slane %v8849, 3
      %v8852 = vshll.u32 %v8736, 16
      %v8854 = vrot.slane %v8852, 4
      %v8855 = vor.u32 %v8851, %v8854
      %v8856 = vsel %vm2146, %v8846, %v8855
      %v8858 = vshrl.u32 %v8737, 16
      %v8860 = vrot.slane %v8858, 3
      %v8861 = vshll.u32 %v8737, 16
      %v8863 = vrot.slane %v8861, 4
      %v8864 = vor.u32 %v8860, %v8863
      %v8865 = vsel %vm2146, %v8855, %v8864
      %v8867 = vshrl.u32 %v8738, 16
      %v8869 = vrot.slane %v8867, 3
      %v8870 = vshll.u32 %v8738, 16
      %v8872 = vrot.slane %v8870, 4
      %v8873 = vor.u32 %v8869, %v8872
      %v8874 = vsel %vm2146, %v8864, %v8873
      %v8876 = vshrl.u32 %v8739, 16
      %v8878 = vrot.slane %v8876, 3
      %v8879 = vshll.u32 %v8739, 16
      %v8881 = vrot.slane %v8879, 4
      %v8882 = vor.u32 %v8878, %v8881
      %v8883 = vsel %vm2146, %v8873, %v8882
      %v8885 = vshrl.u32 %v8740, 16
      %v8887 = vrot.slane %v8885, 3
      %v8888 = vshll.u32 %v8740, 16
      %v8890 = vrot.slane %v8888, 4
      %v8891 = vor.u32 %v8887, %v8890
      %v8892 = vsel %vm2146, %v8882, %v8891
      %v8897 = vunpack.c.l.b16 %v8654
      %v8898 = vunpack.c.l.b16 %v8655
      %v8899 = vunpack.c.l.b16 %v8656
      %v8900 = vunpack.c.l.b16 %v8657
      %v8901 = vpack.c.b16 %v8898, %v8897
      %v8902 = vpack.c.b16 %v8900, %v8899
      %v8906 = vsel %vm6378, %v8757, 0
      %v8909 = vsel %vm6378, %v8766, 0
      %v8912 = vsel %vm6378, %v8775, 0
      %v8915 = vsel %vm6378, %v8784, 0
      %v8918 = vsel %vm6378, %v8793, 0
      %v8921 = vsel %vm6378, %v8802, 0
      %v8924 = vsel %vm6378, %v8811, 0
      %v8927 = vsel %vm6378, %v8820, 0
      %v8930 = vsel %vm6378, %v8829, 0
      %v8933 = vsel %vm6378, %v8838, 0
      %v8936 = vsel %vm6378, %v8847, 0
      %v8939 = vsel %vm6378, %v8856, 0
      %v8942 = vsel %vm6378, %v8865, 0
      %v8945 = vsel %vm6378, %v8874, 0
      %v8948 = vsel %vm6378, %v8883, 0
      %v8951 = vsel %vm6378, %v8892, 0
      %8953 = vmatpush.bf16.msra.mxu0 0
      %8954 = vmatpush.bf16.msra.mxu0 0
      %8955 = vmatpush.bf16.msra.mxu0 0
      %8956 = vmatpush.bf16.msra.mxu0 0
      %8957 = vmatpush.bf16.msra.mxu0 0
      %8958 = vmatpush.bf16.msra.mxu0 0
      %8959 = vmatpush.bf16.msra.mxu0 %v8902
      %8960 = vmatpush.bf16.msra.mxu0 %v8901
      %8961 = vmatmul.bf16.gmra.mxu0 %v8906
      %v8962 = vpop.f32.mrf.mxu0
      %v8963 = vadd.f32 0.0, %v8962
      %v8964 = vpop.f32.mrf.mxu0
      %v8965 = vadd.f32 0.0, %v8964
      %8966 = vmatmul.bf16.gmra.mxu0 %v8909
      %v8967 = vpop.f32.mrf.mxu0
      %v8968 = vadd.f32 0.0, %v8967
      %v8969 = vpop.f32.mrf.mxu0
      %v8970 = vadd.f32 0.0, %v8969
      %8971 = vmatmul.bf16.gmra.mxu0 %v8912
      %v8972 = vpop.f32.mrf.mxu0
      %v8973 = vadd.f32 0.0, %v8972
      %v8974 = vpop.f32.mrf.mxu0
      %v8975 = vadd.f32 0.0, %v8974
      %8976 = vmatmul.bf16.gmra.mxu0 %v8915
      %v8977 = vpop.f32.mrf.mxu0
      %v8978 = vadd.f32 0.0, %v8977
      %v8979 = vpop.f32.mrf.mxu0
      %v8980 = vadd.f32 0.0, %v8979
      %8981 = vmatmul.bf16.gmra.mxu0 %v8918
      %v8982 = vpop.f32.mrf.mxu0
      %v8983 = vadd.f32 0.0, %v8982
      %v8984 = vpop.f32.mrf.mxu0
      %v8985 = vadd.f32 0.0, %v8984
      %8986 = vmatmul.bf16.gmra.mxu0 %v8921
      %v8987 = vpop.f32.mrf.mxu0
      %v8988 = vadd.f32 0.0, %v8987
      %v8989 = vpop.f32.mrf.mxu0
      %v8990 = vadd.f32 0.0, %v8989
      %8991 = vmatmul.bf16.gmra.mxu0 %v8924
      %v8992 = vpop.f32.mrf.mxu0
      %v8993 = vadd.f32 0.0, %v8992
      %v8994 = vpop.f32.mrf.mxu0
      %v8995 = vadd.f32 0.0, %v8994
      %8996 = vmatmul.bf16.gmra.mxu0 %v8927
      %v8997 = vpop.f32.mrf.mxu0
      %v8998 = vadd.f32 0.0, %v8997
      %v8999 = vpop.f32.mrf.mxu0
      %v9000 = vadd.f32 0.0, %v8999
      %9001 = vmatmul.bf16.gmra.mxu0 %v8930
      %v9002 = vpop.f32.mrf.mxu0
      %v9003 = vadd.f32 0.0, %v9002
      %v9004 = vpop.f32.mrf.mxu0
      %v9005 = vadd.f32 0.0, %v9004
      %9006 = vmatmul.bf16.gmra.mxu0 %v8933
      %v9007 = vpop.f32.mrf.mxu0
      %v9008 = vadd.f32 0.0, %v9007
      %v9009 = vpop.f32.mrf.mxu0
      %v9010 = vadd.f32 0.0, %v9009
      %9011 = vmatmul.bf16.gmra.mxu0 %v8936
      %v9012 = vpop.f32.mrf.mxu0
      %v9013 = vadd.f32 0.0, %v9012
      %v9014 = vpop.f32.mrf.mxu0
      %v9015 = vadd.f32 0.0, %v9014
      %9016 = vmatmul.bf16.gmra.mxu0 %v8939
      %v9017 = vpop.f32.mrf.mxu0
      %v9018 = vadd.f32 0.0, %v9017
      %v9019 = vpop.f32.mrf.mxu0
      %v9020 = vadd.f32 0.0, %v9019
      %9021 = vmatmul.bf16.gmra.mxu0 %v8942
      %v9022 = vpop.f32.mrf.mxu0
      %v9023 = vadd.f32 0.0, %v9022
      %v9024 = vpop.f32.mrf.mxu0
      %v9025 = vadd.f32 0.0, %v9024
      %9026 = vmatmul.bf16.gmra.mxu0 %v8945
      %v9027 = vpop.f32.mrf.mxu0
      %v9028 = vadd.f32 0.0, %v9027
      %v9029 = vpop.f32.mrf.mxu0
      %v9030 = vadd.f32 0.0, %v9029
      %9031 = vmatmul.bf16.gmra.mxu0 %v8948
      %v9032 = vpop.f32.mrf.mxu0
      %v9033 = vadd.f32 0.0, %v9032
      %v9034 = vpop.f32.mrf.mxu0
      %v9035 = vadd.f32 0.0, %v9034
      %9036 = vmatmul.bf16.gmra.mxu0 %v8951
      %v9037 = vpop.f32.mrf.mxu0
      %v9038 = vadd.f32 0.0, %v9037
      %v9039 = vpop.f32.mrf.mxu0
      %v9040 = vadd.f32 0.0, %v9039
      %9041 = vdwg.mxu0
      %v9042 = vadd.f32 %v8555, %v8963
      %v9043 = vadd.f32 %v8556, %v8965
      %v9044 = vadd.f32 %v8557, %v8968
      %v9045 = vadd.f32 %v8558, %v8970
      %v9046 = vadd.f32 %v8559, %v8973
      %v9047 = vadd.f32 %v8560, %v8975
      %v9048 = vadd.f32 %v8561, %v8978
      %v9049 = vadd.f32 %v8562, %v8980
      %v9050 = vadd.f32 %v8563, %v8983
      %v9051 = vadd.f32 %v8564, %v8985
      %v9052 = vadd.f32 %v8565, %v8988
      %v9053 = vadd.f32 %v8566, %v8990
      %v9054 = vadd.f32 %v8567, %v8993
      %v9055 = vadd.f32 %v8568, %v8995
      %v9056 = vadd.f32 %v8569, %v8998
      %v9057 = vadd.f32 %v8570, %v9000
      %v9058 = vadd.f32 %v8571, %v9003
      %v9059 = vadd.f32 %v8572, %v9005
      %v9060 = vadd.f32 %v8573, %v9008
      %v9061 = vadd.f32 %v8574, %v9010
      %v9062 = vadd.f32 %v8575, %v9013
      %v9063 = vadd.f32 %v8576, %v9015
      %v9064 = vadd.f32 %v8577, %v9018
      %v9065 = vadd.f32 %v8578, %v9020
      %v9066 = vadd.f32 %v8579, %v9023
      %v9067 = vadd.f32 %v8580, %v9025
      %v9068 = vadd.f32 %v8581, %v9028
      %v9069 = vadd.f32 %v8582, %v9030
      %v9070 = vadd.f32 %v8583, %v9033
      %v9071 = vadd.f32 %v8584, %v9035
      %v9072 = vadd.f32 %v8585, %v9038
      %v9073 = vadd.f32 %v8586, %v9040
      %s9074 = scalar_lea.vmem %s5, 112
      %v9075 = vld [vmem:[%s9074] sm:$0xf]
      %v9076 = vld [vmem:[%s9074 + $0x4] sm:$0xf]
      %v9077 = vld [vmem:[%s9074 + $0x8] sm:$0xf]
      %v9078 = vld [vmem:[%s9074 + $0xc] sm:$0xf]
      %v9111 = vunpack.c.l.b16 %v8588
      %v9112 = vunpack.c.l.b16 %v8589
      %v9113 = vunpack.c.l.b16 %v8590
      %v9114 = vunpack.c.l.b16 %v8591
      %v9115 = vunpack.c.l.b16 %v8592
      %v9116 = vunpack.c.l.b16 %v8593
      %v9117 = vunpack.c.l.b16 %v8594
      %v9118 = vunpack.c.l.b16 %v8595
      %v9119 = vunpack.c.l.b16 %v8596
      %v9120 = vunpack.c.l.b16 %v8597
      %v9121 = vunpack.c.l.b16 %v8598
      %v9122 = vunpack.c.l.b16 %v8599
      %v9123 = vunpack.c.l.b16 %v8600
      %v9124 = vunpack.c.l.b16 %v8601
      %v9125 = vunpack.c.l.b16 %v8602
      %v9126 = vunpack.c.l.b16 %v8603
      %v9127 = vunpack.c.l.b16 %v8604
      %v9128 = vunpack.c.l.b16 %v8605
      %v9129 = vunpack.c.l.b16 %v8606
      %v9130 = vunpack.c.l.b16 %v8607
      %v9131 = vunpack.c.l.b16 %v8608
      %v9132 = vunpack.c.l.b16 %v8609
      %v9133 = vunpack.c.l.b16 %v8610
      %v9134 = vunpack.c.l.b16 %v8611
      %v9135 = vunpack.c.l.b16 %v8612
      %v9136 = vunpack.c.l.b16 %v8613
      %v9137 = vunpack.c.l.b16 %v8614
      %v9138 = vunpack.c.l.b16 %v8615
      %v9139 = vunpack.c.l.b16 %v8616
      %v9140 = vunpack.c.l.b16 %v8617
      %v9141 = vunpack.c.l.b16 %v8618
      %v9142 = vunpack.c.l.b16 %v8619
      %v9143 = vpack.c.b16 %v9112, %v9111
      %v9144 = vpack.c.b16 %v9114, %v9113
      %v9145 = vpack.c.b16 %v9116, %v9115
      %v9146 = vpack.c.b16 %v9118, %v9117
      %v9147 = vpack.c.b16 %v9120, %v9119
      %v9148 = vpack.c.b16 %v9122, %v9121
      %v9149 = vpack.c.b16 %v9124, %v9123
      %v9150 = vpack.c.b16 %v9126, %v9125
      %v9151 = vpack.c.b16 %v9128, %v9127
      %v9152 = vpack.c.b16 %v9130, %v9129
      %v9153 = vpack.c.b16 %v9132, %v9131
      %v9154 = vpack.c.b16 %v9134, %v9133
      %v9155 = vpack.c.b16 %v9136, %v9135
      %v9156 = vpack.c.b16 %v9138, %v9137
      %v9157 = vpack.c.b16 %v9140, %v9139
      %v9158 = vpack.c.b16 %v9142, %v9141
      %v9163 = vunpack.c.l.b16 %v9075
      %v9164 = vunpack.c.l.b16 %v9076
      %v9165 = vunpack.c.l.b16 %v9077
      %v9166 = vunpack.c.l.b16 %v9078
      %v9167 = vpack.c.b16 %v9164, %v9163
      %v9168 = vpack.c.b16 %v9166, %v9165
      %v9172 = vsel %vm6378, %v9143, 0
      %v9175 = vsel %vm6378, %v9144, 0
      %v9178 = vsel %vm6378, %v9145, 0
      %v9181 = vsel %vm6378, %v9146, 0
      %v9184 = vsel %vm6378, %v9147, 0
      %v9187 = vsel %vm6378, %v9148, 0
      %v9190 = vsel %vm6378, %v9149, 0
      %v9193 = vsel %vm6378, %v9150, 0
      %v9196 = vsel %vm6378, %v9151, 0
      %v9199 = vsel %vm6378, %v9152, 0
      %v9202 = vsel %vm6378, %v9153, 0
      %v9205 = vsel %vm6378, %v9154, 0
      %v9208 = vsel %vm6378, %v9155, 0
      %v9211 = vsel %vm6378, %v9156, 0
      %v9214 = vsel %vm6378, %v9157, 0
      %v9217 = vsel %vm6378, %v9158, 0
      %9219 = vmatpush.bf16.msra.mxu0 0
      %9220 = vmatpush.bf16.msra.mxu0 0
      %9221 = vmatpush.bf16.msra.mxu0 0
      %9222 = vmatpush.bf16.msra.mxu0 0
      %9223 = vmatpush.bf16.msra.mxu0 0
      %9224 = vmatpush.bf16.msra.mxu0 0
      %9225 = vmatpush.bf16.msra.mxu0 %v9168
      %9226 = vmatpush.bf16.msra.mxu0 %v9167
      %9227 = vmatmul.bf16.gmra.mxu0 %v9172
      %v9228 = vpop.f32.mrf.mxu0
      %v9229 = vadd.f32 0.0, %v9228
      %v9230 = vpop.f32.mrf.mxu0
      %v9231 = vadd.f32 0.0, %v9230
      %9232 = vmatmul.bf16.gmra.mxu0 %v9175
      %v9233 = vpop.f32.mrf.mxu0
      %v9234 = vadd.f32 0.0, %v9233
      %v9235 = vpop.f32.mrf.mxu0
      %v9236 = vadd.f32 0.0, %v9235
      %9237 = vmatmul.bf16.gmra.mxu0 %v9178
      %v9238 = vpop.f32.mrf.mxu0
      %v9239 = vadd.f32 0.0, %v9238
      %v9240 = vpop.f32.mrf.mxu0
      %v9241 = vadd.f32 0.0, %v9240
      %9242 = vmatmul.bf16.gmra.mxu0 %v9181
      %v9243 = vpop.f32.mrf.mxu0
      %v9244 = vadd.f32 0.0, %v9243
      %v9245 = vpop.f32.mrf.mxu0
      %v9246 = vadd.f32 0.0, %v9245
      %9247 = vmatmul.bf16.gmra.mxu0 %v9184
      %v9248 = vpop.f32.mrf.mxu0
      %v9249 = vadd.f32 0.0, %v9248
      %v9250 = vpop.f32.mrf.mxu0
      %v9251 = vadd.f32 0.0, %v9250
      %9252 = vmatmul.bf16.gmra.mxu0 %v9187
      %v9253 = vpop.f32.mrf.mxu0
      %v9254 = vadd.f32 0.0, %v9253
      %v9255 = vpop.f32.mrf.mxu0
      %v9256 = vadd.f32 0.0, %v9255
      %9257 = vmatmul.bf16.gmra.mxu0 %v9190
      %v9258 = vpop.f32.mrf.mxu0
      %v9259 = vadd.f32 0.0, %v9258
      %v9260 = vpop.f32.mrf.mxu0
      %v9261 = vadd.f32 0.0, %v9260
      %9262 = vmatmul.bf16.gmra.mxu0 %v9193
      %v9263 = vpop.f32.mrf.mxu0
      %v9264 = vadd.f32 0.0, %v9263
      %v9265 = vpop.f32.mrf.mxu0
      %v9266 = vadd.f32 0.0, %v9265
      %9267 = vmatmul.bf16.gmra.mxu0 %v9196
      %v9268 = vpop.f32.mrf.mxu0
      %v9269 = vadd.f32 0.0, %v9268
      %v9270 = vpop.f32.mrf.mxu0
      %v9271 = vadd.f32 0.0, %v9270
      %9272 = vmatmul.bf16.gmra.mxu0 %v9199
      %v9273 = vpop.f32.mrf.mxu0
      %v9274 = vadd.f32 0.0, %v9273
      %v9275 = vpop.f32.mrf.mxu0
      %v9276 = vadd.f32 0.0, %v9275
      %9277 = vmatmul.bf16.gmra.mxu0 %v9202
      %v9278 = vpop.f32.mrf.mxu0
      %v9279 = vadd.f32 0.0, %v9278
      %v9280 = vpop.f32.mrf.mxu0
      %v9281 = vadd.f32 0.0, %v9280
      %9282 = vmatmul.bf16.gmra.mxu0 %v9205
      %v9283 = vpop.f32.mrf.mxu0
      %v9284 = vadd.f32 0.0, %v9283
      %v9285 = vpop.f32.mrf.mxu0
      %v9286 = vadd.f32 0.0, %v9285
      %9287 = vmatmul.bf16.gmra.mxu0 %v9208
      %v9288 = vpop.f32.mrf.mxu0
      %v9289 = vadd.f32 0.0, %v9288
      %v9290 = vpop.f32.mrf.mxu0
      %v9291 = vadd.f32 0.0, %v9290
      %9292 = vmatmul.bf16.gmra.mxu0 %v9211
      %v9293 = vpop.f32.mrf.mxu0
      %v9294 = vadd.f32 0.0, %v9293
      %v9295 = vpop.f32.mrf.mxu0
      %v9296 = vadd.f32 0.0, %v9295
      %9297 = vmatmul.bf16.gmra.mxu0 %v9214
      %v9298 = vpop.f32.mrf.mxu0
      %v9299 = vadd.f32 0.0, %v9298
      %v9300 = vpop.f32.mrf.mxu0
      %v9301 = vadd.f32 0.0, %v9300
      %9302 = vmatmul.bf16.gmra.mxu0 %v9217
      %v9303 = vpop.f32.mrf.mxu0
      %v9304 = vadd.f32 0.0, %v9303
      %v9305 = vpop.f32.mrf.mxu0
      %v9306 = vadd.f32 0.0, %v9305
      %9307 = vdwg.mxu0
      %v9308 = vadd.f32 %v9042, %v9229
      %v9309 = vadd.f32 %v9043, %v9231
      %v9310 = vadd.f32 %v9044, %v9234
      %v9311 = vadd.f32 %v9045, %v9236
      %v9312 = vadd.f32 %v9046, %v9239
      %v9313 = vadd.f32 %v9047, %v9241
      %v9314 = vadd.f32 %v9048, %v9244
      %v9315 = vadd.f32 %v9049, %v9246
      %v9316 = vadd.f32 %v9050, %v9249
      %v9317 = vadd.f32 %v9051, %v9251
      %v9318 = vadd.f32 %v9052, %v9254
      %v9319 = vadd.f32 %v9053, %v9256
      %v9320 = vadd.f32 %v9054, %v9259
      %v9321 = vadd.f32 %v9055, %v9261
      %v9322 = vadd.f32 %v9056, %v9264
      %v9323 = vadd.f32 %v9057, %v9266
      %v9324 = vadd.f32 %v9058, %v9269
      %v9325 = vadd.f32 %v9059, %v9271
      %v9326 = vadd.f32 %v9060, %v9274
      %v9327 = vadd.f32 %v9061, %v9276
      %v9328 = vadd.f32 %v9062, %v9279
      %v9329 = vadd.f32 %v9063, %v9281
      %v9330 = vadd.f32 %v9064, %v9284
      %v9331 = vadd.f32 %v9065, %v9286
      %v9332 = vadd.f32 %v9066, %v9289
      %v9333 = vadd.f32 %v9067, %v9291
      %v9334 = vadd.f32 %v9068, %v9294
      %v9335 = vadd.f32 %v9069, %v9296
      %v9336 = vadd.f32 %v9070, %v9299
      %v9337 = vadd.f32 %v9071, %v9301
      %v9338 = vadd.f32 %v9072, %v9304
      %v9339 = vadd.f32 %v9073, %v9306
      %v9340 = vld [vmem:[#allocation3 + $0x14] sm:$0xf]
      %v9341 = vld [vmem:[#allocation3 + $0x18] sm:$0xf]
      %v9342 = vld [vmem:[#allocation3 + $0x1c] sm:$0xf]
      %v9343 = vld [vmem:[#allocation3 + $0x20] sm:$0xf]
      %v9344 = vld [vmem:[#allocation3 + $0x24] sm:$0xf]
      %v9345 = vld [vmem:[#allocation3 + $0x28] sm:$0xf]
      %v9346 = vld [vmem:[#allocation3 + $0x2c] sm:$0xf]
      %v9347 = vld [vmem:[#allocation3 + $0x30] sm:$0xf]
      %v9348 = vld [vmem:[#allocation3 + $0x34] sm:$0xf]
      %v9349 = vld [vmem:[#allocation3 + $0x38] sm:$0xf]
      %v9350 = vld [vmem:[#allocation3 + $0x3c] sm:$0xf]
      %v9351 = vld [vmem:[#allocation3 + $0x40] sm:$0xf]
      %v9352 = vld [vmem:[#allocation3 + $0x44] sm:$0xf]
      %v9353 = vld [vmem:[#allocation3 + $0x48] sm:$0xf]
      %v9354 = vld [vmem:[#allocation3 + $0x4c] sm:$0xf]
      %v9355 = vld [vmem:[#allocation3 + $0x50] sm:$0xf]
      %v9356 = vld [vmem:[#allocation3 + $0x54] sm:$0xf]
      %v9357 = vld [vmem:[#allocation3 + $0x58] sm:$0xf]
      %v9358 = vld [vmem:[#allocation3 + $0x5c] sm:$0xf]
      %v9359 = vld [vmem:[#allocation3 + $0x60] sm:$0xf]
      %v9360 = vld [vmem:[#allocation3 + $0x64] sm:$0xf]
      %v9361 = vld [vmem:[#allocation3 + $0x68] sm:$0xf]
      %v9362 = vld [vmem:[#allocation3 + $0x6c] sm:$0xf]
      %v9363 = vld [vmem:[#allocation3 + $0x70] sm:$0xf]
      %v9364 = vld [vmem:[#allocation3 + $0x74] sm:$0xf]
      %v9365 = vld [vmem:[#allocation3 + $0x78] sm:$0xf]
      %v9366 = vld [vmem:[#allocation3 + $0x7c] sm:$0xf]
      %v9367 = vld [vmem:[#allocation3 + $0x80] sm:$0xf]
      %v9368 = vld [vmem:[#allocation3 + $0x84] sm:$0xf]
      %v9369 = vld [vmem:[#allocation3 + $0x88] sm:$0xf]
      %v9370 = vld [vmem:[#allocation3 + $0x8c] sm:$0xf]
      %v9371 = vld [vmem:[#allocation3 + $0x90] sm:$0xf]
      %v9372 = vld [vmem:[#allocation3 + $0x94] sm:$0x1]
      %v9373 = vsel %vm3024, %v9340, 0
      %v9374 = vsel %vm3031, %v9341, 0
      %v9375 = vsel %vm3038, %v9342, 0
      %v9376 = vsel %vm3045, %v9343, 0
      %v9377 = vsel %vm3052, %v9344, 0
      %v9378 = vsel %vm3059, %v9345, 0
      %v9379 = vsel %vm3066, %v9346, 0
      %v9380 = vsel %vm3073, %v9347, 0
      %v9381 = vsel %vm3080, %v9348, 0
      %v9382 = vsel %vm3087, %v9349, 0
      %v9383 = vsel %vm3094, %v9350, 0
      %v9384 = vsel %vm3101, %v9351, 0
      %v9385 = vsel %vm3108, %v9352, 0
      %v9386 = vsel %vm3115, %v9353, 0
      %v9387 = vsel %vm3122, %v9354, 0
      %v9388 = vsel %vm3129, %v9355, 0
      %v9389 = vsel %vm3136, %v9356, 0
      %v9390 = vsel %vm3143, %v9357, 0
      %v9391 = vsel %vm3150, %v9358, 0
      %v9392 = vsel %vm3157, %v9359, 0
      %v9393 = vsel %vm3164, %v9360, 0
      %v9394 = vsel %vm3171, %v9361, 0
      %v9395 = vsel %vm3178, %v9362, 0
      %v9396 = vsel %vm3185, %v9363, 0
      %v9397 = vsel %vm3192, %v9364, 0
      %v9398 = vsel %vm3199, %v9365, 0
      %v9399 = vsel %vm3206, %v9366, 0
      %v9400 = vsel %vm3213, %v9367, 0
      %v9401 = vsel %vm3220, %v9368, 0
      %v9402 = vsel %vm3227, %v9369, 0
      %v9403 = vsel %vm3234, %v9370, 0
      %v9404 = vsel %vm3241, %v9371, 0
      %v9405 = vsel %vm3248, %v9372, 0
      %s9406 = scalar_lea.vmem %s5, 128
      %v9407 = vld [vmem:[%s9406] sm:$0xf]
      %v9408 = vld [vmem:[%s9406 + $0x4] sm:$0xf]
      %v9409 = vld [vmem:[%s9406 + $0x8] sm:$0xf]
      %v9410 = vld [vmem:[%s9406 + $0xc] sm:$0xf]
      %v9444 = vunpack.c.l.b16 %v9373
      %v9445 = vunpack.c.l.b16 %v9374
      %v9446 = vunpack.c.l.b16 %v9375
      %v9447 = vunpack.c.l.b16 %v9376
      %v9448 = vunpack.c.l.b16 %v9377
      %v9449 = vunpack.c.l.b16 %v9378
      %v9450 = vunpack.c.l.b16 %v9379
      %v9451 = vunpack.c.l.b16 %v9380
      %v9452 = vunpack.c.l.b16 %v9381
      %v9453 = vunpack.c.l.b16 %v9382
      %v9454 = vunpack.c.l.b16 %v9383
      %v9455 = vunpack.c.l.b16 %v9384
      %v9456 = vunpack.c.l.b16 %v9385
      %v9457 = vunpack.c.l.b16 %v9386
      %v9458 = vunpack.c.l.b16 %v9387
      %v9459 = vunpack.c.l.b16 %v9388
      %v9460 = vunpack.c.l.b16 %v9389
      %v9461 = vunpack.c.l.b16 %v9390
      %v9462 = vunpack.c.l.b16 %v9391
      %v9463 = vunpack.c.l.b16 %v9392
      %v9464 = vunpack.c.l.b16 %v9393
      %v9465 = vunpack.c.l.b16 %v9394
      %v9466 = vunpack.c.l.b16 %v9395
      %v9467 = vunpack.c.l.b16 %v9396
      %v9468 = vunpack.c.l.b16 %v9397
      %v9469 = vunpack.c.l.b16 %v9398
      %v9470 = vunpack.c.l.b16 %v9399
      %v9471 = vunpack.c.l.b16 %v9400
      %v9472 = vunpack.c.l.b16 %v9401
      %v9473 = vunpack.c.l.b16 %v9402
      %v9474 = vunpack.c.l.b16 %v9403
      %v9475 = vunpack.c.l.b16 %v9404
      %v9476 = vunpack.c.l.b16 %v9405
      %v9477 = vpack.c.b16 %v9445, %v9444
      %v9478 = vpack.c.b16 %v9447, %v9446
      %v9479 = vpack.c.b16 %v9449, %v9448
      %v9480 = vpack.c.b16 %v9451, %v9450
      %v9481 = vpack.c.b16 %v9453, %v9452
      %v9482 = vpack.c.b16 %v9455, %v9454
      %v9483 = vpack.c.b16 %v9457, %v9456
      %v9484 = vpack.c.b16 %v9459, %v9458
      %v9485 = vpack.c.b16 %v9461, %v9460
      %v9486 = vpack.c.b16 %v9463, %v9462
      %v9487 = vpack.c.b16 %v9465, %v9464
      %v9488 = vpack.c.b16 %v9467, %v9466
      %v9489 = vpack.c.b16 %v9469, %v9468
      %v9490 = vpack.c.b16 %v9471, %v9470
      %v9491 = vpack.c.b16 %v9473, %v9472
      %v9492 = vpack.c.b16 %v9475, %v9474
      %v9493 = vpack.c.b16 %v9476, %v9476
      %v9495 = vshrl.u32 %v9477, 16
      %v9497 = vshll.u32 %v9477, 16
      %v9499 = vrot.slane %v9497, 1
      %v9500 = vor.u32 %v9495, %v9499
      %v9502 = vshll.u32 %v9478, 16
      %v9504 = vrot.slane %v9502, 1
      %v9505 = vsel %vm3367, %v9500, %v9504
      %v9506 = vshrl.u32 %v9478, 16
      %v9508 = vor.u32 %v9506, %v9504
      %v9510 = vshll.u32 %v9479, 16
      %v9512 = vrot.slane %v9510, 1
      %v9513 = vsel %vm3367, %v9508, %v9512
      %v9514 = vshrl.u32 %v9479, 16
      %v9516 = vor.u32 %v9514, %v9512
      %v9518 = vshll.u32 %v9480, 16
      %v9520 = vrot.slane %v9518, 1
      %v9521 = vsel %vm3367, %v9516, %v9520
      %v9522 = vshrl.u32 %v9480, 16
      %v9524 = vor.u32 %v9522, %v9520
      %v9526 = vshll.u32 %v9481, 16
      %v9528 = vrot.slane %v9526, 1
      %v9529 = vsel %vm3367, %v9524, %v9528
      %v9530 = vshrl.u32 %v9481, 16
      %v9532 = vor.u32 %v9530, %v9528
      %v9534 = vshll.u32 %v9482, 16
      %v9536 = vrot.slane %v9534, 1
      %v9537 = vsel %vm3367, %v9532, %v9536
      %v9538 = vshrl.u32 %v9482, 16
      %v9540 = vor.u32 %v9538, %v9536
      %v9542 = vshll.u32 %v9483, 16
      %v9544 = vrot.slane %v9542, 1
      %v9545 = vsel %vm3367, %v9540, %v9544
      %v9546 = vshrl.u32 %v9483, 16
      %v9548 = vor.u32 %v9546, %v9544
      %v9550 = vshll.u32 %v9484, 16
      %v9552 = vrot.slane %v9550, 1
      %v9553 = vsel %vm3367, %v9548, %v9552
      %v9554 = vshrl.u32 %v9484, 16
      %v9556 = vor.u32 %v9554, %v9552
      %v9558 = vshll.u32 %v9485, 16
      %v9560 = vrot.slane %v9558, 1
      %v9561 = vsel %vm3367, %v9556, %v9560
      %v9562 = vshrl.u32 %v9485, 16
      %v9564 = vor.u32 %v9562, %v9560
      %v9566 = vshll.u32 %v9486, 16
      %v9568 = vrot.slane %v9566, 1
      %v9569 = vsel %vm3367, %v9564, %v9568
      %v9570 = vshrl.u32 %v9486, 16
      %v9572 = vor.u32 %v9570, %v9568
      %v9574 = vshll.u32 %v9487, 16
      %v9576 = vrot.slane %v9574, 1
      %v9577 = vsel %vm3367, %v9572, %v9576
      %v9578 = vshrl.u32 %v9487, 16
      %v9580 = vor.u32 %v9578, %v9576
      %v9582 = vshll.u32 %v9488, 16
      %v9584 = vrot.slane %v9582, 1
      %v9585 = vsel %vm3367, %v9580, %v9584
      %v9586 = vshrl.u32 %v9488, 16
      %v9588 = vor.u32 %v9586, %v9584
      %v9590 = vshll.u32 %v9489, 16
      %v9592 = vrot.slane %v9590, 1
      %v9593 = vsel %vm3367, %v9588, %v9592
      %v9594 = vshrl.u32 %v9489, 16
      %v9596 = vor.u32 %v9594, %v9592
      %v9598 = vshll.u32 %v9490, 16
      %v9600 = vrot.slane %v9598, 1
      %v9601 = vsel %vm3367, %v9596, %v9600
      %v9602 = vshrl.u32 %v9490, 16
      %v9604 = vor.u32 %v9602, %v9600
      %v9606 = vshll.u32 %v9491, 16
      %v9608 = vrot.slane %v9606, 1
      %v9609 = vsel %vm3367, %v9604, %v9608
      %v9610 = vshrl.u32 %v9491, 16
      %v9612 = vor.u32 %v9610, %v9608
      %v9614 = vshll.u32 %v9492, 16
      %v9616 = vrot.slane %v9614, 1
      %v9617 = vsel %vm3367, %v9612, %v9616
      %v9618 = vshrl.u32 %v9492, 16
      %v9620 = vor.u32 %v9618, %v9616
      %v9622 = vshll.u32 %v9493, 16
      %v9624 = vrot.slane %v9622, 1
      %v9625 = vsel %vm3367, %v9620, %v9624
      %v9630 = vunpack.c.l.b16 %v9407
      %v9631 = vunpack.c.l.b16 %v9408
      %v9632 = vunpack.c.l.b16 %v9409
      %v9633 = vunpack.c.l.b16 %v9410
      %v9634 = vpack.c.b16 %v9631, %v9630
      %v9635 = vpack.c.b16 %v9633, %v9632
      %v9639 = vsel %vm6378, %v9505, 0
      %v9642 = vsel %vm6378, %v9513, 0
      %v9645 = vsel %vm6378, %v9521, 0
      %v9648 = vsel %vm6378, %v9529, 0
      %v9651 = vsel %vm6378, %v9537, 0
      %v9654 = vsel %vm6378, %v9545, 0
      %v9657 = vsel %vm6378, %v9553, 0
      %v9660 = vsel %vm6378, %v9561, 0
      %v9663 = vsel %vm6378, %v9569, 0
      %v9666 = vsel %vm6378, %v9577, 0
      %v9669 = vsel %vm6378, %v9585, 0
      %v9672 = vsel %vm6378, %v9593, 0
      %v9675 = vsel %vm6378, %v9601, 0
      %v9678 = vsel %vm6378, %v9609, 0
      %v9681 = vsel %vm6378, %v9617, 0
      %v9684 = vsel %vm6378, %v9625, 0
      %9686 = vmatpush.bf16.msra.mxu0 0
      %9687 = vmatpush.bf16.msra.mxu0 0
      %9688 = vmatpush.bf16.msra.mxu0 0
      %9689 = vmatpush.bf16.msra.mxu0 0
      %9690 = vmatpush.bf16.msra.mxu0 0
      %9691 = vmatpush.bf16.msra.mxu0 0
      %9692 = vmatpush.bf16.msra.mxu0 %v9635
      %9693 = vmatpush.bf16.msra.mxu0 %v9634
      %9694 = vmatmul.bf16.gmra.mxu0 %v9639
      %v9695 = vpop.f32.mrf.mxu0
      %v9696 = vadd.f32 0.0, %v9695
      %v9697 = vpop.f32.mrf.mxu0
      %v9698 = vadd.f32 0.0, %v9697
      %9699 = vmatmul.bf16.gmra.mxu0 %v9642
      %v9700 = vpop.f32.mrf.mxu0
      %v9701 = vadd.f32 0.0, %v9700
      %v9702 = vpop.f32.mrf.mxu0
      %v9703 = vadd.f32 0.0, %v9702
      %9704 = vmatmul.bf16.gmra.mxu0 %v9645
      %v9705 = vpop.f32.mrf.mxu0
      %v9706 = vadd.f32 0.0, %v9705
      %v9707 = vpop.f32.mrf.mxu0
      %v9708 = vadd.f32 0.0, %v9707
      %9709 = vmatmul.bf16.gmra.mxu0 %v9648
      %v9710 = vpop.f32.mrf.mxu0
      %v9711 = vadd.f32 0.0, %v9710
      %v9712 = vpop.f32.mrf.mxu0
      %v9713 = vadd.f32 0.0, %v9712
      %9714 = vmatmul.bf16.gmra.mxu0 %v9651
      %v9715 = vpop.f32.mrf.mxu0
      %v9716 = vadd.f32 0.0, %v9715
      %v9717 = vpop.f32.mrf.mxu0
      %v9718 = vadd.f32 0.0, %v9717
      %9719 = vmatmul.bf16.gmra.mxu0 %v9654
      %v9720 = vpop.f32.mrf.mxu0
      %v9721 = vadd.f32 0.0, %v9720
      %v9722 = vpop.f32.mrf.mxu0
      %v9723 = vadd.f32 0.0, %v9722
      %9724 = vmatmul.bf16.gmra.mxu0 %v9657
      %v9725 = vpop.f32.mrf.mxu0
      %v9726 = vadd.f32 0.0, %v9725
      %v9727 = vpop.f32.mrf.mxu0
      %v9728 = vadd.f32 0.0, %v9727
      %9729 = vmatmul.bf16.gmra.mxu0 %v9660
      %v9730 = vpop.f32.mrf.mxu0
      %v9731 = vadd.f32 0.0, %v9730
      %v9732 = vpop.f32.mrf.mxu0
      %v9733 = vadd.f32 0.0, %v9732
      %9734 = vmatmul.bf16.gmra.mxu0 %v9663
      %v9735 = vpop.f32.mrf.mxu0
      %v9736 = vadd.f32 0.0, %v9735
      %v9737 = vpop.f32.mrf.mxu0
      %v9738 = vadd.f32 0.0, %v9737
      %9739 = vmatmul.bf16.gmra.mxu0 %v9666
      %v9740 = vpop.f32.mrf.mxu0
      %v9741 = vadd.f32 0.0, %v9740
      %v9742 = vpop.f32.mrf.mxu0
      %v9743 = vadd.f32 0.0, %v9742
      %9744 = vmatmul.bf16.gmra.mxu0 %v9669
      %v9745 = vpop.f32.mrf.mxu0
      %v9746 = vadd.f32 0.0, %v9745
      %v9747 = vpop.f32.mrf.mxu0
      %v9748 = vadd.f32 0.0, %v9747
      %9749 = vmatmul.bf16.gmra.mxu0 %v9672
      %v9750 = vpop.f32.mrf.mxu0
      %v9751 = vadd.f32 0.0, %v9750
      %v9752 = vpop.f32.mrf.mxu0
      %v9753 = vadd.f32 0.0, %v9752
      %9754 = vmatmul.bf16.gmra.mxu0 %v9675
      %v9755 = vpop.f32.mrf.mxu0
      %v9756 = vadd.f32 0.0, %v9755
      %v9757 = vpop.f32.mrf.mxu0
      %v9758 = vadd.f32 0.0, %v9757
      %9759 = vmatmul.bf16.gmra.mxu0 %v9678
      %v9760 = vpop.f32.mrf.mxu0
      %v9761 = vadd.f32 0.0, %v9760
      %v9762 = vpop.f32.mrf.mxu0
      %v9763 = vadd.f32 0.0, %v9762
      %9764 = vmatmul.bf16.gmra.mxu0 %v9681
      %v9765 = vpop.f32.mrf.mxu0
      %v9766 = vadd.f32 0.0, %v9765
      %v9767 = vpop.f32.mrf.mxu0
      %v9768 = vadd.f32 0.0, %v9767
      %9769 = vmatmul.bf16.gmra.mxu0 %v9684
      %v9770 = vpop.f32.mrf.mxu0
      %v9771 = vadd.f32 0.0, %v9770
      %v9772 = vpop.f32.mrf.mxu0
      %v9773 = vadd.f32 0.0, %v9772
      %9774 = vdwg.mxu0
      %v9775 = vadd.f32 %v9308, %v9696
      %v9776 = vadd.f32 %v9309, %v9698
      %v9777 = vadd.f32 %v9310, %v9701
      %v9778 = vadd.f32 %v9311, %v9703
      %v9779 = vadd.f32 %v9312, %v9706
      %v9780 = vadd.f32 %v9313, %v9708
      %v9781 = vadd.f32 %v9314, %v9711
      %v9782 = vadd.f32 %v9315, %v9713
      %v9783 = vadd.f32 %v9316, %v9716
      %v9784 = vadd.f32 %v9317, %v9718
      %v9785 = vadd.f32 %v9318, %v9721
      %v9786 = vadd.f32 %v9319, %v9723
      %v9787 = vadd.f32 %v9320, %v9726
      %v9788 = vadd.f32 %v9321, %v9728
      %v9789 = vadd.f32 %v9322, %v9731
      %v9790 = vadd.f32 %v9323, %v9733
      %v9791 = vadd.f32 %v9324, %v9736
      %v9792 = vadd.f32 %v9325, %v9738
      %v9793 = vadd.f32 %v9326, %v9741
      %v9794 = vadd.f32 %v9327, %v9743
      %v9795 = vadd.f32 %v9328, %v9746
      %v9796 = vadd.f32 %v9329, %v9748
      %v9797 = vadd.f32 %v9330, %v9751
      %v9798 = vadd.f32 %v9331, %v9753
      %v9799 = vadd.f32 %v9332, %v9756
      %v9800 = vadd.f32 %v9333, %v9758
      %v9801 = vadd.f32 %v9334, %v9761
      %v9802 = vadd.f32 %v9335, %v9763
      %v9803 = vadd.f32 %v9336, %v9766
      %v9804 = vadd.f32 %v9337, %v9768
      %v9805 = vadd.f32 %v9338, %v9771
      %v9806 = vadd.f32 %v9339, %v9773
      %v9807 = vld [vmem:[%s6] sm:$0x1]
      %v9809 = vperm.slane %v9807, 0
      %v9811 = vadd.f32 %v9775, %v9809
      %v9812 = vadd.f32 %v9776, %v9809
      %v9813 = vadd.f32 %v9777, %v9809
      %v9814 = vadd.f32 %v9778, %v9809
      %v9815 = vadd.f32 %v9779, %v9809
      %v9816 = vadd.f32 %v9780, %v9809
      %v9817 = vadd.f32 %v9781, %v9809
      %v9818 = vadd.f32 %v9782, %v9809
      %v9819 = vadd.f32 %v9783, %v9809
      %v9820 = vadd.f32 %v9784, %v9809
      %v9821 = vadd.f32 %v9785, %v9809
      %v9822 = vadd.f32 %v9786, %v9809
      %v9823 = vadd.f32 %v9787, %v9809
      %v9824 = vadd.f32 %v9788, %v9809
      %v9825 = vadd.f32 %v9789, %v9809
      %v9826 = vadd.f32 %v9790, %v9809
      %v9827 = vadd.f32 %v9791, %v9809
      %v9828 = vadd.f32 %v9792, %v9809
      %v9829 = vadd.f32 %v9793, %v9809
      %v9830 = vadd.f32 %v9794, %v9809
      %v9831 = vadd.f32 %v9795, %v9809
      %v9832 = vadd.f32 %v9796, %v9809
      %v9833 = vadd.f32 %v9797, %v9809
      %v9834 = vadd.f32 %v9798, %v9809
      %v9835 = vadd.f32 %v9799, %v9809
      %v9836 = vadd.f32 %v9800, %v9809
      %v9837 = vadd.f32 %v9801, %v9809
      %v9838 = vadd.f32 %v9802, %v9809
      %v9839 = vadd.f32 %v9803, %v9809
      %v9840 = vadd.f32 %v9804, %v9809
      %v9841 = vadd.f32 %v9805, %v9809
      %v9842 = vadd.f32 %v9806, %v9809
      %v9843 = vmax.f32 %v9811, 0.0
      %v9844 = vmax.f32 %v9812, 0.0
      %v9845 = vmax.f32 %v9813, 0.0
      %v9846 = vmax.f32 %v9814, 0.0
      %v9847 = vmax.f32 %v9815, 0.0
      %v9848 = vmax.f32 %v9816, 0.0
      %v9849 = vmax.f32 %v9817, 0.0
      %v9850 = vmax.f32 %v9818, 0.0
      %v9851 = vmax.f32 %v9819, 0.0
      %v9852 = vmax.f32 %v9820, 0.0
      %v9853 = vmax.f32 %v9821, 0.0
      %v9854 = vmax.f32 %v9822, 0.0
      %v9855 = vmax.f32 %v9823, 0.0
      %v9856 = vmax.f32 %v9824, 0.0
      %v9857 = vmax.f32 %v9825, 0.0
      %v9858 = vmax.f32 %v9826, 0.0
      %v9859 = vmax.f32 %v9827, 0.0
      %v9860 = vmax.f32 %v9828, 0.0
      %v9861 = vmax.f32 %v9829, 0.0
      %v9862 = vmax.f32 %v9830, 0.0
      %v9863 = vmax.f32 %v9831, 0.0
      %v9864 = vmax.f32 %v9832, 0.0
      %v9865 = vmax.f32 %v9833, 0.0
      %v9866 = vmax.f32 %v9834, 0.0
      %v9867 = vmax.f32 %v9835, 0.0
      %v9868 = vmax.f32 %v9836, 0.0
      %v9869 = vmax.f32 %v9837, 0.0
      %v9870 = vmax.f32 %v9838, 0.0
      %v9871 = vmax.f32 %v9839, 0.0
      %v9872 = vmax.f32 %v9840, 0.0
      %v9873 = vmax.f32 %v9841, 0.0
      %v9874 = vmax.f32 %v9842, 0.0
      %v9875 = vpack.c.bf16 %v9844, %v9843
      %v9876 = vpack.c.bf16 %v9846, %v9845
      %v9877 = vpack.c.bf16 %v9848, %v9847
      %v9878 = vpack.c.bf16 %v9850, %v9849
      %v9879 = vpack.c.bf16 %v9852, %v9851
      %v9880 = vpack.c.bf16 %v9854, %v9853
      %v9881 = vpack.c.bf16 %v9856, %v9855
      %v9882 = vpack.c.bf16 %v9858, %v9857
      %v9883 = vpack.c.bf16 %v9860, %v9859
      %v9884 = vpack.c.bf16 %v9862, %v9861
      %v9885 = vpack.c.bf16 %v9864, %v9863
      %v9886 = vpack.c.bf16 %v9866, %v9865
      %v9887 = vpack.c.bf16 %v9868, %v9867
      %v9888 = vpack.c.bf16 %v9870, %v9869
      %v9889 = vpack.c.bf16 %v9872, %v9871
      %v9890 = vpack.c.bf16 %v9874, %v9873
      %v9891 = vld [vmem:[%s7] sm:$0xf]
      %v9892 = vld [vmem:[%s7 + $0x4] sm:$0xf]
      %v9893 = vld [vmem:[%s7 + $0x8] sm:$0xf]
      %v9894 = vld [vmem:[%s7 + $0xc] sm:$0xf]
      %v9895 = vld [vmem:[%s8] sm:$0x1]
      %v9897 = vperm.slane %v9895, 0
      %v9903 = vunpack.c.l.b16 %v9891
      %v9904 = vunpack.c.l.b16 %v9892
      %v9905 = vunpack.c.l.b16 %v9893
      %v9906 = vunpack.c.l.b16 %v9894
      %v9907 = vpack.c.b16 %v9904, %v9903
      %v9908 = vpack.c.b16 %v9906, %v9905
      %v9912 = vsel %vm6378, %v9875, 0
      %v9915 = vsel %vm6378, %v9876, 0
      %v9918 = vsel %vm6378, %v9877, 0
      %v9921 = vsel %vm6378, %v9878, 0
      %v9924 = vsel %vm6378, %v9879, 0
      %v9927 = vsel %vm6378, %v9880, 0
      %v9930 = vsel %vm6378, %v9881, 0
      %v9933 = vsel %vm6378, %v9882, 0
      %v9936 = vsel %vm6378, %v9883, 0
      %v9939 = vsel %vm6378, %v9884, 0
      %v9942 = vsel %vm6378, %v9885, 0
      %v9945 = vsel %vm6378, %v9886, 0
      %v9948 = vsel %vm6378, %v9887, 0
      %v9951 = vsel %vm6378, %v9888, 0
      %v9954 = vsel %vm6378, %v9889, 0
      %v9957 = vsel %vm6378, %v9890, 0
      %9959 = vmatpush.bf16.msra.mxu0 0
      %9960 = vmatpush.bf16.msra.mxu0 0
      %9961 = vmatpush.bf16.msra.mxu0 0
      %9962 = vmatpush.bf16.msra.mxu0 0
      %9963 = vmatpush.bf16.msra.mxu0 0
      %9964 = vmatpush.bf16.msra.mxu0 0
      %9965 = vmatpush.bf16.msra.mxu0 %v9908
      %9966 = vmatpush.bf16.msra.mxu0 %v9907
      %9967 = vmatmul.bf16.gmra.mxu0 %v9912
      %v9968 = vpop.f32.mrf.mxu0
      %v9969 = vadd.f32 %v9897, %v9968
      %v9970 = vpop.f32.mrf.mxu0
      %v9971 = vadd.f32 %v9897, %v9970
      %9972 = vmatmul.bf16.gmra.mxu0 %v9915
      %v9973 = vpop.f32.mrf.mxu0
      %v9974 = vadd.f32 %v9897, %v9973
      %v9975 = vpop.f32.mrf.mxu0
      %v9976 = vadd.f32 %v9897, %v9975
      %9977 = vmatmul.bf16.gmra.mxu0 %v9918
      %v9978 = vpop.f32.mrf.mxu0
      %v9979 = vadd.f32 %v9897, %v9978
      %v9980 = vpop.f32.mrf.mxu0
      %v9981 = vadd.f32 %v9897, %v9980
      %9982 = vmatmul.bf16.gmra.mxu0 %v9921
      %v9983 = vpop.f32.mrf.mxu0
      %v9984 = vadd.f32 %v9897, %v9983
      %v9985 = vpop.f32.mrf.mxu0
      %v9986 = vadd.f32 %v9897, %v9985
      %9987 = vmatmul.bf16.gmra.mxu0 %v9924
      %v9988 = vpop.f32.mrf.mxu0
      %v9989 = vadd.f32 %v9897, %v9988
      %v9990 = vpop.f32.mrf.mxu0
      %v9991 = vadd.f32 %v9897, %v9990
      %9992 = vmatmul.bf16.gmra.mxu0 %v9927
      %v9993 = vpop.f32.mrf.mxu0
      %v9994 = vadd.f32 %v9897, %v9993
      %v9995 = vpop.f32.mrf.mxu0
      %v9996 = vadd.f32 %v9897, %v9995
      %9997 = vmatmul.bf16.gmra.mxu0 %v9930
      %v9998 = vpop.f32.mrf.mxu0
      %v9999 = vadd.f32 %v9897, %v9998
      %v10000 = vpop.f32.mrf.mxu0
      %v10001 = vadd.f32 %v9897, %v10000
      %10002 = vmatmul.bf16.gmra.mxu0 %v9933
      %v10003 = vpop.f32.mrf.mxu0
      %v10004 = vadd.f32 %v9897, %v10003
      %v10005 = vpop.f32.mrf.mxu0
      %v10006 = vadd.f32 %v9897, %v10005
      %10007 = vmatmul.bf16.gmra.mxu0 %v9936
      %v10008 = vpop.f32.mrf.mxu0
      %v10009 = vadd.f32 %v9897, %v10008
      %v10010 = vpop.f32.mrf.mxu0
      %v10011 = vadd.f32 %v9897, %v10010
      %10012 = vmatmul.bf16.gmra.mxu0 %v9939
      %v10013 = vpop.f32.mrf.mxu0
      %v10014 = vadd.f32 %v9897, %v10013
      %v10015 = vpop.f32.mrf.mxu0
      %v10016 = vadd.f32 %v9897, %v10015
      %10017 = vmatmul.bf16.gmra.mxu0 %v9942
      %v10018 = vpop.f32.mrf.mxu0
      %v10019 = vadd.f32 %v9897, %v10018
      %v10020 = vpop.f32.mrf.mxu0
      %v10021 = vadd.f32 %v9897, %v10020
      %10022 = vmatmul.bf16.gmra.mxu0 %v9945
      %v10023 = vpop.f32.mrf.mxu0
      %v10024 = vadd.f32 %v9897, %v10023
      %v10025 = vpop.f32.mrf.mxu0
      %v10026 = vadd.f32 %v9897, %v10025
      %10027 = vmatmul.bf16.gmra.mxu0 %v9948
      %v10028 = vpop.f32.mrf.mxu0
      %v10029 = vadd.f32 %v9897, %v10028
      %v10030 = vpop.f32.mrf.mxu0
      %v10031 = vadd.f32 %v9897, %v10030
      %10032 = vmatmul.bf16.gmra.mxu0 %v9951
      %v10033 = vpop.f32.mrf.mxu0
      %v10034 = vadd.f32 %v9897, %v10033
      %v10035 = vpop.f32.mrf.mxu0
      %v10036 = vadd.f32 %v9897, %v10035
      %10037 = vmatmul.bf16.gmra.mxu0 %v9954
      %v10038 = vpop.f32.mrf.mxu0
      %v10039 = vadd.f32 %v9897, %v10038
      %v10040 = vpop.f32.mrf.mxu0
      %v10041 = vadd.f32 %v9897, %v10040
      %10042 = vmatmul.bf16.gmra.mxu0 %v9957
      %v10043 = vpop.f32.mrf.mxu0
      %v10044 = vadd.f32 %v9897, %v10043
      %v10045 = vpop.f32.mrf.mxu0
      %v10046 = vadd.f32 %v9897, %v10045
      %10047 = vdwg.mxu0
      %10048 = vst [vmem:[%s332] sm:$0xff] %v9969
      %10049 = vst [vmem:[%s332 + $0x8] sm:$0xff] %v9971
      %10050 = vst [vmem:[%s332 + $0x10] sm:$0xff] %v9974
      %10051 = vst [vmem:[%s332 + $0x18] sm:$0xff] %v9976
      %10052 = vst [vmem:[%s332 + $0x20] sm:$0xff] %v9979
      %10053 = vst [vmem:[%s332 + $0x28] sm:$0xff] %v9981
      %10054 = vst [vmem:[%s332 + $0x30] sm:$0xff] %v9984
      %10055 = vst [vmem:[%s332 + $0x38] sm:$0xff] %v9986
      %10056 = vst [vmem:[%s332 + $0x40] sm:$0xff] %v9989
      %10057 = vst [vmem:[%s332 + $0x48] sm:$0xff] %v9991
      %10058 = vst [vmem:[%s332 + $0x50] sm:$0xff] %v9994
      %10059 = vst [vmem:[%s332 + $0x58] sm:$0xff] %v9996
      %10060 = vst [vmem:[%s332 + $0x60] sm:$0xff] %v9999
      %10061 = vst [vmem:[%s332 + $0x68] sm:$0xff] %v10001
      %10062 = vst [vmem:[%s332 + $0x70] sm:$0xff] %v10004
      %10063 = vst [vmem:[%s332 + $0x78] sm:$0xff] %v10006
      %10064 = vst [vmem:[%s332 + $0x80] sm:$0xff] %v10009
      %10065 = vst [vmem:[%s332 + $0x88] sm:$0xff] %v10011
      %10066 = vst [vmem:[%s332 + $0x90] sm:$0xff] %v10014
      %10067 = vst [vmem:[%s332 + $0x98] sm:$0xff] %v10016
      %10068 = vst [vmem:[%s332 + $0xa0] sm:$0xff] %v10019
      %10069 = vst [vmem:[%s332 + $0xa8] sm:$0xff] %v10021
      %10070 = vst [vmem:[%s332 + $0xb0] sm:$0xff] %v10024
      %10071 = vst [vmem:[%s332 + $0xb8] sm:$0xff] %v10026
      %10072 = vst [vmem:[%s332 + $0xc0] sm:$0xff] %v10029
      %10073 = vst [vmem:[%s332 + $0xc8] sm:$0xff] %v10031
      %10074 = vst [vmem:[%s332 + $0xd0] sm:$0xff] %v10034
      %10075 = vst [vmem:[%s332 + $0xd8] sm:$0xff] %v10036
      %10076 = vst [vmem:[%s332 + $0xe0] sm:$0xff] %v10039
      %10077 = vst [vmem:[%s332 + $0xe8] sm:$0xff] %v10041
      %10078 = vst [vmem:[%s332 + $0xf0] sm:$0xff] %v10044
      %10079 = vst [vmem:[%s332 + $0xf8] sm:$0xff] %v10046
      %p10080 = scmp.lt.s32.totalorder %s20, 1
      %s10081 = scalar_select %p10080, %s20, 1
      %s10082 = smul.addr %s10081, 32
      %s10083 = smul.addr %s10082, 8
      %s10084 = scalar_lea.vmem %s9, %s10083
      // Predicated region
      $region57: #{proposal_network_forward.2} parent=55 // pred_check
        %p10085 = pneg %p232
      $region58: #{proposal_network_forward.2} parent=55 // pred_check_branch
        %10087 = sbr.rel (%p10085) target = $region60
      $region59: #{proposal_network_forward.2} parent=55 // pred_region
        _
      $region60: #{proposal_network_forward.2} parent=55 // pred_fallthru
        _
    $region56: #{proposal_network_forward.2} parent=5 // pred_fallthru
      _
    %p10088 = scmp.le.s32.totalorder 2, %s15
    // Predicated region
    $region61: #{proposal_network_forward.2} parent=5 // pred_check
      %p10089 = pneg %p10088
    $region62: #{proposal_network_forward.2} parent=5 // pred_check_branch
      %10091 = sbr.rel (%p10089) target = $region64
    $region63: #{proposal_network_forward.2} parent=5 // pred_region
      %s10092 = ssub.s32 %s15, 2
      // Predicated region
      $region65: #{proposal_network_forward.2} parent=63 // pred_check
        %p10093 = pneg %p238
      $region66: #{proposal_network_forward.2} parent=63 // pred_check_branch
        %10095 = sbr.rel (%p10093) target = $region68
      $region67: #{proposal_network_forward.2} parent=63 // pred_region
        %p10096 = scmp.lt.s32.totalorder %s21, 1
        %s10097 = scalar_select %p10096, %s21, 1
        %s10098 = smul.addr %s10097, 32
        %s10099 = smul.addr %s10098, 8
        %s10100 = scalar_lea.vmem %s9, %s10099
      $region68: #{proposal_network_forward.2} parent=63 // pred_fallthru
        _
    $region64: #{proposal_network_forward.2} parent=5 // pred_fallthru
      _
  $region6: #{proposal_network_forward.2} parent=0 // loop_footer
    %s19 = sadd.s32 1, %s15
  $region7: #{proposal_network_forward.2} parent=0 // loop_footer_branch
    %14 = sbr.rel target = $region3
  $region8: #{proposal_network_forward.2} parent=0 // loop_exit
    _

</llo_original>
